<compile_context>
chip_gen: v7x
topology: tpu7x:2x2x1
jax: 0.10.0
libtpu: 0.0.40
codegen_flags: <defaults>
</compile_context>

<pallas_src>
import jax
import jax.numpy as jnp
from jax import lax
from jax.experimental import pallas as pl
from jax.experimental.pallas import tpu as pltpu


# --------------------------------------------------------------------------
# In-kernel building block: conv3x3(SAME) -> maxpool 2x2/s2 -> +bias -> ReLU
# --------------------------------------------------------------------------
def _conv3x3_pool_relu(x, pad_ref, col_ref, w_ref, b_ref):
    """x:       (BB, H, W, Cin)   f32 activation (value), sub-batch folded into M.
       pad_ref: (BB, H+2, W+2, Cin) bf16 VMEM scratch (zero border, activation interior).
       col_ref: (BB*H*W, 9*Cin)   bf16 VMEM im2col scratch (tap-major columns).
       w_ref:   (9*Cin, Cout)     bf16 weights, tap-major rows (matches col layout).
       b_ref:   (1, Cout)         f32 bias.
       returns  (BB, H//2, W//2, Cout) f32."""
    BB, Hl, Wl, Cin = x.shape
    Cout = w_ref.shape[-1]
    Hp, Wp = Hl + 2, Wl + 2
    Hh, Wh = Hl // 2, Wl // 2
    M = BB * Hl * Wl
    bf16 = jnp.bfloat16

    # Zero only the 1-pixel border (the interior is fully overwritten right below).
    # Runs every grid step on purpose: scratch is per-core under "parallel" semantics.
    pad_ref[:, 0:1, :, :] = jnp.zeros((BB, 1, Wp, Cin), bf16)
    pad_ref[:, Hp - 1:Hp, :, :] = jnp.zeros((BB, 1, Wp, Cin), bf16)
    pad_ref[:, :, 0:1, :] = jnp.zeros((BB, Hp, 1, Cin), bf16)
    pad_ref[:, :, Wp - 1:Wp, :] = jnp.zeros((BB, Hp, 1, Cin), bf16)
    pad_ref[:, 1:Hl + 1, 1:Wl + 1, :] = x.astype(bf16)

    # im2col: fold the 9 taps into the contraction (K = 9*Cin) -> ONE MXU dot per layer.
    for t in range(9):
        dy, dx = t // 3, t % 3
        col_ref[:, t * Cin:(t + 1) * Cin] = (
            pad_ref[:, dy:dy + Hl, dx:dx + Wl, :].reshape(M, Cin))
    # TODO(synk): for spectrograms past ~32x32, tile this dot over row blocks of M so the
    # live f32 accumulator stays within a few vregs instead of spilling.
    acc = jnp.dot(col_ref[...], w_ref[...],
                  preferred_element_type=jnp.float32)          # (M, Cout) f32

    # 2x2 / stride-2 max-pool on the raw conv output, then bias + ReLU once (exact:
    # per-channel bias-add and ReLU are monotone and commute with max).
    # TODO(synk): switch to the fully lane-dense (M//2, 2*Cout) packed pool once Mosaic
    # lane-merging reshape support is confirmed on all target generations.
    r3 = acc.reshape(BB * Hl * Wh, 2, Cout)
    wmax = jnp.maximum(r3[:, 0, :], r3[:, 1, :])               # pool along W
    r4 = wmax.reshape(BB * Hh, 2, Wh, Cout)
    hmax = jnp.maximum(r4[:, 0, :, :], r4[:, 1, :, :])         # pool along H
    out = jnp.maximum(hmax + b_ref[...], 0.0)                  # (BB*Hh, Wh, Cout) f32
    return out.reshape(BB, Hh, Wh, Cout)


# --------------------------------------------------------------------------
# Fused whole-network kernel (one batch block per grid step)
# --------------------------------------------------------------------------
def _audio_cnn_kernel(x_ref, w1_ref, b1_ref, w2_ref, b2_ref, w3_ref, b3_ref,
                      wf1_ref, bf1_ref, wf2_ref, bf2_ref, o_ref,
                      pad1_ref, col1_ref, pad2_ref, col2_ref, pad3_ref, col3_ref,
                      feat_ref):
    a1 = _conv3x3_pool_relu(x_ref[...], pad1_ref, col1_ref, w1_ref, b1_ref)
    a2 = _conv3x3_pool_relu(a1, pad2_ref, col2_ref, w2_ref, b2_ref)
    a3 = _conv3x3_pool_relu(a2, pad3_ref, col3_ref, w3_ref, b3_ref)
    BB, H3, W3, C3 = a3.shape

    # NHWC flatten of a3 into one lane-dense bf16 feature row per example.  fc1 weights
    # were pre-permuted (prepare_params) so this matches torch's (C,H,W) flatten order.
    a3_b = a3.astype(jnp.bfloat16)
    for hh in range(H3):
        for wh in range(W3):
            s = hh * W3 + wh
            feat_ref[:, s * C3:(s + 1) * C3] = a3_b[:, hh, wh, :]

    # fc1 -> ReLU -> fc2 as two MXU dots with M = BB (single dot replaces the old
    # unrolled per-row fc1 accumulation chain).
    h = jnp.dot(feat_ref[...], wf1_ref[...], preferred_element_type=jnp.float32)
    h = jnp.maximum(h + bf1_ref[...], 0.0).astype(jnp.bfloat16)
    out = jnp.dot(h, wf2_ref[...], preferred_element_type=jnp.float32) + bf2_ref[...]
    o_ref[...] = out[:, None, :]


def audio_cnn_forward_fn(x_nchw, kp, *, batch_block=None):
    B, C, H, W = x_nchw.shape
    assert C == 1 and H % 8 == 0 and W % 8 == 0, (
        "AudioCNN Pallas kernel expects 1 input channel and H, W divisible by 8")
    if batch_block is None:
        # Default: at most two grid steps so both v7x TensorCores get work; any extra
        # batch is folded into the matmul M dimension.  On single-TC v5e/v6e, pass
        # batch_block=B to run the entire batch in one grid step.
        batch_block = B // 2 if (B >= 2 and B % 2 == 0) else 1
    assert B % batch_block == 0
    num_blocks = B // batch_block
    BBlk = batch_block

    x = x_nchw.reshape(B, H, W, 1)                    # NCHW -> NHWC (C == 1: free relabel)
    c1 = kp["w1"].shape[-1]
    c2 = kp["w2"].shape[-1]
    c3 = kp["w3"].shape[-1]
    k1, k2, k3 = kp["w1"].shape[0], kp["w2"].shape[0], kp["w3"].shape[0]
    hid = kp["fc1_w"].shape[-1]
    NC = kp["fc2_w"].shape[-1]
    H2, W2, H4, W4 = H // 2, W // 2, H // 4, W // 4
    S3 = (H // 8) * (W // 8)

    out = pl.pallas_call(
        _audio_cnn_kernel,
        out_shape=jax.ShapeDtypeStruct((B, 1, NC), jnp.float32),
        grid=(num_blocks,),
        in_specs=[
            pl.BlockSpec((BBlk, H, W, 1), lambda i: (i, 0, 0, 0)),
            pl.BlockSpec((k1, c1), lambda i: (0, 0)),
            pl.BlockSpec((1, c1), lambda i: (0, 0)),
            pl.BlockSpec((k2, c2), lambda i: (0, 0)),
            pl.BlockSpec((1, c2), lambda i: (0, 0)),
            pl.BlockSpec((k3, c3), lambda i: (0, 0)),
            pl.BlockSpec((1, c3), lambda i: (0, 0)),
            pl.BlockSpec((S3 * c3, hid), lambda i: (0, 0)),
            pl.BlockSpec((1, hid), lambda i: (0, 0)),
            pl.BlockSpec((hid, NC), lambda i: (0, 0)),
            pl.BlockSpec((1, NC), lambda i: (0, 0)),
        ],
        out_specs=pl.BlockSpec((BBlk, 1, NC), lambda i: (i, 0, 0)),
        scratch_shapes=[
            pltpu.VMEM((BBlk, H + 2, W + 2, 1), jnp.bfloat16),        # pad1
            pltpu.VMEM((BBlk * H * W, 9), jnp.bfloat16),              # im2col 1
            pltpu.VMEM((BBlk, H2 + 2, W2 + 2, c1), jnp.bfloat16),     # pad2
            pltpu.VMEM((BBlk * H2 * W2, 9 * c1), jnp.bfloat16),       # im2col 2
            pltpu.VMEM((BBlk, H4 + 2, W4 + 2, c2), jnp.bfloat16),     # pad3
            pltpu.VMEM((BBlk * H4 * W4, 9 * c2), jnp.bfloat16),       # im2col 3
            pltpu.VMEM((BBlk, S3 * c3), jnp.bfloat16),                # fc1 feature row
        ],
        compiler_params=pltpu.CompilerParams(
            dimension_semantics=("parallel",),
            vmem_limit_bytes=32 * 1024 * 1024,
        ),
        # TODO(synk): for large spectrograms on v7x (64 MiB VMEM) single-buffer the
        # grid-invariant weight specs (pipeline_mode=pl.Buffered(1)) to avoid
        # double-buffering fc1_w.
    )(x, kp["w1"], kp["b1"], kp["w2"], kp["b2"], kp["w3"], kp["b3"],
      kp["fc1_w"], kp["fc1_b"], kp["fc2_w"], kp["fc2_b"])
    return out.reshape(B, NC)


audio_cnn_forward = jax.jit(audio_cnn_forward_fn, static_argnames=("batch_block",))


# --------------------------------------------------------------------------
# Parameters (deterministic synthetic init; fc1 lazy-init resolved statically)
# --------------------------------------------------------------------------
def init_params(key, height, width, num_classes):
    ks = jax.random.split(key, 10)

    def nrm(k, shape, scale):
        return scale * jax.random.normal(k, shape, jnp.float32)

    feat = 64 * (height // 8) * (width // 8)   # fc1_input_features after 3 pools
    return {
        "w1": nrm(ks[0], (3, 3, 1, 16), 0.2),  "b1": nrm(ks[1], (16,), 0.1),
        "w2": nrm(ks[2], (3, 3, 16, 32), 0.1), "b2": nrm(ks[3], (32,), 0.1),
        "w3": nrm(ks[4], (3, 3, 32, 64), 0.1), "b3": nrm(ks[5], (64,), 0.1),
        "fc1_w": nrm(ks[6], (feat, 128), 0.05), "fc1_b": nrm(ks[7], (128,), 0.05),
        "fc2_w": nrm(ks[8], (128, num_classes), 0.05),
        "fc2_b": nrm(ks[9], (num_classes,), 0.05),
    }


def prepare_params(params, height, width):
    """One-time repack of the raw (torch-layout) params into kernel layout: bf16 weights,
    tap-major (9*Cin, Cout) conv weights matching the im2col columns, fc1 rows permuted
    from torch's (C,H,W) flatten to the kernel's NHWC flatten."""
    H3, W3 = height // 8, width // 8
    c3 = params["w3"].shape[-1]
    hid = params["fc1_w"].shape[-1]

    def conv_w(w):                               # (3,3,Cin,Cout) -> (9*Cin, Cout) bf16
        kh, kw, cin, cout = w.shape
        return w.reshape(kh * kw * cin, cout).astype(jnp.bfloat16)

    # torch flatten row index c*H3*W3 + h*W3 + w  ->  NHWC index (h*W3 + w)*c3 + c
    fc1 = params["fc1_w"].reshape(c3, H3, W3, hid).transpose(1, 2, 0, 3)
    fc1 = fc1.reshape(H3 * W3 * c3, hid).astype(jnp.bfloat16)
    return {
        "w1": conv_w(params["w1"]), "b1": params["b1"].reshape(1, -1),
        "w2": conv_w(params["w2"]), "b2": params["b2"].reshape(1, -1),
        "w3": conv_w(params["w3"]), "b3": params["b3"].reshape(1, -1),
        "fc1_w": fc1, "fc1_b": params["fc1_b"].reshape(1, -1),
        "fc2_w": params["fc2_w"].astype(jnp.bfloat16),
        "fc2_b": params["fc2_b"].reshape(1, -1),
    }


# --------------------------------------------------------------------------
# Pure-JAX reference (same bf16 weight/activation rounding; sanity check only)
# --------------------------------------------------------------------------
def reference_forward(x_nchw, params):
    f32 = jnp.float32
    x = jnp.transpose(x_nchw, (0, 2, 3, 1))
    convs = ((params["w1"], params["b1"]), (params["w2"], params["b2"]),
             (params["w3"], params["b3"]))
    for w, b in convs:
        y = lax.conv_general_dilated(
            x.astype(jnp.bfloat16), w.astype(jnp.bfloat16),
            window_strides=(1, 1), padding="SAME",
            dimension_numbers=("NHWC", "HWIO", "NHWC"),
            preferred_element_type=f32, precision=lax.Precision.HIGHEST)
        y = jnp.maximum(y + b, 0.0)
        x = lax.reduce_window(y, -jnp.inf, lax.max, (1, 2, 2, 1), (1, 2, 2, 1), "VALID")
    B = x.shape[0]
    x = jnp.transpose(x, (0, 3, 1, 2)).reshape(B, -1)        # torch-style (C,H,W) flatten
    h = jnp.dot(x.astype(jnp.bfloat16), params["fc1_w"].astype(jnp.bfloat16),
                preferred_element_type=f32, precision=lax.Precision.HIGHEST)
    h = jnp.maximum(h + params["fc1_b"], 0.0)
    out = jnp.dot(h.astype(jnp.bfloat16), params["fc2_w"].astype(jnp.bfloat16),
                  preferred_element_type=f32, precision=lax.Precision.HIGHEST)
    return out + params["fc2_b"]


if __name__ == "__main__":
    key = jax.random.PRNGKey(0)
    k_x, k_p = jax.random.split(key)
    B, H, W = 2, 16, 16
    num_classes = 10

    x = jax.random.normal(k_x, (B, 1, H, W), jnp.float32)    # NCHW, like PyTorch
    params = init_params(k_p, H, W, num_classes)
    kparams = prepare_params(params, H, W)

    out = audio_cnn_forward(x, kparams)
    out = jax.block_until_ready(out)
    assert out.shape == (B, num_classes)

    ref = reference_forward(x, params)
    err = jnp.max(jnp.abs(out - ref))
    assert jnp.allclose(out, ref, atol=1e-2, rtol=1e-2), (
        "mismatch vs JAX reference, max abs err = %s" % err)

    print("KERNEL_OK")
</pallas_src>

<mosaic_0001>
module attributes {stable_mosaic.version = 11 : i64} {
  func.func @_audio_cnn_kernel(%arg0: i32, %arg1: memref<1x16x16x1xf32, #tpu.memory_space<vmem>>, %arg2: memref<9x16xbf16, #tpu.memory_space<vmem>>, %arg3: memref<1x16xf32, #tpu.memory_space<vmem>>, %arg4: memref<144x32xbf16, #tpu.memory_space<vmem>>, %arg5: memref<1x32xf32, #tpu.memory_space<vmem>>, %arg6: memref<288x64xbf16, #tpu.memory_space<vmem>>, %arg7: memref<1x64xf32, #tpu.memory_space<vmem>>, %arg8: memref<256x128xbf16, #tpu.memory_space<vmem>>, %arg9: memref<1x128xf32, #tpu.memory_space<vmem>>, %arg10: memref<128x10xbf16, #tpu.memory_space<vmem>>, %arg11: memref<1x10xf32, #tpu.memory_space<vmem>>, %arg12: memref<1x1x10xf32, #tpu.memory_space<vmem>>, %arg13: memref<1x18x18x1xbf16, #tpu.memory_space<vmem>>, %arg14: memref<256x9xbf16, #tpu.memory_space<vmem>>, %arg15: memref<1x10x10x16xbf16, #tpu.memory_space<vmem>>, %arg16: memref<64x144xbf16, #tpu.memory_space<vmem>>, %arg17: memref<1x6x6x32xbf16, #tpu.memory_space<vmem>>, %arg18: memref<16x288xbf16, #tpu.memory_space<vmem>>, %arg19: memref<1x256xbf16, #tpu.memory_space<vmem>>) attributes {dimension_semantics = [#tpu.dimension_semantics<parallel>], iteration_bounds = array<i64: 2>, scalar_prefetch = 0 : i64, scratch_operands = 7 : i64, tpu.core_type = #tpu.core_type<tc>, window_params = [{transform_indices = @transform_0, window_bounds = array<i64: 1, 16, 16, 1>}, {pipeline_mode = #tpu.pipeline_mode<synchronous>, transform_indices = @transform_1, window_bounds = array<i64: 9, 16>}, {pipeline_mode = #tpu.pipeline_mode<synchronous>, transform_indices = @transform_2, window_bounds = array<i64: 1, 16>}, {pipeline_mode = #tpu.pipeline_mode<synchronous>, transform_indices = @transform_3, window_bounds = array<i64: 144, 32>}, {pipeline_mode = #tpu.pipeline_mode<synchronous>, transform_indices = @transform_4, window_bounds = array<i64: 1, 32>}, {pipeline_mode = #tpu.pipeline_mode<synchronous>, transform_indices = @transform_5, window_bounds = array<i64: 288, 64>}, {pipeline_mode = #tpu.pipeline_mode<synchronous>, transform_indices = @transform_6, window_bounds = array<i64: 1, 64>}, {pipeline_mode = #tpu.pipeline_mode<synchronous>, transform_indices = @transform_7, window_bounds = array<i64: 256, 128>}, {pipeline_mode = #tpu.pipeline_mode<synchronous>, transform_indices = @transform_8, window_bounds = array<i64: 1, 128>}, {pipeline_mode = #tpu.pipeline_mode<synchronous>, transform_indices = @transform_9, window_bounds = array<i64: 128, 10>}, {pipeline_mode = #tpu.pipeline_mode<synchronous>, transform_indices = @transform_10, window_bounds = array<i64: 1, 10>}, {transform_indices = @transform_11, window_bounds = array<i64: 1, 1, 10>}]} {
    %c0 = arith.constant 0 : index
    %c0_0 = arith.constant 0 : index
    %c0_1 = arith.constant 0 : index
    %c0_2 = arith.constant 0 : index
    %0 = vector.load %arg1[%c0, %c0_0, %c0_1, %c0_2] : memref<1x16x16x1xf32, #tpu.memory_space<vmem>>, vector<1x16x16x1xf32>
    %cst = arith.constant 0.000000e+00 : bf16
    %1 = vector.broadcast %cst : bf16 to vector<1x1x18x1xbf16>
    %c0_3 = arith.constant 0 : index
    %c0_4 = arith.constant 0 : index
    %c0_5 = arith.constant 0 : index
    %c0_6 = arith.constant 0 : index
    %2 = vector.load %arg13[%c0_3, %c0_4, %c0_5, %c0_6] : memref<1x18x18x1xbf16, #tpu.memory_space<vmem>>, vector<1x1x18x1xbf16>
    tpu.vector_store %arg13[%c0_3, %c0_4, %c0_5, %c0_6], %1 {strides = array<i32>} : memref<1x18x18x1xbf16, #tpu.memory_space<vmem>>, vector<1x1x18x1xbf16>,
    %cst_7 = arith.constant 0.000000e+00 : bf16
    %3 = vector.broadcast %cst_7 : bf16 to vector<1x1x18x1xbf16>
    %c0_8 = arith.constant 0 : index
    %c17 = arith.constant 17 : index
    %c0_9 = arith.constant 0 : index
    %c0_10 = arith.constant 0 : index
    %4 = vector.load %arg13[%c0_8, %c17, %c0_9, %c0_10] : memref<1x18x18x1xbf16, #tpu.memory_space<vmem>>, vector<1x1x18x1xbf16>
    tpu.vector_store %arg13[%c0_8, %c17, %c0_9, %c0_10], %3 {strides = array<i32>} : memref<1x18x18x1xbf16, #tpu.memory_space<vmem>>, vector<1x1x18x1xbf16>,
    %cst_11 = arith.constant 0.000000e+00 : bf16
    %5 = vector.broadcast %cst_11 : bf16 to vector<1x18x1x1xbf16>
    %c0_12 = arith.constant 0 : index
    %c0_13 = arith.constant 0 : index
    %c0_14 = arith.constant 0 : index
    %c0_15 = arith.constant 0 : index
    %6 = vector.load %arg13[%c0_12, %c0_13, %c0_14, %c0_15] : memref<1x18x18x1xbf16, #tpu.memory_space<vmem>>, vector<1x18x1x1xbf16>
    tpu.vector_store %arg13[%c0_12, %c0_13, %c0_14, %c0_15], %5 {strides = array<i32>} : memref<1x18x18x1xbf16, #tpu.memory_space<vmem>>, vector<1x18x1x1xbf16>,
    %cst_16 = arith.constant 0.000000e+00 : bf16
    %7 = vector.broadcast %cst_16 : bf16 to vector<1x18x1x1xbf16>
    %c0_17 = arith.constant 0 : index
    %c0_18 = arith.constant 0 : index
    %c17_19 = arith.constant 17 : index
    %c0_20 = arith.constant 0 : index
    %8 = vector.load %arg13[%c0_17, %c0_18, %c17_19, %c0_20] : memref<1x18x18x1xbf16, #tpu.memory_space<vmem>>, vector<1x18x1x1xbf16>
    tpu.vector_store %arg13[%c0_17, %c0_18, %c17_19, %c0_20], %7 {strides = array<i32>} : memref<1x18x18x1xbf16, #tpu.memory_space<vmem>>, vector<1x18x1x1xbf16>,
    %9 = arith.truncf %0 : vector<1x16x16x1xf32> to vector<1x16x16x1xbf16>
    %c0_21 = arith.constant 0 : index
    %c1 = arith.constant 1 : index
    %c1_22 = arith.constant 1 : index
    %c0_23 = arith.constant 0 : index
    %10 = vector.load %arg13[%c0_21, %c1, %c1_22, %c0_23] : memref<1x18x18x1xbf16, #tpu.memory_space<vmem>>, vector<1x16x16x1xbf16>
    tpu.vector_store %arg13[%c0_21, %c1, %c1_22, %c0_23], %9 {strides = array<i32>} : memref<1x18x18x1xbf16, #tpu.memory_space<vmem>>, vector<1x16x16x1xbf16>,
    %c0_24 = arith.constant 0 : index
    %c0_25 = arith.constant 0 : index
    %c0_26 = arith.constant 0 : index
    %c0_27 = arith.constant 0 : index
    %11 = vector.load %arg13[%c0_24, %c0_25, %c0_26, %c0_27] : memref<1x18x18x1xbf16, #tpu.memory_space<vmem>>, vector<1x16x16x1xbf16>
    %12 = vector.shape_cast %11 : vector<1x16x16x1xbf16> to vector<256x1xbf16>
    %c0_28 = arith.constant 0 : index
    %c0_29 = arith.constant 0 : index
    %13 = vector.load %arg14[%c0_28, %c0_29] : memref<256x9xbf16, #tpu.memory_space<vmem>>, vector<256x1xbf16>
    tpu.vector_store %arg14[%c0_28, %c0_29], %12 {strides = array<i32>} : memref<256x9xbf16, #tpu.memory_space<vmem>>, vector<256x1xbf16>,
    %c0_30 = arith.constant 0 : index
    %c0_31 = arith.constant 0 : index
    %c1_32 = arith.constant 1 : index
    %c0_33 = arith.constant 0 : index
    %14 = vector.load %arg13[%c0_30, %c0_31, %c1_32, %c0_33] : memref<1x18x18x1xbf16, #tpu.memory_space<vmem>>, vector<1x16x16x1xbf16>
    %15 = vector.shape_cast %14 : vector<1x16x16x1xbf16> to vector<256x1xbf16>
    %c0_34 = arith.constant 0 : index
    %c1_35 = arith.constant 1 : index
    %16 = vector.load %arg14[%c0_34, %c1_35] : memref<256x9xbf16, #tpu.memory_space<vmem>>, vector<256x1xbf16>
    tpu.vector_store %arg14[%c0_34, %c1_35], %15 {strides = array<i32>} : memref<256x9xbf16, #tpu.memory_space<vmem>>, vector<256x1xbf16>,
    %c0_36 = arith.constant 0 : index
    %c0_37 = arith.constant 0 : index
    %c2 = arith.constant 2 : index
    %c0_38 = arith.constant 0 : index
    %17 = vector.load %arg13[%c0_36, %c0_37, %c2, %c0_38] : memref<1x18x18x1xbf16, #tpu.memory_space<vmem>>, vector<1x16x16x1xbf16>
    %18 = vector.shape_cast %17 : vector<1x16x16x1xbf16> to vector<256x1xbf16>
    %c0_39 = arith.constant 0 : index
    %c2_40 = arith.constant 2 : index
    %19 = vector.load %arg14[%c0_39, %c2_40] : memref<256x9xbf16, #tpu.memory_space<vmem>>, vector<256x1xbf16>
    tpu.vector_store %arg14[%c0_39, %c2_40], %18 {strides = array<i32>} : memref<256x9xbf16, #tpu.memory_space<vmem>>, vector<256x1xbf16>,
    %c0_41 = arith.constant 0 : index
    %c1_42 = arith.constant 1 : index
    %c0_43 = arith.constant 0 : index
    %c0_44 = arith.constant 0 : index
    %20 = vector.load %arg13[%c0_41, %c1_42, %c0_43, %c0_44] : memref<1x18x18x1xbf16, #tpu.memory_space<vmem>>, vector<1x16x16x1xbf16>
    %21 = vector.shape_cast %20 : vector<1x16x16x1xbf16> to vector<256x1xbf16>
    %c0_45 = arith.constant 0 : index
    %c3 = arith.constant 3 : index
    %22 = vector.load %arg14[%c0_45, %c3] : memref<256x9xbf16, #tpu.memory_space<vmem>>, vector<256x1xbf16>
    tpu.vector_store %arg14[%c0_45, %c3], %21 {strides = array<i32>} : memref<256x9xbf16, #tpu.memory_space<vmem>>, vector<256x1xbf16>,
    %c0_46 = arith.constant 0 : index
    %c1_47 = arith.constant 1 : index
    %c1_48 = arith.constant 1 : index
    %c0_49 = arith.constant 0 : index
    %23 = vector.load %arg13[%c0_46, %c1_47, %c1_48, %c0_49] : memref<1x18x18x1xbf16, #tpu.memory_space<vmem>>, vector<1x16x16x1xbf16>
    %24 = vector.shape_cast %23 : vector<1x16x16x1xbf16> to vector<256x1xbf16>
    %c0_50 = arith.constant 0 : index
    %c4 = arith.constant 4 : index
    %25 = vector.load %arg14[%c0_50, %c4] : memref<256x9xbf16, #tpu.memory_space<vmem>>, vector<256x1xbf16>
    tpu.vector_store %arg14[%c0_50, %c4], %24 {strides = array<i32>} : memref<256x9xbf16, #tpu.memory_space<vmem>>, vector<256x1xbf16>,
    %c0_51 = arith.constant 0 : index
    %c1_52 = arith.constant 1 : index
    %c2_53 = arith.constant 2 : index
    %c0_54 = arith.constant 0 : index
    %26 = vector.load %arg13[%c0_51, %c1_52, %c2_53, %c0_54] : memref<1x18x18x1xbf16, #tpu.memory_space<vmem>>, vector<1x16x16x1xbf16>
    %27 = vector.shape_cast %26 : vector<1x16x16x1xbf16> to vector<256x1xbf16>
    %c0_55 = arith.constant 0 : index
    %c5 = arith.constant 5 : index
    %28 = vector.load %arg14[%c0_55, %c5] : memref<256x9xbf16, #tpu.memory_space<vmem>>, vector<256x1xbf16>
    tpu.vector_store %arg14[%c0_55, %c5], %27 {strides = array<i32>} : memref<256x9xbf16, #tpu.memory_space<vmem>>, vector<256x1xbf16>,
    %c0_56 = arith.constant 0 : index
    %c2_57 = arith.constant 2 : index
    %c0_58 = arith.constant 0 : index
    %c0_59 = arith.constant 0 : index
    %29 = vector.load %arg13[%c0_56, %c2_57, %c0_58, %c0_59] : memref<1x18x18x1xbf16, #tpu.memory_space<vmem>>, vector<1x16x16x1xbf16>
    %30 = vector.shape_cast %29 : vector<1x16x16x1xbf16> to vector<256x1xbf16>
    %c0_60 = arith.constant 0 : index
    %c6 = arith.constant 6 : index
    %31 = vector.load %arg14[%c0_60, %c6] : memref<256x9xbf16, #tpu.memory_space<vmem>>, vector<256x1xbf16>
    tpu.vector_store %arg14[%c0_60, %c6], %30 {strides = array<i32>} : memref<256x9xbf16, #tpu.memory_space<vmem>>, vector<256x1xbf16>,
    %c0_61 = arith.constant 0 : index
    %c2_62 = arith.constant 2 : index
    %c1_63 = arith.constant 1 : index
    %c0_64 = arith.constant 0 : index
    %32 = vector.load %arg13[%c0_61, %c2_62, %c1_63, %c0_64] : memref<1x18x18x1xbf16, #tpu.memory_space<vmem>>, vector<1x16x16x1xbf16>
    %33 = vector.shape_cast %32 : vector<1x16x16x1xbf16> to vector<256x1xbf16>
    %c0_65 = arith.constant 0 : index
    %c7 = arith.constant 7 : index
    %34 = vector.load %arg14[%c0_65, %c7] : memref<256x9xbf16, #tpu.memory_space<vmem>>, vector<256x1xbf16>
    tpu.vector_store %arg14[%c0_65, %c7], %33 {strides = array<i32>} : memref<256x9xbf16, #tpu.memory_space<vmem>>, vector<256x1xbf16>,
    %c0_66 = arith.constant 0 : index
    %c2_67 = arith.constant 2 : index
    %c2_68 = arith.constant 2 : index
    %c0_69 = arith.constant 0 : index
    %35 = vector.load %arg13[%c0_66, %c2_67, %c2_68, %c0_69] : memref<1x18x18x1xbf16, #tpu.memory_space<vmem>>, vector<1x16x16x1xbf16>
    %36 = vector.shape_cast %35 : vector<1x16x16x1xbf16> to vector<256x1xbf16>
    %c0_70 = arith.constant 0 : index
    %c8 = arith.constant 8 : index
    %37 = vector.load %arg14[%c0_70, %c8] : memref<256x9xbf16, #tpu.memory_space<vmem>>, vector<256x1xbf16>
    tpu.vector_store %arg14[%c0_70, %c8], %36 {strides = array<i32>} : memref<256x9xbf16, #tpu.memory_space<vmem>>, vector<256x1xbf16>,
    %c0_71 = arith.constant 0 : index
    %c0_72 = arith.constant 0 : index
    %38 = vector.load %arg14[%c0_71, %c0_72] : memref<256x9xbf16, #tpu.memory_space<vmem>>, vector<256x9xbf16>
    %c0_73 = arith.constant 0 : index
    %c0_74 = arith.constant 0 : index
    %39 = vector.load %arg2[%c0_73, %c0_74] : memref<9x16xbf16, #tpu.memory_space<vmem>>, vector<9x16xbf16>
    %cst_75 = arith.constant dense<0.000000e+00> : vector<256x16xf32>
    %40 = tpu.matmul %38, %39, %cst_75 {dimension_numbers = #tpu.dot_dimension_numbers<[1], [0], [0], [1], [0, 0, 1, 1], [], []>} : vector<256x9xbf16>, vector<9x16xbf16>, vector<256x16xf32> -> vector<256x16xf32>
    %41 = vector.shape_cast %40 : vector<256x16xf32> to vector<128x2x16xf32>
    %42 = vector.extract_strided_slice %41 {offsets = [0, 0, 0], sizes = [128, 1, 16], strides = [1, 1, 1]} : vector<128x2x16xf32> to vector<128x1x16xf32>
    %43 = vector.shape_cast %42 : vector<128x1x16xf32> to vector<128x16xf32>
    %44 = vector.extract_strided_slice %41 {offsets = [0, 1, 0], sizes = [128, 1, 16], strides = [1, 1, 1]} : vector<128x2x16xf32> to vector<128x1x16xf32>
    %45 = vector.shape_cast %44 : vector<128x1x16xf32> to vector<128x16xf32>
    %46 = arith.maximumf %43, %45 : vector<128x16xf32>
    %47 = vector.shape_cast %46 : vector<128x16xf32> to vector<8x2x8x16xf32>
    %48 = vector.extract_strided_slice %47 {offsets = [0, 0, 0, 0], sizes = [8, 1, 8, 16], strides = [1, 1, 1, 1]} : vector<8x2x8x16xf32> to vector<8x1x8x16xf32>
    %49 = vector.shape_cast %48 : vector<8x1x8x16xf32> to vector<8x8x16xf32>
    %50 = vector.extract_strided_slice %47 {offsets = [0, 1, 0, 0], sizes = [8, 1, 8, 16], strides = [1, 1, 1, 1]} : vector<8x2x8x16xf32> to vector<8x1x8x16xf32>
    %51 = vector.shape_cast %50 : vector<8x1x8x16xf32> to vector<8x8x16xf32>
    %52 = arith.maximumf %49, %51 : vector<8x8x16xf32>
    %c0_76 = arith.constant 0 : index
    %c0_77 = arith.constant 0 : index
    %53 = vector.load %arg3[%c0_76, %c0_77] : memref<1x16xf32, #tpu.memory_space<vmem>>, vector<1x16xf32>
    %54 = vector.shape_cast %53 : vector<1x16xf32> to vector<1x1x16xf32>
    %55 = vector.broadcast %54 : vector<1x1x16xf32> to vector<8x8x16xf32>
    %56 = arith.addf %52, %55 : vector<8x8x16xf32>
    %cst_78 = arith.constant 0.000000e+00 : f32
    %57 = vector.broadcast %cst_78 : f32 to vector<8x8x16xf32>
    %58 = arith.maximumf %56, %57 : vector<8x8x16xf32>
    %59 = vector.shape_cast %58 : vector<8x8x16xf32> to vector<1x8x8x16xf32>
    %cst_79 = arith.constant 0.000000e+00 : bf16
    %60 = vector.broadcast %cst_79 : bf16 to vector<1x1x10x16xbf16>
    %c0_80 = arith.constant 0 : index
    %c0_81 = arith.constant 0 : index
    %c0_82 = arith.constant 0 : index
    %c0_83 = arith.constant 0 : index
    %61 = vector.load %arg15[%c0_80, %c0_81, %c0_82, %c0_83] : memref<1x10x10x16xbf16, #tpu.memory_space<vmem>>, vector<1x1x10x16xbf16>
    tpu.vector_store %arg15[%c0_80, %c0_81, %c0_82, %c0_83], %60 {strides = array<i32>} : memref<1x10x10x16xbf16, #tpu.memory_space<vmem>>, vector<1x1x10x16xbf16>,
    %cst_84 = arith.constant 0.000000e+00 : bf16
    %62 = vector.broadcast %cst_84 : bf16 to vector<1x1x10x16xbf16>
    %c0_85 = arith.constant 0 : index
    %c9 = arith.constant 9 : index
    %c0_86 = arith.constant 0 : index
    %c0_87 = arith.constant 0 : index
    %63 = vector.load %arg15[%c0_85, %c9, %c0_86, %c0_87] : memref<1x10x10x16xbf16, #tpu.memory_space<vmem>>, vector<1x1x10x16xbf16>
    tpu.vector_store %arg15[%c0_85, %c9, %c0_86, %c0_87], %62 {strides = array<i32>} : memref<1x10x10x16xbf16, #tpu.memory_space<vmem>>, vector<1x1x10x16xbf16>,
    %cst_88 = arith.constant 0.000000e+00 : bf16
    %64 = vector.broadcast %cst_88 : bf16 to vector<1x10x1x16xbf16>
    %c0_89 = arith.constant 0 : index
    %c0_90 = arith.constant 0 : index
    %c0_91 = arith.constant 0 : index
    %c0_92 = arith.constant 0 : index
    %65 = vector.load %arg15[%c0_89, %c0_90, %c0_91, %c0_92] : memref<1x10x10x16xbf16, #tpu.memory_space<vmem>>, vector<1x10x1x16xbf16>
    tpu.vector_store %arg15[%c0_89, %c0_90, %c0_91, %c0_92], %64 {strides = array<i32>} : memref<1x10x10x16xbf16, #tpu.memory_space<vmem>>, vector<1x10x1x16xbf16>,
    %cst_93 = arith.constant 0.000000e+00 : bf16
    %66 = vector.broadcast %cst_93 : bf16 to vector<1x10x1x16xbf16>
    %c0_94 = arith.constant 0 : index
    %c0_95 = arith.constant 0 : index
    %c9_96 = arith.constant 9 : index
    %c0_97 = arith.constant 0 : index
    %67 = vector.load %arg15[%c0_94, %c0_95, %c9_96, %c0_97] : memref<1x10x10x16xbf16, #tpu.memory_space<vmem>>, vector<1x10x1x16xbf16>
    tpu.vector_store %arg15[%c0_94, %c0_95, %c9_96, %c0_97], %66 {strides = array<i32>} : memref<1x10x10x16xbf16, #tpu.memory_space<vmem>>, vector<1x10x1x16xbf16>,
    %68 = arith.truncf %59 : vector<1x8x8x16xf32> to vector<1x8x8x16xbf16>
    %c0_98 = arith.constant 0 : index
    %c1_99 = arith.constant 1 : index
    %c1_100 = arith.constant 1 : index
    %c0_101 = arith.constant 0 : index
    %69 = vector.load %arg15[%c0_98, %c1_99, %c1_100, %c0_101] : memref<1x10x10x16xbf16, #tpu.memory_space<vmem>>, vector<1x8x8x16xbf16>
    tpu.vector_store %arg15[%c0_98, %c1_99, %c1_100, %c0_101], %68 {strides = array<i32>} : memref<1x10x10x16xbf16, #tpu.memory_space<vmem>>, vector<1x8x8x16xbf16>,
    %c0_102 = arith.constant 0 : index
    %c0_103 = arith.constant 0 : index
    %c0_104 = arith.constant 0 : index
    %c0_105 = arith.constant 0 : index
    %70 = vector.load %arg15[%c0_102, %c0_103, %c0_104, %c0_105] : memref<1x10x10x16xbf16, #tpu.memory_space<vmem>>, vector<1x8x8x16xbf16>
    %71 = vector.shape_cast %70 : vector<1x8x8x16xbf16> to vector<64x16xbf16>
    %c0_106 = arith.constant 0 : index
    %c0_107 = arith.constant 0 : index
    %72 = vector.load %arg16[%c0_106, %c0_107] : memref<64x144xbf16, #tpu.memory_space<vmem>>, vector<64x16xbf16>
    tpu.vector_store %arg16[%c0_106, %c0_107], %71 {strides = array<i32>} : memref<64x144xbf16, #tpu.memory_space<vmem>>, vector<64x16xbf16>,
    %c0_108 = arith.constant 0 : index
    %c0_109 = arith.constant 0 : index
    %c1_110 = arith.constant 1 : index
    %c0_111 = arith.constant 0 : index
    %73 = vector.load %arg15[%c0_108, %c0_109, %c1_110, %c0_111] : memref<1x10x10x16xbf16, #tpu.memory_space<vmem>>, vector<1x8x8x16xbf16>
    %74 = vector.shape_cast %73 : vector<1x8x8x16xbf16> to vector<64x16xbf16>
    %c0_112 = arith.constant 0 : index
    %c16 = arith.constant 16 : index
    %75 = vector.load %arg16[%c0_112, %c16] : memref<64x144xbf16, #tpu.memory_space<vmem>>, vector<64x16xbf16>
    tpu.vector_store %arg16[%c0_112, %c16], %74 {strides = array<i32>} : memref<64x144xbf16, #tpu.memory_space<vmem>>, vector<64x16xbf16>,
    %c0_113 = arith.constant 0 : index
    %c0_114 = arith.constant 0 : index
    %c2_115 = arith.constant 2 : index
    %c0_116 = arith.constant 0 : index
    %76 = vector.load %arg15[%c0_113, %c0_114, %c2_115, %c0_116] : memref<1x10x10x16xbf16, #tpu.memory_space<vmem>>, vector<1x8x8x16xbf16>
    %77 = vector.shape_cast %76 : vector<1x8x8x16xbf16> to vector<64x16xbf16>
    %c0_117 = arith.constant 0 : index
    %c32 = arith.constant 32 : index
    %78 = vector.load %arg16[%c0_117, %c32] : memref<64x144xbf16, #tpu.memory_space<vmem>>, vector<64x16xbf16>
    tpu.vector_store %arg16[%c0_117, %c32], %77 {strides = array<i32>} : memref<64x144xbf16, #tpu.memory_space<vmem>>, vector<64x16xbf16>,
    %c0_118 = arith.constant 0 : index
    %c1_119 = arith.constant 1 : index
    %c0_120 = arith.constant 0 : index
    %c0_121 = arith.constant 0 : index
    %79 = vector.load %arg15[%c0_118, %c1_119, %c0_120, %c0_121] : memref<1x10x10x16xbf16, #tpu.memory_space<vmem>>, vector<1x8x8x16xbf16>
    %80 = vector.shape_cast %79 : vector<1x8x8x16xbf16> to vector<64x16xbf16>
    %c0_122 = arith.constant 0 : index
    %c48 = arith.constant 48 : index
    %81 = vector.load %arg16[%c0_122, %c48] : memref<64x144xbf16, #tpu.memory_space<vmem>>, vector<64x16xbf16>
    tpu.vector_store %arg16[%c0_122, %c48], %80 {strides = array<i32>} : memref<64x144xbf16, #tpu.memory_space<vmem>>, vector<64x16xbf16>,
    %c0_123 = arith.constant 0 : index
    %c1_124 = arith.constant 1 : index
    %c1_125 = arith.constant 1 : index
    %c0_126 = arith.constant 0 : index
    %82 = vector.load %arg15[%c0_123, %c1_124, %c1_125, %c0_126] : memref<1x10x10x16xbf16, #tpu.memory_space<vmem>>, vector<1x8x8x16xbf16>
    %83 = vector.shape_cast %82 : vector<1x8x8x16xbf16> to vector<64x16xbf16>
    %c0_127 = arith.constant 0 : index
    %c64 = arith.constant 64 : index
    %84 = vector.load %arg16[%c0_127, %c64] : memref<64x144xbf16, #tpu.memory_space<vmem>>, vector<64x16xbf16>
    tpu.vector_store %arg16[%c0_127, %c64], %83 {strides = array<i32>} : memref<64x144xbf16, #tpu.memory_space<vmem>>, vector<64x16xbf16>,
    %c0_128 = arith.constant 0 : index
    %c1_129 = arith.constant 1 : index
    %c2_130 = arith.constant 2 : index
    %c0_131 = arith.constant 0 : index
    %85 = vector.load %arg15[%c0_128, %c1_129, %c2_130, %c0_131] : memref<1x10x10x16xbf16, #tpu.memory_space<vmem>>, vector<1x8x8x16xbf16>
    %86 = vector.shape_cast %85 : vector<1x8x8x16xbf16> to vector<64x16xbf16>
    %c0_132 = arith.constant 0 : index
    %c80 = arith.constant 80 : index
    %87 = vector.load %arg16[%c0_132, %c80] : memref<64x144xbf16, #tpu.memory_space<vmem>>, vector<64x16xbf16>
    tpu.vector_store %arg16[%c0_132, %c80], %86 {strides = array<i32>} : memref<64x144xbf16, #tpu.memory_space<vmem>>, vector<64x16xbf16>,
    %c0_133 = arith.constant 0 : index
    %c2_134 = arith.constant 2 : index
    %c0_135 = arith.constant 0 : index
    %c0_136 = arith.constant 0 : index
    %88 = vector.load %arg15[%c0_133, %c2_134, %c0_135, %c0_136] : memref<1x10x10x16xbf16, #tpu.memory_space<vmem>>, vector<1x8x8x16xbf16>
    %89 = vector.shape_cast %88 : vector<1x8x8x16xbf16> to vector<64x16xbf16>
    %c0_137 = arith.constant 0 : index
    %c96 = arith.constant 96 : index
    %90 = vector.load %arg16[%c0_137, %c96] : memref<64x144xbf16, #tpu.memory_space<vmem>>, vector<64x16xbf16>
    tpu.vector_store %arg16[%c0_137, %c96], %89 {strides = array<i32>} : memref<64x144xbf16, #tpu.memory_space<vmem>>, vector<64x16xbf16>,
    %c0_138 = arith.constant 0 : index
    %c2_139 = arith.constant 2 : index
    %c1_140 = arith.constant 1 : index
    %c0_141 = arith.constant 0 : index
    %91 = vector.load %arg15[%c0_138, %c2_139, %c1_140, %c0_141] : memref<1x10x10x16xbf16, #tpu.memory_space<vmem>>, vector<1x8x8x16xbf16>
    %92 = vector.shape_cast %91 : vector<1x8x8x16xbf16> to vector<64x16xbf16>
    %c0_142 = arith.constant 0 : index
    %c112 = arith.constant 112 : index
    %93 = vector.load %arg16[%c0_142, %c112] : memref<64x144xbf16, #tpu.memory_space<vmem>>, vector<64x16xbf16>
    tpu.vector_store %arg16[%c0_142, %c112], %92 {strides = array<i32>} : memref<64x144xbf16, #tpu.memory_space<vmem>>, vector<64x16xbf16>,
    %c0_143 = arith.constant 0 : index
    %c2_144 = arith.constant 2 : index
    %c2_145 = arith.constant 2 : index
    %c0_146 = arith.constant 0 : index
    %94 = vector.load %arg15[%c0_143, %c2_144, %c2_145, %c0_146] : memref<1x10x10x16xbf16, #tpu.memory_space<vmem>>, vector<1x8x8x16xbf16>
    %95 = vector.shape_cast %94 : vector<1x8x8x16xbf16> to vector<64x16xbf16>
    %c0_147 = arith.constant 0 : index
    %c128 = arith.constant 128 : index
    %96 = vector.load %arg16[%c0_147, %c128] : memref<64x144xbf16, #tpu.memory_space<vmem>>, vector<64x16xbf16>
    tpu.vector_store %arg16[%c0_147, %c128], %95 {strides = array<i32>} : memref<64x144xbf16, #tpu.memory_space<vmem>>, vector<64x16xbf16>,
    %c0_148 = arith.constant 0 : index
    %c0_149 = arith.constant 0 : index
    %97 = vector.load %arg16[%c0_148, %c0_149] : memref<64x144xbf16, #tpu.memory_space<vmem>>, vector<64x144xbf16>
    %c0_150 = arith.constant 0 : index
    %c0_151 = arith.constant 0 : index
    %98 = vector.load %arg4[%c0_150, %c0_151] : memref<144x32xbf16, #tpu.memory_space<vmem>>, vector<144x32xbf16>
    %cst_152 = arith.constant dense<0.000000e+00> : vector<64x32xf32>
    %99 = tpu.matmul %97, %98, %cst_152 {dimension_numbers = #tpu.dot_dimension_numbers<[1], [0], [0], [1], [0, 0, 1, 1], [], []>} : vector<64x144xbf16>, vector<144x32xbf16>, vector<64x32xf32> -> vector<64x32xf32>
    %100 = vector.shape_cast %99 : vector<64x32xf32> to vector<32x2x32xf32>
    %101 = vector.extract_strided_slice %100 {offsets = [0, 0, 0], sizes = [32, 1, 32], strides = [1, 1, 1]} : vector<32x2x32xf32> to vector<32x1x32xf32>
    %102 = vector.shape_cast %101 : vector<32x1x32xf32> to vector<32x32xf32>
    %103 = vector.extract_strided_slice %100 {offsets = [0, 1, 0], sizes = [32, 1, 32], strides = [1, 1, 1]} : vector<32x2x32xf32> to vector<32x1x32xf32>
    %104 = vector.shape_cast %103 : vector<32x1x32xf32> to vector<32x32xf32>
    %105 = arith.maximumf %102, %104 : vector<32x32xf32>
    %106 = vector.shape_cast %105 : vector<32x32xf32> to vector<4x2x4x32xf32>
    %107 = vector.extract_strided_slice %106 {offsets = [0, 0, 0, 0], sizes = [4, 1, 4, 32], strides = [1, 1, 1, 1]} : vector<4x2x4x32xf32> to vector<4x1x4x32xf32>
    %108 = vector.shape_cast %107 : vector<4x1x4x32xf32> to vector<4x4x32xf32>
    %109 = vector.extract_strided_slice %106 {offsets = [0, 1, 0, 0], sizes = [4, 1, 4, 32], strides = [1, 1, 1, 1]} : vector<4x2x4x32xf32> to vector<4x1x4x32xf32>
    %110 = vector.shape_cast %109 : vector<4x1x4x32xf32> to vector<4x4x32xf32>
    %111 = arith.maximumf %108, %110 : vector<4x4x32xf32>
    %c0_153 = arith.constant 0 : index
    %c0_154 = arith.constant 0 : index
    %112 = vector.load %arg5[%c0_153, %c0_154] : memref<1x32xf32, #tpu.memory_space<vmem>>, vector<1x32xf32>
    %113 = vector.shape_cast %112 : vector<1x32xf32> to vector<1x1x32xf32>
    %114 = vector.broadcast %113 : vector<1x1x32xf32> to vector<4x4x32xf32>
    %115 = arith.addf %111, %114 : vector<4x4x32xf32>
    %cst_155 = arith.constant 0.000000e+00 : f32
    %116 = vector.broadcast %cst_155 : f32 to vector<4x4x32xf32>
    %117 = arith.maximumf %115, %116 : vector<4x4x32xf32>
    %118 = vector.shape_cast %117 : vector<4x4x32xf32> to vector<1x4x4x32xf32>
    %cst_156 = arith.constant 0.000000e+00 : bf16
    %119 = vector.broadcast %cst_156 : bf16 to vector<1x1x6x32xbf16>
    %c0_157 = arith.constant 0 : index
    %c0_158 = arith.constant 0 : index
    %c0_159 = arith.constant 0 : index
    %c0_160 = arith.constant 0 : index
    %120 = vector.load %arg17[%c0_157, %c0_158, %c0_159, %c0_160] : memref<1x6x6x32xbf16, #tpu.memory_space<vmem>>, vector<1x1x6x32xbf16>
    tpu.vector_store %arg17[%c0_157, %c0_158, %c0_159, %c0_160], %119 {strides = array<i32>} : memref<1x6x6x32xbf16, #tpu.memory_space<vmem>>, vector<1x1x6x32xbf16>,
    %cst_161 = arith.constant 0.000000e+00 : bf16
    %121 = vector.broadcast %cst_161 : bf16 to vector<1x1x6x32xbf16>
    %c0_162 = arith.constant 0 : index
    %c5_163 = arith.constant 5 : index
    %c0_164 = arith.constant 0 : index
    %c0_165 = arith.constant 0 : index
    %122 = vector.load %arg17[%c0_162, %c5_163, %c0_164, %c0_165] : memref<1x6x6x32xbf16, #tpu.memory_space<vmem>>, vector<1x1x6x32xbf16>
    tpu.vector_store %arg17[%c0_162, %c5_163, %c0_164, %c0_165], %121 {strides = array<i32>} : memref<1x6x6x32xbf16, #tpu.memory_space<vmem>>, vector<1x1x6x32xbf16>,
    %cst_166 = arith.constant 0.000000e+00 : bf16
    %123 = vector.broadcast %cst_166 : bf16 to vector<1x6x1x32xbf16>
    %c0_167 = arith.constant 0 : index
    %c0_168 = arith.constant 0 : index
    %c0_169 = arith.constant 0 : index
    %c0_170 = arith.constant 0 : index
    %124 = vector.load %arg17[%c0_167, %c0_168, %c0_169, %c0_170] : memref<1x6x6x32xbf16, #tpu.memory_space<vmem>>, vector<1x6x1x32xbf16>
    tpu.vector_store %arg17[%c0_167, %c0_168, %c0_169, %c0_170], %123 {strides = array<i32>} : memref<1x6x6x32xbf16, #tpu.memory_space<vmem>>, vector<1x6x1x32xbf16>,
    %cst_171 = arith.constant 0.000000e+00 : bf16
    %125 = vector.broadcast %cst_171 : bf16 to vector<1x6x1x32xbf16>
    %c0_172 = arith.constant 0 : index
    %c0_173 = arith.constant 0 : index
    %c5_174 = arith.constant 5 : index
    %c0_175 = arith.constant 0 : index
    %126 = vector.load %arg17[%c0_172, %c0_173, %c5_174, %c0_175] : memref<1x6x6x32xbf16, #tpu.memory_space<vmem>>, vector<1x6x1x32xbf16>
    tpu.vector_store %arg17[%c0_172, %c0_173, %c5_174, %c0_175], %125 {strides = array<i32>} : memref<1x6x6x32xbf16, #tpu.memory_space<vmem>>, vector<1x6x1x32xbf16>,
    %127 = arith.truncf %118 : vector<1x4x4x32xf32> to vector<1x4x4x32xbf16>
    %c0_176 = arith.constant 0 : index
    %c1_177 = arith.constant 1 : index
    %c1_178 = arith.constant 1 : index
    %c0_179 = arith.constant 0 : index
    %128 = vector.load %arg17[%c0_176, %c1_177, %c1_178, %c0_179] : memref<1x6x6x32xbf16, #tpu.memory_space<vmem>>, vector<1x4x4x32xbf16>
    tpu.vector_store %arg17[%c0_176, %c1_177, %c1_178, %c0_179], %127 {strides = array<i32>} : memref<1x6x6x32xbf16, #tpu.memory_space<vmem>>, vector<1x4x4x32xbf16>,
    %c0_180 = arith.constant 0 : index
    %c0_181 = arith.constant 0 : index
    %c0_182 = arith.constant 0 : index
    %c0_183 = arith.constant 0 : index
    %129 = vector.load %arg17[%c0_180, %c0_181, %c0_182, %c0_183] : memref<1x6x6x32xbf16, #tpu.memory_space<vmem>>, vector<1x4x4x32xbf16>
    %130 = vector.shape_cast %129 : vector<1x4x4x32xbf16> to vector<16x32xbf16>
    %c0_184 = arith.constant 0 : index
    %c0_185 = arith.constant 0 : index
    %131 = vector.load %arg18[%c0_184, %c0_185] : memref<16x288xbf16, #tpu.memory_space<vmem>>, vector<16x32xbf16>
    tpu.vector_store %arg18[%c0_184, %c0_185], %130 {strides = array<i32>} : memref<16x288xbf16, #tpu.memory_space<vmem>>, vector<16x32xbf16>,
    %c0_186 = arith.constant 0 : index
    %c0_187 = arith.constant 0 : index
    %c1_188 = arith.constant 1 : index
    %c0_189 = arith.constant 0 : index
    %132 = vector.load %arg17[%c0_186, %c0_187, %c1_188, %c0_189] : memref<1x6x6x32xbf16, #tpu.memory_space<vmem>>, vector<1x4x4x32xbf16>
    %133 = vector.shape_cast %132 : vector<1x4x4x32xbf16> to vector<16x32xbf16>
    %c0_190 = arith.constant 0 : index
    %c32_191 = arith.constant 32 : index
    %134 = vector.load %arg18[%c0_190, %c32_191] : memref<16x288xbf16, #tpu.memory_space<vmem>>, vector<16x32xbf16>
    tpu.vector_store %arg18[%c0_190, %c32_191], %133 {strides = array<i32>} : memref<16x288xbf16, #tpu.memory_space<vmem>>, vector<16x32xbf16>,
    %c0_192 = arith.constant 0 : index
    %c0_193 = arith.constant 0 : index
    %c2_194 = arith.constant 2 : index
    %c0_195 = arith.constant 0 : index
    %135 = vector.load %arg17[%c0_192, %c0_193, %c2_194, %c0_195] : memref<1x6x6x32xbf16, #tpu.memory_space<vmem>>, vector<1x4x4x32xbf16>
    %136 = vector.shape_cast %135 : vector<1x4x4x32xbf16> to vector<16x32xbf16>
    %c0_196 = arith.constant 0 : index
    %c64_197 = arith.constant 64 : index
    %137 = vector.load %arg18[%c0_196, %c64_197] : memref<16x288xbf16, #tpu.memory_space<vmem>>, vector<16x32xbf16>
    tpu.vector_store %arg18[%c0_196, %c64_197], %136 {strides = array<i32>} : memref<16x288xbf16, #tpu.memory_space<vmem>>, vector<16x32xbf16>,
    %c0_198 = arith.constant 0 : index
    %c1_199 = arith.constant 1 : index
    %c0_200 = arith.constant 0 : index
    %c0_201 = arith.constant 0 : index
    %138 = vector.load %arg17[%c0_198, %c1_199, %c0_200, %c0_201] : memref<1x6x6x32xbf16, #tpu.memory_space<vmem>>, vector<1x4x4x32xbf16>
    %139 = vector.shape_cast %138 : vector<1x4x4x32xbf16> to vector<16x32xbf16>
    %c0_202 = arith.constant 0 : index
    %c96_203 = arith.constant 96 : index
    %140 = vector.load %arg18[%c0_202, %c96_203] : memref<16x288xbf16, #tpu.memory_space<vmem>>, vector<16x32xbf16>
    tpu.vector_store %arg18[%c0_202, %c96_203], %139 {strides = array<i32>} : memref<16x288xbf16, #tpu.memory_space<vmem>>, vector<16x32xbf16>,
    %c0_204 = arith.constant 0 : index
    %c1_205 = arith.constant 1 : index
    %c1_206 = arith.constant 1 : index
    %c0_207 = arith.constant 0 : index
    %141 = vector.load %arg17[%c0_204, %c1_205, %c1_206, %c0_207] : memref<1x6x6x32xbf16, #tpu.memory_space<vmem>>, vector<1x4x4x32xbf16>
    %142 = vector.shape_cast %141 : vector<1x4x4x32xbf16> to vector<16x32xbf16>
    %c0_208 = arith.constant 0 : index
    %c128_209 = arith.constant 128 : index
    %143 = vector.load %arg18[%c0_208, %c128_209] : memref<16x288xbf16, #tpu.memory_space<vmem>>, vector<16x32xbf16>
    tpu.vector_store %arg18[%c0_208, %c128_209], %142 {strides = array<i32>} : memref<16x288xbf16, #tpu.memory_space<vmem>>, vector<16x32xbf16>,
    %c0_210 = arith.constant 0 : index
    %c1_211 = arith.constant 1 : index
    %c2_212 = arith.constant 2 : index
    %c0_213 = arith.constant 0 : index
    %144 = vector.load %arg17[%c0_210, %c1_211, %c2_212, %c0_213] : memref<1x6x6x32xbf16, #tpu.memory_space<vmem>>, vector<1x4x4x32xbf16>
    %145 = vector.shape_cast %144 : vector<1x4x4x32xbf16> to vector<16x32xbf16>
    %c0_214 = arith.constant 0 : index
    %c160 = arith.constant 160 : index
    %146 = vector.load %arg18[%c0_214, %c160] : memref<16x288xbf16, #tpu.memory_space<vmem>>, vector<16x32xbf16>
    tpu.vector_store %arg18[%c0_214, %c160], %145 {strides = array<i32>} : memref<16x288xbf16, #tpu.memory_space<vmem>>, vector<16x32xbf16>,
    %c0_215 = arith.constant 0 : index
    %c2_216 = arith.constant 2 : index
    %c0_217 = arith.constant 0 : index
    %c0_218 = arith.constant 0 : index
    %147 = vector.load %arg17[%c0_215, %c2_216, %c0_217, %c0_218] : memref<1x6x6x32xbf16, #tpu.memory_space<vmem>>, vector<1x4x4x32xbf16>
    %148 = vector.shape_cast %147 : vector<1x4x4x32xbf16> to vector<16x32xbf16>
    %c0_219 = arith.constant 0 : index
    %c192 = arith.constant 192 : index
    %149 = vector.load %arg18[%c0_219, %c192] : memref<16x288xbf16, #tpu.memory_space<vmem>>, vector<16x32xbf16>
    tpu.vector_store %arg18[%c0_219, %c192], %148 {strides = array<i32>} : memref<16x288xbf16, #tpu.memory_space<vmem>>, vector<16x32xbf16>,
    %c0_220 = arith.constant 0 : index
    %c2_221 = arith.constant 2 : index
    %c1_222 = arith.constant 1 : index
    %c0_223 = arith.constant 0 : index
    %150 = vector.load %arg17[%c0_220, %c2_221, %c1_222, %c0_223] : memref<1x6x6x32xbf16, #tpu.memory_space<vmem>>, vector<1x4x4x32xbf16>
    %151 = vector.shape_cast %150 : vector<1x4x4x32xbf16> to vector<16x32xbf16>
    %c0_224 = arith.constant 0 : index
    %c224 = arith.constant 224 : index
    %152 = vector.load %arg18[%c0_224, %c224] : memref<16x288xbf16, #tpu.memory_space<vmem>>, vector<16x32xbf16>
    tpu.vector_store %arg18[%c0_224, %c224], %151 {strides = array<i32>} : memref<16x288xbf16, #tpu.memory_space<vmem>>, vector<16x32xbf16>,
    %c0_225 = arith.constant 0 : index
    %c2_226 = arith.constant 2 : index
    %c2_227 = arith.constant 2 : index
    %c0_228 = arith.constant 0 : index
    %153 = vector.load %arg17[%c0_225, %c2_226, %c2_227, %c0_228] : memref<1x6x6x32xbf16, #tpu.memory_space<vmem>>, vector<1x4x4x32xbf16>
    %154 = vector.shape_cast %153 : vector<1x4x4x32xbf16> to vector<16x32xbf16>
    %c0_229 = arith.constant 0 : index
    %c256 = arith.constant 256 : index
    %155 = vector.load %arg18[%c0_229, %c256] : memref<16x288xbf16, #tpu.memory_space<vmem>>, vector<16x32xbf16>
    tpu.vector_store %arg18[%c0_229, %c256], %154 {strides = array<i32>} : memref<16x288xbf16, #tpu.memory_space<vmem>>, vector<16x32xbf16>,
    %c0_230 = arith.constant 0 : index
    %c0_231 = arith.constant 0 : index
    %156 = vector.load %arg18[%c0_230, %c0_231] : memref<16x288xbf16, #tpu.memory_space<vmem>>, vector<16x288xbf16>
    %c0_232 = arith.constant 0 : index
    %c0_233 = arith.constant 0 : index
    %157 = vector.load %arg6[%c0_232, %c0_233] : memref<288x64xbf16, #tpu.memory_space<vmem>>, vector<288x64xbf16>
    %cst_234 = arith.constant dense<0.000000e+00> : vector<16x64xf32>
    %158 = tpu.matmul %156, %157, %cst_234 {dimension_numbers = #tpu.dot_dimension_numbers<[1], [0], [0], [1], [0, 0, 1, 1], [], []>} : vector<16x288xbf16>, vector<288x64xbf16>, vector<16x64xf32> -> vector<16x64xf32>
    %159 = vector.shape_cast %158 : vector<16x64xf32> to vector<8x2x64xf32>
    %160 = vector.extract_strided_slice %159 {offsets = [0, 0, 0], sizes = [8, 1, 64], strides = [1, 1, 1]} : vector<8x2x64xf32> to vector<8x1x64xf32>
    %161 = vector.shape_cast %160 : vector<8x1x64xf32> to vector<8x64xf32>
    %162 = vector.extract_strided_slice %159 {offsets = [0, 1, 0], sizes = [8, 1, 64], strides = [1, 1, 1]} : vector<8x2x64xf32> to vector<8x1x64xf32>
    %163 = vector.shape_cast %162 : vector<8x1x64xf32> to vector<8x64xf32>
    %164 = arith.maximumf %161, %163 : vector<8x64xf32>
    %165 = vector.shape_cast %164 : vector<8x64xf32> to vector<2x2x2x64xf32>
    %166 = vector.extract_strided_slice %165 {offsets = [0, 0, 0, 0], sizes = [2, 1, 2, 64], strides = [1, 1, 1, 1]} : vector<2x2x2x64xf32> to vector<2x1x2x64xf32>
    %167 = vector.shape_cast %166 : vector<2x1x2x64xf32> to vector<2x2x64xf32>
    %168 = vector.extract_strided_slice %165 {offsets = [0, 1, 0, 0], sizes = [2, 1, 2, 64], strides = [1, 1, 1, 1]} : vector<2x2x2x64xf32> to vector<2x1x2x64xf32>
    %169 = vector.shape_cast %168 : vector<2x1x2x64xf32> to vector<2x2x64xf32>
    %170 = arith.maximumf %167, %169 : vector<2x2x64xf32>
    %c0_235 = arith.constant 0 : index
    %c0_236 = arith.constant 0 : index
    %171 = vector.load %arg7[%c0_235, %c0_236] : memref<1x64xf32, #tpu.memory_space<vmem>>, vector<1x64xf32>
    %172 = vector.shape_cast %171 : vector<1x64xf32> to vector<1x1x64xf32>
    %173 = vector.broadcast %172 : vector<1x1x64xf32> to vector<2x2x64xf32>
    %174 = arith.addf %170, %173 : vector<2x2x64xf32>
    %cst_237 = arith.constant 0.000000e+00 : f32
    %175 = vector.broadcast %cst_237 : f32 to vector<2x2x64xf32>
    %176 = arith.maximumf %174, %175 : vector<2x2x64xf32>
    %177 = vector.shape_cast %176 : vector<2x2x64xf32> to vector<1x2x2x64xf32>
    %178 = arith.truncf %177 : vector<1x2x2x64xf32> to vector<1x2x2x64xbf16>
    %179 = vector.extract_strided_slice %178 {offsets = [0, 0, 0, 0], sizes = [1, 1, 1, 64], strides = [1, 1, 1, 1]} : vector<1x2x2x64xbf16> to vector<1x1x1x64xbf16>
    %180 = vector.shape_cast %179 : vector<1x1x1x64xbf16> to vector<1x64xbf16>
    %c0_238 = arith.constant 0 : index
    %c0_239 = arith.constant 0 : index
    %181 = vector.load %arg19[%c0_238, %c0_239] : memref<1x256xbf16, #tpu.memory_space<vmem>>, vector<1x64xbf16>
    tpu.vector_store %arg19[%c0_238, %c0_239], %180 {strides = array<i32>} : memref<1x256xbf16, #tpu.memory_space<vmem>>, vector<1x64xbf16>,
    %182 = vector.extract_strided_slice %178 {offsets = [0, 0, 1, 0], sizes = [1, 1, 1, 64], strides = [1, 1, 1, 1]} : vector<1x2x2x64xbf16> to vector<1x1x1x64xbf16>
    %183 = vector.shape_cast %182 : vector<1x1x1x64xbf16> to vector<1x64xbf16>
    %c0_240 = arith.constant 0 : index
    %c64_241 = arith.constant 64 : index
    %184 = vector.load %arg19[%c0_240, %c64_241] : memref<1x256xbf16, #tpu.memory_space<vmem>>, vector<1x64xbf16>
    tpu.vector_store %arg19[%c0_240, %c64_241], %183 {strides = array<i32>} : memref<1x256xbf16, #tpu.memory_space<vmem>>, vector<1x64xbf16>,
    %185 = vector.extract_strided_slice %178 {offsets = [0, 1, 0, 0], sizes = [1, 1, 1, 64], strides = [1, 1, 1, 1]} : vector<1x2x2x64xbf16> to vector<1x1x1x64xbf16>
    %186 = vector.shape_cast %185 : vector<1x1x1x64xbf16> to vector<1x64xbf16>
    %c0_242 = arith.constant 0 : index
    %c128_243 = arith.constant 128 : index
    %187 = vector.load %arg19[%c0_242, %c128_243] : memref<1x256xbf16, #tpu.memory_space<vmem>>, vector<1x64xbf16>
    tpu.vector_store %arg19[%c0_242, %c128_243], %186 {strides = array<i32>} : memref<1x256xbf16, #tpu.memory_space<vmem>>, vector<1x64xbf16>,
    %188 = vector.extract_strided_slice %178 {offsets = [0, 1, 1, 0], sizes = [1, 1, 1, 64], strides = [1, 1, 1, 1]} : vector<1x2x2x64xbf16> to vector<1x1x1x64xbf16>
    %189 = vector.shape_cast %188 : vector<1x1x1x64xbf16> to vector<1x64xbf16>
    %c0_244 = arith.constant 0 : index
    %c192_245 = arith.constant 192 : index
    %190 = vector.load %arg19[%c0_244, %c192_245] : memref<1x256xbf16, #tpu.memory_space<vmem>>, vector<1x64xbf16>
    tpu.vector_store %arg19[%c0_244, %c192_245], %189 {strides = array<i32>} : memref<1x256xbf16, #tpu.memory_space<vmem>>, vector<1x64xbf16>,
    %c0_246 = arith.constant 0 : index
    %c0_247 = arith.constant 0 : index
    %191 = vector.load %arg19[%c0_246, %c0_247] : memref<1x256xbf16, #tpu.memory_space<vmem>>, vector<1x256xbf16>
    %c0_248 = arith.constant 0 : index
    %c0_249 = arith.constant 0 : index
    %192 = vector.load %arg8[%c0_248, %c0_249] : memref<256x128xbf16, #tpu.memory_space<vmem>>, vector<256x128xbf16>
    %cst_250 = arith.constant dense<0.000000e+00> : vector<1x128xf32>
    %193 = tpu.matmul %191, %192, %cst_250 {dimension_numbers = #tpu.dot_dimension_numbers<[1], [0], [0], [1], [0, 0, 1, 1], [], []>} : vector<1x256xbf16>, vector<256x128xbf16>, vector<1x128xf32> -> vector<1x128xf32>
    %c0_251 = arith.constant 0 : index
    %c0_252 = arith.constant 0 : index
    %194 = vector.load %arg9[%c0_251, %c0_252] : memref<1x128xf32, #tpu.memory_space<vmem>>, vector<1x128xf32>
    %195 = arith.addf %193, %194 : vector<1x128xf32>
    %cst_253 = arith.constant 0.000000e+00 : f32
    %196 = vector.broadcast %cst_253 : f32 to vector<1x128xf32>
    %197 = arith.maximumf %195, %196 : vector<1x128xf32>
    %198 = arith.truncf %197 : vector<1x128xf32> to vector<1x128xbf16>
    %c0_254 = arith.constant 0 : index
    %c0_255 = arith.constant 0 : index
    %199 = vector.load %arg10[%c0_254, %c0_255] : memref<128x10xbf16, #tpu.memory_space<vmem>>, vector<128x10xbf16>
    %cst_256 = arith.constant dense<0.000000e+00> : vector<1x10xf32>
    %200 = tpu.matmul %198, %199, %cst_256 {dimension_numbers = #tpu.dot_dimension_numbers<[1], [0], [0], [1], [0, 0, 1, 1], [], []>} : vector<1x128xbf16>, vector<128x10xbf16>, vector<1x10xf32> -> vector<1x10xf32>
    %c0_257 = arith.constant 0 : index
    %c0_258 = arith.constant 0 : index
    %201 = vector.load %arg11[%c0_257, %c0_258] : memref<1x10xf32, #tpu.memory_space<vmem>>, vector<1x10xf32>
    %202 = arith.addf %200, %201 : vector<1x10xf32>
    %203 = vector.shape_cast %202 : vector<1x10xf32> to vector<1x1x10xf32>
    %c0_259 = arith.constant 0 : index
    %c0_260 = arith.constant 0 : index
    %c0_261 = arith.constant 0 : index
    %204 = vector.load %arg12[%c0_259, %c0_260, %c0_261] : memref<1x1x10xf32, #tpu.memory_space<vmem>>, vector<1x1x10xf32>
    tpu.vector_store %arg12[%c0_259, %c0_260, %c0_261], %203 {strides = array<i32>} : memref<1x1x10xf32, #tpu.memory_space<vmem>>, vector<1x1x10xf32>,
    return
  }
  func.func @transform_0(%arg0: i32) -> (i32, i32, i32, i32) {
    %c0_i32 = arith.constant 0 : i32
    %c0_i32_0 = arith.constant 0 : i32
    %c0_i32_1 = arith.constant 0 : i32
    %c0_i32_2 = arith.constant 0 : i32
    return %arg0, %c0_i32, %c0_i32_0, %c0_i32_1 : i32, i32, i32, i32
  }
  func.func @transform_1(%arg0: i32) -> (i32, i32) {
    %c0_i32 = arith.constant 0 : i32
    %c0_i32_0 = arith.constant 0 : i32
    %c0_i32_1 = arith.constant 0 : i32
    return %c0_i32, %c0_i32_0 : i32, i32
  }
  func.func @transform_2(%arg0: i32) -> (i32, i32) {
    %c0_i32 = arith.constant 0 : i32
    %c0_i32_0 = arith.constant 0 : i32
    %c0_i32_1 = arith.constant 0 : i32
    return %c0_i32, %c0_i32_0 : i32, i32
  }
  func.func @transform_3(%arg0: i32) -> (i32, i32) {
    %c0_i32 = arith.constant 0 : i32
    %c0_i32_0 = arith.constant 0 : i32
    %c0_i32_1 = arith.constant 0 : i32
    return %c0_i32, %c0_i32_0 : i32, i32
  }
  func.func @transform_4(%arg0: i32) -> (i32, i32) {
    %c0_i32 = arith.constant 0 : i32
    %c0_i32_0 = arith.constant 0 : i32
    %c0_i32_1 = arith.constant 0 : i32
    return %c0_i32, %c0_i32_0 : i32, i32
  }
  func.func @transform_5(%arg0: i32) -> (i32, i32) {
    %c0_i32 = arith.constant 0 : i32
    %c0_i32_0 = arith.constant 0 : i32
    %c0_i32_1 = arith.constant 0 : i32
    return %c0_i32, %c0_i32_0 : i32, i32
  }
  func.func @transform_6(%arg0: i32) -> (i32, i32) {
    %c0_i32 = arith.constant 0 : i32
    %c0_i32_0 = arith.constant 0 : i32
    %c0_i32_1 = arith.constant 0 : i32
    return %c0_i32, %c0_i32_0 : i32, i32
  }
  func.func @transform_7(%arg0: i32) -> (i32, i32) {
    %c0_i32 = arith.constant 0 : i32
    %c0_i32_0 = arith.constant 0 : i32
    %c0_i32_1 = arith.constant 0 : i32
    return %c0_i32, %c0_i32_0 : i32, i32
  }
  func.func @transform_8(%arg0: i32) -> (i32, i32) {
    %c0_i32 = arith.constant 0 : i32
    %c0_i32_0 = arith.constant 0 : i32
    %c0_i32_1 = arith.constant 0 : i32
    return %c0_i32, %c0_i32_0 : i32, i32
  }
  func.func @transform_9(%arg0: i32) -> (i32, i32) {
    %c0_i32 = arith.constant 0 : i32
    %c0_i32_0 = arith.constant 0 : i32
    %c0_i32_1 = arith.constant 0 : i32
    return %c0_i32, %c0_i32_0 : i32, i32
  }
  func.func @transform_10(%arg0: i32) -> (i32, i32) {
    %c0_i32 = arith.constant 0 : i32
    %c0_i32_0 = arith.constant 0 : i32
    %c0_i32_1 = arith.constant 0 : i32
    return %c0_i32, %c0_i32_0 : i32, i32
  }
  func.func @transform_11(%arg0: i32) -> (i32, i32, i32) {
    %c0_i32 = arith.constant 0 : i32
    %c0_i32_0 = arith.constant 0 : i32
    %c0_i32_1 = arith.constant 0 : i32
    return %arg0, %c0_i32, %c0_i32_0 : i32, i32, i32
  }
}

</mosaic_0001>

<llo_original>
// kernel: audio_cnn_forward_fn.1
$region0: #{audio_cnn_forward_fn.1}
  #allocation0 [shape = 'u32[]', space=smem, size = 0x4, offset = 0x4, fixed_abs, tag = 'smem constant byte address 0x4 - core index']
  #allocation1 [shape = 'u32[144,128]{1,0:T(1,128)}', space=vmem, size = 0x12000, scoped, tag = 'internal scratch']
  #allocation2 [shape = 'bf16[1,18,18,1]{3,2,1,0:T(8,128)(2,1)}', space=vmem, size = 0x1b000, scoped, tag = 'scratch operand']
  #allocation3 [shape = 'bf16[256,9]{1,0:T(16,128)(2,1)}', space=vmem, size = 0x10000, scoped, tag = 'scratch operand']
  #allocation4 [shape = 'bf16[1,10,10,16]{3,2,1,0:T(8,128)(2,1)}', space=vmem, size = 0xa000, scoped, tag = 'scratch operand']
  #allocation5 [shape = 'bf16[64,144]{1,0:T(16,128)(2,1)}', space=vmem, size = 0x8000, scoped, tag = 'scratch operand']
  #allocation6 [shape = 'bf16[1,6,6,32]{3,2,1,0:T(8,128)(2,1)}', space=vmem, size = 0x3000, scoped, tag = 'scratch operand']
  #allocation7 [shape = 'bf16[16,288]{1,0:T(16,128)(2,1)}', space=vmem, size = 0x3000, scoped, tag = 'scratch operand']
  #allocation8 [shape = 'bf16[1,256]{1,0:T(2,128)(2,1)}', space=vmem, size = 0x400, scoped, tag = 'scratch operand']
  %s0 = inlined_call_operand.vmem [shape: f32[2,16,16,1], index: 0, kind: input, shape index: {}]
  %s1 = inlined_call_operand.vmem [shape: bf16[9,16], index: 1, kind: input, shape index: {}]
  %s2 = inlined_call_operand.vmem [shape: f32[1,16], index: 2, kind: input, shape index: {}]
  %s3 = inlined_call_operand.vmem [shape: bf16[144,32], index: 3, kind: input, shape index: {}]
  %s4 = inlined_call_operand.vmem [shape: f32[1,32], index: 4, kind: input, shape index: {}]
  %s5 = inlined_call_operand.vmem [shape: bf16[288,64], index: 5, kind: input, shape index: {}]
  %s6 = inlined_call_operand.vmem [shape: f32[1,64], index: 6, kind: input, shape index: {}]
  %s7 = inlined_call_operand.vmem [shape: bf16[256,128], index: 7, kind: input, shape index: {}]
  %s8 = inlined_call_operand.vmem [shape: f32[1,128], index: 8, kind: input, shape index: {}]
  %s9 = inlined_call_operand.vmem [shape: bf16[128,10], index: 9, kind: input, shape index: {}]
  %s10 = inlined_call_operand.vmem [shape: f32[1,10], index: 10, kind: input, shape index: {}]
  %s11 = inlined_call_operand.hbm [shape: f32[2,1,10], index: 11, kind: output, shape index: {}]
  %s12 = sld [smem:[#allocation0]]
  $region77: #{audio_cnn_forward_fn.1} parent=0
    _
  %s14 = ssub.s32 1, %s12
  %s15 = scalar_select 0, %s14, %s12
  $region1: #{audio_cnn_forward_fn.1} parent=0
    #allocation9 [shape = 'u8[1024]{0}', space=vmem, size = 0x400, scoped, tag = 'output window, operand 0']
    #allocation10 [shape = 's32[2]{0}', space=sflag, size = 0x8, scoped, tag = 'scoped memory for audio_cnn_forward_fn.1']
    %16 = vsyncpa [#allocation10], 0
    %s17 = scalar_lea.sflag [#allocation10], 1
    %18 = vsyncpa %s17, 0
    loop: start=0, step=1, limit=4
    $region2: #{audio_cnn_forward_fn.1} parent=1 // loop_pre_header
      _
    $region3: #{audio_cnn_forward_fn.1} parent=1 // loop_header
      %s20 = sphi 0, %s24
      %p21 = scmp.ge.s32.totalorder %s20, 4
      %s30 = sphi 0, %s32
      %s33 = sphi 0, %s30
      %s34 = sphi 0, %s33
      %s50 = sphi 0, %s34
      %s54 = sphi 0, %s54
      %s56 = sphi 0, %s54
      %s57 = sphi 0, %s56
      %s71 = sphi 0, %s57
      %s75 = sphi 0, %s75
      %s77 = sphi 0, %s75
      %s78 = sphi 0, %s77
      %s92 = sphi 0, %s78
      %s96 = sphi 0, %s96
      %s98 = sphi 0, %s96
      %s99 = sphi 0, %s98
      %s113 = sphi 0, %s99
      %s117 = sphi 0, %s117
      %s119 = sphi 0, %s117
      %s120 = sphi 0, %s119
      %s134 = sphi 0, %s120
      %s138 = sphi 0, %s138
      %s140 = sphi 0, %s138
      %s141 = sphi 0, %s140
      %s155 = sphi 0, %s141
      %s159 = sphi 0, %s159
      %s161 = sphi 0, %s159
      %s162 = sphi 0, %s161
      %s176 = sphi 0, %s162
      %s180 = sphi 0, %s180
      %s182 = sphi 0, %s180
      %s183 = sphi 0, %s182
      %s197 = sphi 0, %s183
      %s201 = sphi 0, %s201
      %s203 = sphi 0, %s201
      %s204 = sphi 0, %s203
      %s218 = sphi 0, %s204
      %s222 = sphi 0, %s222
      %s224 = sphi 0, %s222
      %s225 = sphi 0, %s224
      %s239 = sphi 0, %s225
      %s243 = sphi 0, %s243
      %s245 = sphi 0, %s243
      %s246 = sphi 0, %s245
      %s260 = sphi 0, %s246
      %s266 = sphi 0, %s268
      %s269 = sphi 0, %s266
      %s270 = sphi 0, %s269
      %s286 = sphi 0, %s270
    $region4: #{audio_cnn_forward_fn.1} parent=1 // loop_header_branch
      %23 = sbr.rel (%p21) target = $region8
    $region5: #{audio_cnn_forward_fn.1} parent=1 // loop_body
      %s25 = ssub.s32 %s20, 1
      %s26 = ssub.s32 %s20, 2
      %s27 = sadd.s32 %s20, 1
      %s28 = ssub.s32 %s20, %s27
      %p29 = scmp.eq.s32.totalorder %s28, 0
      %s31 = sadd.s32 %s30, 1
      %s32 = scalar_select %p29, %s30, %s31
      %p35 = pneg %p29
      %p36 = scmp.eq.s32.totalorder %s20, 1
      %p37 = por %p35, %p36
      %p38 = scmp.ne.s32.totalorder %s30, %s33
      %p39 = scmp.eq.s32.totalorder %s20, 0
      %p40 = por %p38, %p39
      %p41 = scmp.ne.s32.totalorder %s30, %s33
      %p42 = scmp.eq.s32.totalorder %s25, 1
      %p43 = por %p41, %p42
      %p44 = scmp.ne.s32.totalorder %s33, %s34
      %p45 = scmp.eq.s32.totalorder %s25, 0
      %p46 = por %p44, %p45
      %p47 = scmp.ne.s32.totalorder %s33, %s34
      %p48 = scmp.eq.s32.totalorder %s26, 1
      %p49 = por %p47, %p48
      %p51 = scmp.ne.s32.totalorder %s34, %s50
      %p52 = scmp.eq.s32.totalorder %s26, 0
      %p53 = por %p51, %p52
      %s55 = sadd.s32 %s54, 1
      %p58 = scmp.eq.s32.totalorder %s20, 1
      %p59 = scmp.ne.s32.totalorder %s54, %s56
      %p60 = scmp.eq.s32.totalorder %s20, 0
      %p61 = por %p59, %p60
      %p62 = scmp.ne.s32.totalorder %s54, %s56
      %p63 = scmp.eq.s32.totalorder %s25, 1
      %p64 = por %p62, %p63
      %p65 = scmp.ne.s32.totalorder %s56, %s57
      %p66 = scmp.eq.s32.totalorder %s25, 0
      %p67 = por %p65, %p66
      %p68 = scmp.ne.s32.totalorder %s56, %s57
      %p69 = scmp.eq.s32.totalorder %s26, 1
      %p70 = por %p68, %p69
      %p72 = scmp.ne.s32.totalorder %s57, %s71
      %p73 = scmp.eq.s32.totalorder %s26, 0
      %p74 = por %p72, %p73
      %s76 = sadd.s32 %s75, 1
      %p79 = scmp.eq.s32.totalorder %s20, 1
      %p80 = scmp.ne.s32.totalorder %s75, %s77
      %p81 = scmp.eq.s32.totalorder %s20, 0
      %p82 = por %p80, %p81
      %p83 = scmp.ne.s32.totalorder %s75, %s77
      %p84 = scmp.eq.s32.totalorder %s25, 1
      %p85 = por %p83, %p84
      %p86 = scmp.ne.s32.totalorder %s77, %s78
      %p87 = scmp.eq.s32.totalorder %s25, 0
      %p88 = por %p86, %p87
      %p89 = scmp.ne.s32.totalorder %s77, %s78
      %p90 = scmp.eq.s32.totalorder %s26, 1
      %p91 = por %p89, %p90
      %p93 = scmp.ne.s32.totalorder %s78, %s92
      %p94 = scmp.eq.s32.totalorder %s26, 0
      %p95 = por %p93, %p94
      %s97 = sadd.s32 %s96, 1
      %p100 = scmp.eq.s32.totalorder %s20, 1
      %p101 = scmp.ne.s32.totalorder %s96, %s98
      %p102 = scmp.eq.s32.totalorder %s20, 0
      %p103 = por %p101, %p102
      %p104 = scmp.ne.s32.totalorder %s96, %s98
      %p105 = scmp.eq.s32.totalorder %s25, 1
      %p106 = por %p104, %p105
      %p107 = scmp.ne.s32.totalorder %s98, %s99
      %p108 = scmp.eq.s32.totalorder %s25, 0
      %p109 = por %p107, %p108
      %p110 = scmp.ne.s32.totalorder %s98, %s99
      %p111 = scmp.eq.s32.totalorder %s26, 1
      %p112 = por %p110, %p111
      %p114 = scmp.ne.s32.totalorder %s99, %s113
      %p115 = scmp.eq.s32.totalorder %s26, 0
      %p116 = por %p114, %p115
      %s118 = sadd.s32 %s117, 1
      %p121 = scmp.eq.s32.totalorder %s20, 1
      %p122 = scmp.ne.s32.totalorder %s117, %s119
      %p123 = scmp.eq.s32.totalorder %s20, 0
      %p124 = por %p122, %p123
      %p125 = scmp.ne.s32.totalorder %s117, %s119
      %p126 = scmp.eq.s32.totalorder %s25, 1
      %p127 = por %p125, %p126
      %p128 = scmp.ne.s32.totalorder %s119, %s120
      %p129 = scmp.eq.s32.totalorder %s25, 0
      %p130 = por %p128, %p129
      %p131 = scmp.ne.s32.totalorder %s119, %s120
      %p132 = scmp.eq.s32.totalorder %s26, 1
      %p133 = por %p131, %p132
      %p135 = scmp.ne.s32.totalorder %s120, %s134
      %p136 = scmp.eq.s32.totalorder %s26, 0
      %p137 = por %p135, %p136
      %s139 = sadd.s32 %s138, 1
      %p142 = scmp.eq.s32.totalorder %s20, 1
      %p143 = scmp.ne.s32.totalorder %s138, %s140
      %p144 = scmp.eq.s32.totalorder %s20, 0
      %p145 = por %p143, %p144
      %p146 = scmp.ne.s32.totalorder %s138, %s140
      %p147 = scmp.eq.s32.totalorder %s25, 1
      %p148 = por %p146, %p147
      %p149 = scmp.ne.s32.totalorder %s140, %s141
      %p150 = scmp.eq.s32.totalorder %s25, 0
      %p151 = por %p149, %p150
      %p152 = scmp.ne.s32.totalorder %s140, %s141
      %p153 = scmp.eq.s32.totalorder %s26, 1
      %p154 = por %p152, %p153
      %p156 = scmp.ne.s32.totalorder %s141, %s155
      %p157 = scmp.eq.s32.totalorder %s26, 0
      %p158 = por %p156, %p157
      %s160 = sadd.s32 %s159, 1
      %p163 = scmp.eq.s32.totalorder %s20, 1
      %p164 = scmp.ne.s32.totalorder %s159, %s161
      %p165 = scmp.eq.s32.totalorder %s20, 0
      %p166 = por %p164, %p165
      %p167 = scmp.ne.s32.totalorder %s159, %s161
      %p168 = scmp.eq.s32.totalorder %s25, 1
      %p169 = por %p167, %p168
      %p170 = scmp.ne.s32.totalorder %s161, %s162
      %p171 = scmp.eq.s32.totalorder %s25, 0
      %p172 = por %p170, %p171
      %p173 = scmp.ne.s32.totalorder %s161, %s162
      %p174 = scmp.eq.s32.totalorder %s26, 1
      %p175 = por %p173, %p174
      %p177 = scmp.ne.s32.totalorder %s162, %s176
      %p178 = scmp.eq.s32.totalorder %s26, 0
      %p179 = por %p177, %p178
      %s181 = sadd.s32 %s180, 1
      %p184 = scmp.eq.s32.totalorder %s20, 1
      %p185 = scmp.ne.s32.totalorder %s180, %s182
      %p186 = scmp.eq.s32.totalorder %s20, 0
      %p187 = por %p185, %p186
      %p188 = scmp.ne.s32.totalorder %s180, %s182
      %p189 = scmp.eq.s32.totalorder %s25, 1
      %p190 = por %p188, %p189
      %p191 = scmp.ne.s32.totalorder %s182, %s183
      %p192 = scmp.eq.s32.totalorder %s25, 0
      %p193 = por %p191, %p192
      %p194 = scmp.ne.s32.totalorder %s182, %s183
      %p195 = scmp.eq.s32.totalorder %s26, 1
      %p196 = por %p194, %p195
      %p198 = scmp.ne.s32.totalorder %s183, %s197
      %p199 = scmp.eq.s32.totalorder %s26, 0
      %p200 = por %p198, %p199
      %s202 = sadd.s32 %s201, 1
      %p205 = scmp.eq.s32.totalorder %s20, 1
      %p206 = scmp.ne.s32.totalorder %s201, %s203
      %p207 = scmp.eq.s32.totalorder %s20, 0
      %p208 = por %p206, %p207
      %p209 = scmp.ne.s32.totalorder %s201, %s203
      %p210 = scmp.eq.s32.totalorder %s25, 1
      %p211 = por %p209, %p210
      %p212 = scmp.ne.s32.totalorder %s203, %s204
      %p213 = scmp.eq.s32.totalorder %s25, 0
      %p214 = por %p212, %p213
      %p215 = scmp.ne.s32.totalorder %s203, %s204
      %p216 = scmp.eq.s32.totalorder %s26, 1
      %p217 = por %p215, %p216
      %p219 = scmp.ne.s32.totalorder %s204, %s218
      %p220 = scmp.eq.s32.totalorder %s26, 0
      %p221 = por %p219, %p220
      %s223 = sadd.s32 %s222, 1
      %p226 = scmp.eq.s32.totalorder %s20, 1
      %p227 = scmp.ne.s32.totalorder %s222, %s224
      %p228 = scmp.eq.s32.totalorder %s20, 0
      %p229 = por %p227, %p228
      %p230 = scmp.ne.s32.totalorder %s222, %s224
      %p231 = scmp.eq.s32.totalorder %s25, 1
      %p232 = por %p230, %p231
      %p233 = scmp.ne.s32.totalorder %s224, %s225
      %p234 = scmp.eq.s32.totalorder %s25, 0
      %p235 = por %p233, %p234
      %p236 = scmp.ne.s32.totalorder %s224, %s225
      %p237 = scmp.eq.s32.totalorder %s26, 1
      %p238 = por %p236, %p237
      %p240 = scmp.ne.s32.totalorder %s225, %s239
      %p241 = scmp.eq.s32.totalorder %s26, 0
      %p242 = por %p240, %p241
      %s244 = sadd.s32 %s243, 1
      %p247 = scmp.eq.s32.totalorder %s20, 1
      %p248 = scmp.ne.s32.totalorder %s243, %s245
      %p249 = scmp.eq.s32.totalorder %s20, 0
      %p250 = por %p248, %p249
      %p251 = scmp.ne.s32.totalorder %s243, %s245
      %p252 = scmp.eq.s32.totalorder %s25, 1
      %p253 = por %p251, %p252
      %p254 = scmp.ne.s32.totalorder %s245, %s246
      %p255 = scmp.eq.s32.totalorder %s25, 0
      %p256 = por %p254, %p255
      %p257 = scmp.ne.s32.totalorder %s245, %s246
      %p258 = scmp.eq.s32.totalorder %s26, 1
      %p259 = por %p257, %p258
      %p261 = scmp.ne.s32.totalorder %s246, %s260
      %p262 = scmp.eq.s32.totalorder %s26, 0
      %p263 = por %p261, %p262
      %s264 = ssub.s32 %s20, %s27
      %p265 = scmp.eq.s32.totalorder %s264, 0
      %s267 = sadd.s32 %s266, 1
      %s268 = scalar_select %p265, %s266, %s267
      %p271 = pneg %p265
      %p272 = scmp.eq.s32.totalorder %s20, 1
      %p273 = por %p271, %p272
      %p274 = scmp.ne.s32.totalorder %s266, %s269
      %p275 = scmp.eq.s32.totalorder %s20, 0
      %p276 = por %p274, %p275
      %p277 = scmp.ne.s32.totalorder %s266, %s269
      %p278 = scmp.eq.s32.totalorder %s25, 1
      %p279 = por %p277, %p278
      %p280 = scmp.ne.s32.totalorder %s269, %s270
      %p281 = scmp.eq.s32.totalorder %s25, 0
      %p282 = por %p280, %p281
      %p283 = scmp.ne.s32.totalorder %s269, %s270
      %p284 = scmp.eq.s32.totalorder %s26, 1
      %p285 = por %p283, %p284
      %p287 = scmp.ne.s32.totalorder %s270, %s286
      %p288 = scmp.eq.s32.totalorder %s26, 0
      %p289 = por %p287, %p288
      %p290 = scmp.le.s32.totalorder 1, %s20
      %p291 = scmp.lt.s32.totalorder %s20, 3
      %p292 = pnand %p290, %p291
      %p293 = pneg %p292
      // Predicated region
      $region9: #{audio_cnn_forward_fn.1} parent=5 // pred_check
        _
      $region10: #{audio_cnn_forward_fn.1} parent=5 // pred_check_branch
        %295 = sbr.rel (%p292) target = $region12
      $region11: #{audio_cnn_forward_fn.1} parent=5 // pred_region
        %s296 = ssub.s32 %s20, 1
        // Predicated region
        $region13: #{audio_cnn_forward_fn.1} parent=11 // pred_check
          %p297 = pneg %p67
        $region14: #{audio_cnn_forward_fn.1} parent=11 // pred_check_branch
          %299 = sbr.rel (%p297) target = $region16
        $region15: #{audio_cnn_forward_fn.1} parent=11 // pred_region
          _
        $region16: #{audio_cnn_forward_fn.1} parent=11 // pred_fallthru
          _
        // Predicated region
        $region17: #{audio_cnn_forward_fn.1} parent=11 // pred_check
          %p300 = pneg %p88
        $region18: #{audio_cnn_forward_fn.1} parent=11 // pred_check_branch
          %302 = sbr.rel (%p300) target = $region20
        $region19: #{audio_cnn_forward_fn.1} parent=11 // pred_region
          _
        $region20: #{audio_cnn_forward_fn.1} parent=11 // pred_fallthru
          _
        // Predicated region
        $region21: #{audio_cnn_forward_fn.1} parent=11 // pred_check
          %p303 = pneg %p109
        $region22: #{audio_cnn_forward_fn.1} parent=11 // pred_check_branch
          %305 = sbr.rel (%p303) target = $region24
        $region23: #{audio_cnn_forward_fn.1} parent=11 // pred_region
          _
        $region24: #{audio_cnn_forward_fn.1} parent=11 // pred_fallthru
          _
        // Predicated region
        $region25: #{audio_cnn_forward_fn.1} parent=11 // pred_check
          %p306 = pneg %p130
        $region26: #{audio_cnn_forward_fn.1} parent=11 // pred_check_branch
          %308 = sbr.rel (%p306) target = $region28
        $region27: #{audio_cnn_forward_fn.1} parent=11 // pred_region
          _
        $region28: #{audio_cnn_forward_fn.1} parent=11 // pred_fallthru
          _
        // Predicated region
        $region29: #{audio_cnn_forward_fn.1} parent=11 // pred_check
          %p309 = pneg %p151
        $region30: #{audio_cnn_forward_fn.1} parent=11 // pred_check_branch
          %311 = sbr.rel (%p309) target = $region32
        $region31: #{audio_cnn_forward_fn.1} parent=11 // pred_region
          _
        $region32: #{audio_cnn_forward_fn.1} parent=11 // pred_fallthru
          _
        // Predicated region
        $region33: #{audio_cnn_forward_fn.1} parent=11 // pred_check
          %p312 = pneg %p172
        $region34: #{audio_cnn_forward_fn.1} parent=11 // pred_check_branch
          %314 = sbr.rel (%p312) target = $region36
        $region35: #{audio_cnn_forward_fn.1} parent=11 // pred_region
          _
        $region36: #{audio_cnn_forward_fn.1} parent=11 // pred_fallthru
          _
        // Predicated region
        $region37: #{audio_cnn_forward_fn.1} parent=11 // pred_check
          %p315 = pneg %p193
        $region38: #{audio_cnn_forward_fn.1} parent=11 // pred_check_branch
          %317 = sbr.rel (%p315) target = $region40
        $region39: #{audio_cnn_forward_fn.1} parent=11 // pred_region
          _
        $region40: #{audio_cnn_forward_fn.1} parent=11 // pred_fallthru
          _
        // Predicated region
        $region41: #{audio_cnn_forward_fn.1} parent=11 // pred_check
          %p318 = pneg %p214
        $region42: #{audio_cnn_forward_fn.1} parent=11 // pred_check_branch
          %320 = sbr.rel (%p318) target = $region44
        $region43: #{audio_cnn_forward_fn.1} parent=11 // pred_region
          _
        $region44: #{audio_cnn_forward_fn.1} parent=11 // pred_fallthru
          _
        // Predicated region
        $region45: #{audio_cnn_forward_fn.1} parent=11 // pred_check
          %p321 = pneg %p235
        $region46: #{audio_cnn_forward_fn.1} parent=11 // pred_check_branch
          %323 = sbr.rel (%p321) target = $region48
        $region47: #{audio_cnn_forward_fn.1} parent=11 // pred_region
          _
        $region48: #{audio_cnn_forward_fn.1} parent=11 // pred_fallthru
          _
        // Predicated region
        $region49: #{audio_cnn_forward_fn.1} parent=11 // pred_check
          %p324 = pneg %p256
        $region50: #{audio_cnn_forward_fn.1} parent=11 // pred_check_branch
          %326 = sbr.rel (%p324) target = $region52
        $region51: #{audio_cnn_forward_fn.1} parent=11 // pred_region
          _
        $region52: #{audio_cnn_forward_fn.1} parent=11 // pred_fallthru
          _
      $region12: #{audio_cnn_forward_fn.1} parent=5 // pred_fallthru
        _
      %p327 = scmp.lt.s32.totalorder %s20, 2
      // Predicated region
      $region53: #{audio_cnn_forward_fn.1} parent=5 // pred_check
        %p328 = pneg %p327
      $region54: #{audio_cnn_forward_fn.1} parent=5 // pred_check_branch
        %330 = sbr.rel (%p328) target = $region56
      $region55: #{audio_cnn_forward_fn.1} parent=5 // pred_region
        // Predicated region
        $region57: #{audio_cnn_forward_fn.1} parent=55 // pred_check
          %p331 = pneg %p40
        $region58: #{audio_cnn_forward_fn.1} parent=55 // pred_check_branch
          %333 = sbr.rel (%p331) target = $region60
        $region59: #{audio_cnn_forward_fn.1} parent=55 // pred_region
          %p334 = scmp.lt.s32.totalorder %s20, 1
          %s335 = scalar_select %p334, %s20, 1
          %s336 = smul.addr %s335, 32
          %s337 = smul.addr %s336, 8
          %s338 = scalar_lea.vmem %s0, %s337
        $region60: #{audio_cnn_forward_fn.1} parent=55 // pred_fallthru
          _
      $region56: #{audio_cnn_forward_fn.1} parent=5 // pred_fallthru
        _
      %p339 = scmp.le.s32.totalorder 1, %s20
      %p340 = scmp.lt.s32.totalorder %s20, 3
      %p341 = pnand %p339, %p340
      %p342 = pneg %p341
      // Predicated region
      $region61: #{audio_cnn_forward_fn.1} parent=5 // pred_check
        _
      $region62: #{audio_cnn_forward_fn.1} parent=5 // pred_check_branch
        %344 = sbr.rel (%p341) target = $region64
      $region63: #{audio_cnn_forward_fn.1} parent=5 // pred_region
        %s345 = ssub.s32 %s20, 1
        %p346 = scmp.lt.s32.totalorder %s25, 1
        %s347 = scalar_select %p346, %s25, 1
        %s348 = smul.addr %s347, 32
        %s349 = smul.addr %s348, 8
        %s350 = scalar_lea.vmem %s0, %s349
        %p351 = pneg %p46
        %p352 = pneg %p43
        %p353 = pneg %p67
        %p354 = pneg %p64
        %p355 = pneg %p88
        %p356 = pneg %p85
        %p357 = pneg %p109
        %p358 = pneg %p106
        %p359 = pneg %p130
        %p360 = pneg %p127
        %p361 = pneg %p151
        %p362 = pneg %p148
        %p363 = pneg %p172
        %p364 = pneg %p169
        %p365 = pneg %p193
        %p366 = pneg %p190
        %p367 = pneg %p214
        %p368 = pneg %p211
        %p369 = pneg %p235
        %p370 = pneg %p232
        %p371 = pneg %p256
        %p372 = pneg %p253
        %p373 = pneg %p282
        %p374 = pneg %p279
        %s375 = sand.u32 %s269, 1
        %s376 = scalar_lea.sflag [#allocation10], %s375
        %s377 = sand.u32 %s269, 1
        %s378 = scalar_lea.vmem [#allocation9], %s377
        %p379 = scmp.lt.s32.totalorder %s25, 1
        %s380 = scalar_select %p379, %s25, 1
        %s381 = smul.addr %s380, 32
        %s382 = smul.addr %s381, 8
        %s383 = scalar_lea.vmem %s0, %s382
        %v385 = vld [vmem:[%s383] sm:$0xff]
        %v386 = vld [vmem:[%s383 + $0x8] sm:$0xff]
        %v387 = vld [vmem:[%s383 + $0x10] sm:$0xff]
        %v388 = vld [vmem:[%s383 + $0x18] sm:$0xff]
        %v389 = vld [vmem:[%s383 + $0x20] sm:$0xff]
        %v390 = vld [vmem:[%s383 + $0x28] sm:$0xff]
        %v391 = vld [vmem:[%s383 + $0x30] sm:$0xff]
        %v392 = vld [vmem:[%s383 + $0x38] sm:$0xff]
        %v393 = vld [vmem:[%s383 + $0x40] sm:$0xff]
        %v394 = vld [vmem:[%s383 + $0x48] sm:$0xff]
        %v395 = vld [vmem:[%s383 + $0x50] sm:$0xff]
        %v396 = vld [vmem:[%s383 + $0x58] sm:$0xff]
        %v397 = vld [vmem:[%s383 + $0x60] sm:$0xff]
        %v398 = vld [vmem:[%s383 + $0x68] sm:$0xff]
        %v399 = vld [vmem:[%s383 + $0x70] sm:$0xff]
        %v400 = vld [vmem:[%s383 + $0x78] sm:$0xff]
        %v401 = vld [vmem:[%s383 + $0x80] sm:$0xff]
        %v402 = vld [vmem:[%s383 + $0x88] sm:$0xff]
        %v403 = vld [vmem:[%s383 + $0x90] sm:$0xff]
        %v404 = vld [vmem:[%s383 + $0x98] sm:$0xff]
        %v405 = vld [vmem:[%s383 + $0xa0] sm:$0xff]
        %v406 = vld [vmem:[%s383 + $0xa8] sm:$0xff]
        %v407 = vld [vmem:[%s383 + $0xb0] sm:$0xff]
        %v408 = vld [vmem:[%s383 + $0xb8] sm:$0xff]
        %v409 = vld [vmem:[%s383 + $0xc0] sm:$0xff]
        %v410 = vld [vmem:[%s383 + $0xc8] sm:$0xff]
        %v411 = vld [vmem:[%s383 + $0xd0] sm:$0xff]
        %v412 = vld [vmem:[%s383 + $0xd8] sm:$0xff]
        %v413 = vld [vmem:[%s383 + $0xe0] sm:$0xff]
        %v414 = vld [vmem:[%s383 + $0xe8] sm:$0xff]
        %v415 = vld [vmem:[%s383 + $0xf0] sm:$0xff]
        %v416 = vld [vmem:[%s383 + $0xf8] sm:$0xff]
        %vm417 = vcmask 3072
        %418 = vst.msk [vmem:[#allocation2] sm:$0xf] %vm417, 0
        %419 = vst.msk [vmem:[#allocation2 + $0x4] sm:$0xf] %vm417, 0
        %vm420 = vcmask 0
        %421 = vst.msk [vmem:[#allocation2 + $0x8] sm:$0x1] %vm420, 0
        %s422 = scalar_lea.vmem [#allocation2], 204
        %423 = vst.msk [vmem:[%s422] sm:$0xf] %vm417, 0
        %424 = vst.msk [vmem:[%s422 + $0x4] sm:$0xf] %vm417, 0
        %425 = vst.msk [vmem:[%s422 + $0x8] sm:$0x1] %vm420, 0
        %vm426 = vcmask 0
        %vm427 = vsmask.f32 256
        %vm428 = vmand %vm426, %vm427
        %v429 = vld [vmem:[#allocation2] sm:$0x1]
        %v430 = vsel %vm428, 0, %v429
        %431 = vst [vmem:[#allocation2] sm:$0x1] %v430
        %v432 = vld [vmem:[#allocation2 + $0xc] sm:$0x1]
        %v433 = vsel %vm428, 0, %v432
        %434 = vst [vmem:[#allocation2 + $0xc] sm:$0x1] %v433
        %v435 = vld [vmem:[#allocation2 + $0x18] sm:$0x1]
        %v436 = vsel %vm428, 0, %v435
        %437 = vst [vmem:[#allocation2 + $0x18] sm:$0x1] %v436
        %v438 = vld [vmem:[#allocation2 + $0x24] sm:$0x1]
        %v439 = vsel %vm428, 0, %v438
        %440 = vst [vmem:[#allocation2 + $0x24] sm:$0x1] %v439
        %v441 = vld [vmem:[#allocation2 + $0x30] sm:$0x1]
        %v442 = vsel %vm428, 0, %v441
        %443 = vst [vmem:[#allocation2 + $0x30] sm:$0x1] %v442
        %v444 = vld [vmem:[#allocation2 + $0x3c] sm:$0x1]
        %v445 = vsel %vm428, 0, %v444
        %446 = vst [vmem:[#allocation2 + $0x3c] sm:$0x1] %v445
        %v447 = vld [vmem:[#allocation2 + $0x48] sm:$0x1]
        %v448 = vsel %vm428, 0, %v447
        %449 = vst [vmem:[#allocation2 + $0x48] sm:$0x1] %v448
        %v450 = vld [vmem:[#allocation2 + $0x54] sm:$0x1]
        %v451 = vsel %vm428, 0, %v450
        %452 = vst [vmem:[#allocation2 + $0x54] sm:$0x1] %v451
        %v453 = vld [vmem:[#allocation2 + $0x60] sm:$0x1]
        %v454 = vsel %vm428, 0, %v453
        %455 = vst [vmem:[#allocation2 + $0x60] sm:$0x1] %v454
        %v456 = vld [vmem:[#allocation2 + $0x6c] sm:$0x1]
        %v457 = vsel %vm428, 0, %v456
        %458 = vst [vmem:[#allocation2 + $0x6c] sm:$0x1] %v457
        %v459 = vld [vmem:[#allocation2 + $0x78] sm:$0x1]
        %v460 = vsel %vm428, 0, %v459
        %461 = vst [vmem:[#allocation2 + $0x78] sm:$0x1] %v460
        %v462 = vld [vmem:[#allocation2 + $0x84] sm:$0x1]
        %v463 = vsel %vm428, 0, %v462
        %464 = vst [vmem:[#allocation2 + $0x84] sm:$0x1] %v463
        %v465 = vld [vmem:[#allocation2 + $0x90] sm:$0x1]
        %v466 = vsel %vm428, 0, %v465
        %467 = vst [vmem:[#allocation2 + $0x90] sm:$0x1] %v466
        %v468 = vld [vmem:[#allocation2 + $0x9c] sm:$0x1]
        %v469 = vsel %vm428, 0, %v468
        %470 = vst [vmem:[#allocation2 + $0x9c] sm:$0x1] %v469
        %v471 = vld [vmem:[#allocation2 + $0xa8] sm:$0x1]
        %v472 = vsel %vm428, 0, %v471
        %473 = vst [vmem:[#allocation2 + $0xa8] sm:$0x1] %v472
        %v474 = vld [vmem:[#allocation2 + $0xb4] sm:$0x1]
        %v475 = vsel %vm428, 0, %v474
        %476 = vst [vmem:[#allocation2 + $0xb4] sm:$0x1] %v475
        %v477 = vld [vmem:[#allocation2 + $0xc0] sm:$0x1]
        %v478 = vsel %vm428, 0, %v477
        %479 = vst [vmem:[#allocation2 + $0xc0] sm:$0x1] %v478
        %v480 = vld [vmem:[#allocation2 + $0xcc] sm:$0x1]
        %v481 = vsel %vm428, 0, %v480
        %482 = vst [vmem:[#allocation2 + $0xcc] sm:$0x1] %v481
        %vm483 = vsmask.f32 7938
        %vm484 = vmand %vm426, %vm483
        %v485 = vld [vmem:[#allocation2 + $0x8] sm:$0x1]
        %v486 = vsel %vm484, 0, %v485
        %487 = vst [vmem:[#allocation2 + $0x8] sm:$0x1] %v486
        %v488 = vld [vmem:[#allocation2 + $0x14] sm:$0x1]
        %v489 = vsel %vm484, 0, %v488
        %490 = vst [vmem:[#allocation2 + $0x14] sm:$0x1] %v489
        %v491 = vld [vmem:[#allocation2 + $0x20] sm:$0x1]
        %v492 = vsel %vm484, 0, %v491
        %493 = vst [vmem:[#allocation2 + $0x20] sm:$0x1] %v492
        %v494 = vld [vmem:[#allocation2 + $0x2c] sm:$0x1]
        %v495 = vsel %vm484, 0, %v494
        %496 = vst [vmem:[#allocation2 + $0x2c] sm:$0x1] %v495
        %v497 = vld [vmem:[#allocation2 + $0x38] sm:$0x1]
        %v498 = vsel %vm484, 0, %v497
        %499 = vst [vmem:[#allocation2 + $0x38] sm:$0x1] %v498
        %v500 = vld [vmem:[#allocation2 + $0x44] sm:$0x1]
        %v501 = vsel %vm484, 0, %v500
        %502 = vst [vmem:[#allocation2 + $0x44] sm:$0x1] %v501
        %v503 = vld [vmem:[#allocation2 + $0x50] sm:$0x1]
        %v504 = vsel %vm484, 0, %v503
        %505 = vst [vmem:[#allocation2 + $0x50] sm:$0x1] %v504
        %v506 = vld [vmem:[#allocation2 + $0x5c] sm:$0x1]
        %v507 = vsel %vm484, 0, %v506
        %508 = vst [vmem:[#allocation2 + $0x5c] sm:$0x1] %v507
        %v509 = vld [vmem:[#allocation2 + $0x68] sm:$0x1]
        %v510 = vsel %vm484, 0, %v509
        %511 = vst [vmem:[#allocation2 + $0x68] sm:$0x1] %v510
        %v512 = vld [vmem:[#allocation2 + $0x74] sm:$0x1]
        %v513 = vsel %vm484, 0, %v512
        %514 = vst [vmem:[#allocation2 + $0x74] sm:$0x1] %v513
        %v515 = vld [vmem:[#allocation2 + $0x80] sm:$0x1]
        %v516 = vsel %vm484, 0, %v515
        %517 = vst [vmem:[#allocation2 + $0x80] sm:$0x1] %v516
        %v518 = vld [vmem:[#allocation2 + $0x8c] sm:$0x1]
        %v519 = vsel %vm484, 0, %v518
        %520 = vst [vmem:[#allocation2 + $0x8c] sm:$0x1] %v519
        %v521 = vld [vmem:[#allocation2 + $0x98] sm:$0x1]
        %v522 = vsel %vm484, 0, %v521
        %523 = vst [vmem:[#allocation2 + $0x98] sm:$0x1] %v522
        %v524 = vld [vmem:[#allocation2 + $0xa4] sm:$0x1]
        %v525 = vsel %vm484, 0, %v524
        %526 = vst [vmem:[#allocation2 + $0xa4] sm:$0x1] %v525
        %v527 = vld [vmem:[#allocation2 + $0xb0] sm:$0x1]
        %v528 = vsel %vm484, 0, %v527
        %529 = vst [vmem:[#allocation2 + $0xb0] sm:$0x1] %v528
        %v530 = vld [vmem:[#allocation2 + $0xbc] sm:$0x1]
        %v531 = vsel %vm484, 0, %v530
        %532 = vst [vmem:[#allocation2 + $0xbc] sm:$0x1] %v531
        %v533 = vld [vmem:[#allocation2 + $0xc8] sm:$0x1]
        %v534 = vsel %vm484, 0, %v533
        %535 = vst [vmem:[#allocation2 + $0xc8] sm:$0x1] %v534
        %v536 = vld [vmem:[#allocation2 + $0xd4] sm:$0x1]
        %v537 = vsel %vm484, 0, %v536
        %538 = vst [vmem:[#allocation2 + $0xd4] sm:$0x1] %v537
        %v539 = vpack.c.bf16 %v386, %v385
        %v540 = vpack.c.bf16 %v388, %v387
        %v541 = vpack.c.bf16 %v390, %v389
        %v542 = vpack.c.bf16 %v392, %v391
        %v543 = vpack.c.bf16 %v394, %v393
        %v544 = vpack.c.bf16 %v396, %v395
        %v545 = vpack.c.bf16 %v398, %v397
        %v546 = vpack.c.bf16 %v400, %v399
        %v547 = vpack.c.bf16 %v402, %v401
        %v548 = vpack.c.bf16 %v404, %v403
        %v549 = vpack.c.bf16 %v406, %v405
        %v550 = vpack.c.bf16 %v408, %v407
        %v551 = vpack.c.bf16 %v410, %v409
        %v552 = vpack.c.bf16 %v412, %v411
        %v553 = vpack.c.bf16 %v414, %v413
        %v554 = vpack.c.bf16 %v416, %v415
        %v571 = vunpack.c.l.b16 %v539
        %v572 = vunpack.c.h.b16 %v539
        %v573 = vunpack.c.l.b16 %v540
        %v574 = vunpack.c.h.b16 %v540
        %v575 = vunpack.c.l.b16 %v541
        %v576 = vunpack.c.h.b16 %v541
        %v577 = vunpack.c.l.b16 %v542
        %v578 = vunpack.c.h.b16 %v542
        %v579 = vunpack.c.l.b16 %v543
        %v580 = vunpack.c.h.b16 %v543
        %v581 = vunpack.c.l.b16 %v544
        %v582 = vunpack.c.h.b16 %v544
        %v583 = vunpack.c.l.b16 %v545
        %v584 = vunpack.c.h.b16 %v545
        %v585 = vunpack.c.l.b16 %v546
        %v586 = vunpack.c.h.b16 %v546
        %v587 = vunpack.c.l.b16 %v547
        %v588 = vunpack.c.h.b16 %v547
        %v589 = vunpack.c.l.b16 %v548
        %v590 = vunpack.c.h.b16 %v548
        %v591 = vunpack.c.l.b16 %v549
        %v592 = vunpack.c.h.b16 %v549
        %v593 = vunpack.c.l.b16 %v550
        %v594 = vunpack.c.h.b16 %v550
        %v595 = vunpack.c.l.b16 %v551
        %v596 = vunpack.c.h.b16 %v551
        %v597 = vunpack.c.l.b16 %v552
        %v598 = vunpack.c.h.b16 %v552
        %v599 = vunpack.c.l.b16 %v553
        %v600 = vunpack.c.h.b16 %v553
        %v601 = vunpack.c.l.b16 %v554
        %v602 = vunpack.c.h.b16 %v554
        %v603 = vpack.c.b16 %v571, %v571
        %v604 = vpack.c.b16 %v572, %v572
        %v605 = vpack.c.b16 %v573, %v573
        %v606 = vpack.c.b16 %v574, %v574
        %v607 = vpack.c.b16 %v575, %v575
        %v608 = vpack.c.b16 %v576, %v576
        %v609 = vpack.c.b16 %v577, %v577
        %v610 = vpack.c.b16 %v578, %v578
        %v611 = vpack.c.b16 %v579, %v579
        %v612 = vpack.c.b16 %v580, %v580
        %v613 = vpack.c.b16 %v581, %v581
        %v614 = vpack.c.b16 %v582, %v582
        %v615 = vpack.c.b16 %v583, %v583
        %v616 = vpack.c.b16 %v584, %v584
        %v617 = vpack.c.b16 %v585, %v585
        %v618 = vpack.c.b16 %v586, %v586
        %v619 = vpack.c.b16 %v587, %v587
        %v620 = vpack.c.b16 %v588, %v588
        %v621 = vpack.c.b16 %v589, %v589
        %v622 = vpack.c.b16 %v590, %v590
        %v623 = vpack.c.b16 %v591, %v591
        %v624 = vpack.c.b16 %v592, %v592
        %v625 = vpack.c.b16 %v593, %v593
        %v626 = vpack.c.b16 %v594, %v594
        %v627 = vpack.c.b16 %v595, %v595
        %v628 = vpack.c.b16 %v596, %v596
        %v629 = vpack.c.b16 %v597, %v597
        %v630 = vpack.c.b16 %v598, %v598
        %v631 = vpack.c.b16 %v599, %v599
        %v632 = vpack.c.b16 %v600, %v600
        %v633 = vpack.c.b16 %v601, %v601
        %v634 = vpack.c.b16 %v602, %v602
        %vm635 = vsmask.f32 4368
        %vm636 = vmor %vm427, %vm635
        %v638 = vshrl.u32 %v603, 16
        %v640 = vrot.slane %v638, 7
        %v641 = vshll.u32 %v603, 16
        %v643 = vor.u32 %v640, %v641
        %v644 = vrot.slane %v640, 4
        %v646 = vshrl.u32 %v604, 16
        %v648 = vrot.slane %v646, 7
        %v649 = vshll.u32 %v604, 16
        %v651 = vor.u32 %v648, %v649
        %v652 = vsel %vm636, %v644, %v651
        %v653 = vrot.slane %v648, 4
        %v655 = vshrl.u32 %v605, 16
        %v657 = vrot.slane %v655, 7
        %v658 = vshll.u32 %v605, 16
        %v660 = vor.u32 %v657, %v658
        %v661 = vrot.slane %v657, 4
        %v663 = vshrl.u32 %v606, 16
        %v665 = vrot.slane %v663, 7
        %v666 = vshll.u32 %v606, 16
        %v668 = vor.u32 %v665, %v666
        %v669 = vsel %vm636, %v661, %v668
        %v670 = vrot.slane %v665, 4
        %v672 = vshrl.u32 %v607, 16
        %v674 = vrot.slane %v672, 7
        %v675 = vshll.u32 %v607, 16
        %v677 = vor.u32 %v674, %v675
        %v678 = vrot.slane %v674, 4
        %v680 = vshrl.u32 %v608, 16
        %v682 = vrot.slane %v680, 7
        %v683 = vshll.u32 %v608, 16
        %v685 = vor.u32 %v682, %v683
        %v686 = vsel %vm636, %v678, %v685
        %v687 = vrot.slane %v682, 4
        %v689 = vshrl.u32 %v609, 16
        %v691 = vrot.slane %v689, 7
        %v692 = vshll.u32 %v609, 16
        %v694 = vor.u32 %v691, %v692
        %v695 = vrot.slane %v691, 4
        %v697 = vshrl.u32 %v610, 16
        %v699 = vrot.slane %v697, 7
        %v700 = vshll.u32 %v610, 16
        %v702 = vor.u32 %v699, %v700
        %v703 = vsel %vm636, %v695, %v702
        %v704 = vrot.slane %v699, 4
        %v706 = vshrl.u32 %v611, 16
        %v708 = vrot.slane %v706, 7
        %v709 = vshll.u32 %v611, 16
        %v711 = vor.u32 %v708, %v709
        %v712 = vrot.slane %v708, 4
        %v714 = vshrl.u32 %v612, 16
        %v716 = vrot.slane %v714, 7
        %v717 = vshll.u32 %v612, 16
        %v719 = vor.u32 %v716, %v717
        %v720 = vsel %vm636, %v712, %v719
        %v721 = vrot.slane %v716, 4
        %v723 = vshrl.u32 %v613, 16
        %v725 = vrot.slane %v723, 7
        %v726 = vshll.u32 %v613, 16
        %v728 = vor.u32 %v725, %v726
        %v729 = vrot.slane %v725, 4
        %v731 = vshrl.u32 %v614, 16
        %v733 = vrot.slane %v731, 7
        %v734 = vshll.u32 %v614, 16
        %v736 = vor.u32 %v733, %v734
        %v737 = vsel %vm636, %v729, %v736
        %v738 = vrot.slane %v733, 4
        %v740 = vshrl.u32 %v615, 16
        %v742 = vrot.slane %v740, 7
        %v743 = vshll.u32 %v615, 16
        %v745 = vor.u32 %v742, %v743
        %v746 = vrot.slane %v742, 4
        %v748 = vshrl.u32 %v616, 16
        %v750 = vrot.slane %v748, 7
        %v751 = vshll.u32 %v616, 16
        %v753 = vor.u32 %v750, %v751
        %v754 = vsel %vm636, %v746, %v753
        %v755 = vrot.slane %v750, 4
        %v757 = vshrl.u32 %v617, 16
        %v759 = vrot.slane %v757, 7
        %v760 = vshll.u32 %v617, 16
        %v762 = vor.u32 %v759, %v760
        %v763 = vrot.slane %v759, 4
        %v765 = vshrl.u32 %v618, 16
        %v767 = vrot.slane %v765, 7
        %v768 = vshll.u32 %v618, 16
        %v770 = vor.u32 %v767, %v768
        %v771 = vsel %vm636, %v763, %v770
        %v772 = vrot.slane %v767, 4
        %v774 = vshrl.u32 %v619, 16
        %v776 = vrot.slane %v774, 7
        %v777 = vshll.u32 %v619, 16
        %v779 = vor.u32 %v776, %v777
        %v780 = vrot.slane %v776, 4
        %v782 = vshrl.u32 %v620, 16
        %v784 = vrot.slane %v782, 7
        %v785 = vshll.u32 %v620, 16
        %v787 = vor.u32 %v784, %v785
        %v788 = vsel %vm636, %v780, %v787
        %v789 = vrot.slane %v784, 4
        %v791 = vshrl.u32 %v621, 16
        %v793 = vrot.slane %v791, 7
        %v794 = vshll.u32 %v621, 16
        %v796 = vor.u32 %v793, %v794
        %v797 = vrot.slane %v793, 4
        %v799 = vshrl.u32 %v622, 16
        %v801 = vrot.slane %v799, 7
        %v802 = vshll.u32 %v622, 16
        %v804 = vor.u32 %v801, %v802
        %v805 = vsel %vm636, %v797, %v804
        %v806 = vrot.slane %v801, 4
        %v808 = vshrl.u32 %v623, 16
        %v810 = vrot.slane %v808, 7
        %v811 = vshll.u32 %v623, 16
        %v813 = vor.u32 %v810, %v811
        %v814 = vrot.slane %v810, 4
        %v816 = vshrl.u32 %v624, 16
        %v818 = vrot.slane %v816, 7
        %v819 = vshll.u32 %v624, 16
        %v821 = vor.u32 %v818, %v819
        %v822 = vsel %vm636, %v814, %v821
        %v823 = vrot.slane %v818, 4
        %v825 = vshrl.u32 %v625, 16
        %v827 = vrot.slane %v825, 7
        %v828 = vshll.u32 %v625, 16
        %v830 = vor.u32 %v827, %v828
        %v831 = vrot.slane %v827, 4
        %v833 = vshrl.u32 %v626, 16
        %v835 = vrot.slane %v833, 7
        %v836 = vshll.u32 %v626, 16
        %v838 = vor.u32 %v835, %v836
        %v839 = vsel %vm636, %v831, %v838
        %v840 = vrot.slane %v835, 4
        %v842 = vshrl.u32 %v627, 16
        %v844 = vrot.slane %v842, 7
        %v845 = vshll.u32 %v627, 16
        %v847 = vor.u32 %v844, %v845
        %v848 = vrot.slane %v844, 4
        %v850 = vshrl.u32 %v628, 16
        %v852 = vrot.slane %v850, 7
        %v853 = vshll.u32 %v628, 16
        %v855 = vor.u32 %v852, %v853
        %v856 = vsel %vm636, %v848, %v855
        %v857 = vrot.slane %v852, 4
        %v859 = vshrl.u32 %v629, 16
        %v861 = vrot.slane %v859, 7
        %v862 = vshll.u32 %v629, 16
        %v864 = vor.u32 %v861, %v862
        %v865 = vrot.slane %v861, 4
        %v867 = vshrl.u32 %v630, 16
        %v869 = vrot.slane %v867, 7
        %v870 = vshll.u32 %v630, 16
        %v872 = vor.u32 %v869, %v870
        %v873 = vsel %vm636, %v865, %v872
        %v874 = vrot.slane %v869, 4
        %v876 = vshrl.u32 %v631, 16
        %v878 = vrot.slane %v876, 7
        %v879 = vshll.u32 %v631, 16
        %v881 = vor.u32 %v878, %v879
        %v882 = vrot.slane %v878, 4
        %v884 = vshrl.u32 %v632, 16
        %v886 = vrot.slane %v884, 7
        %v887 = vshll.u32 %v632, 16
        %v889 = vor.u32 %v886, %v887
        %v890 = vsel %vm636, %v882, %v889
        %v891 = vrot.slane %v886, 4
        %v893 = vshrl.u32 %v633, 16
        %v895 = vrot.slane %v893, 7
        %v896 = vshll.u32 %v633, 16
        %v898 = vor.u32 %v895, %v896
        %v899 = vrot.slane %v895, 4
        %v901 = vshrl.u32 %v634, 16
        %v903 = vrot.slane %v901, 7
        %v904 = vshll.u32 %v634, 16
        %v906 = vor.u32 %v903, %v904
        %v907 = vsel %vm636, %v899, %v906
        %v908 = vrot.slane %v903, 4
        %s957 = scalar_lea.vmem [#allocation2], 12
        %vm958 = vcmask 3072
        %vm959 = vmand %vm958, %vm483
        %v960 = vld [vmem:[%s957] sm:$0xf]
        %v961 = vsel %vm959, %v643, %v960
        %962 = vst [vmem:[%s957] sm:$0xf] %v961
        %963 = vst.msk [vmem:[%s957 + $0x4] sm:$0xf] %vm417, %v652
        %v964 = vld [vmem:[%s957 + $0x8] sm:$0x1]
        %v965 = vsel %vm428, %v653, %v964
        %966 = vst [vmem:[%s957 + $0x8] sm:$0x1] %v965
        %v967 = vld [vmem:[%s957 + $0xc] sm:$0xf]
        %v968 = vsel %vm959, %v660, %v967
        %969 = vst [vmem:[%s957 + $0xc] sm:$0xf] %v968
        %970 = vst.msk [vmem:[%s957 + $0x10] sm:$0xf] %vm417, %v669
        %v971 = vld [vmem:[%s957 + $0x14] sm:$0x1]
        %v972 = vsel %vm428, %v670, %v971
        %973 = vst [vmem:[%s957 + $0x14] sm:$0x1] %v972
        %v974 = vld [vmem:[%s957 + $0x18] sm:$0xf]
        %v975 = vsel %vm959, %v677, %v974
        %976 = vst [vmem:[%s957 + $0x18] sm:$0xf] %v975
        %977 = vst.msk [vmem:[%s957 + $0x1c] sm:$0xf] %vm417, %v686
        %v978 = vld [vmem:[%s957 + $0x20] sm:$0x1]
        %v979 = vsel %vm428, %v687, %v978
        %980 = vst [vmem:[%s957 + $0x20] sm:$0x1] %v979
        %v981 = vld [vmem:[%s957 + $0x24] sm:$0xf]
        %v982 = vsel %vm959, %v694, %v981
        %983 = vst [vmem:[%s957 + $0x24] sm:$0xf] %v982
        %984 = vst.msk [vmem:[%s957 + $0x28] sm:$0xf] %vm417, %v703
        %v985 = vld [vmem:[%s957 + $0x2c] sm:$0x1]
        %v986 = vsel %vm428, %v704, %v985
        %987 = vst [vmem:[%s957 + $0x2c] sm:$0x1] %v986
        %v988 = vld [vmem:[%s957 + $0x30] sm:$0xf]
        %v989 = vsel %vm959, %v711, %v988
        %990 = vst [vmem:[%s957 + $0x30] sm:$0xf] %v989
        %991 = vst.msk [vmem:[%s957 + $0x34] sm:$0xf] %vm417, %v720
        %v992 = vld [vmem:[%s957 + $0x38] sm:$0x1]
        %v993 = vsel %vm428, %v721, %v992
        %994 = vst [vmem:[%s957 + $0x38] sm:$0x1] %v993
        %v995 = vld [vmem:[%s957 + $0x3c] sm:$0xf]
        %v996 = vsel %vm959, %v728, %v995
        %997 = vst [vmem:[%s957 + $0x3c] sm:$0xf] %v996
        %998 = vst.msk [vmem:[%s957 + $0x40] sm:$0xf] %vm417, %v737
        %v999 = vld [vmem:[%s957 + $0x44] sm:$0x1]
        %v1000 = vsel %vm428, %v738, %v999
        %1001 = vst [vmem:[%s957 + $0x44] sm:$0x1] %v1000
        %v1002 = vld [vmem:[%s957 + $0x48] sm:$0xf]
        %v1003 = vsel %vm959, %v745, %v1002
        %1004 = vst [vmem:[%s957 + $0x48] sm:$0xf] %v1003
        %1005 = vst.msk [vmem:[%s957 + $0x4c] sm:$0xf] %vm417, %v754
        %v1006 = vld [vmem:[%s957 + $0x50] sm:$0x1]
        %v1007 = vsel %vm428, %v755, %v1006
        %1008 = vst [vmem:[%s957 + $0x50] sm:$0x1] %v1007
        %v1009 = vld [vmem:[%s957 + $0x54] sm:$0xf]
        %v1010 = vsel %vm959, %v762, %v1009
        %1011 = vst [vmem:[%s957 + $0x54] sm:$0xf] %v1010
        %1012 = vst.msk [vmem:[%s957 + $0x58] sm:$0xf] %vm417, %v771
        %v1013 = vld [vmem:[%s957 + $0x5c] sm:$0x1]
        %v1014 = vsel %vm428, %v772, %v1013
        %1015 = vst [vmem:[%s957 + $0x5c] sm:$0x1] %v1014
        %v1016 = vld [vmem:[%s957 + $0x60] sm:$0xf]
        %v1017 = vsel %vm959, %v779, %v1016
        %1018 = vst [vmem:[%s957 + $0x60] sm:$0xf] %v1017
        %1019 = vst.msk [vmem:[%s957 + $0x64] sm:$0xf] %vm417, %v788
        %v1020 = vld [vmem:[%s957 + $0x68] sm:$0x1]
        %v1021 = vsel %vm428, %v789, %v1020
        %1022 = vst [vmem:[%s957 + $0x68] sm:$0x1] %v1021
        %v1023 = vld [vmem:[%s957 + $0x6c] sm:$0xf]
        %v1024 = vsel %vm959, %v796, %v1023
        %1025 = vst [vmem:[%s957 + $0x6c] sm:$0xf] %v1024
        %1026 = vst.msk [vmem:[%s957 + $0x70] sm:$0xf] %vm417, %v805
        %v1027 = vld [vmem:[%s957 + $0x74] sm:$0x1]
        %v1028 = vsel %vm428, %v806, %v1027
        %1029 = vst [vmem:[%s957 + $0x74] sm:$0x1] %v1028
        %v1030 = vld [vmem:[%s957 + $0x78] sm:$0xf]
        %v1031 = vsel %vm959, %v813, %v1030
        %1032 = vst [vmem:[%s957 + $0x78] sm:$0xf] %v1031
        %1033 = vst.msk [vmem:[%s957 + $0x7c] sm:$0xf] %vm417, %v822
        %v1034 = vld [vmem:[%s957 + $0x80] sm:$0x1]
        %v1035 = vsel %vm428, %v823, %v1034
        %1036 = vst [vmem:[%s957 + $0x80] sm:$0x1] %v1035
        %v1037 = vld [vmem:[%s957 + $0x84] sm:$0xf]
        %v1038 = vsel %vm959, %v830, %v1037
        %1039 = vst [vmem:[%s957 + $0x84] sm:$0xf] %v1038
        %1040 = vst.msk [vmem:[%s957 + $0x88] sm:$0xf] %vm417, %v839
        %v1041 = vld [vmem:[%s957 + $0x8c] sm:$0x1]
        %v1042 = vsel %vm428, %v840, %v1041
        %1043 = vst [vmem:[%s957 + $0x8c] sm:$0x1] %v1042
        %v1044 = vld [vmem:[%s957 + $0x90] sm:$0xf]
        %v1045 = vsel %vm959, %v847, %v1044
        %1046 = vst [vmem:[%s957 + $0x90] sm:$0xf] %v1045
        %1047 = vst.msk [vmem:[%s957 + $0x94] sm:$0xf] %vm417, %v856
        %v1048 = vld [vmem:[%s957 + $0x98] sm:$0x1]
        %v1049 = vsel %vm428, %v857, %v1048
        %1050 = vst [vmem:[%s957 + $0x98] sm:$0x1] %v1049
        %v1051 = vld [vmem:[%s957 + $0x9c] sm:$0xf]
        %v1052 = vsel %vm959, %v864, %v1051
        %1053 = vst [vmem:[%s957 + $0x9c] sm:$0xf] %v1052
        %1054 = vst.msk [vmem:[%s957 + $0xa0] sm:$0xf] %vm417, %v873
        %v1055 = vld [vmem:[%s957 + $0xa4] sm:$0x1]
        %v1056 = vsel %vm428, %v874, %v1055
        %1057 = vst [vmem:[%s957 + $0xa4] sm:$0x1] %v1056
        %v1058 = vld [vmem:[%s957 + $0xa8] sm:$0xf]
        %v1059 = vsel %vm959, %v881, %v1058
        %1060 = vst [vmem:[%s957 + $0xa8] sm:$0xf] %v1059
        %1061 = vst.msk [vmem:[%s957 + $0xac] sm:$0xf] %vm417, %v890
        %v1062 = vld [vmem:[%s957 + $0xb0] sm:$0x1]
        %v1063 = vsel %vm428, %v891, %v1062
        %1064 = vst [vmem:[%s957 + $0xb0] sm:$0x1] %v1063
        %v1065 = vld [vmem:[%s957 + $0xb4] sm:$0xf]
        %v1066 = vsel %vm959, %v898, %v1065
        %1067 = vst [vmem:[%s957 + $0xb4] sm:$0xf] %v1066
        %1068 = vst.msk [vmem:[%s957 + $0xb8] sm:$0xf] %vm417, %v907
        %v1069 = vld [vmem:[%s957 + $0xbc] sm:$0x1]
        %v1070 = vsel %vm428, %v908, %v1069
        %1071 = vst [vmem:[%s957 + $0xbc] sm:$0x1] %v1070
        %v1072 = vld [vmem:[#allocation2] sm:$0xf]
        %v1073 = vld [vmem:[#allocation2 + $0x4] sm:$0xf]
        %v1074 = vld [vmem:[#allocation2 + $0xc] sm:$0xf]
        %v1075 = vld [vmem:[#allocation2 + $0x10] sm:$0xf]
        %v1076 = vld [vmem:[#allocation2 + $0x18] sm:$0xf]
        %v1077 = vld [vmem:[#allocation2 + $0x1c] sm:$0xf]
        %v1078 = vld [vmem:[#allocation2 + $0x24] sm:$0xf]
        %v1079 = vld [vmem:[#allocation2 + $0x28] sm:$0xf]
        %v1080 = vld [vmem:[#allocation2 + $0x30] sm:$0xf]
        %v1081 = vld [vmem:[#allocation2 + $0x34] sm:$0xf]
        %v1082 = vld [vmem:[#allocation2 + $0x3c] sm:$0xf]
        %v1083 = vld [vmem:[#allocation2 + $0x40] sm:$0xf]
        %v1084 = vld [vmem:[#allocation2 + $0x48] sm:$0xf]
        %v1085 = vld [vmem:[#allocation2 + $0x4c] sm:$0xf]
        %v1086 = vld [vmem:[#allocation2 + $0x54] sm:$0xf]
        %v1087 = vld [vmem:[#allocation2 + $0x58] sm:$0xf]
        %v1088 = vld [vmem:[#allocation2 + $0x60] sm:$0xf]
        %v1089 = vld [vmem:[#allocation2 + $0x64] sm:$0xf]
        %v1090 = vld [vmem:[#allocation2 + $0x6c] sm:$0xf]
        %v1091 = vld [vmem:[#allocation2 + $0x70] sm:$0xf]
        %v1092 = vld [vmem:[#allocation2 + $0x78] sm:$0xf]
        %v1093 = vld [vmem:[#allocation2 + $0x7c] sm:$0xf]
        %v1094 = vld [vmem:[#allocation2 + $0x84] sm:$0xf]
        %v1095 = vld [vmem:[#allocation2 + $0x88] sm:$0xf]
        %v1096 = vld [vmem:[#allocation2 + $0x90] sm:$0xf]
        %v1097 = vld [vmem:[#allocation2 + $0x94] sm:$0xf]
        %v1098 = vld [vmem:[#allocation2 + $0x9c] sm:$0xf]
        %v1099 = vld [vmem:[#allocation2 + $0xa0] sm:$0xf]
        %v1100 = vld [vmem:[#allocation2 + $0xa8] sm:$0xf]
        %v1101 = vld [vmem:[#allocation2 + $0xac] sm:$0xf]
        %v1102 = vld [vmem:[#allocation2 + $0xb4] sm:$0xf]
        %v1103 = vld [vmem:[#allocation2 + $0xb8] sm:$0xf]
        %v1136 = vunpack.c.l.b16 %v1072
        %v1137 = vunpack.c.l.b16 %v1073
        %v1138 = vunpack.c.l.b16 %v1074
        %v1139 = vunpack.c.l.b16 %v1075
        %v1140 = vunpack.c.l.b16 %v1076
        %v1141 = vunpack.c.l.b16 %v1077
        %v1142 = vunpack.c.l.b16 %v1078
        %v1143 = vunpack.c.l.b16 %v1079
        %v1144 = vunpack.c.l.b16 %v1080
        %v1145 = vunpack.c.l.b16 %v1081
        %v1146 = vunpack.c.l.b16 %v1082
        %v1147 = vunpack.c.l.b16 %v1083
        %v1148 = vunpack.c.l.b16 %v1084
        %v1149 = vunpack.c.l.b16 %v1085
        %v1150 = vunpack.c.l.b16 %v1086
        %v1151 = vunpack.c.l.b16 %v1087
        %v1152 = vunpack.c.l.b16 %v1088
        %v1153 = vunpack.c.l.b16 %v1089
        %v1154 = vunpack.c.l.b16 %v1090
        %v1155 = vunpack.c.l.b16 %v1091
        %v1156 = vunpack.c.l.b16 %v1092
        %v1157 = vunpack.c.l.b16 %v1093
        %v1158 = vunpack.c.l.b16 %v1094
        %v1159 = vunpack.c.l.b16 %v1095
        %v1160 = vunpack.c.l.b16 %v1096
        %v1161 = vunpack.c.l.b16 %v1097
        %v1162 = vunpack.c.l.b16 %v1098
        %v1163 = vunpack.c.l.b16 %v1099
        %v1164 = vunpack.c.l.b16 %v1100
        %v1165 = vunpack.c.l.b16 %v1101
        %v1166 = vunpack.c.l.b16 %v1102
        %v1167 = vunpack.c.l.b16 %v1103
        %v1168 = vpack.c.b16 %v1137, %v1136
        %v1169 = vpack.c.b16 %v1139, %v1138
        %v1170 = vpack.c.b16 %v1141, %v1140
        %v1171 = vpack.c.b16 %v1143, %v1142
        %v1172 = vpack.c.b16 %v1145, %v1144
        %v1173 = vpack.c.b16 %v1147, %v1146
        %v1174 = vpack.c.b16 %v1149, %v1148
        %v1175 = vpack.c.b16 %v1151, %v1150
        %v1176 = vpack.c.b16 %v1153, %v1152
        %v1177 = vpack.c.b16 %v1155, %v1154
        %v1178 = vpack.c.b16 %v1157, %v1156
        %v1179 = vpack.c.b16 %v1159, %v1158
        %v1180 = vpack.c.b16 %v1161, %v1160
        %v1181 = vpack.c.b16 %v1163, %v1162
        %v1182 = vpack.c.b16 %v1165, %v1164
        %v1183 = vpack.c.b16 %v1167, %v1166
        %vm1200 = vcmask 7168
        %1201 = vst.msk [vmem:[#allocation3] sm:$0xff] %vm1200, %v1168
        %1202 = vst.msk [vmem:[#allocation3 + $0x8] sm:$0xff] %vm1200, %v1169
        %1203 = vst.msk [vmem:[#allocation3 + $0x10] sm:$0xff] %vm1200, %v1170
        %1204 = vst.msk [vmem:[#allocation3 + $0x18] sm:$0xff] %vm1200, %v1171
        %1205 = vst.msk [vmem:[#allocation3 + $0x20] sm:$0xff] %vm1200, %v1172
        %1206 = vst.msk [vmem:[#allocation3 + $0x28] sm:$0xff] %vm1200, %v1173
        %1207 = vst.msk [vmem:[#allocation3 + $0x30] sm:$0xff] %vm1200, %v1174
        %1208 = vst.msk [vmem:[#allocation3 + $0x38] sm:$0xff] %vm1200, %v1175
        %1209 = vst.msk [vmem:[#allocation3 + $0x40] sm:$0xff] %vm1200, %v1176
        %1210 = vst.msk [vmem:[#allocation3 + $0x48] sm:$0xff] %vm1200, %v1177
        %1211 = vst.msk [vmem:[#allocation3 + $0x50] sm:$0xff] %vm1200, %v1178
        %1212 = vst.msk [vmem:[#allocation3 + $0x58] sm:$0xff] %vm1200, %v1179
        %1213 = vst.msk [vmem:[#allocation3 + $0x60] sm:$0xff] %vm1200, %v1180
        %1214 = vst.msk [vmem:[#allocation3 + $0x68] sm:$0xff] %vm1200, %v1181
        %1215 = vst.msk [vmem:[#allocation3 + $0x70] sm:$0xff] %vm1200, %v1182
        %1216 = vst.msk [vmem:[#allocation3 + $0x78] sm:$0xff] %vm1200, %v1183
        %v1217 = vld [vmem:[#allocation2] sm:$0xf]
        %v1218 = vld [vmem:[#allocation2 + $0x4] sm:$0xf]
        %v1219 = vld [vmem:[#allocation2 + $0x8] sm:$0x1]
        %v1220 = vld [vmem:[#allocation2 + $0xc] sm:$0xf]
        %v1221 = vld [vmem:[#allocation2 + $0x10] sm:$0xf]
        %v1222 = vld [vmem:[#allocation2 + $0x14] sm:$0x1]
        %v1223 = vld [vmem:[#allocation2 + $0x18] sm:$0xf]
        %v1224 = vld [vmem:[#allocation2 + $0x1c] sm:$0xf]
        %v1225 = vld [vmem:[#allocation2 + $0x20] sm:$0x1]
        %v1226 = vld [vmem:[#allocation2 + $0x24] sm:$0xf]
        %v1227 = vld [vmem:[#allocation2 + $0x28] sm:$0xf]
        %v1228 = vld [vmem:[#allocation2 + $0x2c] sm:$0x1]
        %v1229 = vld [vmem:[#allocation2 + $0x30] sm:$0xf]
        %v1230 = vld [vmem:[#allocation2 + $0x34] sm:$0xf]
        %v1231 = vld [vmem:[#allocation2 + $0x38] sm:$0x1]
        %v1232 = vld [vmem:[#allocation2 + $0x3c] sm:$0xf]
        %v1233 = vld [vmem:[#allocation2 + $0x40] sm:$0xf]
        %v1234 = vld [vmem:[#allocation2 + $0x44] sm:$0x1]
        %v1235 = vld [vmem:[#allocation2 + $0x48] sm:$0xf]
        %v1236 = vld [vmem:[#allocation2 + $0x4c] sm:$0xf]
        %v1237 = vld [vmem:[#allocation2 + $0x50] sm:$0x1]
        %v1238 = vld [vmem:[#allocation2 + $0x54] sm:$0xf]
        %v1239 = vld [vmem:[#allocation2 + $0x58] sm:$0xf]
        %v1240 = vld [vmem:[#allocation2 + $0x5c] sm:$0x1]
        %v1241 = vld [vmem:[#allocation2 + $0x60] sm:$0xf]
        %v1242 = vld [vmem:[#allocation2 + $0x64] sm:$0xf]
        %v1243 = vld [vmem:[#allocation2 + $0x68] sm:$0x1]
        %v1244 = vld [vmem:[#allocation2 + $0x6c] sm:$0xf]
        %v1245 = vld [vmem:[#allocation2 + $0x70] sm:$0xf]
        %v1246 = vld [vmem:[#allocation2 + $0x74] sm:$0x1]
        %v1247 = vld [vmem:[#allocation2 + $0x78] sm:$0xf]
        %v1248 = vld [vmem:[#allocation2 + $0x7c] sm:$0xf]
        %v1249 = vld [vmem:[#allocation2 + $0x80] sm:$0x1]
        %v1250 = vld [vmem:[#allocation2 + $0x84] sm:$0xf]
        %v1251 = vld [vmem:[#allocation2 + $0x88] sm:$0xf]
        %v1252 = vld [vmem:[#allocation2 + $0x8c] sm:$0x1]
        %v1253 = vld [vmem:[#allocation2 + $0x90] sm:$0xf]
        %v1254 = vld [vmem:[#allocation2 + $0x94] sm:$0xf]
        %v1255 = vld [vmem:[#allocation2 + $0x98] sm:$0x1]
        %v1256 = vld [vmem:[#allocation2 + $0x9c] sm:$0xf]
        %v1257 = vld [vmem:[#allocation2 + $0xa0] sm:$0xf]
        %v1258 = vld [vmem:[#allocation2 + $0xa4] sm:$0x1]
        %v1259 = vld [vmem:[#allocation2 + $0xa8] sm:$0xf]
        %v1260 = vld [vmem:[#allocation2 + $0xac] sm:$0xf]
        %v1261 = vld [vmem:[#allocation2 + $0xb0] sm:$0x1]
        %v1262 = vld [vmem:[#allocation2 + $0xb4] sm:$0xf]
        %v1263 = vld [vmem:[#allocation2 + $0xb8] sm:$0xf]
        %v1264 = vld [vmem:[#allocation2 + $0xbc] sm:$0x1]
        %vm1265 = vsmask.f32 3328
        %vm1266 = vsmask.f32 7440
        %vm1267 = vmor %vm1265, %vm1266
        %v1269 = vshrl.u32 %v1217, 16
        %v1271 = vrot.slane %v1269, 4
        %v1272 = vshll.u32 %v1217, 16
        %v1274 = vrot.slane %v1272, 5
        %v1275 = vor.u32 %v1271, %v1274
        %v1276 = vrot.slane %v1275, 4
        %v1278 = vshll.u32 %v1218, 16
        %v1280 = vrot.slane %v1278, 5
        %v1281 = vsel %vm1267, %v1276, %v1280
        %v1282 = vshrl.u32 %v1218, 16
        %v1284 = vrot.slane %v1282, 4
        %v1285 = vor.u32 %v1284, %v1280
        %v1286 = vrot.slane %v1285, 4
        %v1288 = vshll.u32 %v1219, 16
        %v1290 = vrot.slane %v1288, 5
        %v1291 = vsel %vm1267, %v1286, %v1290
        %v1293 = vshrl.u32 %v1220, 16
        %v1295 = vrot.slane %v1293, 4
        %v1296 = vshll.u32 %v1220, 16
        %v1298 = vrot.slane %v1296, 5
        %v1299 = vor.u32 %v1295, %v1298
        %v1300 = vrot.slane %v1299, 4
        %v1302 = vshll.u32 %v1221, 16
        %v1304 = vrot.slane %v1302, 5
        %v1305 = vsel %vm1267, %v1300, %v1304
        %v1306 = vshrl.u32 %v1221, 16
        %v1308 = vrot.slane %v1306, 4
        %v1309 = vor.u32 %v1308, %v1304
        %v1310 = vrot.slane %v1309, 4
        %v1312 = vshll.u32 %v1222, 16
        %v1314 = vrot.slane %v1312, 5
        %v1315 = vsel %vm1267, %v1310, %v1314
        %v1317 = vshrl.u32 %v1223, 16
        %v1319 = vrot.slane %v1317, 4
        %v1320 = vshll.u32 %v1223, 16
        %v1322 = vrot.slane %v1320, 5
        %v1323 = vor.u32 %v1319, %v1322
        %v1324 = vrot.slane %v1323, 4
        %v1326 = vshll.u32 %v1224, 16
        %v1328 = vrot.slane %v1326, 5
        %v1329 = vsel %vm1267, %v1324, %v1328
        %v1330 = vshrl.u32 %v1224, 16
        %v1332 = vrot.slane %v1330, 4
        %v1333 = vor.u32 %v1332, %v1328
        %v1334 = vrot.slane %v1333, 4
        %v1336 = vshll.u32 %v1225, 16
        %v1338 = vrot.slane %v1336, 5
        %v1339 = vsel %vm1267, %v1334, %v1338
        %v1341 = vshrl.u32 %v1226, 16
        %v1343 = vrot.slane %v1341, 4
        %v1344 = vshll.u32 %v1226, 16
        %v1346 = vrot.slane %v1344, 5
        %v1347 = vor.u32 %v1343, %v1346
        %v1348 = vrot.slane %v1347, 4
        %v1350 = vshll.u32 %v1227, 16
        %v1352 = vrot.slane %v1350, 5
        %v1353 = vsel %vm1267, %v1348, %v1352
        %v1354 = vshrl.u32 %v1227, 16
        %v1356 = vrot.slane %v1354, 4
        %v1357 = vor.u32 %v1356, %v1352
        %v1358 = vrot.slane %v1357, 4
        %v1360 = vshll.u32 %v1228, 16
        %v1362 = vrot.slane %v1360, 5
        %v1363 = vsel %vm1267, %v1358, %v1362
        %v1365 = vshrl.u32 %v1229, 16
        %v1367 = vrot.slane %v1365, 4
        %v1368 = vshll.u32 %v1229, 16
        %v1370 = vrot.slane %v1368, 5
        %v1371 = vor.u32 %v1367, %v1370
        %v1372 = vrot.slane %v1371, 4
        %v1374 = vshll.u32 %v1230, 16
        %v1376 = vrot.slane %v1374, 5
        %v1377 = vsel %vm1267, %v1372, %v1376
        %v1378 = vshrl.u32 %v1230, 16
        %v1380 = vrot.slane %v1378, 4
        %v1381 = vor.u32 %v1380, %v1376
        %v1382 = vrot.slane %v1381, 4
        %v1384 = vshll.u32 %v1231, 16
        %v1386 = vrot.slane %v1384, 5
        %v1387 = vsel %vm1267, %v1382, %v1386
        %v1389 = vshrl.u32 %v1232, 16
        %v1391 = vrot.slane %v1389, 4
        %v1392 = vshll.u32 %v1232, 16
        %v1394 = vrot.slane %v1392, 5
        %v1395 = vor.u32 %v1391, %v1394
        %v1396 = vrot.slane %v1395, 4
        %v1398 = vshll.u32 %v1233, 16
        %v1400 = vrot.slane %v1398, 5
        %v1401 = vsel %vm1267, %v1396, %v1400
        %v1402 = vshrl.u32 %v1233, 16
        %v1404 = vrot.slane %v1402, 4
        %v1405 = vor.u32 %v1404, %v1400
        %v1406 = vrot.slane %v1405, 4
        %v1408 = vshll.u32 %v1234, 16
        %v1410 = vrot.slane %v1408, 5
        %v1411 = vsel %vm1267, %v1406, %v1410
        %v1413 = vshrl.u32 %v1235, 16
        %v1415 = vrot.slane %v1413, 4
        %v1416 = vshll.u32 %v1235, 16
        %v1418 = vrot.slane %v1416, 5
        %v1419 = vor.u32 %v1415, %v1418
        %v1420 = vrot.slane %v1419, 4
        %v1422 = vshll.u32 %v1236, 16
        %v1424 = vrot.slane %v1422, 5
        %v1425 = vsel %vm1267, %v1420, %v1424
        %v1426 = vshrl.u32 %v1236, 16
        %v1428 = vrot.slane %v1426, 4
        %v1429 = vor.u32 %v1428, %v1424
        %v1430 = vrot.slane %v1429, 4
        %v1432 = vshll.u32 %v1237, 16
        %v1434 = vrot.slane %v1432, 5
        %v1435 = vsel %vm1267, %v1430, %v1434
        %v1437 = vshrl.u32 %v1238, 16
        %v1439 = vrot.slane %v1437, 4
        %v1440 = vshll.u32 %v1238, 16
        %v1442 = vrot.slane %v1440, 5
        %v1443 = vor.u32 %v1439, %v1442
        %v1444 = vrot.slane %v1443, 4
        %v1446 = vshll.u32 %v1239, 16
        %v1448 = vrot.slane %v1446, 5
        %v1449 = vsel %vm1267, %v1444, %v1448
        %v1450 = vshrl.u32 %v1239, 16
        %v1452 = vrot.slane %v1450, 4
        %v1453 = vor.u32 %v1452, %v1448
        %v1454 = vrot.slane %v1453, 4
        %v1456 = vshll.u32 %v1240, 16
        %v1458 = vrot.slane %v1456, 5
        %v1459 = vsel %vm1267, %v1454, %v1458
        %v1461 = vshrl.u32 %v1241, 16
        %v1463 = vrot.slane %v1461, 4
        %v1464 = vshll.u32 %v1241, 16
        %v1466 = vrot.slane %v1464, 5
        %v1467 = vor.u32 %v1463, %v1466
        %v1468 = vrot.slane %v1467, 4
        %v1470 = vshll.u32 %v1242, 16
        %v1472 = vrot.slane %v1470, 5
        %v1473 = vsel %vm1267, %v1468, %v1472
        %v1474 = vshrl.u32 %v1242, 16
        %v1476 = vrot.slane %v1474, 4
        %v1477 = vor.u32 %v1476, %v1472
        %v1478 = vrot.slane %v1477, 4
        %v1480 = vshll.u32 %v1243, 16
        %v1482 = vrot.slane %v1480, 5
        %v1483 = vsel %vm1267, %v1478, %v1482
        %v1485 = vshrl.u32 %v1244, 16
        %v1487 = vrot.slane %v1485, 4
        %v1488 = vshll.u32 %v1244, 16
        %v1490 = vrot.slane %v1488, 5
        %v1491 = vor.u32 %v1487, %v1490
        %v1492 = vrot.slane %v1491, 4
        %v1494 = vshll.u32 %v1245, 16
        %v1496 = vrot.slane %v1494, 5
        %v1497 = vsel %vm1267, %v1492, %v1496
        %v1498 = vshrl.u32 %v1245, 16
        %v1500 = vrot.slane %v1498, 4
        %v1501 = vor.u32 %v1500, %v1496
        %v1502 = vrot.slane %v1501, 4
        %v1504 = vshll.u32 %v1246, 16
        %v1506 = vrot.slane %v1504, 5
        %v1507 = vsel %vm1267, %v1502, %v1506
        %v1509 = vshrl.u32 %v1247, 16
        %v1511 = vrot.slane %v1509, 4
        %v1512 = vshll.u32 %v1247, 16
        %v1514 = vrot.slane %v1512, 5
        %v1515 = vor.u32 %v1511, %v1514
        %v1516 = vrot.slane %v1515, 4
        %v1518 = vshll.u32 %v1248, 16
        %v1520 = vrot.slane %v1518, 5
        %v1521 = vsel %vm1267, %v1516, %v1520
        %v1522 = vshrl.u32 %v1248, 16
        %v1524 = vrot.slane %v1522, 4
        %v1525 = vor.u32 %v1524, %v1520
        %v1526 = vrot.slane %v1525, 4
        %v1528 = vshll.u32 %v1249, 16
        %v1530 = vrot.slane %v1528, 5
        %v1531 = vsel %vm1267, %v1526, %v1530
        %v1533 = vshrl.u32 %v1250, 16
        %v1535 = vrot.slane %v1533, 4
        %v1536 = vshll.u32 %v1250, 16
        %v1538 = vrot.slane %v1536, 5
        %v1539 = vor.u32 %v1535, %v1538
        %v1540 = vrot.slane %v1539, 4
        %v1542 = vshll.u32 %v1251, 16
        %v1544 = vrot.slane %v1542, 5
        %v1545 = vsel %vm1267, %v1540, %v1544
        %v1546 = vshrl.u32 %v1251, 16
        %v1548 = vrot.slane %v1546, 4
        %v1549 = vor.u32 %v1548, %v1544
        %v1550 = vrot.slane %v1549, 4
        %v1552 = vshll.u32 %v1252, 16
        %v1554 = vrot.slane %v1552, 5
        %v1555 = vsel %vm1267, %v1550, %v1554
        %v1557 = vshrl.u32 %v1253, 16
        %v1559 = vrot.slane %v1557, 4
        %v1560 = vshll.u32 %v1253, 16
        %v1562 = vrot.slane %v1560, 5
        %v1563 = vor.u32 %v1559, %v1562
        %v1564 = vrot.slane %v1563, 4
        %v1566 = vshll.u32 %v1254, 16
        %v1568 = vrot.slane %v1566, 5
        %v1569 = vsel %vm1267, %v1564, %v1568
        %v1570 = vshrl.u32 %v1254, 16
        %v1572 = vrot.slane %v1570, 4
        %v1573 = vor.u32 %v1572, %v1568
        %v1574 = vrot.slane %v1573, 4
        %v1576 = vshll.u32 %v1255, 16
        %v1578 = vrot.slane %v1576, 5
        %v1579 = vsel %vm1267, %v1574, %v1578
        %v1581 = vshrl.u32 %v1256, 16
        %v1583 = vrot.slane %v1581, 4
        %v1584 = vshll.u32 %v1256, 16
        %v1586 = vrot.slane %v1584, 5
        %v1587 = vor.u32 %v1583, %v1586
        %v1588 = vrot.slane %v1587, 4
        %v1590 = vshll.u32 %v1257, 16
        %v1592 = vrot.slane %v1590, 5
        %v1593 = vsel %vm1267, %v1588, %v1592
        %v1594 = vshrl.u32 %v1257, 16
        %v1596 = vrot.slane %v1594, 4
        %v1597 = vor.u32 %v1596, %v1592
        %v1598 = vrot.slane %v1597, 4
        %v1600 = vshll.u32 %v1258, 16
        %v1602 = vrot.slane %v1600, 5
        %v1603 = vsel %vm1267, %v1598, %v1602
        %v1605 = vshrl.u32 %v1259, 16
        %v1607 = vrot.slane %v1605, 4
        %v1608 = vshll.u32 %v1259, 16
        %v1610 = vrot.slane %v1608, 5
        %v1611 = vor.u32 %v1607, %v1610
        %v1612 = vrot.slane %v1611, 4
        %v1614 = vshll.u32 %v1260, 16
        %v1616 = vrot.slane %v1614, 5
        %v1617 = vsel %vm1267, %v1612, %v1616
        %v1618 = vshrl.u32 %v1260, 16
        %v1620 = vrot.slane %v1618, 4
        %v1621 = vor.u32 %v1620, %v1616
        %v1622 = vrot.slane %v1621, 4
        %v1624 = vshll.u32 %v1261, 16
        %v1626 = vrot.slane %v1624, 5
        %v1627 = vsel %vm1267, %v1622, %v1626
        %v1629 = vshrl.u32 %v1262, 16
        %v1631 = vrot.slane %v1629, 4
        %v1632 = vshll.u32 %v1262, 16
        %v1634 = vrot.slane %v1632, 5
        %v1635 = vor.u32 %v1631, %v1634
        %v1636 = vrot.slane %v1635, 4
        %v1638 = vshll.u32 %v1263, 16
        %v1640 = vrot.slane %v1638, 5
        %v1641 = vsel %vm1267, %v1636, %v1640
        %v1642 = vshrl.u32 %v1263, 16
        %v1644 = vrot.slane %v1642, 4
        %v1645 = vor.u32 %v1644, %v1640
        %v1646 = vrot.slane %v1645, 4
        %v1648 = vshll.u32 %v1264, 16
        %v1650 = vrot.slane %v1648, 5
        %v1651 = vsel %vm1267, %v1646, %v1650
        %v1652 = vunpack.c.l.b16 %v1281
        %v1653 = vunpack.c.l.b16 %v1291
        %v1654 = vunpack.c.l.b16 %v1305
        %v1655 = vunpack.c.l.b16 %v1315
        %v1656 = vunpack.c.l.b16 %v1329
        %v1657 = vunpack.c.l.b16 %v1339
        %v1658 = vunpack.c.l.b16 %v1353
        %v1659 = vunpack.c.l.b16 %v1363
        %v1660 = vunpack.c.l.b16 %v1377
        %v1661 = vunpack.c.l.b16 %v1387
        %v1662 = vunpack.c.l.b16 %v1401
        %v1663 = vunpack.c.l.b16 %v1411
        %v1664 = vunpack.c.l.b16 %v1425
        %v1665 = vunpack.c.l.b16 %v1435
        %v1666 = vunpack.c.l.b16 %v1449
        %v1667 = vunpack.c.l.b16 %v1459
        %v1668 = vunpack.c.l.b16 %v1473
        %v1669 = vunpack.c.l.b16 %v1483
        %v1670 = vunpack.c.l.b16 %v1497
        %v1671 = vunpack.c.l.b16 %v1507
        %v1672 = vunpack.c.l.b16 %v1521
        %v1673 = vunpack.c.l.b16 %v1531
        %v1674 = vunpack.c.l.b16 %v1545
        %v1675 = vunpack.c.l.b16 %v1555
        %v1676 = vunpack.c.l.b16 %v1569
        %v1677 = vunpack.c.l.b16 %v1579
        %v1678 = vunpack.c.l.b16 %v1593
        %v1679 = vunpack.c.l.b16 %v1603
        %v1680 = vunpack.c.l.b16 %v1617
        %v1681 = vunpack.c.l.b16 %v1627
        %v1682 = vunpack.c.l.b16 %v1641
        %v1683 = vunpack.c.l.b16 %v1651
        %v1684 = vpack.c.b16 %v1653, %v1652
        %v1685 = vpack.c.b16 %v1655, %v1654
        %v1686 = vpack.c.b16 %v1657, %v1656
        %v1687 = vpack.c.b16 %v1659, %v1658
        %v1688 = vpack.c.b16 %v1661, %v1660
        %v1689 = vpack.c.b16 %v1663, %v1662
        %v1690 = vpack.c.b16 %v1665, %v1664
        %v1691 = vpack.c.b16 %v1667, %v1666
        %v1692 = vpack.c.b16 %v1669, %v1668
        %v1693 = vpack.c.b16 %v1671, %v1670
        %v1694 = vpack.c.b16 %v1673, %v1672
        %v1695 = vpack.c.b16 %v1675, %v1674
        %v1696 = vpack.c.b16 %v1677, %v1676
        %v1697 = vpack.c.b16 %v1679, %v1678
        %v1698 = vpack.c.b16 %v1681, %v1680
        %v1699 = vpack.c.b16 %v1683, %v1682
        %1700 = vrot.lane.b32.xlu0 %v1684, 1
        %v1701 = vpop.permute.xlu0 %1700
        %1702 = vrot.lane.b32.xlu0 %v1685, 1
        %v1703 = vpop.permute.xlu0 %1702
        %1704 = vrot.lane.b32.xlu0 %v1686, 1
        %v1705 = vpop.permute.xlu0 %1704
        %1706 = vrot.lane.b32.xlu0 %v1687, 1
        %v1707 = vpop.permute.xlu0 %1706
        %1708 = vrot.lane.b32.xlu0 %v1688, 1
        %v1709 = vpop.permute.xlu0 %1708
        %1710 = vrot.lane.b32.xlu0 %v1689, 1
        %v1711 = vpop.permute.xlu0 %1710
        %1712 = vrot.lane.b32.xlu0 %v1690, 1
        %v1713 = vpop.permute.xlu0 %1712
        %1714 = vrot.lane.b32.xlu0 %v1691, 1
        %v1715 = vpop.permute.xlu0 %1714
        %1716 = vrot.lane.b32.xlu0 %v1692, 1
        %v1717 = vpop.permute.xlu0 %1716
        %1718 = vrot.lane.b32.xlu0 %v1693, 1
        %v1719 = vpop.permute.xlu0 %1718
        %1720 = vrot.lane.b32.xlu0 %v1694, 1
        %v1721 = vpop.permute.xlu0 %1720
        %1722 = vrot.lane.b32.xlu0 %v1695, 1
        %v1723 = vpop.permute.xlu0 %1722
        %1724 = vrot.lane.b32.xlu0 %v1696, 1
        %v1725 = vpop.permute.xlu0 %1724
        %1726 = vrot.lane.b32.xlu0 %v1697, 1
        %v1727 = vpop.permute.xlu0 %1726
        %1728 = vrot.lane.b32.xlu0 %v1698, 1
        %v1729 = vpop.permute.xlu0 %1728
        %1730 = vrot.lane.b32.xlu0 %v1699, 1
        %v1731 = vpop.permute.xlu0 %1730
        %vm1748 = vcmask 15368
        %1749 = vst.msk [vmem:[#allocation3] sm:$0xff] %vm1748, %v1701
        %1750 = vst.msk [vmem:[#allocation3 + $0x8] sm:$0xff] %vm1748, %v1703
        %1751 = vst.msk [vmem:[#allocation3 + $0x10] sm:$0xff] %vm1748, %v1705
        %1752 = vst.msk [vmem:[#allocation3 + $0x18] sm:$0xff] %vm1748, %v1707
        %1753 = vst.msk [vmem:[#allocation3 + $0x20] sm:$0xff] %vm1748, %v1709
        %1754 = vst.msk [vmem:[#allocation3 + $0x28] sm:$0xff] %vm1748, %v1711
        %1755 = vst.msk [vmem:[#allocation3 + $0x30] sm:$0xff] %vm1748, %v1713
        %1756 = vst.msk [vmem:[#allocation3 + $0x38] sm:$0xff] %vm1748, %v1715
        %1757 = vst.msk [vmem:[#allocation3 + $0x40] sm:$0xff] %vm1748, %v1717
        %1758 = vst.msk [vmem:[#allocation3 + $0x48] sm:$0xff] %vm1748, %v1719
        %1759 = vst.msk [vmem:[#allocation3 + $0x50] sm:$0xff] %vm1748, %v1721
        %1760 = vst.msk [vmem:[#allocation3 + $0x58] sm:$0xff] %vm1748, %v1723
        %1761 = vst.msk [vmem:[#allocation3 + $0x60] sm:$0xff] %vm1748, %v1725
        %1762 = vst.msk [vmem:[#allocation3 + $0x68] sm:$0xff] %vm1748, %v1727
        %1763 = vst.msk [vmem:[#allocation3 + $0x70] sm:$0xff] %vm1748, %v1729
        %1764 = vst.msk [vmem:[#allocation3 + $0x78] sm:$0xff] %vm1748, %v1731
        %v1765 = vld [vmem:[#allocation2] sm:$0xe]
        %v1766 = vld [vmem:[#allocation2 + $0x4] sm:$0xf]
        %v1767 = vld [vmem:[#allocation2 + $0x8] sm:$0x1]
        %v1768 = vld [vmem:[#allocation2 + $0xc] sm:$0xe]
        %v1769 = vld [vmem:[#allocation2 + $0x10] sm:$0xf]
        %v1770 = vld [vmem:[#allocation2 + $0x14] sm:$0x1]
        %v1771 = vld [vmem:[#allocation2 + $0x18] sm:$0xe]
        %v1772 = vld [vmem:[#allocation2 + $0x1c] sm:$0xf]
        %v1773 = vld [vmem:[#allocation2 + $0x20] sm:$0x1]
        %v1774 = vld [vmem:[#allocation2 + $0x24] sm:$0xe]
        %v1775 = vld [vmem:[#allocation2 + $0x28] sm:$0xf]
        %v1776 = vld [vmem:[#allocation2 + $0x2c] sm:$0x1]
        %v1777 = vld [vmem:[#allocation2 + $0x30] sm:$0xe]
        %v1778 = vld [vmem:[#allocation2 + $0x34] sm:$0xf]
        %v1779 = vld [vmem:[#allocation2 + $0x38] sm:$0x1]
        %v1780 = vld [vmem:[#allocation2 + $0x3c] sm:$0xe]
        %v1781 = vld [vmem:[#allocation2 + $0x40] sm:$0xf]
        %v1782 = vld [vmem:[#allocation2 + $0x44] sm:$0x1]
        %v1783 = vld [vmem:[#allocation2 + $0x48] sm:$0xe]
        %v1784 = vld [vmem:[#allocation2 + $0x4c] sm:$0xf]
        %v1785 = vld [vmem:[#allocation2 + $0x50] sm:$0x1]
        %v1786 = vld [vmem:[#allocation2 + $0x54] sm:$0xe]
        %v1787 = vld [vmem:[#allocation2 + $0x58] sm:$0xf]
        %v1788 = vld [vmem:[#allocation2 + $0x5c] sm:$0x1]
        %v1789 = vld [vmem:[#allocation2 + $0x60] sm:$0xe]
        %v1790 = vld [vmem:[#allocation2 + $0x64] sm:$0xf]
        %v1791 = vld [vmem:[#allocation2 + $0x68] sm:$0x1]
        %v1792 = vld [vmem:[#allocation2 + $0x6c] sm:$0xe]
        %v1793 = vld [vmem:[#allocation2 + $0x70] sm:$0xf]
        %v1794 = vld [vmem:[#allocation2 + $0x74] sm:$0x1]
        %v1795 = vld [vmem:[#allocation2 + $0x78] sm:$0xe]
        %v1796 = vld [vmem:[#allocation2 + $0x7c] sm:$0xf]
        %v1797 = vld [vmem:[#allocation2 + $0x80] sm:$0x1]
        %v1798 = vld [vmem:[#allocation2 + $0x84] sm:$0xe]
        %v1799 = vld [vmem:[#allocation2 + $0x88] sm:$0xf]
        %v1800 = vld [vmem:[#allocation2 + $0x8c] sm:$0x1]
        %v1801 = vld [vmem:[#allocation2 + $0x90] sm:$0xe]
        %v1802 = vld [vmem:[#allocation2 + $0x94] sm:$0xf]
        %v1803 = vld [vmem:[#allocation2 + $0x98] sm:$0x1]
        %v1804 = vld [vmem:[#allocation2 + $0x9c] sm:$0xe]
        %v1805 = vld [vmem:[#allocation2 + $0xa0] sm:$0xf]
        %v1806 = vld [vmem:[#allocation2 + $0xa4] sm:$0x1]
        %v1807 = vld [vmem:[#allocation2 + $0xa8] sm:$0xe]
        %v1808 = vld [vmem:[#allocation2 + $0xac] sm:$0xf]
        %v1809 = vld [vmem:[#allocation2 + $0xb0] sm:$0x1]
        %v1810 = vld [vmem:[#allocation2 + $0xb4] sm:$0xe]
        %v1811 = vld [vmem:[#allocation2 + $0xb8] sm:$0xf]
        %v1812 = vld [vmem:[#allocation2 + $0xbc] sm:$0x1]
        %vm1861 = vcmask 1042432
        %vm1862 = vcmask 1046532
        %vm1863 = vmor %vm1861, %vm1862
        %v1864 = vrot.slane %v1765, 5
        %v1865 = vrot.slane %v1864, 4
        %v1866 = vrot.slane %v1766, 5
        %v1867 = vsel %vm1863, %v1865, %v1866
        %v1868 = vrot.slane %v1866, 4
        %v1869 = vrot.slane %v1767, 5
        %v1870 = vsel %vm1863, %v1868, %v1869
        %v1871 = vrot.slane %v1768, 5
        %v1872 = vrot.slane %v1871, 4
        %v1873 = vrot.slane %v1769, 5
        %v1874 = vsel %vm1863, %v1872, %v1873
        %v1875 = vrot.slane %v1873, 4
        %v1876 = vrot.slane %v1770, 5
        %v1877 = vsel %vm1863, %v1875, %v1876
        %v1878 = vrot.slane %v1771, 5
        %v1879 = vrot.slane %v1878, 4
        %v1880 = vrot.slane %v1772, 5
        %v1881 = vsel %vm1863, %v1879, %v1880
        %v1882 = vrot.slane %v1880, 4
        %v1883 = vrot.slane %v1773, 5
        %v1884 = vsel %vm1863, %v1882, %v1883
        %v1885 = vrot.slane %v1774, 5
        %v1886 = vrot.slane %v1885, 4
        %v1887 = vrot.slane %v1775, 5
        %v1888 = vsel %vm1863, %v1886, %v1887
        %v1889 = vrot.slane %v1887, 4
        %v1890 = vrot.slane %v1776, 5
        %v1891 = vsel %vm1863, %v1889, %v1890
        %v1892 = vrot.slane %v1777, 5
        %v1893 = vrot.slane %v1892, 4
        %v1894 = vrot.slane %v1778, 5
        %v1895 = vsel %vm1863, %v1893, %v1894
        %v1896 = vrot.slane %v1894, 4
        %v1897 = vrot.slane %v1779, 5
        %v1898 = vsel %vm1863, %v1896, %v1897
        %v1899 = vrot.slane %v1780, 5
        %v1900 = vrot.slane %v1899, 4
        %v1901 = vrot.slane %v1781, 5
        %v1902 = vsel %vm1863, %v1900, %v1901
        %v1903 = vrot.slane %v1901, 4
        %v1904 = vrot.slane %v1782, 5
        %v1905 = vsel %vm1863, %v1903, %v1904
        %v1906 = vrot.slane %v1783, 5
        %v1907 = vrot.slane %v1906, 4
        %v1908 = vrot.slane %v1784, 5
        %v1909 = vsel %vm1863, %v1907, %v1908
        %v1910 = vrot.slane %v1908, 4
        %v1911 = vrot.slane %v1785, 5
        %v1912 = vsel %vm1863, %v1910, %v1911
        %v1913 = vrot.slane %v1786, 5
        %v1914 = vrot.slane %v1913, 4
        %v1915 = vrot.slane %v1787, 5
        %v1916 = vsel %vm1863, %v1914, %v1915
        %v1917 = vrot.slane %v1915, 4
        %v1918 = vrot.slane %v1788, 5
        %v1919 = vsel %vm1863, %v1917, %v1918
        %v1920 = vrot.slane %v1789, 5
        %v1921 = vrot.slane %v1920, 4
        %v1922 = vrot.slane %v1790, 5
        %v1923 = vsel %vm1863, %v1921, %v1922
        %v1924 = vrot.slane %v1922, 4
        %v1925 = vrot.slane %v1791, 5
        %v1926 = vsel %vm1863, %v1924, %v1925
        %v1927 = vrot.slane %v1792, 5
        %v1928 = vrot.slane %v1927, 4
        %v1929 = vrot.slane %v1793, 5
        %v1930 = vsel %vm1863, %v1928, %v1929
        %v1931 = vrot.slane %v1929, 4
        %v1932 = vrot.slane %v1794, 5
        %v1933 = vsel %vm1863, %v1931, %v1932
        %v1934 = vrot.slane %v1795, 5
        %v1935 = vrot.slane %v1934, 4
        %v1936 = vrot.slane %v1796, 5
        %v1937 = vsel %vm1863, %v1935, %v1936
        %v1938 = vrot.slane %v1936, 4
        %v1939 = vrot.slane %v1797, 5
        %v1940 = vsel %vm1863, %v1938, %v1939
        %v1941 = vrot.slane %v1798, 5
        %v1942 = vrot.slane %v1941, 4
        %v1943 = vrot.slane %v1799, 5
        %v1944 = vsel %vm1863, %v1942, %v1943
        %v1945 = vrot.slane %v1943, 4
        %v1946 = vrot.slane %v1800, 5
        %v1947 = vsel %vm1863, %v1945, %v1946
        %v1948 = vrot.slane %v1801, 5
        %v1949 = vrot.slane %v1948, 4
        %v1950 = vrot.slane %v1802, 5
        %v1951 = vsel %vm1863, %v1949, %v1950
        %v1952 = vrot.slane %v1950, 4
        %v1953 = vrot.slane %v1803, 5
        %v1954 = vsel %vm1863, %v1952, %v1953
        %v1955 = vrot.slane %v1804, 5
        %v1956 = vrot.slane %v1955, 4
        %v1957 = vrot.slane %v1805, 5
        %v1958 = vsel %vm1863, %v1956, %v1957
        %v1959 = vrot.slane %v1957, 4
        %v1960 = vrot.slane %v1806, 5
        %v1961 = vsel %vm1863, %v1959, %v1960
        %v1962 = vrot.slane %v1807, 5
        %v1963 = vrot.slane %v1962, 4
        %v1964 = vrot.slane %v1808, 5
        %v1965 = vsel %vm1863, %v1963, %v1964
        %v1966 = vrot.slane %v1964, 4
        %v1967 = vrot.slane %v1809, 5
        %v1968 = vsel %vm1863, %v1966, %v1967
        %v1969 = vrot.slane %v1810, 5
        %v1970 = vrot.slane %v1969, 4
        %v1971 = vrot.slane %v1811, 5
        %v1972 = vsel %vm1863, %v1970, %v1971
        %v1973 = vrot.slane %v1971, 4
        %v1974 = vrot.slane %v1812, 5
        %v1975 = vsel %vm1863, %v1973, %v1974
        %v1976 = vunpack.c.l.b16 %v1867
        %v1977 = vunpack.c.l.b16 %v1870
        %v1978 = vunpack.c.l.b16 %v1874
        %v1979 = vunpack.c.l.b16 %v1877
        %v1980 = vunpack.c.l.b16 %v1881
        %v1981 = vunpack.c.l.b16 %v1884
        %v1982 = vunpack.c.l.b16 %v1888
        %v1983 = vunpack.c.l.b16 %v1891
        %v1984 = vunpack.c.l.b16 %v1895
        %v1985 = vunpack.c.l.b16 %v1898
        %v1986 = vunpack.c.l.b16 %v1902
        %v1987 = vunpack.c.l.b16 %v1905
        %v1988 = vunpack.c.l.b16 %v1909
        %v1989 = vunpack.c.l.b16 %v1912
        %v1990 = vunpack.c.l.b16 %v1916
        %v1991 = vunpack.c.l.b16 %v1919
        %v1992 = vunpack.c.l.b16 %v1923
        %v1993 = vunpack.c.l.b16 %v1926
        %v1994 = vunpack.c.l.b16 %v1930
        %v1995 = vunpack.c.l.b16 %v1933
        %v1996 = vunpack.c.l.b16 %v1937
        %v1997 = vunpack.c.l.b16 %v1940
        %v1998 = vunpack.c.l.b16 %v1944
        %v1999 = vunpack.c.l.b16 %v1947
        %v2000 = vunpack.c.l.b16 %v1951
        %v2001 = vunpack.c.l.b16 %v1954
        %v2002 = vunpack.c.l.b16 %v1958
        %v2003 = vunpack.c.l.b16 %v1961
        %v2004 = vunpack.c.l.b16 %v1965
        %v2005 = vunpack.c.l.b16 %v1968
        %v2006 = vunpack.c.l.b16 %v1972
        %v2007 = vunpack.c.l.b16 %v1975
        %v2008 = vpack.c.b16 %v1977, %v1976
        %v2009 = vpack.c.b16 %v1979, %v1978
        %v2010 = vpack.c.b16 %v1981, %v1980
        %v2011 = vpack.c.b16 %v1983, %v1982
        %v2012 = vpack.c.b16 %v1985, %v1984
        %v2013 = vpack.c.b16 %v1987, %v1986
        %v2014 = vpack.c.b16 %v1989, %v1988
        %v2015 = vpack.c.b16 %v1991, %v1990
        %v2016 = vpack.c.b16 %v1993, %v1992
        %v2017 = vpack.c.b16 %v1995, %v1994
        %v2018 = vpack.c.b16 %v1997, %v1996
        %v2019 = vpack.c.b16 %v1999, %v1998
        %v2020 = vpack.c.b16 %v2001, %v2000
        %v2021 = vpack.c.b16 %v2003, %v2002
        %v2022 = vpack.c.b16 %v2005, %v2004
        %v2023 = vpack.c.b16 %v2007, %v2006
        %2024 = vrot.lane.b32.xlu0 %v2008, 2
        %v2025 = vpop.permute.xlu0 %2024
        %2026 = vrot.lane.b32.xlu0 %v2009, 2
        %v2027 = vpop.permute.xlu0 %2026
        %2028 = vrot.lane.b32.xlu0 %v2010, 2
        %v2029 = vpop.permute.xlu0 %2028
        %2030 = vrot.lane.b32.xlu0 %v2011, 2
        %v2031 = vpop.permute.xlu0 %2030
        %2032 = vrot.lane.b32.xlu0 %v2012, 2
        %v2033 = vpop.permute.xlu0 %2032
        %2034 = vrot.lane.b32.xlu0 %v2013, 2
        %v2035 = vpop.permute.xlu0 %2034
        %2036 = vrot.lane.b32.xlu0 %v2014, 2
        %v2037 = vpop.permute.xlu0 %2036
        %2038 = vrot.lane.b32.xlu0 %v2015, 2
        %v2039 = vpop.permute.xlu0 %2038
        %2040 = vrot.lane.b32.xlu0 %v2016, 2
        %v2041 = vpop.permute.xlu0 %2040
        %2042 = vrot.lane.b32.xlu0 %v2017, 2
        %v2043 = vpop.permute.xlu0 %2042
        %2044 = vrot.lane.b32.xlu0 %v2018, 2
        %v2045 = vpop.permute.xlu0 %2044
        %2046 = vrot.lane.b32.xlu0 %v2019, 2
        %v2047 = vpop.permute.xlu0 %2046
        %2048 = vrot.lane.b32.xlu0 %v2020, 2
        %v2049 = vpop.permute.xlu0 %2048
        %2050 = vrot.lane.b32.xlu0 %v2021, 2
        %v2051 = vpop.permute.xlu0 %2050
        %2052 = vrot.lane.b32.xlu0 %v2022, 2
        %v2053 = vpop.permute.xlu0 %2052
        %2054 = vrot.lane.b32.xlu0 %v2023, 2
        %v2055 = vpop.permute.xlu0 %2054
        %vm2072 = vcmask 23568
        %2073 = vst.msk [vmem:[#allocation3] sm:$0xff] %vm2072, %v2025
        %2074 = vst.msk [vmem:[#allocation3 + $0x8] sm:$0xff] %vm2072, %v2027
        %2075 = vst.msk [vmem:[#allocation3 + $0x10] sm:$0xff] %vm2072, %v2029
        %2076 = vst.msk [vmem:[#allocation3 + $0x18] sm:$0xff] %vm2072, %v2031
        %2077 = vst.msk [vmem:[#allocation3 + $0x20] sm:$0xff] %vm2072, %v2033
        %2078 = vst.msk [vmem:[#allocation3 + $0x28] sm:$0xff] %vm2072, %v2035
        %2079 = vst.msk [vmem:[#allocation3 + $0x30] sm:$0xff] %vm2072, %v2037
        %2080 = vst.msk [vmem:[#allocation3 + $0x38] sm:$0xff] %vm2072, %v2039
        %2081 = vst.msk [vmem:[#allocation3 + $0x40] sm:$0xff] %vm2072, %v2041
        %2082 = vst.msk [vmem:[#allocation3 + $0x48] sm:$0xff] %vm2072, %v2043
        %2083 = vst.msk [vmem:[#allocation3 + $0x50] sm:$0xff] %vm2072, %v2045
        %2084 = vst.msk [vmem:[#allocation3 + $0x58] sm:$0xff] %vm2072, %v2047
        %2085 = vst.msk [vmem:[#allocation3 + $0x60] sm:$0xff] %vm2072, %v2049
        %2086 = vst.msk [vmem:[#allocation3 + $0x68] sm:$0xff] %vm2072, %v2051
        %2087 = vst.msk [vmem:[#allocation3 + $0x70] sm:$0xff] %vm2072, %v2053
        %2088 = vst.msk [vmem:[#allocation3 + $0x78] sm:$0xff] %vm2072, %v2055
        %v2089 = vld [vmem:[%s957] sm:$0xf]
        %v2090 = vld [vmem:[%s957 + $0x4] sm:$0xf]
        %v2091 = vld [vmem:[%s957 + $0xc] sm:$0xf]
        %v2092 = vld [vmem:[%s957 + $0x10] sm:$0xf]
        %v2093 = vld [vmem:[%s957 + $0x18] sm:$0xf]
        %v2094 = vld [vmem:[%s957 + $0x1c] sm:$0xf]
        %v2095 = vld [vmem:[%s957 + $0x24] sm:$0xf]
        %v2096 = vld [vmem:[%s957 + $0x28] sm:$0xf]
        %v2097 = vld [vmem:[%s957 + $0x30] sm:$0xf]
        %v2098 = vld [vmem:[%s957 + $0x34] sm:$0xf]
        %v2099 = vld [vmem:[%s957 + $0x3c] sm:$0xf]
        %v2100 = vld [vmem:[%s957 + $0x40] sm:$0xf]
        %v2101 = vld [vmem:[%s957 + $0x48] sm:$0xf]
        %v2102 = vld [vmem:[%s957 + $0x4c] sm:$0xf]
        %v2103 = vld [vmem:[%s957 + $0x54] sm:$0xf]
        %v2104 = vld [vmem:[%s957 + $0x58] sm:$0xf]
        %v2105 = vld [vmem:[%s957 + $0x60] sm:$0xf]
        %v2106 = vld [vmem:[%s957 + $0x64] sm:$0xf]
        %v2107 = vld [vmem:[%s957 + $0x6c] sm:$0xf]
        %v2108 = vld [vmem:[%s957 + $0x70] sm:$0xf]
        %v2109 = vld [vmem:[%s957 + $0x78] sm:$0xf]
        %v2110 = vld [vmem:[%s957 + $0x7c] sm:$0xf]
        %v2111 = vld [vmem:[%s957 + $0x84] sm:$0xf]
        %v2112 = vld [vmem:[%s957 + $0x88] sm:$0xf]
        %v2113 = vld [vmem:[%s957 + $0x90] sm:$0xf]
        %v2114 = vld [vmem:[%s957 + $0x94] sm:$0xf]
        %v2115 = vld [vmem:[%s957 + $0x9c] sm:$0xf]
        %v2116 = vld [vmem:[%s957 + $0xa0] sm:$0xf]
        %v2117 = vld [vmem:[%s957 + $0xa8] sm:$0xf]
        %v2118 = vld [vmem:[%s957 + $0xac] sm:$0xf]
        %v2119 = vld [vmem:[%s957 + $0xb4] sm:$0xf]
        %v2120 = vld [vmem:[%s957 + $0xb8] sm:$0xf]
        %v2153 = vunpack.c.l.b16 %v2089
        %v2154 = vunpack.c.l.b16 %v2090
        %v2155 = vunpack.c.l.b16 %v2091
        %v2156 = vunpack.c.l.b16 %v2092
        %v2157 = vunpack.c.l.b16 %v2093
        %v2158 = vunpack.c.l.b16 %v2094
        %v2159 = vunpack.c.l.b16 %v2095
        %v2160 = vunpack.c.l.b16 %v2096
        %v2161 = vunpack.c.l.b16 %v2097
        %v2162 = vunpack.c.l.b16 %v2098
        %v2163 = vunpack.c.l.b16 %v2099
        %v2164 = vunpack.c.l.b16 %v2100
        %v2165 = vunpack.c.l.b16 %v2101
        %v2166 = vunpack.c.l.b16 %v2102
        %v2167 = vunpack.c.l.b16 %v2103
        %v2168 = vunpack.c.l.b16 %v2104
        %v2169 = vunpack.c.l.b16 %v2105
        %v2170 = vunpack.c.l.b16 %v2106
        %v2171 = vunpack.c.l.b16 %v2107
        %v2172 = vunpack.c.l.b16 %v2108
        %v2173 = vunpack.c.l.b16 %v2109
        %v2174 = vunpack.c.l.b16 %v2110
        %v2175 = vunpack.c.l.b16 %v2111
        %v2176 = vunpack.c.l.b16 %v2112
        %v2177 = vunpack.c.l.b16 %v2113
        %v2178 = vunpack.c.l.b16 %v2114
        %v2179 = vunpack.c.l.b16 %v2115
        %v2180 = vunpack.c.l.b16 %v2116
        %v2181 = vunpack.c.l.b16 %v2117
        %v2182 = vunpack.c.l.b16 %v2118
        %v2183 = vunpack.c.l.b16 %v2119
        %v2184 = vunpack.c.l.b16 %v2120
        %v2185 = vpack.c.b16 %v2154, %v2153
        %v2186 = vpack.c.b16 %v2156, %v2155
        %v2187 = vpack.c.b16 %v2158, %v2157
        %v2188 = vpack.c.b16 %v2160, %v2159
        %v2189 = vpack.c.b16 %v2162, %v2161
        %v2190 = vpack.c.b16 %v2164, %v2163
        %v2191 = vpack.c.b16 %v2166, %v2165
        %v2192 = vpack.c.b16 %v2168, %v2167
        %v2193 = vpack.c.b16 %v2170, %v2169
        %v2194 = vpack.c.b16 %v2172, %v2171
        %v2195 = vpack.c.b16 %v2174, %v2173
        %v2196 = vpack.c.b16 %v2176, %v2175
        %v2197 = vpack.c.b16 %v2178, %v2177
        %v2198 = vpack.c.b16 %v2180, %v2179
        %v2199 = vpack.c.b16 %v2182, %v2181
        %v2200 = vpack.c.b16 %v2184, %v2183
        %2201 = vrot.lane.b32.xlu0 %v2185, 3
        %v2202 = vpop.permute.xlu0 %2201
        %2203 = vrot.lane.b32.xlu0 %v2186, 3
        %v2204 = vpop.permute.xlu0 %2203
        %2205 = vrot.lane.b32.xlu0 %v2187, 3
        %v2206 = vpop.permute.xlu0 %2205
        %2207 = vrot.lane.b32.xlu0 %v2188, 3
        %v2208 = vpop.permute.xlu0 %2207
        %2209 = vrot.lane.b32.xlu0 %v2189, 3
        %v2210 = vpop.permute.xlu0 %2209
        %2211 = vrot.lane.b32.xlu0 %v2190, 3
        %v2212 = vpop.permute.xlu0 %2211
        %2213 = vrot.lane.b32.xlu0 %v2191, 3
        %v2214 = vpop.permute.xlu0 %2213
        %2215 = vrot.lane.b32.xlu0 %v2192, 3
        %v2216 = vpop.permute.xlu0 %2215
        %2217 = vrot.lane.b32.xlu0 %v2193, 3
        %v2218 = vpop.permute.xlu0 %2217
        %2219 = vrot.lane.b32.xlu0 %v2194, 3
        %v2220 = vpop.permute.xlu0 %2219
        %2221 = vrot.lane.b32.xlu0 %v2195, 3
        %v2222 = vpop.permute.xlu0 %2221
        %2223 = vrot.lane.b32.xlu0 %v2196, 3
        %v2224 = vpop.permute.xlu0 %2223
        %2225 = vrot.lane.b32.xlu0 %v2197, 3
        %v2226 = vpop.permute.xlu0 %2225
        %2227 = vrot.lane.b32.xlu0 %v2198, 3
        %v2228 = vpop.permute.xlu0 %2227
        %2229 = vrot.lane.b32.xlu0 %v2199, 3
        %v2230 = vpop.permute.xlu0 %2229
        %2231 = vrot.lane.b32.xlu0 %v2200, 3
        %v2232 = vpop.permute.xlu0 %2231
        %vm2249 = vcmask 31768
        %2250 = vst.msk [vmem:[#allocation3] sm:$0xff] %vm2249, %v2202
        %2251 = vst.msk [vmem:[#allocation3 + $0x8] sm:$0xff] %vm2249, %v2204
        %2252 = vst.msk [vmem:[#allocation3 + $0x10] sm:$0xff] %vm2249, %v2206
        %2253 = vst.msk [vmem:[#allocation3 + $0x18] sm:$0xff] %vm2249, %v2208
        %2254 = vst.msk [vmem:[#allocation3 + $0x20] sm:$0xff] %vm2249, %v2210
        %2255 = vst.msk [vmem:[#allocation3 + $0x28] sm:$0xff] %vm2249, %v2212
        %2256 = vst.msk [vmem:[#allocation3 + $0x30] sm:$0xff] %vm2249, %v2214
        %2257 = vst.msk [vmem:[#allocation3 + $0x38] sm:$0xff] %vm2249, %v2216
        %2258 = vst.msk [vmem:[#allocation3 + $0x40] sm:$0xff] %vm2249, %v2218
        %2259 = vst.msk [vmem:[#allocation3 + $0x48] sm:$0xff] %vm2249, %v2220
        %2260 = vst.msk [vmem:[#allocation3 + $0x50] sm:$0xff] %vm2249, %v2222
        %2261 = vst.msk [vmem:[#allocation3 + $0x58] sm:$0xff] %vm2249, %v2224
        %2262 = vst.msk [vmem:[#allocation3 + $0x60] sm:$0xff] %vm2249, %v2226
        %2263 = vst.msk [vmem:[#allocation3 + $0x68] sm:$0xff] %vm2249, %v2228
        %2264 = vst.msk [vmem:[#allocation3 + $0x70] sm:$0xff] %vm2249, %v2230
        %2265 = vst.msk [vmem:[#allocation3 + $0x78] sm:$0xff] %vm2249, %v2232
        %v2266 = vld [vmem:[%s957] sm:$0xf]
        %v2267 = vld [vmem:[%s957 + $0x4] sm:$0xf]
        %v2268 = vld [vmem:[%s957 + $0x8] sm:$0x1]
        %v2269 = vld [vmem:[%s957 + $0xc] sm:$0xf]
        %v2270 = vld [vmem:[%s957 + $0x10] sm:$0xf]
        %v2271 = vld [vmem:[%s957 + $0x14] sm:$0x1]
        %v2272 = vld [vmem:[%s957 + $0x18] sm:$0xf]
        %v2273 = vld [vmem:[%s957 + $0x1c] sm:$0xf]
        %v2274 = vld [vmem:[%s957 + $0x20] sm:$0x1]
        %v2275 = vld [vmem:[%s957 + $0x24] sm:$0xf]
        %v2276 = vld [vmem:[%s957 + $0x28] sm:$0xf]
        %v2277 = vld [vmem:[%s957 + $0x2c] sm:$0x1]
        %v2278 = vld [vmem:[%s957 + $0x30] sm:$0xf]
        %v2279 = vld [vmem:[%s957 + $0x34] sm:$0xf]
        %v2280 = vld [vmem:[%s957 + $0x38] sm:$0x1]
        %v2281 = vld [vmem:[%s957 + $0x3c] sm:$0xf]
        %v2282 = vld [vmem:[%s957 + $0x40] sm:$0xf]
        %v2283 = vld [vmem:[%s957 + $0x44] sm:$0x1]
        %v2284 = vld [vmem:[%s957 + $0x48] sm:$0xf]
        %v2285 = vld [vmem:[%s957 + $0x4c] sm:$0xf]
        %v2286 = vld [vmem:[%s957 + $0x50] sm:$0x1]
        %v2287 = vld [vmem:[%s957 + $0x54] sm:$0xf]
        %v2288 = vld [vmem:[%s957 + $0x58] sm:$0xf]
        %v2289 = vld [vmem:[%s957 + $0x5c] sm:$0x1]
        %v2290 = vld [vmem:[%s957 + $0x60] sm:$0xf]
        %v2291 = vld [vmem:[%s957 + $0x64] sm:$0xf]
        %v2292 = vld [vmem:[%s957 + $0x68] sm:$0x1]
        %v2293 = vld [vmem:[%s957 + $0x6c] sm:$0xf]
        %v2294 = vld [vmem:[%s957 + $0x70] sm:$0xf]
        %v2295 = vld [vmem:[%s957 + $0x74] sm:$0x1]
        %v2296 = vld [vmem:[%s957 + $0x78] sm:$0xf]
        %v2297 = vld [vmem:[%s957 + $0x7c] sm:$0xf]
        %v2298 = vld [vmem:[%s957 + $0x80] sm:$0x1]
        %v2299 = vld [vmem:[%s957 + $0x84] sm:$0xf]
        %v2300 = vld [vmem:[%s957 + $0x88] sm:$0xf]
        %v2301 = vld [vmem:[%s957 + $0x8c] sm:$0x1]
        %v2302 = vld [vmem:[%s957 + $0x90] sm:$0xf]
        %v2303 = vld [vmem:[%s957 + $0x94] sm:$0xf]
        %v2304 = vld [vmem:[%s957 + $0x98] sm:$0x1]
        %v2305 = vld [vmem:[%s957 + $0x9c] sm:$0xf]
        %v2306 = vld [vmem:[%s957 + $0xa0] sm:$0xf]
        %v2307 = vld [vmem:[%s957 + $0xa4] sm:$0x1]
        %v2308 = vld [vmem:[%s957 + $0xa8] sm:$0xf]
        %v2309 = vld [vmem:[%s957 + $0xac] sm:$0xf]
        %v2310 = vld [vmem:[%s957 + $0xb0] sm:$0x1]
        %v2311 = vld [vmem:[%s957 + $0xb4] sm:$0xf]
        %v2312 = vld [vmem:[%s957 + $0xb8] sm:$0xf]
        %v2313 = vld [vmem:[%s957 + $0xbc] sm:$0x1]
        %v2315 = vshrl.u32 %v2266, 16
        %v2317 = vrot.slane %v2315, 4
        %v2318 = vshll.u32 %v2266, 16
        %v2320 = vrot.slane %v2318, 5
        %v2321 = vor.u32 %v2317, %v2320
        %v2322 = vrot.slane %v2321, 4
        %v2324 = vshll.u32 %v2267, 16
        %v2326 = vrot.slane %v2324, 5
        %v2327 = vsel %vm1267, %v2322, %v2326
        %v2328 = vshrl.u32 %v2267, 16
        %v2330 = vrot.slane %v2328, 4
        %v2331 = vor.u32 %v2330, %v2326
        %v2332 = vrot.slane %v2331, 4
        %v2334 = vshll.u32 %v2268, 16
        %v2336 = vrot.slane %v2334, 5
        %v2337 = vsel %vm1267, %v2332, %v2336
        %v2339 = vshrl.u32 %v2269, 16
        %v2341 = vrot.slane %v2339, 4
        %v2342 = vshll.u32 %v2269, 16
        %v2344 = vrot.slane %v2342, 5
        %v2345 = vor.u32 %v2341, %v2344
        %v2346 = vrot.slane %v2345, 4
        %v2348 = vshll.u32 %v2270, 16
        %v2350 = vrot.slane %v2348, 5
        %v2351 = vsel %vm1267, %v2346, %v2350
        %v2352 = vshrl.u32 %v2270, 16
        %v2354 = vrot.slane %v2352, 4
        %v2355 = vor.u32 %v2354, %v2350
        %v2356 = vrot.slane %v2355, 4
        %v2358 = vshll.u32 %v2271, 16
        %v2360 = vrot.slane %v2358, 5
        %v2361 = vsel %vm1267, %v2356, %v2360
        %v2363 = vshrl.u32 %v2272, 16
        %v2365 = vrot.slane %v2363, 4
        %v2366 = vshll.u32 %v2272, 16
        %v2368 = vrot.slane %v2366, 5
        %v2369 = vor.u32 %v2365, %v2368
        %v2370 = vrot.slane %v2369, 4
        %v2372 = vshll.u32 %v2273, 16
        %v2374 = vrot.slane %v2372, 5
        %v2375 = vsel %vm1267, %v2370, %v2374
        %v2376 = vshrl.u32 %v2273, 16
        %v2378 = vrot.slane %v2376, 4
        %v2379 = vor.u32 %v2378, %v2374
        %v2380 = vrot.slane %v2379, 4
        %v2382 = vshll.u32 %v2274, 16
        %v2384 = vrot.slane %v2382, 5
        %v2385 = vsel %vm1267, %v2380, %v2384
        %v2387 = vshrl.u32 %v2275, 16
        %v2389 = vrot.slane %v2387, 4
        %v2390 = vshll.u32 %v2275, 16
        %v2392 = vrot.slane %v2390, 5
        %v2393 = vor.u32 %v2389, %v2392
        %v2394 = vrot.slane %v2393, 4
        %v2396 = vshll.u32 %v2276, 16
        %v2398 = vrot.slane %v2396, 5
        %v2399 = vsel %vm1267, %v2394, %v2398
        %v2400 = vshrl.u32 %v2276, 16
        %v2402 = vrot.slane %v2400, 4
        %v2403 = vor.u32 %v2402, %v2398
        %v2404 = vrot.slane %v2403, 4
        %v2406 = vshll.u32 %v2277, 16
        %v2408 = vrot.slane %v2406, 5
        %v2409 = vsel %vm1267, %v2404, %v2408
        %v2411 = vshrl.u32 %v2278, 16
        %v2413 = vrot.slane %v2411, 4
        %v2414 = vshll.u32 %v2278, 16
        %v2416 = vrot.slane %v2414, 5
        %v2417 = vor.u32 %v2413, %v2416
        %v2418 = vrot.slane %v2417, 4
        %v2420 = vshll.u32 %v2279, 16
        %v2422 = vrot.slane %v2420, 5
        %v2423 = vsel %vm1267, %v2418, %v2422
        %v2424 = vshrl.u32 %v2279, 16
        %v2426 = vrot.slane %v2424, 4
        %v2427 = vor.u32 %v2426, %v2422
        %v2428 = vrot.slane %v2427, 4
        %v2430 = vshll.u32 %v2280, 16
        %v2432 = vrot.slane %v2430, 5
        %v2433 = vsel %vm1267, %v2428, %v2432
        %v2435 = vshrl.u32 %v2281, 16
        %v2437 = vrot.slane %v2435, 4
        %v2438 = vshll.u32 %v2281, 16
        %v2440 = vrot.slane %v2438, 5
        %v2441 = vor.u32 %v2437, %v2440
        %v2442 = vrot.slane %v2441, 4
        %v2444 = vshll.u32 %v2282, 16
        %v2446 = vrot.slane %v2444, 5
        %v2447 = vsel %vm1267, %v2442, %v2446
        %v2448 = vshrl.u32 %v2282, 16
        %v2450 = vrot.slane %v2448, 4
        %v2451 = vor.u32 %v2450, %v2446
        %v2452 = vrot.slane %v2451, 4
        %v2454 = vshll.u32 %v2283, 16
        %v2456 = vrot.slane %v2454, 5
        %v2457 = vsel %vm1267, %v2452, %v2456
        %v2459 = vshrl.u32 %v2284, 16
        %v2461 = vrot.slane %v2459, 4
        %v2462 = vshll.u32 %v2284, 16
        %v2464 = vrot.slane %v2462, 5
        %v2465 = vor.u32 %v2461, %v2464
        %v2466 = vrot.slane %v2465, 4
        %v2468 = vshll.u32 %v2285, 16
        %v2470 = vrot.slane %v2468, 5
        %v2471 = vsel %vm1267, %v2466, %v2470
        %v2472 = vshrl.u32 %v2285, 16
        %v2474 = vrot.slane %v2472, 4
        %v2475 = vor.u32 %v2474, %v2470
        %v2476 = vrot.slane %v2475, 4
        %v2478 = vshll.u32 %v2286, 16
        %v2480 = vrot.slane %v2478, 5
        %v2481 = vsel %vm1267, %v2476, %v2480
        %v2483 = vshrl.u32 %v2287, 16
        %v2485 = vrot.slane %v2483, 4
        %v2486 = vshll.u32 %v2287, 16
        %v2488 = vrot.slane %v2486, 5
        %v2489 = vor.u32 %v2485, %v2488
        %v2490 = vrot.slane %v2489, 4
        %v2492 = vshll.u32 %v2288, 16
        %v2494 = vrot.slane %v2492, 5
        %v2495 = vsel %vm1267, %v2490, %v2494
        %v2496 = vshrl.u32 %v2288, 16
        %v2498 = vrot.slane %v2496, 4
        %v2499 = vor.u32 %v2498, %v2494
        %v2500 = vrot.slane %v2499, 4
        %v2502 = vshll.u32 %v2289, 16
        %v2504 = vrot.slane %v2502, 5
        %v2505 = vsel %vm1267, %v2500, %v2504
        %v2507 = vshrl.u32 %v2290, 16
        %v2509 = vrot.slane %v2507, 4
        %v2510 = vshll.u32 %v2290, 16
        %v2512 = vrot.slane %v2510, 5
        %v2513 = vor.u32 %v2509, %v2512
        %v2514 = vrot.slane %v2513, 4
        %v2516 = vshll.u32 %v2291, 16
        %v2518 = vrot.slane %v2516, 5
        %v2519 = vsel %vm1267, %v2514, %v2518
        %v2520 = vshrl.u32 %v2291, 16
        %v2522 = vrot.slane %v2520, 4
        %v2523 = vor.u32 %v2522, %v2518
        %v2524 = vrot.slane %v2523, 4
        %v2526 = vshll.u32 %v2292, 16
        %v2528 = vrot.slane %v2526, 5
        %v2529 = vsel %vm1267, %v2524, %v2528
        %v2531 = vshrl.u32 %v2293, 16
        %v2533 = vrot.slane %v2531, 4
        %v2534 = vshll.u32 %v2293, 16
        %v2536 = vrot.slane %v2534, 5
        %v2537 = vor.u32 %v2533, %v2536
        %v2538 = vrot.slane %v2537, 4
        %v2540 = vshll.u32 %v2294, 16
        %v2542 = vrot.slane %v2540, 5
        %v2543 = vsel %vm1267, %v2538, %v2542
        %v2544 = vshrl.u32 %v2294, 16
        %v2546 = vrot.slane %v2544, 4
        %v2547 = vor.u32 %v2546, %v2542
        %v2548 = vrot.slane %v2547, 4
        %v2550 = vshll.u32 %v2295, 16
        %v2552 = vrot.slane %v2550, 5
        %v2553 = vsel %vm1267, %v2548, %v2552
        %v2555 = vshrl.u32 %v2296, 16
        %v2557 = vrot.slane %v2555, 4
        %v2558 = vshll.u32 %v2296, 16
        %v2560 = vrot.slane %v2558, 5
        %v2561 = vor.u32 %v2557, %v2560
        %v2562 = vrot.slane %v2561, 4
        %v2564 = vshll.u32 %v2297, 16
        %v2566 = vrot.slane %v2564, 5
        %v2567 = vsel %vm1267, %v2562, %v2566
        %v2568 = vshrl.u32 %v2297, 16
        %v2570 = vrot.slane %v2568, 4
        %v2571 = vor.u32 %v2570, %v2566
        %v2572 = vrot.slane %v2571, 4
        %v2574 = vshll.u32 %v2298, 16
        %v2576 = vrot.slane %v2574, 5
        %v2577 = vsel %vm1267, %v2572, %v2576
        %v2579 = vshrl.u32 %v2299, 16
        %v2581 = vrot.slane %v2579, 4
        %v2582 = vshll.u32 %v2299, 16
        %v2584 = vrot.slane %v2582, 5
        %v2585 = vor.u32 %v2581, %v2584
        %v2586 = vrot.slane %v2585, 4
        %v2588 = vshll.u32 %v2300, 16
        %v2590 = vrot.slane %v2588, 5
        %v2591 = vsel %vm1267, %v2586, %v2590
        %v2592 = vshrl.u32 %v2300, 16
        %v2594 = vrot.slane %v2592, 4
        %v2595 = vor.u32 %v2594, %v2590
        %v2596 = vrot.slane %v2595, 4
        %v2598 = vshll.u32 %v2301, 16
        %v2600 = vrot.slane %v2598, 5
        %v2601 = vsel %vm1267, %v2596, %v2600
        %v2603 = vshrl.u32 %v2302, 16
        %v2605 = vrot.slane %v2603, 4
        %v2606 = vshll.u32 %v2302, 16
        %v2608 = vrot.slane %v2606, 5
        %v2609 = vor.u32 %v2605, %v2608
        %v2610 = vrot.slane %v2609, 4
        %v2612 = vshll.u32 %v2303, 16
        %v2614 = vrot.slane %v2612, 5
        %v2615 = vsel %vm1267, %v2610, %v2614
        %v2616 = vshrl.u32 %v2303, 16
        %v2618 = vrot.slane %v2616, 4
        %v2619 = vor.u32 %v2618, %v2614
        %v2620 = vrot.slane %v2619, 4
        %v2622 = vshll.u32 %v2304, 16
        %v2624 = vrot.slane %v2622, 5
        %v2625 = vsel %vm1267, %v2620, %v2624
        %v2627 = vshrl.u32 %v2305, 16
        %v2629 = vrot.slane %v2627, 4
        %v2630 = vshll.u32 %v2305, 16
        %v2632 = vrot.slane %v2630, 5
        %v2633 = vor.u32 %v2629, %v2632
        %v2634 = vrot.slane %v2633, 4
        %v2636 = vshll.u32 %v2306, 16
        %v2638 = vrot.slane %v2636, 5
        %v2639 = vsel %vm1267, %v2634, %v2638
        %v2640 = vshrl.u32 %v2306, 16
        %v2642 = vrot.slane %v2640, 4
        %v2643 = vor.u32 %v2642, %v2638
        %v2644 = vrot.slane %v2643, 4
        %v2646 = vshll.u32 %v2307, 16
        %v2648 = vrot.slane %v2646, 5
        %v2649 = vsel %vm1267, %v2644, %v2648
        %v2651 = vshrl.u32 %v2308, 16
        %v2653 = vrot.slane %v2651, 4
        %v2654 = vshll.u32 %v2308, 16
        %v2656 = vrot.slane %v2654, 5
        %v2657 = vor.u32 %v2653, %v2656
        %v2658 = vrot.slane %v2657, 4
        %v2660 = vshll.u32 %v2309, 16
        %v2662 = vrot.slane %v2660, 5
        %v2663 = vsel %vm1267, %v2658, %v2662
        %v2664 = vshrl.u32 %v2309, 16
        %v2666 = vrot.slane %v2664, 4
        %v2667 = vor.u32 %v2666, %v2662
        %v2668 = vrot.slane %v2667, 4
        %v2670 = vshll.u32 %v2310, 16
        %v2672 = vrot.slane %v2670, 5
        %v2673 = vsel %vm1267, %v2668, %v2672
        %v2675 = vshrl.u32 %v2311, 16
        %v2677 = vrot.slane %v2675, 4
        %v2678 = vshll.u32 %v2311, 16
        %v2680 = vrot.slane %v2678, 5
        %v2681 = vor.u32 %v2677, %v2680
        %v2682 = vrot.slane %v2681, 4
        %v2684 = vshll.u32 %v2312, 16
        %v2686 = vrot.slane %v2684, 5
        %v2687 = vsel %vm1267, %v2682, %v2686
        %v2688 = vshrl.u32 %v2312, 16
        %v2690 = vrot.slane %v2688, 4
        %v2691 = vor.u32 %v2690, %v2686
        %v2692 = vrot.slane %v2691, 4
        %v2694 = vshll.u32 %v2313, 16
        %v2696 = vrot.slane %v2694, 5
        %v2697 = vsel %vm1267, %v2692, %v2696
        %v2698 = vunpack.c.l.b16 %v2327
        %v2699 = vunpack.c.l.b16 %v2337
        %v2700 = vunpack.c.l.b16 %v2351
        %v2701 = vunpack.c.l.b16 %v2361
        %v2702 = vunpack.c.l.b16 %v2375
        %v2703 = vunpack.c.l.b16 %v2385
        %v2704 = vunpack.c.l.b16 %v2399
        %v2705 = vunpack.c.l.b16 %v2409
        %v2706 = vunpack.c.l.b16 %v2423
        %v2707 = vunpack.c.l.b16 %v2433
        %v2708 = vunpack.c.l.b16 %v2447
        %v2709 = vunpack.c.l.b16 %v2457
        %v2710 = vunpack.c.l.b16 %v2471
        %v2711 = vunpack.c.l.b16 %v2481
        %v2712 = vunpack.c.l.b16 %v2495
        %v2713 = vunpack.c.l.b16 %v2505
        %v2714 = vunpack.c.l.b16 %v2519
        %v2715 = vunpack.c.l.b16 %v2529
        %v2716 = vunpack.c.l.b16 %v2543
        %v2717 = vunpack.c.l.b16 %v2553
        %v2718 = vunpack.c.l.b16 %v2567
        %v2719 = vunpack.c.l.b16 %v2577
        %v2720 = vunpack.c.l.b16 %v2591
        %v2721 = vunpack.c.l.b16 %v2601
        %v2722 = vunpack.c.l.b16 %v2615
        %v2723 = vunpack.c.l.b16 %v2625
        %v2724 = vunpack.c.l.b16 %v2639
        %v2725 = vunpack.c.l.b16 %v2649
        %v2726 = vunpack.c.l.b16 %v2663
        %v2727 = vunpack.c.l.b16 %v2673
        %v2728 = vunpack.c.l.b16 %v2687
        %v2729 = vunpack.c.l.b16 %v2697
        %v2730 = vpack.c.b16 %v2699, %v2698
        %v2731 = vpack.c.b16 %v2701, %v2700
        %v2732 = vpack.c.b16 %v2703, %v2702
        %v2733 = vpack.c.b16 %v2705, %v2704
        %v2734 = vpack.c.b16 %v2707, %v2706
        %v2735 = vpack.c.b16 %v2709, %v2708
        %v2736 = vpack.c.b16 %v2711, %v2710
        %v2737 = vpack.c.b16 %v2713, %v2712
        %v2738 = vpack.c.b16 %v2715, %v2714
        %v2739 = vpack.c.b16 %v2717, %v2716
        %v2740 = vpack.c.b16 %v2719, %v2718
        %v2741 = vpack.c.b16 %v2721, %v2720
        %v2742 = vpack.c.b16 %v2723, %v2722
        %v2743 = vpack.c.b16 %v2725, %v2724
        %v2744 = vpack.c.b16 %v2727, %v2726
        %v2745 = vpack.c.b16 %v2729, %v2728
        %2746 = vrot.lane.b32.xlu0 %v2730, 4
        %v2747 = vpop.permute.xlu0 %2746
        %2748 = vrot.lane.b32.xlu0 %v2731, 4
        %v2749 = vpop.permute.xlu0 %2748
        %2750 = vrot.lane.b32.xlu0 %v2732, 4
        %v2751 = vpop.permute.xlu0 %2750
        %2752 = vrot.lane.b32.xlu0 %v2733, 4
        %v2753 = vpop.permute.xlu0 %2752
        %2754 = vrot.lane.b32.xlu0 %v2734, 4
        %v2755 = vpop.permute.xlu0 %2754
        %2756 = vrot.lane.b32.xlu0 %v2735, 4
        %v2757 = vpop.permute.xlu0 %2756
        %2758 = vrot.lane.b32.xlu0 %v2736, 4
        %v2759 = vpop.permute.xlu0 %2758
        %2760 = vrot.lane.b32.xlu0 %v2737, 4
        %v2761 = vpop.permute.xlu0 %2760
        %2762 = vrot.lane.b32.xlu0 %v2738, 4
        %v2763 = vpop.permute.xlu0 %2762
        %2764 = vrot.lane.b32.xlu0 %v2739, 4
        %v2765 = vpop.permute.xlu0 %2764
        %2766 = vrot.lane.b32.xlu0 %v2740, 4
        %v2767 = vpop.permute.xlu0 %2766
        %2768 = vrot.lane.b32.xlu0 %v2741, 4
        %v2769 = vpop.permute.xlu0 %2768
        %2770 = vrot.lane.b32.xlu0 %v2742, 4
        %v2771 = vpop.permute.xlu0 %2770
        %2772 = vrot.lane.b32.xlu0 %v2743, 4
        %v2773 = vpop.permute.xlu0 %2772
        %2774 = vrot.lane.b32.xlu0 %v2744, 4
        %v2775 = vpop.permute.xlu0 %2774
        %2776 = vrot.lane.b32.xlu0 %v2745, 4
        %v2777 = vpop.permute.xlu0 %2776
        %vm2794 = vcmask 39968
        %2795 = vst.msk [vmem:[#allocation3] sm:$0xff] %vm2794, %v2747
        %2796 = vst.msk [vmem:[#allocation3 + $0x8] sm:$0xff] %vm2794, %v2749
        %2797 = vst.msk [vmem:[#allocation3 + $0x10] sm:$0xff] %vm2794, %v2751
        %2798 = vst.msk [vmem:[#allocation3 + $0x18] sm:$0xff] %vm2794, %v2753
        %2799 = vst.msk [vmem:[#allocation3 + $0x20] sm:$0xff] %vm2794, %v2755
        %2800 = vst.msk [vmem:[#allocation3 + $0x28] sm:$0xff] %vm2794, %v2757
        %2801 = vst.msk [vmem:[#allocation3 + $0x30] sm:$0xff] %vm2794, %v2759
        %2802 = vst.msk [vmem:[#allocation3 + $0x38] sm:$0xff] %vm2794, %v2761
        %2803 = vst.msk [vmem:[#allocation3 + $0x40] sm:$0xff] %vm2794, %v2763
        %2804 = vst.msk [vmem:[#allocation3 + $0x48] sm:$0xff] %vm2794, %v2765
        %2805 = vst.msk [vmem:[#allocation3 + $0x50] sm:$0xff] %vm2794, %v2767
        %2806 = vst.msk [vmem:[#allocation3 + $0x58] sm:$0xff] %vm2794, %v2769
        %2807 = vst.msk [vmem:[#allocation3 + $0x60] sm:$0xff] %vm2794, %v2771
        %2808 = vst.msk [vmem:[#allocation3 + $0x68] sm:$0xff] %vm2794, %v2773
        %2809 = vst.msk [vmem:[#allocation3 + $0x70] sm:$0xff] %vm2794, %v2775
        %2810 = vst.msk [vmem:[#allocation3 + $0x78] sm:$0xff] %vm2794, %v2777
        %v2811 = vld [vmem:[%s957] sm:$0xe]
        %v2812 = vld [vmem:[%s957 + $0x4] sm:$0xf]
        %v2813 = vld [vmem:[%s957 + $0x8] sm:$0x1]
        %v2814 = vld [vmem:[%s957 + $0xc] sm:$0xe]
        %v2815 = vld [vmem:[%s957 + $0x10] sm:$0xf]
        %v2816 = vld [vmem:[%s957 + $0x14] sm:$0x1]
        %v2817 = vld [vmem:[%s957 + $0x18] sm:$0xe]
        %v2818 = vld [vmem:[%s957 + $0x1c] sm:$0xf]
        %v2819 = vld [vmem:[%s957 + $0x20] sm:$0x1]
        %v2820 = vld [vmem:[%s957 + $0x24] sm:$0xe]
        %v2821 = vld [vmem:[%s957 + $0x28] sm:$0xf]
        %v2822 = vld [vmem:[%s957 + $0x2c] sm:$0x1]
        %v2823 = vld [vmem:[%s957 + $0x30] sm:$0xe]
        %v2824 = vld [vmem:[%s957 + $0x34] sm:$0xf]
        %v2825 = vld [vmem:[%s957 + $0x38] sm:$0x1]
        %v2826 = vld [vmem:[%s957 + $0x3c] sm:$0xe]
        %v2827 = vld [vmem:[%s957 + $0x40] sm:$0xf]
        %v2828 = vld [vmem:[%s957 + $0x44] sm:$0x1]
        %v2829 = vld [vmem:[%s957 + $0x48] sm:$0xe]
        %v2830 = vld [vmem:[%s957 + $0x4c] sm:$0xf]
        %v2831 = vld [vmem:[%s957 + $0x50] sm:$0x1]
        %v2832 = vld [vmem:[%s957 + $0x54] sm:$0xe]
        %v2833 = vld [vmem:[%s957 + $0x58] sm:$0xf]
        %v2834 = vld [vmem:[%s957 + $0x5c] sm:$0x1]
        %v2835 = vld [vmem:[%s957 + $0x60] sm:$0xe]
        %v2836 = vld [vmem:[%s957 + $0x64] sm:$0xf]
        %v2837 = vld [vmem:[%s957 + $0x68] sm:$0x1]
        %v2838 = vld [vmem:[%s957 + $0x6c] sm:$0xe]
        %v2839 = vld [vmem:[%s957 + $0x70] sm:$0xf]
        %v2840 = vld [vmem:[%s957 + $0x74] sm:$0x1]
        %v2841 = vld [vmem:[%s957 + $0x78] sm:$0xe]
        %v2842 = vld [vmem:[%s957 + $0x7c] sm:$0xf]
        %v2843 = vld [vmem:[%s957 + $0x80] sm:$0x1]
        %v2844 = vld [vmem:[%s957 + $0x84] sm:$0xe]
        %v2845 = vld [vmem:[%s957 + $0x88] sm:$0xf]
        %v2846 = vld [vmem:[%s957 + $0x8c] sm:$0x1]
        %v2847 = vld [vmem:[%s957 + $0x90] sm:$0xe]
        %v2848 = vld [vmem:[%s957 + $0x94] sm:$0xf]
        %v2849 = vld [vmem:[%s957 + $0x98] sm:$0x1]
        %v2850 = vld [vmem:[%s957 + $0x9c] sm:$0xe]
        %v2851 = vld [vmem:[%s957 + $0xa0] sm:$0xf]
        %v2852 = vld [vmem:[%s957 + $0xa4] sm:$0x1]
        %v2853 = vld [vmem:[%s957 + $0xa8] sm:$0xe]
        %v2854 = vld [vmem:[%s957 + $0xac] sm:$0xf]
        %v2855 = vld [vmem:[%s957 + $0xb0] sm:$0x1]
        %v2856 = vld [vmem:[%s957 + $0xb4] sm:$0xe]
        %v2857 = vld [vmem:[%s957 + $0xb8] sm:$0xf]
        %v2858 = vld [vmem:[%s957 + $0xbc] sm:$0x1]
        %v2907 = vrot.slane %v2811, 5
        %v2908 = vrot.slane %v2907, 4
        %v2909 = vrot.slane %v2812, 5
        %v2910 = vsel %vm1863, %v2908, %v2909
        %v2911 = vrot.slane %v2909, 4
        %v2912 = vrot.slane %v2813, 5
        %v2913 = vsel %vm1863, %v2911, %v2912
        %v2914 = vrot.slane %v2814, 5
        %v2915 = vrot.slane %v2914, 4
        %v2916 = vrot.slane %v2815, 5
        %v2917 = vsel %vm1863, %v2915, %v2916
        %v2918 = vrot.slane %v2916, 4
        %v2919 = vrot.slane %v2816, 5
        %v2920 = vsel %vm1863, %v2918, %v2919
        %v2921 = vrot.slane %v2817, 5
        %v2922 = vrot.slane %v2921, 4
        %v2923 = vrot.slane %v2818, 5
        %v2924 = vsel %vm1863, %v2922, %v2923
        %v2925 = vrot.slane %v2923, 4
        %v2926 = vrot.slane %v2819, 5
        %v2927 = vsel %vm1863, %v2925, %v2926
        %v2928 = vrot.slane %v2820, 5
        %v2929 = vrot.slane %v2928, 4
        %v2930 = vrot.slane %v2821, 5
        %v2931 = vsel %vm1863, %v2929, %v2930
        %v2932 = vrot.slane %v2930, 4
        %v2933 = vrot.slane %v2822, 5
        %v2934 = vsel %vm1863, %v2932, %v2933
        %v2935 = vrot.slane %v2823, 5
        %v2936 = vrot.slane %v2935, 4
        %v2937 = vrot.slane %v2824, 5
        %v2938 = vsel %vm1863, %v2936, %v2937
        %v2939 = vrot.slane %v2937, 4
        %v2940 = vrot.slane %v2825, 5
        %v2941 = vsel %vm1863, %v2939, %v2940
        %v2942 = vrot.slane %v2826, 5
        %v2943 = vrot.slane %v2942, 4
        %v2944 = vrot.slane %v2827, 5
        %v2945 = vsel %vm1863, %v2943, %v2944
        %v2946 = vrot.slane %v2944, 4
        %v2947 = vrot.slane %v2828, 5
        %v2948 = vsel %vm1863, %v2946, %v2947
        %v2949 = vrot.slane %v2829, 5
        %v2950 = vrot.slane %v2949, 4
        %v2951 = vrot.slane %v2830, 5
        %v2952 = vsel %vm1863, %v2950, %v2951
        %v2953 = vrot.slane %v2951, 4
        %v2954 = vrot.slane %v2831, 5
        %v2955 = vsel %vm1863, %v2953, %v2954
        %v2956 = vrot.slane %v2832, 5
        %v2957 = vrot.slane %v2956, 4
        %v2958 = vrot.slane %v2833, 5
        %v2959 = vsel %vm1863, %v2957, %v2958
        %v2960 = vrot.slane %v2958, 4
        %v2961 = vrot.slane %v2834, 5
        %v2962 = vsel %vm1863, %v2960, %v2961
        %v2963 = vrot.slane %v2835, 5
        %v2964 = vrot.slane %v2963, 4
        %v2965 = vrot.slane %v2836, 5
        %v2966 = vsel %vm1863, %v2964, %v2965
        %v2967 = vrot.slane %v2965, 4
        %v2968 = vrot.slane %v2837, 5
        %v2969 = vsel %vm1863, %v2967, %v2968
        %v2970 = vrot.slane %v2838, 5
        %v2971 = vrot.slane %v2970, 4
        %v2972 = vrot.slane %v2839, 5
        %v2973 = vsel %vm1863, %v2971, %v2972
        %v2974 = vrot.slane %v2972, 4
        %v2975 = vrot.slane %v2840, 5
        %v2976 = vsel %vm1863, %v2974, %v2975
        %v2977 = vrot.slane %v2841, 5
        %v2978 = vrot.slane %v2977, 4
        %v2979 = vrot.slane %v2842, 5
        %v2980 = vsel %vm1863, %v2978, %v2979
        %v2981 = vrot.slane %v2979, 4
        %v2982 = vrot.slane %v2843, 5
        %v2983 = vsel %vm1863, %v2981, %v2982
        %v2984 = vrot.slane %v2844, 5
        %v2985 = vrot.slane %v2984, 4
        %v2986 = vrot.slane %v2845, 5
        %v2987 = vsel %vm1863, %v2985, %v2986
        %v2988 = vrot.slane %v2986, 4
        %v2989 = vrot.slane %v2846, 5
        %v2990 = vsel %vm1863, %v2988, %v2989
        %v2991 = vrot.slane %v2847, 5
        %v2992 = vrot.slane %v2991, 4
        %v2993 = vrot.slane %v2848, 5
        %v2994 = vsel %vm1863, %v2992, %v2993
        %v2995 = vrot.slane %v2993, 4
        %v2996 = vrot.slane %v2849, 5
        %v2997 = vsel %vm1863, %v2995, %v2996
        %v2998 = vrot.slane %v2850, 5
        %v2999 = vrot.slane %v2998, 4
        %v3000 = vrot.slane %v2851, 5
        %v3001 = vsel %vm1863, %v2999, %v3000
        %v3002 = vrot.slane %v3000, 4
        %v3003 = vrot.slane %v2852, 5
        %v3004 = vsel %vm1863, %v3002, %v3003
        %v3005 = vrot.slane %v2853, 5
        %v3006 = vrot.slane %v3005, 4
        %v3007 = vrot.slane %v2854, 5
        %v3008 = vsel %vm1863, %v3006, %v3007
        %v3009 = vrot.slane %v3007, 4
        %v3010 = vrot.slane %v2855, 5
        %v3011 = vsel %vm1863, %v3009, %v3010
        %v3012 = vrot.slane %v2856, 5
        %v3013 = vrot.slane %v3012, 4
        %v3014 = vrot.slane %v2857, 5
        %v3015 = vsel %vm1863, %v3013, %v3014
        %v3016 = vrot.slane %v3014, 4
        %v3017 = vrot.slane %v2858, 5
        %v3018 = vsel %vm1863, %v3016, %v3017
        %v3019 = vunpack.c.l.b16 %v2910
        %v3020 = vunpack.c.l.b16 %v2913
        %v3021 = vunpack.c.l.b16 %v2917
        %v3022 = vunpack.c.l.b16 %v2920
        %v3023 = vunpack.c.l.b16 %v2924
        %v3024 = vunpack.c.l.b16 %v2927
        %v3025 = vunpack.c.l.b16 %v2931
        %v3026 = vunpack.c.l.b16 %v2934
        %v3027 = vunpack.c.l.b16 %v2938
        %v3028 = vunpack.c.l.b16 %v2941
        %v3029 = vunpack.c.l.b16 %v2945
        %v3030 = vunpack.c.l.b16 %v2948
        %v3031 = vunpack.c.l.b16 %v2952
        %v3032 = vunpack.c.l.b16 %v2955
        %v3033 = vunpack.c.l.b16 %v2959
        %v3034 = vunpack.c.l.b16 %v2962
        %v3035 = vunpack.c.l.b16 %v2966
        %v3036 = vunpack.c.l.b16 %v2969
        %v3037 = vunpack.c.l.b16 %v2973
        %v3038 = vunpack.c.l.b16 %v2976
        %v3039 = vunpack.c.l.b16 %v2980
        %v3040 = vunpack.c.l.b16 %v2983
        %v3041 = vunpack.c.l.b16 %v2987
        %v3042 = vunpack.c.l.b16 %v2990
        %v3043 = vunpack.c.l.b16 %v2994
        %v3044 = vunpack.c.l.b16 %v2997
        %v3045 = vunpack.c.l.b16 %v3001
        %v3046 = vunpack.c.l.b16 %v3004
        %v3047 = vunpack.c.l.b16 %v3008
        %v3048 = vunpack.c.l.b16 %v3011
        %v3049 = vunpack.c.l.b16 %v3015
        %v3050 = vunpack.c.l.b16 %v3018
        %v3051 = vpack.c.b16 %v3020, %v3019
        %v3052 = vpack.c.b16 %v3022, %v3021
        %v3053 = vpack.c.b16 %v3024, %v3023
        %v3054 = vpack.c.b16 %v3026, %v3025
        %v3055 = vpack.c.b16 %v3028, %v3027
        %v3056 = vpack.c.b16 %v3030, %v3029
        %v3057 = vpack.c.b16 %v3032, %v3031
        %v3058 = vpack.c.b16 %v3034, %v3033
        %v3059 = vpack.c.b16 %v3036, %v3035
        %v3060 = vpack.c.b16 %v3038, %v3037
        %v3061 = vpack.c.b16 %v3040, %v3039
        %v3062 = vpack.c.b16 %v3042, %v3041
        %v3063 = vpack.c.b16 %v3044, %v3043
        %v3064 = vpack.c.b16 %v3046, %v3045
        %v3065 = vpack.c.b16 %v3048, %v3047
        %v3066 = vpack.c.b16 %v3050, %v3049
        %3067 = vrot.lane.b32.xlu0 %v3051, 5
        %v3068 = vpop.permute.xlu0 %3067
        %3069 = vrot.lane.b32.xlu0 %v3052, 5
        %v3070 = vpop.permute.xlu0 %3069
        %3071 = vrot.lane.b32.xlu0 %v3053, 5
        %v3072 = vpop.permute.xlu0 %3071
        %3073 = vrot.lane.b32.xlu0 %v3054, 5
        %v3074 = vpop.permute.xlu0 %3073
        %3075 = vrot.lane.b32.xlu0 %v3055, 5
        %v3076 = vpop.permute.xlu0 %3075
        %3077 = vrot.lane.b32.xlu0 %v3056, 5
        %v3078 = vpop.permute.xlu0 %3077
        %3079 = vrot.lane.b32.xlu0 %v3057, 5
        %v3080 = vpop.permute.xlu0 %3079
        %3081 = vrot.lane.b32.xlu0 %v3058, 5
        %v3082 = vpop.permute.xlu0 %3081
        %3083 = vrot.lane.b32.xlu0 %v3059, 5
        %v3084 = vpop.permute.xlu0 %3083
        %3085 = vrot.lane.b32.xlu0 %v3060, 5
        %v3086 = vpop.permute.xlu0 %3085
        %3087 = vrot.lane.b32.xlu0 %v3061, 5
        %v3088 = vpop.permute.xlu0 %3087
        %3089 = vrot.lane.b32.xlu0 %v3062, 5
        %v3090 = vpop.permute.xlu0 %3089
        %3091 = vrot.lane.b32.xlu0 %v3063, 5
        %v3092 = vpop.permute.xlu0 %3091
        %3093 = vrot.lane.b32.xlu0 %v3064, 5
        %v3094 = vpop.permute.xlu0 %3093
        %3095 = vrot.lane.b32.xlu0 %v3065, 5
        %v3096 = vpop.permute.xlu0 %3095
        %3097 = vrot.lane.b32.xlu0 %v3066, 5
        %v3098 = vpop.permute.xlu0 %3097
        %vm3115 = vcmask 48168
        %3116 = vst.msk [vmem:[#allocation3] sm:$0xff] %vm3115, %v3068
        %3117 = vst.msk [vmem:[#allocation3 + $0x8] sm:$0xff] %vm3115, %v3070
        %3118 = vst.msk [vmem:[#allocation3 + $0x10] sm:$0xff] %vm3115, %v3072
        %3119 = vst.msk [vmem:[#allocation3 + $0x18] sm:$0xff] %vm3115, %v3074
        %3120 = vst.msk [vmem:[#allocation3 + $0x20] sm:$0xff] %vm3115, %v3076
        %3121 = vst.msk [vmem:[#allocation3 + $0x28] sm:$0xff] %vm3115, %v3078
        %3122 = vst.msk [vmem:[#allocation3 + $0x30] sm:$0xff] %vm3115, %v3080
        %3123 = vst.msk [vmem:[#allocation3 + $0x38] sm:$0xff] %vm3115, %v3082
        %3124 = vst.msk [vmem:[#allocation3 + $0x40] sm:$0xff] %vm3115, %v3084
        %3125 = vst.msk [vmem:[#allocation3 + $0x48] sm:$0xff] %vm3115, %v3086
        %3126 = vst.msk [vmem:[#allocation3 + $0x50] sm:$0xff] %vm3115, %v3088
        %3127 = vst.msk [vmem:[#allocation3 + $0x58] sm:$0xff] %vm3115, %v3090
        %3128 = vst.msk [vmem:[#allocation3 + $0x60] sm:$0xff] %vm3115, %v3092
        %3129 = vst.msk [vmem:[#allocation3 + $0x68] sm:$0xff] %vm3115, %v3094
        %3130 = vst.msk [vmem:[#allocation3 + $0x70] sm:$0xff] %vm3115, %v3096
        %3131 = vst.msk [vmem:[#allocation3 + $0x78] sm:$0xff] %vm3115, %v3098
        %s3132 = scalar_lea.vmem [#allocation2], 24
        %v3133 = vld [vmem:[%s3132] sm:$0xf]
        %v3134 = vld [vmem:[%s3132 + $0x4] sm:$0xf]
        %v3135 = vld [vmem:[%s3132 + $0xc] sm:$0xf]
        %v3136 = vld [vmem:[%s3132 + $0x10] sm:$0xf]
        %v3137 = vld [vmem:[%s3132 + $0x18] sm:$0xf]
        %v3138 = vld [vmem:[%s3132 + $0x1c] sm:$0xf]
        %v3139 = vld [vmem:[%s3132 + $0x24] sm:$0xf]
        %v3140 = vld [vmem:[%s3132 + $0x28] sm:$0xf]
        %v3141 = vld [vmem:[%s3132 + $0x30] sm:$0xf]
        %v3142 = vld [vmem:[%s3132 + $0x34] sm:$0xf]
        %v3143 = vld [vmem:[%s3132 + $0x3c] sm:$0xf]
        %v3144 = vld [vmem:[%s3132 + $0x40] sm:$0xf]
        %v3145 = vld [vmem:[%s3132 + $0x48] sm:$0xf]
        %v3146 = vld [vmem:[%s3132 + $0x4c] sm:$0xf]
        %v3147 = vld [vmem:[%s3132 + $0x54] sm:$0xf]
        %v3148 = vld [vmem:[%s3132 + $0x58] sm:$0xf]
        %v3149 = vld [vmem:[%s3132 + $0x60] sm:$0xf]
        %v3150 = vld [vmem:[%s3132 + $0x64] sm:$0xf]
        %v3151 = vld [vmem:[%s3132 + $0x6c] sm:$0xf]
        %v3152 = vld [vmem:[%s3132 + $0x70] sm:$0xf]
        %v3153 = vld [vmem:[%s3132 + $0x78] sm:$0xf]
        %v3154 = vld [vmem:[%s3132 + $0x7c] sm:$0xf]
        %v3155 = vld [vmem:[%s3132 + $0x84] sm:$0xf]
        %v3156 = vld [vmem:[%s3132 + $0x88] sm:$0xf]
        %v3157 = vld [vmem:[%s3132 + $0x90] sm:$0xf]
        %v3158 = vld [vmem:[%s3132 + $0x94] sm:$0xf]
        %v3159 = vld [vmem:[%s3132 + $0x9c] sm:$0xf]
        %v3160 = vld [vmem:[%s3132 + $0xa0] sm:$0xf]
        %v3161 = vld [vmem:[%s3132 + $0xa8] sm:$0xf]
        %v3162 = vld [vmem:[%s3132 + $0xac] sm:$0xf]
        %v3163 = vld [vmem:[%s3132 + $0xb4] sm:$0xf]
        %v3164 = vld [vmem:[%s3132 + $0xb8] sm:$0xf]
        %v3197 = vunpack.c.l.b16 %v3133
        %v3198 = vunpack.c.l.b16 %v3134
        %v3199 = vunpack.c.l.b16 %v3135
        %v3200 = vunpack.c.l.b16 %v3136
        %v3201 = vunpack.c.l.b16 %v3137
        %v3202 = vunpack.c.l.b16 %v3138
        %v3203 = vunpack.c.l.b16 %v3139
        %v3204 = vunpack.c.l.b16 %v3140
        %v3205 = vunpack.c.l.b16 %v3141
        %v3206 = vunpack.c.l.b16 %v3142
        %v3207 = vunpack.c.l.b16 %v3143
        %v3208 = vunpack.c.l.b16 %v3144
        %v3209 = vunpack.c.l.b16 %v3145
        %v3210 = vunpack.c.l.b16 %v3146
        %v3211 = vunpack.c.l.b16 %v3147
        %v3212 = vunpack.c.l.b16 %v3148
        %v3213 = vunpack.c.l.b16 %v3149
        %v3214 = vunpack.c.l.b16 %v3150
        %v3215 = vunpack.c.l.b16 %v3151
        %v3216 = vunpack.c.l.b16 %v3152
        %v3217 = vunpack.c.l.b16 %v3153
        %v3218 = vunpack.c.l.b16 %v3154
        %v3219 = vunpack.c.l.b16 %v3155
        %v3220 = vunpack.c.l.b16 %v3156
        %v3221 = vunpack.c.l.b16 %v3157
        %v3222 = vunpack.c.l.b16 %v3158
        %v3223 = vunpack.c.l.b16 %v3159
        %v3224 = vunpack.c.l.b16 %v3160
        %v3225 = vunpack.c.l.b16 %v3161
        %v3226 = vunpack.c.l.b16 %v3162
        %v3227 = vunpack.c.l.b16 %v3163
        %v3228 = vunpack.c.l.b16 %v3164
        %v3229 = vpack.c.b16 %v3198, %v3197
        %v3230 = vpack.c.b16 %v3200, %v3199
        %v3231 = vpack.c.b16 %v3202, %v3201
        %v3232 = vpack.c.b16 %v3204, %v3203
        %v3233 = vpack.c.b16 %v3206, %v3205
        %v3234 = vpack.c.b16 %v3208, %v3207
        %v3235 = vpack.c.b16 %v3210, %v3209
        %v3236 = vpack.c.b16 %v3212, %v3211
        %v3237 = vpack.c.b16 %v3214, %v3213
        %v3238 = vpack.c.b16 %v3216, %v3215
        %v3239 = vpack.c.b16 %v3218, %v3217
        %v3240 = vpack.c.b16 %v3220, %v3219
        %v3241 = vpack.c.b16 %v3222, %v3221
        %v3242 = vpack.c.b16 %v3224, %v3223
        %v3243 = vpack.c.b16 %v3226, %v3225
        %v3244 = vpack.c.b16 %v3228, %v3227
        %3245 = vrot.lane.b32.xlu0 %v3229, 6
        %v3246 = vpop.permute.xlu0 %3245
        %3247 = vrot.lane.b32.xlu0 %v3230, 6
        %v3248 = vpop.permute.xlu0 %3247
        %3249 = vrot.lane.b32.xlu0 %v3231, 6
        %v3250 = vpop.permute.xlu0 %3249
        %3251 = vrot.lane.b32.xlu0 %v3232, 6
        %v3252 = vpop.permute.xlu0 %3251
        %3253 = vrot.lane.b32.xlu0 %v3233, 6
        %v3254 = vpop.permute.xlu0 %3253
        %3255 = vrot.lane.b32.xlu0 %v3234, 6
        %v3256 = vpop.permute.xlu0 %3255
        %3257 = vrot.lane.b32.xlu0 %v3235, 6
        %v3258 = vpop.permute.xlu0 %3257
        %3259 = vrot.lane.b32.xlu0 %v3236, 6
        %v3260 = vpop.permute.xlu0 %3259
        %3261 = vrot.lane.b32.xlu0 %v3237, 6
        %v3262 = vpop.permute.xlu0 %3261
        %3263 = vrot.lane.b32.xlu0 %v3238, 6
        %v3264 = vpop.permute.xlu0 %3263
        %3265 = vrot.lane.b32.xlu0 %v3239, 6
        %v3266 = vpop.permute.xlu0 %3265
        %3267 = vrot.lane.b32.xlu0 %v3240, 6
        %v3268 = vpop.permute.xlu0 %3267
        %3269 = vrot.lane.b32.xlu0 %v3241, 6
        %v3270 = vpop.permute.xlu0 %3269
        %3271 = vrot.lane.b32.xlu0 %v3242, 6
        %v3272 = vpop.permute.xlu0 %3271
        %3273 = vrot.lane.b32.xlu0 %v3243, 6
        %v3274 = vpop.permute.xlu0 %3273
        %3275 = vrot.lane.b32.xlu0 %v3244, 6
        %v3276 = vpop.permute.xlu0 %3275
        %vm3293 = vcmask 56368
        %3294 = vst.msk [vmem:[#allocation3] sm:$0xff] %vm3293, %v3246
        %3295 = vst.msk [vmem:[#allocation3 + $0x8] sm:$0xff] %vm3293, %v3248
        %3296 = vst.msk [vmem:[#allocation3 + $0x10] sm:$0xff] %vm3293, %v3250
        %3297 = vst.msk [vmem:[#allocation3 + $0x18] sm:$0xff] %vm3293, %v3252
        %3298 = vst.msk [vmem:[#allocation3 + $0x20] sm:$0xff] %vm3293, %v3254
        %3299 = vst.msk [vmem:[#allocation3 + $0x28] sm:$0xff] %vm3293, %v3256
        %3300 = vst.msk [vmem:[#allocation3 + $0x30] sm:$0xff] %vm3293, %v3258
        %3301 = vst.msk [vmem:[#allocation3 + $0x38] sm:$0xff] %vm3293, %v3260
        %3302 = vst.msk [vmem:[#allocation3 + $0x40] sm:$0xff] %vm3293, %v3262
        %3303 = vst.msk [vmem:[#allocation3 + $0x48] sm:$0xff] %vm3293, %v3264
        %3304 = vst.msk [vmem:[#allocation3 + $0x50] sm:$0xff] %vm3293, %v3266
        %3305 = vst.msk [vmem:[#allocation3 + $0x58] sm:$0xff] %vm3293, %v3268
        %3306 = vst.msk [vmem:[#allocation3 + $0x60] sm:$0xff] %vm3293, %v3270
        %3307 = vst.msk [vmem:[#allocation3 + $0x68] sm:$0xff] %vm3293, %v3272
        %3308 = vst.msk [vmem:[#allocation3 + $0x70] sm:$0xff] %vm3293, %v3274
        %3309 = vst.msk [vmem:[#allocation3 + $0x78] sm:$0xff] %vm3293, %v3276
        %v3310 = vld [vmem:[%s3132] sm:$0xf]
        %v3311 = vld [vmem:[%s3132 + $0x4] sm:$0xf]
        %v3312 = vld [vmem:[%s3132 + $0x8] sm:$0x1]
        %v3313 = vld [vmem:[%s3132 + $0xc] sm:$0xf]
        %v3314 = vld [vmem:[%s3132 + $0x10] sm:$0xf]
        %v3315 = vld [vmem:[%s3132 + $0x14] sm:$0x1]
        %v3316 = vld [vmem:[%s3132 + $0x18] sm:$0xf]
        %v3317 = vld [vmem:[%s3132 + $0x1c] sm:$0xf]
        %v3318 = vld [vmem:[%s3132 + $0x20] sm:$0x1]
        %v3319 = vld [vmem:[%s3132 + $0x24] sm:$0xf]
        %v3320 = vld [vmem:[%s3132 + $0x28] sm:$0xf]
        %v3321 = vld [vmem:[%s3132 + $0x2c] sm:$0x1]
        %v3322 = vld [vmem:[%s3132 + $0x30] sm:$0xf]
        %v3323 = vld [vmem:[%s3132 + $0x34] sm:$0xf]
        %v3324 = vld [vmem:[%s3132 + $0x38] sm:$0x1]
        %v3325 = vld [vmem:[%s3132 + $0x3c] sm:$0xf]
        %v3326 = vld [vmem:[%s3132 + $0x40] sm:$0xf]
        %v3327 = vld [vmem:[%s3132 + $0x44] sm:$0x1]
        %v3328 = vld [vmem:[%s3132 + $0x48] sm:$0xf]
        %v3329 = vld [vmem:[%s3132 + $0x4c] sm:$0xf]
        %v3330 = vld [vmem:[%s3132 + $0x50] sm:$0x1]
        %v3331 = vld [vmem:[%s3132 + $0x54] sm:$0xf]
        %v3332 = vld [vmem:[%s3132 + $0x58] sm:$0xf]
        %v3333 = vld [vmem:[%s3132 + $0x5c] sm:$0x1]
        %v3334 = vld [vmem:[%s3132 + $0x60] sm:$0xf]
        %v3335 = vld [vmem:[%s3132 + $0x64] sm:$0xf]
        %v3336 = vld [vmem:[%s3132 + $0x68] sm:$0x1]
        %v3337 = vld [vmem:[%s3132 + $0x6c] sm:$0xf]
        %v3338 = vld [vmem:[%s3132 + $0x70] sm:$0xf]
        %v3339 = vld [vmem:[%s3132 + $0x74] sm:$0x1]
        %v3340 = vld [vmem:[%s3132 + $0x78] sm:$0xf]
        %v3341 = vld [vmem:[%s3132 + $0x7c] sm:$0xf]
        %v3342 = vld [vmem:[%s3132 + $0x80] sm:$0x1]
        %v3343 = vld [vmem:[%s3132 + $0x84] sm:$0xf]
        %v3344 = vld [vmem:[%s3132 + $0x88] sm:$0xf]
        %v3345 = vld [vmem:[%s3132 + $0x8c] sm:$0x1]
        %v3346 = vld [vmem:[%s3132 + $0x90] sm:$0xf]
        %v3347 = vld [vmem:[%s3132 + $0x94] sm:$0xf]
        %v3348 = vld [vmem:[%s3132 + $0x98] sm:$0x1]
        %v3349 = vld [vmem:[%s3132 + $0x9c] sm:$0xf]
        %v3350 = vld [vmem:[%s3132 + $0xa0] sm:$0xf]
        %v3351 = vld [vmem:[%s3132 + $0xa4] sm:$0x1]
        %v3352 = vld [vmem:[%s3132 + $0xa8] sm:$0xf]
        %v3353 = vld [vmem:[%s3132 + $0xac] sm:$0xf]
        %v3354 = vld [vmem:[%s3132 + $0xb0] sm:$0x1]
        %v3355 = vld [vmem:[%s3132 + $0xb4] sm:$0xf]
        %v3356 = vld [vmem:[%s3132 + $0xb8] sm:$0xf]
        %v3357 = vld [vmem:[%s3132 + $0xbc] sm:$0x1]
        %v3359 = vshrl.u32 %v3310, 16
        %v3361 = vrot.slane %v3359, 4
        %v3362 = vshll.u32 %v3310, 16
        %v3364 = vrot.slane %v3362, 5
        %v3365 = vor.u32 %v3361, %v3364
        %v3366 = vrot.slane %v3365, 4
        %v3368 = vshll.u32 %v3311, 16
        %v3370 = vrot.slane %v3368, 5
        %v3371 = vsel %vm1267, %v3366, %v3370
        %v3372 = vshrl.u32 %v3311, 16
        %v3374 = vrot.slane %v3372, 4
        %v3375 = vor.u32 %v3374, %v3370
        %v3376 = vrot.slane %v3375, 4
        %v3378 = vshll.u32 %v3312, 16
        %v3380 = vrot.slane %v3378, 5
        %v3381 = vsel %vm1267, %v3376, %v3380
        %v3383 = vshrl.u32 %v3313, 16
        %v3385 = vrot.slane %v3383, 4
        %v3386 = vshll.u32 %v3313, 16
        %v3388 = vrot.slane %v3386, 5
        %v3389 = vor.u32 %v3385, %v3388
        %v3390 = vrot.slane %v3389, 4
        %v3392 = vshll.u32 %v3314, 16
        %v3394 = vrot.slane %v3392, 5
        %v3395 = vsel %vm1267, %v3390, %v3394
        %v3396 = vshrl.u32 %v3314, 16
        %v3398 = vrot.slane %v3396, 4
        %v3399 = vor.u32 %v3398, %v3394
        %v3400 = vrot.slane %v3399, 4
        %v3402 = vshll.u32 %v3315, 16
        %v3404 = vrot.slane %v3402, 5
        %v3405 = vsel %vm1267, %v3400, %v3404
        %v3407 = vshrl.u32 %v3316, 16
        %v3409 = vrot.slane %v3407, 4
        %v3410 = vshll.u32 %v3316, 16
        %v3412 = vrot.slane %v3410, 5
        %v3413 = vor.u32 %v3409, %v3412
        %v3414 = vrot.slane %v3413, 4
        %v3416 = vshll.u32 %v3317, 16
        %v3418 = vrot.slane %v3416, 5
        %v3419 = vsel %vm1267, %v3414, %v3418
        %v3420 = vshrl.u32 %v3317, 16
        %v3422 = vrot.slane %v3420, 4
        %v3423 = vor.u32 %v3422, %v3418
        %v3424 = vrot.slane %v3423, 4
        %v3426 = vshll.u32 %v3318, 16
        %v3428 = vrot.slane %v3426, 5
        %v3429 = vsel %vm1267, %v3424, %v3428
        %v3431 = vshrl.u32 %v3319, 16
        %v3433 = vrot.slane %v3431, 4
        %v3434 = vshll.u32 %v3319, 16
        %v3436 = vrot.slane %v3434, 5
        %v3437 = vor.u32 %v3433, %v3436
        %v3438 = vrot.slane %v3437, 4
        %v3440 = vshll.u32 %v3320, 16
        %v3442 = vrot.slane %v3440, 5
        %v3443 = vsel %vm1267, %v3438, %v3442
        %v3444 = vshrl.u32 %v3320, 16
        %v3446 = vrot.slane %v3444, 4
        %v3447 = vor.u32 %v3446, %v3442
        %v3448 = vrot.slane %v3447, 4
        %v3450 = vshll.u32 %v3321, 16
        %v3452 = vrot.slane %v3450, 5
        %v3453 = vsel %vm1267, %v3448, %v3452
        %v3455 = vshrl.u32 %v3322, 16
        %v3457 = vrot.slane %v3455, 4
        %v3458 = vshll.u32 %v3322, 16
        %v3460 = vrot.slane %v3458, 5
        %v3461 = vor.u32 %v3457, %v3460
        %v3462 = vrot.slane %v3461, 4
        %v3464 = vshll.u32 %v3323, 16
        %v3466 = vrot.slane %v3464, 5
        %v3467 = vsel %vm1267, %v3462, %v3466
        %v3468 = vshrl.u32 %v3323, 16
        %v3470 = vrot.slane %v3468, 4
        %v3471 = vor.u32 %v3470, %v3466
        %v3472 = vrot.slane %v3471, 4
        %v3474 = vshll.u32 %v3324, 16
        %v3476 = vrot.slane %v3474, 5
        %v3477 = vsel %vm1267, %v3472, %v3476
        %v3479 = vshrl.u32 %v3325, 16
        %v3481 = vrot.slane %v3479, 4
        %v3482 = vshll.u32 %v3325, 16
        %v3484 = vrot.slane %v3482, 5
        %v3485 = vor.u32 %v3481, %v3484
        %v3486 = vrot.slane %v3485, 4
        %v3488 = vshll.u32 %v3326, 16
        %v3490 = vrot.slane %v3488, 5
        %v3491 = vsel %vm1267, %v3486, %v3490
        %v3492 = vshrl.u32 %v3326, 16
        %v3494 = vrot.slane %v3492, 4
        %v3495 = vor.u32 %v3494, %v3490
        %v3496 = vrot.slane %v3495, 4
        %v3498 = vshll.u32 %v3327, 16
        %v3500 = vrot.slane %v3498, 5
        %v3501 = vsel %vm1267, %v3496, %v3500
        %v3503 = vshrl.u32 %v3328, 16
        %v3505 = vrot.slane %v3503, 4
        %v3506 = vshll.u32 %v3328, 16
        %v3508 = vrot.slane %v3506, 5
        %v3509 = vor.u32 %v3505, %v3508
        %v3510 = vrot.slane %v3509, 4
        %v3512 = vshll.u32 %v3329, 16
        %v3514 = vrot.slane %v3512, 5
        %v3515 = vsel %vm1267, %v3510, %v3514
        %v3516 = vshrl.u32 %v3329, 16
        %v3518 = vrot.slane %v3516, 4
        %v3519 = vor.u32 %v3518, %v3514
        %v3520 = vrot.slane %v3519, 4
        %v3522 = vshll.u32 %v3330, 16
        %v3524 = vrot.slane %v3522, 5
        %v3525 = vsel %vm1267, %v3520, %v3524
        %v3527 = vshrl.u32 %v3331, 16
        %v3529 = vrot.slane %v3527, 4
        %v3530 = vshll.u32 %v3331, 16
        %v3532 = vrot.slane %v3530, 5
        %v3533 = vor.u32 %v3529, %v3532
        %v3534 = vrot.slane %v3533, 4
        %v3536 = vshll.u32 %v3332, 16
        %v3538 = vrot.slane %v3536, 5
        %v3539 = vsel %vm1267, %v3534, %v3538
        %v3540 = vshrl.u32 %v3332, 16
        %v3542 = vrot.slane %v3540, 4
        %v3543 = vor.u32 %v3542, %v3538
        %v3544 = vrot.slane %v3543, 4
        %v3546 = vshll.u32 %v3333, 16
        %v3548 = vrot.slane %v3546, 5
        %v3549 = vsel %vm1267, %v3544, %v3548
        %v3551 = vshrl.u32 %v3334, 16
        %v3553 = vrot.slane %v3551, 4
        %v3554 = vshll.u32 %v3334, 16
        %v3556 = vrot.slane %v3554, 5
        %v3557 = vor.u32 %v3553, %v3556
        %v3558 = vrot.slane %v3557, 4
        %v3560 = vshll.u32 %v3335, 16
        %v3562 = vrot.slane %v3560, 5
        %v3563 = vsel %vm1267, %v3558, %v3562
        %v3564 = vshrl.u32 %v3335, 16
        %v3566 = vrot.slane %v3564, 4
        %v3567 = vor.u32 %v3566, %v3562
        %v3568 = vrot.slane %v3567, 4
        %v3570 = vshll.u32 %v3336, 16
        %v3572 = vrot.slane %v3570, 5
        %v3573 = vsel %vm1267, %v3568, %v3572
        %v3575 = vshrl.u32 %v3337, 16
        %v3577 = vrot.slane %v3575, 4
        %v3578 = vshll.u32 %v3337, 16
        %v3580 = vrot.slane %v3578, 5
        %v3581 = vor.u32 %v3577, %v3580
        %v3582 = vrot.slane %v3581, 4
        %v3584 = vshll.u32 %v3338, 16
        %v3586 = vrot.slane %v3584, 5
        %v3587 = vsel %vm1267, %v3582, %v3586
        %v3588 = vshrl.u32 %v3338, 16
        %v3590 = vrot.slane %v3588, 4
        %v3591 = vor.u32 %v3590, %v3586
        %v3592 = vrot.slane %v3591, 4
        %v3594 = vshll.u32 %v3339, 16
        %v3596 = vrot.slane %v3594, 5
        %v3597 = vsel %vm1267, %v3592, %v3596
        %v3599 = vshrl.u32 %v3340, 16
        %v3601 = vrot.slane %v3599, 4
        %v3602 = vshll.u32 %v3340, 16
        %v3604 = vrot.slane %v3602, 5
        %v3605 = vor.u32 %v3601, %v3604
        %v3606 = vrot.slane %v3605, 4
        %v3608 = vshll.u32 %v3341, 16
        %v3610 = vrot.slane %v3608, 5
        %v3611 = vsel %vm1267, %v3606, %v3610
        %v3612 = vshrl.u32 %v3341, 16
        %v3614 = vrot.slane %v3612, 4
        %v3615 = vor.u32 %v3614, %v3610
        %v3616 = vrot.slane %v3615, 4
        %v3618 = vshll.u32 %v3342, 16
        %v3620 = vrot.slane %v3618, 5
        %v3621 = vsel %vm1267, %v3616, %v3620
        %v3623 = vshrl.u32 %v3343, 16
        %v3625 = vrot.slane %v3623, 4
        %v3626 = vshll.u32 %v3343, 16
        %v3628 = vrot.slane %v3626, 5
        %v3629 = vor.u32 %v3625, %v3628
        %v3630 = vrot.slane %v3629, 4
        %v3632 = vshll.u32 %v3344, 16
        %v3634 = vrot.slane %v3632, 5
        %v3635 = vsel %vm1267, %v3630, %v3634
        %v3636 = vshrl.u32 %v3344, 16
        %v3638 = vrot.slane %v3636, 4
        %v3639 = vor.u32 %v3638, %v3634
        %v3640 = vrot.slane %v3639, 4
        %v3642 = vshll.u32 %v3345, 16
        %v3644 = vrot.slane %v3642, 5
        %v3645 = vsel %vm1267, %v3640, %v3644
        %v3647 = vshrl.u32 %v3346, 16
        %v3649 = vrot.slane %v3647, 4
        %v3650 = vshll.u32 %v3346, 16
        %v3652 = vrot.slane %v3650, 5
        %v3653 = vor.u32 %v3649, %v3652
        %v3654 = vrot.slane %v3653, 4
        %v3656 = vshll.u32 %v3347, 16
        %v3658 = vrot.slane %v3656, 5
        %v3659 = vsel %vm1267, %v3654, %v3658
        %v3660 = vshrl.u32 %v3347, 16
        %v3662 = vrot.slane %v3660, 4
        %v3663 = vor.u32 %v3662, %v3658
        %v3664 = vrot.slane %v3663, 4
        %v3666 = vshll.u32 %v3348, 16
        %v3668 = vrot.slane %v3666, 5
        %v3669 = vsel %vm1267, %v3664, %v3668
        %v3671 = vshrl.u32 %v3349, 16
        %v3673 = vrot.slane %v3671, 4
        %v3674 = vshll.u32 %v3349, 16
        %v3676 = vrot.slane %v3674, 5
        %v3677 = vor.u32 %v3673, %v3676
        %v3678 = vrot.slane %v3677, 4
        %v3680 = vshll.u32 %v3350, 16
        %v3682 = vrot.slane %v3680, 5
        %v3683 = vsel %vm1267, %v3678, %v3682
        %v3684 = vshrl.u32 %v3350, 16
        %v3686 = vrot.slane %v3684, 4
        %v3687 = vor.u32 %v3686, %v3682
        %v3688 = vrot.slane %v3687, 4
        %v3690 = vshll.u32 %v3351, 16
        %v3692 = vrot.slane %v3690, 5
        %v3693 = vsel %vm1267, %v3688, %v3692
        %v3695 = vshrl.u32 %v3352, 16
        %v3697 = vrot.slane %v3695, 4
        %v3698 = vshll.u32 %v3352, 16
        %v3700 = vrot.slane %v3698, 5
        %v3701 = vor.u32 %v3697, %v3700
        %v3702 = vrot.slane %v3701, 4
        %v3704 = vshll.u32 %v3353, 16
        %v3706 = vrot.slane %v3704, 5
        %v3707 = vsel %vm1267, %v3702, %v3706
        %v3708 = vshrl.u32 %v3353, 16
        %v3710 = vrot.slane %v3708, 4
        %v3711 = vor.u32 %v3710, %v3706
        %v3712 = vrot.slane %v3711, 4
        %v3714 = vshll.u32 %v3354, 16
        %v3716 = vrot.slane %v3714, 5
        %v3717 = vsel %vm1267, %v3712, %v3716
        %v3719 = vshrl.u32 %v3355, 16
        %v3721 = vrot.slane %v3719, 4
        %v3722 = vshll.u32 %v3355, 16
        %v3724 = vrot.slane %v3722, 5
        %v3725 = vor.u32 %v3721, %v3724
        %v3726 = vrot.slane %v3725, 4
        %v3728 = vshll.u32 %v3356, 16
        %v3730 = vrot.slane %v3728, 5
        %v3731 = vsel %vm1267, %v3726, %v3730
        %v3732 = vshrl.u32 %v3356, 16
        %v3734 = vrot.slane %v3732, 4
        %v3735 = vor.u32 %v3734, %v3730
        %v3736 = vrot.slane %v3735, 4
        %v3738 = vshll.u32 %v3357, 16
        %v3740 = vrot.slane %v3738, 5
        %v3741 = vsel %vm1267, %v3736, %v3740
        %v3742 = vunpack.c.l.b16 %v3371
        %v3743 = vunpack.c.l.b16 %v3381
        %v3744 = vunpack.c.l.b16 %v3395
        %v3745 = vunpack.c.l.b16 %v3405
        %v3746 = vunpack.c.l.b16 %v3419
        %v3747 = vunpack.c.l.b16 %v3429
        %v3748 = vunpack.c.l.b16 %v3443
        %v3749 = vunpack.c.l.b16 %v3453
        %v3750 = vunpack.c.l.b16 %v3467
        %v3751 = vunpack.c.l.b16 %v3477
        %v3752 = vunpack.c.l.b16 %v3491
        %v3753 = vunpack.c.l.b16 %v3501
        %v3754 = vunpack.c.l.b16 %v3515
        %v3755 = vunpack.c.l.b16 %v3525
        %v3756 = vunpack.c.l.b16 %v3539
        %v3757 = vunpack.c.l.b16 %v3549
        %v3758 = vunpack.c.l.b16 %v3563
        %v3759 = vunpack.c.l.b16 %v3573
        %v3760 = vunpack.c.l.b16 %v3587
        %v3761 = vunpack.c.l.b16 %v3597
        %v3762 = vunpack.c.l.b16 %v3611
        %v3763 = vunpack.c.l.b16 %v3621
        %v3764 = vunpack.c.l.b16 %v3635
        %v3765 = vunpack.c.l.b16 %v3645
        %v3766 = vunpack.c.l.b16 %v3659
        %v3767 = vunpack.c.l.b16 %v3669
        %v3768 = vunpack.c.l.b16 %v3683
        %v3769 = vunpack.c.l.b16 %v3693
        %v3770 = vunpack.c.l.b16 %v3707
        %v3771 = vunpack.c.l.b16 %v3717
        %v3772 = vunpack.c.l.b16 %v3731
        %v3773 = vunpack.c.l.b16 %v3741
        %v3774 = vpack.c.b16 %v3743, %v3742
        %v3775 = vpack.c.b16 %v3745, %v3744
        %v3776 = vpack.c.b16 %v3747, %v3746
        %v3777 = vpack.c.b16 %v3749, %v3748
        %v3778 = vpack.c.b16 %v3751, %v3750
        %v3779 = vpack.c.b16 %v3753, %v3752
        %v3780 = vpack.c.b16 %v3755, %v3754
        %v3781 = vpack.c.b16 %v3757, %v3756
        %v3782 = vpack.c.b16 %v3759, %v3758
        %v3783 = vpack.c.b16 %v3761, %v3760
        %v3784 = vpack.c.b16 %v3763, %v3762
        %v3785 = vpack.c.b16 %v3765, %v3764
        %v3786 = vpack.c.b16 %v3767, %v3766
        %v3787 = vpack.c.b16 %v3769, %v3768
        %v3788 = vpack.c.b16 %v3771, %v3770
        %v3789 = vpack.c.b16 %v3773, %v3772
        %3790 = vrot.lane.b32.xlu0 %v3774, 7
        %v3791 = vpop.permute.xlu0 %3790
        %3792 = vrot.lane.b32.xlu0 %v3775, 7
        %v3793 = vpop.permute.xlu0 %3792
        %3794 = vrot.lane.b32.xlu0 %v3776, 7
        %v3795 = vpop.permute.xlu0 %3794
        %3796 = vrot.lane.b32.xlu0 %v3777, 7
        %v3797 = vpop.permute.xlu0 %3796
        %3798 = vrot.lane.b32.xlu0 %v3778, 7
        %v3799 = vpop.permute.xlu0 %3798
        %3800 = vrot.lane.b32.xlu0 %v3779, 7
        %v3801 = vpop.permute.xlu0 %3800
        %3802 = vrot.lane.b32.xlu0 %v3780, 7
        %v3803 = vpop.permute.xlu0 %3802
        %3804 = vrot.lane.b32.xlu0 %v3781, 7
        %v3805 = vpop.permute.xlu0 %3804
        %3806 = vrot.lane.b32.xlu0 %v3782, 7
        %v3807 = vpop.permute.xlu0 %3806
        %3808 = vrot.lane.b32.xlu0 %v3783, 7
        %v3809 = vpop.permute.xlu0 %3808
        %3810 = vrot.lane.b32.xlu0 %v3784, 7
        %v3811 = vpop.permute.xlu0 %3810
        %3812 = vrot.lane.b32.xlu0 %v3785, 7
        %v3813 = vpop.permute.xlu0 %3812
        %3814 = vrot.lane.b32.xlu0 %v3786, 7
        %v3815 = vpop.permute.xlu0 %3814
        %3816 = vrot.lane.b32.xlu0 %v3787, 7
        %v3817 = vpop.permute.xlu0 %3816
        %3818 = vrot.lane.b32.xlu0 %v3788, 7
        %v3819 = vpop.permute.xlu0 %3818
        %3820 = vrot.lane.b32.xlu0 %v3789, 7
        %v3821 = vpop.permute.xlu0 %3820
        %vm3838 = vcmask 64568
        %3839 = vst.msk [vmem:[#allocation3] sm:$0xff] %vm3838, %v3791
        %3840 = vst.msk [vmem:[#allocation3 + $0x8] sm:$0xff] %vm3838, %v3793
        %3841 = vst.msk [vmem:[#allocation3 + $0x10] sm:$0xff] %vm3838, %v3795
        %3842 = vst.msk [vmem:[#allocation3 + $0x18] sm:$0xff] %vm3838, %v3797
        %3843 = vst.msk [vmem:[#allocation3 + $0x20] sm:$0xff] %vm3838, %v3799
        %3844 = vst.msk [vmem:[#allocation3 + $0x28] sm:$0xff] %vm3838, %v3801
        %3845 = vst.msk [vmem:[#allocation3 + $0x30] sm:$0xff] %vm3838, %v3803
        %3846 = vst.msk [vmem:[#allocation3 + $0x38] sm:$0xff] %vm3838, %v3805
        %3847 = vst.msk [vmem:[#allocation3 + $0x40] sm:$0xff] %vm3838, %v3807
        %3848 = vst.msk [vmem:[#allocation3 + $0x48] sm:$0xff] %vm3838, %v3809
        %3849 = vst.msk [vmem:[#allocation3 + $0x50] sm:$0xff] %vm3838, %v3811
        %3850 = vst.msk [vmem:[#allocation3 + $0x58] sm:$0xff] %vm3838, %v3813
        %3851 = vst.msk [vmem:[#allocation3 + $0x60] sm:$0xff] %vm3838, %v3815
        %3852 = vst.msk [vmem:[#allocation3 + $0x68] sm:$0xff] %vm3838, %v3817
        %3853 = vst.msk [vmem:[#allocation3 + $0x70] sm:$0xff] %vm3838, %v3819
        %3854 = vst.msk [vmem:[#allocation3 + $0x78] sm:$0xff] %vm3838, %v3821
        %v3855 = vld [vmem:[%s3132] sm:$0xe]
        %v3856 = vld [vmem:[%s3132 + $0x4] sm:$0xf]
        %v3857 = vld [vmem:[%s3132 + $0x8] sm:$0x1]
        %v3858 = vld [vmem:[%s3132 + $0xc] sm:$0xe]
        %v3859 = vld [vmem:[%s3132 + $0x10] sm:$0xf]
        %v3860 = vld [vmem:[%s3132 + $0x14] sm:$0x1]
        %v3861 = vld [vmem:[%s3132 + $0x18] sm:$0xe]
        %v3862 = vld [vmem:[%s3132 + $0x1c] sm:$0xf]
        %v3863 = vld [vmem:[%s3132 + $0x20] sm:$0x1]
        %v3864 = vld [vmem:[%s3132 + $0x24] sm:$0xe]
        %v3865 = vld [vmem:[%s3132 + $0x28] sm:$0xf]
        %v3866 = vld [vmem:[%s3132 + $0x2c] sm:$0x1]
        %v3867 = vld [vmem:[%s3132 + $0x30] sm:$0xe]
        %v3868 = vld [vmem:[%s3132 + $0x34] sm:$0xf]
        %v3869 = vld [vmem:[%s3132 + $0x38] sm:$0x1]
        %v3870 = vld [vmem:[%s3132 + $0x3c] sm:$0xe]
        %v3871 = vld [vmem:[%s3132 + $0x40] sm:$0xf]
        %v3872 = vld [vmem:[%s3132 + $0x44] sm:$0x1]
        %v3873 = vld [vmem:[%s3132 + $0x48] sm:$0xe]
        %v3874 = vld [vmem:[%s3132 + $0x4c] sm:$0xf]
        %v3875 = vld [vmem:[%s3132 + $0x50] sm:$0x1]
        %v3876 = vld [vmem:[%s3132 + $0x54] sm:$0xe]
        %v3877 = vld [vmem:[%s3132 + $0x58] sm:$0xf]
        %v3878 = vld [vmem:[%s3132 + $0x5c] sm:$0x1]
        %v3879 = vld [vmem:[%s3132 + $0x60] sm:$0xe]
        %v3880 = vld [vmem:[%s3132 + $0x64] sm:$0xf]
        %v3881 = vld [vmem:[%s3132 + $0x68] sm:$0x1]
        %v3882 = vld [vmem:[%s3132 + $0x6c] sm:$0xe]
        %v3883 = vld [vmem:[%s3132 + $0x70] sm:$0xf]
        %v3884 = vld [vmem:[%s3132 + $0x74] sm:$0x1]
        %v3885 = vld [vmem:[%s3132 + $0x78] sm:$0xe]
        %v3886 = vld [vmem:[%s3132 + $0x7c] sm:$0xf]
        %v3887 = vld [vmem:[%s3132 + $0x80] sm:$0x1]
        %v3888 = vld [vmem:[%s3132 + $0x84] sm:$0xe]
        %v3889 = vld [vmem:[%s3132 + $0x88] sm:$0xf]
        %v3890 = vld [vmem:[%s3132 + $0x8c] sm:$0x1]
        %v3891 = vld [vmem:[%s3132 + $0x90] sm:$0xe]
        %v3892 = vld [vmem:[%s3132 + $0x94] sm:$0xf]
        %v3893 = vld [vmem:[%s3132 + $0x98] sm:$0x1]
        %v3894 = vld [vmem:[%s3132 + $0x9c] sm:$0xe]
        %v3895 = vld [vmem:[%s3132 + $0xa0] sm:$0xf]
        %v3896 = vld [vmem:[%s3132 + $0xa4] sm:$0x1]
        %v3897 = vld [vmem:[%s3132 + $0xa8] sm:$0xe]
        %v3898 = vld [vmem:[%s3132 + $0xac] sm:$0xf]
        %v3899 = vld [vmem:[%s3132 + $0xb0] sm:$0x1]
        %v3900 = vld [vmem:[%s3132 + $0xb4] sm:$0xe]
        %v3901 = vld [vmem:[%s3132 + $0xb8] sm:$0xf]
        %v3902 = vld [vmem:[%s3132 + $0xbc] sm:$0x1]
        %v3951 = vrot.slane %v3855, 5
        %v3952 = vrot.slane %v3951, 4
        %v3953 = vrot.slane %v3856, 5
        %v3954 = vsel %vm1863, %v3952, %v3953
        %v3955 = vrot.slane %v3953, 4
        %v3956 = vrot.slane %v3857, 5
        %v3957 = vsel %vm1863, %v3955, %v3956
        %v3958 = vrot.slane %v3858, 5
        %v3959 = vrot.slane %v3958, 4
        %v3960 = vrot.slane %v3859, 5
        %v3961 = vsel %vm1863, %v3959, %v3960
        %v3962 = vrot.slane %v3960, 4
        %v3963 = vrot.slane %v3860, 5
        %v3964 = vsel %vm1863, %v3962, %v3963
        %v3965 = vrot.slane %v3861, 5
        %v3966 = vrot.slane %v3965, 4
        %v3967 = vrot.slane %v3862, 5
        %v3968 = vsel %vm1863, %v3966, %v3967
        %v3969 = vrot.slane %v3967, 4
        %v3970 = vrot.slane %v3863, 5
        %v3971 = vsel %vm1863, %v3969, %v3970
        %v3972 = vrot.slane %v3864, 5
        %v3973 = vrot.slane %v3972, 4
        %v3974 = vrot.slane %v3865, 5
        %v3975 = vsel %vm1863, %v3973, %v3974
        %v3976 = vrot.slane %v3974, 4
        %v3977 = vrot.slane %v3866, 5
        %v3978 = vsel %vm1863, %v3976, %v3977
        %v3979 = vrot.slane %v3867, 5
        %v3980 = vrot.slane %v3979, 4
        %v3981 = vrot.slane %v3868, 5
        %v3982 = vsel %vm1863, %v3980, %v3981
        %v3983 = vrot.slane %v3981, 4
        %v3984 = vrot.slane %v3869, 5
        %v3985 = vsel %vm1863, %v3983, %v3984
        %v3986 = vrot.slane %v3870, 5
        %v3987 = vrot.slane %v3986, 4
        %v3988 = vrot.slane %v3871, 5
        %v3989 = vsel %vm1863, %v3987, %v3988
        %v3990 = vrot.slane %v3988, 4
        %v3991 = vrot.slane %v3872, 5
        %v3992 = vsel %vm1863, %v3990, %v3991
        %v3993 = vrot.slane %v3873, 5
        %v3994 = vrot.slane %v3993, 4
        %v3995 = vrot.slane %v3874, 5
        %v3996 = vsel %vm1863, %v3994, %v3995
        %v3997 = vrot.slane %v3995, 4
        %v3998 = vrot.slane %v3875, 5
        %v3999 = vsel %vm1863, %v3997, %v3998
        %v4000 = vrot.slane %v3876, 5
        %v4001 = vrot.slane %v4000, 4
        %v4002 = vrot.slane %v3877, 5
        %v4003 = vsel %vm1863, %v4001, %v4002
        %v4004 = vrot.slane %v4002, 4
        %v4005 = vrot.slane %v3878, 5
        %v4006 = vsel %vm1863, %v4004, %v4005
        %v4007 = vrot.slane %v3879, 5
        %v4008 = vrot.slane %v4007, 4
        %v4009 = vrot.slane %v3880, 5
        %v4010 = vsel %vm1863, %v4008, %v4009
        %v4011 = vrot.slane %v4009, 4
        %v4012 = vrot.slane %v3881, 5
        %v4013 = vsel %vm1863, %v4011, %v4012
        %v4014 = vrot.slane %v3882, 5
        %v4015 = vrot.slane %v4014, 4
        %v4016 = vrot.slane %v3883, 5
        %v4017 = vsel %vm1863, %v4015, %v4016
        %v4018 = vrot.slane %v4016, 4
        %v4019 = vrot.slane %v3884, 5
        %v4020 = vsel %vm1863, %v4018, %v4019
        %v4021 = vrot.slane %v3885, 5
        %v4022 = vrot.slane %v4021, 4
        %v4023 = vrot.slane %v3886, 5
        %v4024 = vsel %vm1863, %v4022, %v4023
        %v4025 = vrot.slane %v4023, 4
        %v4026 = vrot.slane %v3887, 5
        %v4027 = vsel %vm1863, %v4025, %v4026
        %v4028 = vrot.slane %v3888, 5
        %v4029 = vrot.slane %v4028, 4
        %v4030 = vrot.slane %v3889, 5
        %v4031 = vsel %vm1863, %v4029, %v4030
        %v4032 = vrot.slane %v4030, 4
        %v4033 = vrot.slane %v3890, 5
        %v4034 = vsel %vm1863, %v4032, %v4033
        %v4035 = vrot.slane %v3891, 5
        %v4036 = vrot.slane %v4035, 4
        %v4037 = vrot.slane %v3892, 5
        %v4038 = vsel %vm1863, %v4036, %v4037
        %v4039 = vrot.slane %v4037, 4
        %v4040 = vrot.slane %v3893, 5
        %v4041 = vsel %vm1863, %v4039, %v4040
        %v4042 = vrot.slane %v3894, 5
        %v4043 = vrot.slane %v4042, 4
        %v4044 = vrot.slane %v3895, 5
        %v4045 = vsel %vm1863, %v4043, %v4044
        %v4046 = vrot.slane %v4044, 4
        %v4047 = vrot.slane %v3896, 5
        %v4048 = vsel %vm1863, %v4046, %v4047
        %v4049 = vrot.slane %v3897, 5
        %v4050 = vrot.slane %v4049, 4
        %v4051 = vrot.slane %v3898, 5
        %v4052 = vsel %vm1863, %v4050, %v4051
        %v4053 = vrot.slane %v4051, 4
        %v4054 = vrot.slane %v3899, 5
        %v4055 = vsel %vm1863, %v4053, %v4054
        %v4056 = vrot.slane %v3900, 5
        %v4057 = vrot.slane %v4056, 4
        %v4058 = vrot.slane %v3901, 5
        %v4059 = vsel %vm1863, %v4057, %v4058
        %v4060 = vrot.slane %v4058, 4
        %v4061 = vrot.slane %v3902, 5
        %v4062 = vsel %vm1863, %v4060, %v4061
        %v4063 = vunpack.c.l.b16 %v3954
        %v4064 = vunpack.c.l.b16 %v3957
        %v4065 = vunpack.c.l.b16 %v3961
        %v4066 = vunpack.c.l.b16 %v3964
        %v4067 = vunpack.c.l.b16 %v3968
        %v4068 = vunpack.c.l.b16 %v3971
        %v4069 = vunpack.c.l.b16 %v3975
        %v4070 = vunpack.c.l.b16 %v3978
        %v4071 = vunpack.c.l.b16 %v3982
        %v4072 = vunpack.c.l.b16 %v3985
        %v4073 = vunpack.c.l.b16 %v3989
        %v4074 = vunpack.c.l.b16 %v3992
        %v4075 = vunpack.c.l.b16 %v3996
        %v4076 = vunpack.c.l.b16 %v3999
        %v4077 = vunpack.c.l.b16 %v4003
        %v4078 = vunpack.c.l.b16 %v4006
        %v4079 = vunpack.c.l.b16 %v4010
        %v4080 = vunpack.c.l.b16 %v4013
        %v4081 = vunpack.c.l.b16 %v4017
        %v4082 = vunpack.c.l.b16 %v4020
        %v4083 = vunpack.c.l.b16 %v4024
        %v4084 = vunpack.c.l.b16 %v4027
        %v4085 = vunpack.c.l.b16 %v4031
        %v4086 = vunpack.c.l.b16 %v4034
        %v4087 = vunpack.c.l.b16 %v4038
        %v4088 = vunpack.c.l.b16 %v4041
        %v4089 = vunpack.c.l.b16 %v4045
        %v4090 = vunpack.c.l.b16 %v4048
        %v4091 = vunpack.c.l.b16 %v4052
        %v4092 = vunpack.c.l.b16 %v4055
        %v4093 = vunpack.c.l.b16 %v4059
        %v4094 = vunpack.c.l.b16 %v4062
        %v4095 = vpack.c.b16 %v4064, %v4063
        %v4096 = vpack.c.b16 %v4066, %v4065
        %v4097 = vpack.c.b16 %v4068, %v4067
        %v4098 = vpack.c.b16 %v4070, %v4069
        %v4099 = vpack.c.b16 %v4072, %v4071
        %v4100 = vpack.c.b16 %v4074, %v4073
        %v4101 = vpack.c.b16 %v4076, %v4075
        %v4102 = vpack.c.b16 %v4078, %v4077
        %v4103 = vpack.c.b16 %v4080, %v4079
        %v4104 = vpack.c.b16 %v4082, %v4081
        %v4105 = vpack.c.b16 %v4084, %v4083
        %v4106 = vpack.c.b16 %v4086, %v4085
        %v4107 = vpack.c.b16 %v4088, %v4087
        %v4108 = vpack.c.b16 %v4090, %v4089
        %v4109 = vpack.c.b16 %v4092, %v4091
        %v4110 = vpack.c.b16 %v4094, %v4093
        %4111 = vrot.lane.b32.xlu0 %v4095, 8
        %v4112 = vpop.permute.xlu0 %4111
        %4113 = vrot.lane.b32.xlu0 %v4096, 8
        %v4114 = vpop.permute.xlu0 %4113
        %4115 = vrot.lane.b32.xlu0 %v4097, 8
        %v4116 = vpop.permute.xlu0 %4115
        %4117 = vrot.lane.b32.xlu0 %v4098, 8
        %v4118 = vpop.permute.xlu0 %4117
        %4119 = vrot.lane.b32.xlu0 %v4099, 8
        %v4120 = vpop.permute.xlu0 %4119
        %4121 = vrot.lane.b32.xlu0 %v4100, 8
        %v4122 = vpop.permute.xlu0 %4121
        %4123 = vrot.lane.b32.xlu0 %v4101, 8
        %v4124 = vpop.permute.xlu0 %4123
        %4125 = vrot.lane.b32.xlu0 %v4102, 8
        %v4126 = vpop.permute.xlu0 %4125
        %4127 = vrot.lane.b32.xlu0 %v4103, 8
        %v4128 = vpop.permute.xlu0 %4127
        %4129 = vrot.lane.b32.xlu0 %v4104, 8
        %v4130 = vpop.permute.xlu0 %4129
        %4131 = vrot.lane.b32.xlu0 %v4105, 8
        %v4132 = vpop.permute.xlu0 %4131
        %4133 = vrot.lane.b32.xlu0 %v4106, 8
        %v4134 = vpop.permute.xlu0 %4133
        %4135 = vrot.lane.b32.xlu0 %v4107, 8
        %v4136 = vpop.permute.xlu0 %4135
        %4137 = vrot.lane.b32.xlu0 %v4108, 8
        %v4138 = vpop.permute.xlu0 %4137
        %4139 = vrot.lane.b32.xlu0 %v4109, 8
        %v4140 = vpop.permute.xlu0 %4139
        %4141 = vrot.lane.b32.xlu0 %v4110, 8
        %v4142 = vpop.permute.xlu0 %4141
        %vm4159 = vcmask 72768
        %4160 = vst.msk [vmem:[#allocation3] sm:$0xff] %vm4159, %v4112
        %4161 = vst.msk [vmem:[#allocation3 + $0x8] sm:$0xff] %vm4159, %v4114
        %4162 = vst.msk [vmem:[#allocation3 + $0x10] sm:$0xff] %vm4159, %v4116
        %4163 = vst.msk [vmem:[#allocation3 + $0x18] sm:$0xff] %vm4159, %v4118
        %4164 = vst.msk [vmem:[#allocation3 + $0x20] sm:$0xff] %vm4159, %v4120
        %4165 = vst.msk [vmem:[#allocation3 + $0x28] sm:$0xff] %vm4159, %v4122
        %4166 = vst.msk [vmem:[#allocation3 + $0x30] sm:$0xff] %vm4159, %v4124
        %4167 = vst.msk [vmem:[#allocation3 + $0x38] sm:$0xff] %vm4159, %v4126
        %4168 = vst.msk [vmem:[#allocation3 + $0x40] sm:$0xff] %vm4159, %v4128
        %4169 = vst.msk [vmem:[#allocation3 + $0x48] sm:$0xff] %vm4159, %v4130
        %4170 = vst.msk [vmem:[#allocation3 + $0x50] sm:$0xff] %vm4159, %v4132
        %4171 = vst.msk [vmem:[#allocation3 + $0x58] sm:$0xff] %vm4159, %v4134
        %4172 = vst.msk [vmem:[#allocation3 + $0x60] sm:$0xff] %vm4159, %v4136
        %4173 = vst.msk [vmem:[#allocation3 + $0x68] sm:$0xff] %vm4159, %v4138
        %4174 = vst.msk [vmem:[#allocation3 + $0x70] sm:$0xff] %vm4159, %v4140
        %4175 = vst.msk [vmem:[#allocation3 + $0x78] sm:$0xff] %vm4159, %v4142
        %v4176 = vld [vmem:[#allocation3] sm:$0xff]
        %v4177 = vld [vmem:[#allocation3 + $0x8] sm:$0xff]
        %v4178 = vld [vmem:[#allocation3 + $0x10] sm:$0xff]
        %v4179 = vld [vmem:[#allocation3 + $0x18] sm:$0xff]
        %v4180 = vld [vmem:[#allocation3 + $0x20] sm:$0xff]
        %v4181 = vld [vmem:[#allocation3 + $0x28] sm:$0xff]
        %v4182 = vld [vmem:[#allocation3 + $0x30] sm:$0xff]
        %v4183 = vld [vmem:[#allocation3 + $0x38] sm:$0xff]
        %v4184 = vld [vmem:[#allocation3 + $0x40] sm:$0xff]
        %v4185 = vld [vmem:[#allocation3 + $0x48] sm:$0xff]
        %v4186 = vld [vmem:[#allocation3 + $0x50] sm:$0xff]
        %v4187 = vld [vmem:[#allocation3 + $0x58] sm:$0xff]
        %v4188 = vld [vmem:[#allocation3 + $0x60] sm:$0xff]
        %v4189 = vld [vmem:[#allocation3 + $0x68] sm:$0xff]
        %v4190 = vld [vmem:[#allocation3 + $0x70] sm:$0xff]
        %v4191 = vld [vmem:[#allocation3 + $0x78] sm:$0xff]
        %v4192 = vld [vmem:[%s1] sm:$0xf]
        %v4193 = vld [vmem:[%s1 + $0x4] sm:$0x1]
        %v4196 = vunpack.c.l.b16 %v4192
        %v4197 = vunpack.c.l.b16 %v4193
        %v4198 = vpack.c.b16 %v4197, %v4196
        %vm4199 = vcmask 72704
        %v4201 = vsel %vm4199, %v4176, 0
        %v4204 = vsel %vm4199, %v4177, 0
        %v4207 = vsel %vm4199, %v4178, 0
        %v4210 = vsel %vm4199, %v4179, 0
        %v4213 = vsel %vm4199, %v4180, 0
        %v4216 = vsel %vm4199, %v4181, 0
        %v4219 = vsel %vm4199, %v4182, 0
        %v4222 = vsel %vm4199, %v4183, 0
        %v4225 = vsel %vm4199, %v4184, 0
        %v4228 = vsel %vm4199, %v4185, 0
        %v4231 = vsel %vm4199, %v4186, 0
        %v4234 = vsel %vm4199, %v4187, 0
        %v4237 = vsel %vm4199, %v4188, 0
        %v4240 = vsel %vm4199, %v4189, 0
        %v4243 = vsel %vm4199, %v4190, 0
        %v4246 = vsel %vm4199, %v4191, 0
        %vm4248 = vcmask 1043456
        %vm4249 = vcmask 1044480
        %v4250 = vsel %vm4248, 4294967295, 65535
        %v4251 = vsel %vm4249, %v4250, 0
        %v4253 = vand.u32 %v4198, %v4251
        %4255 = vmatprep.subr.bf16.mxu0 0
        %4256 = vmatpush1.bf16.msra.mxu0 %v4253
        %4257 = vmatprep.subr.bf16.mxu0 0
        %4258 = vmatpush1.bf16.msra.mxu0 0
        %4259 = vmatprep.subr.bf16.mxu0 0
        %4260 = vmatpush1.bf16.msra.mxu0 0
        %4261 = vmatprep.subr.bf16.mxu0 0
        %4262 = vmatpush1.bf16.msra.mxu0 0
        %4263 = vmatprep.subr.bf16.mxu0 0
        %4264 = vmatpush1.bf16.msra.mxu0 0
        %4265 = vmatprep.subr.bf16.mxu0 0
        %4266 = vmatpush1.bf16.msra.mxu0 0
        %4267 = vmatprep.subr.bf16.mxu0 0
        %4268 = vmatpush1.bf16.msra.mxu0 0
        %4269 = vmatprep.subr.bf16.mxu0 0
        %4270 = vmatpush1.bf16.msra.mxu0 0
        %4271 = vmatprep.subr.bf16.mxu0 0
        %4272 = vmatpush1.bf16.msra.mxu0 0
        %4273 = vmatprep.subr.bf16.mxu0 0
        %4274 = vmatpush1.bf16.msra.mxu0 0
        %4275 = vmatprep.subr.bf16.mxu0 0
        %4276 = vmatpush1.bf16.msra.mxu0 0
        %4277 = vmatprep.subr.bf16.mxu0 0
        %4278 = vmatpush1.bf16.msra.mxu0 0
        %4279 = vmatprep.subr.bf16.mxu0 0
        %4280 = vmatpush1.bf16.msra.mxu0 0
        %4281 = vmatprep.subr.bf16.mxu0 0
        %4282 = vmatpush1.bf16.msra.mxu0 0
        %4283 = vmatprep.subr.bf16.mxu0 0
        %4284 = vmatpush1.bf16.msra.mxu0 0
        %4285 = vmatprep.subr.bf16.mxu0 0
        %4286 = vmatpush1.bf16.msra.mxu0 0
        %4287 = vmatprep.mubr.bf16.mxu0 0
        %4288 = vmatmul.mubr.bf16.gmra.mrb[0].mxu0 %v4201
        %v4289 = vpop.f32.mrb[0].mxu0
        %v4290 = vadd.f32 0.0, %v4289
        %v4291 = vpop.f32.mrb[0].mxu0
        %v4292 = vpop.f32.mrb[0].mxu0
        %v4293 = vadd.f32 0.0, %v4292
        %v4294 = vpop.f32.mrb[0].mxu0
        %4295 = vmatprep.mubr.bf16.mxu0 0
        %4296 = vmatmul.mubr.bf16.gmra.mrb[0].mxu0 %v4204
        %v4297 = vpop.f32.mrb[0].mxu0
        %v4298 = vadd.f32 0.0, %v4297
        %v4299 = vpop.f32.mrb[0].mxu0
        %v4300 = vpop.f32.mrb[0].mxu0
        %v4301 = vadd.f32 0.0, %v4300
        %v4302 = vpop.f32.mrb[0].mxu0
        %4303 = vmatprep.mubr.bf16.mxu0 0
        %4304 = vmatmul.mubr.bf16.gmra.mrb[0].mxu0 %v4207
        %v4305 = vpop.f32.mrb[0].mxu0
        %v4306 = vadd.f32 0.0, %v4305
        %v4307 = vpop.f32.mrb[0].mxu0
        %v4308 = vpop.f32.mrb[0].mxu0
        %v4309 = vadd.f32 0.0, %v4308
        %v4310 = vpop.f32.mrb[0].mxu0
        %4311 = vmatprep.mubr.bf16.mxu0 0
        %4312 = vmatmul.mubr.bf16.gmra.mrb[0].mxu0 %v4210
        %v4313 = vpop.f32.mrb[0].mxu0
        %v4314 = vadd.f32 0.0, %v4313
        %v4315 = vpop.f32.mrb[0].mxu0
        %v4316 = vpop.f32.mrb[0].mxu0
        %v4317 = vadd.f32 0.0, %v4316
        %v4318 = vpop.f32.mrb[0].mxu0
        %4319 = vmatprep.mubr.bf16.mxu0 0
        %4320 = vmatmul.mubr.bf16.gmra.mrb[0].mxu0 %v4213
        %v4321 = vpop.f32.mrb[0].mxu0
        %v4322 = vadd.f32 0.0, %v4321
        %v4323 = vpop.f32.mrb[0].mxu0
        %v4324 = vpop.f32.mrb[0].mxu0
        %v4325 = vadd.f32 0.0, %v4324
        %v4326 = vpop.f32.mrb[0].mxu0
        %4327 = vmatprep.mubr.bf16.mxu0 0
        %4328 = vmatmul.mubr.bf16.gmra.mrb[0].mxu0 %v4216
        %v4329 = vpop.f32.mrb[0].mxu0
        %v4330 = vadd.f32 0.0, %v4329
        %v4331 = vpop.f32.mrb[0].mxu0
        %v4332 = vpop.f32.mrb[0].mxu0
        %v4333 = vadd.f32 0.0, %v4332
        %v4334 = vpop.f32.mrb[0].mxu0
        %4335 = vmatprep.mubr.bf16.mxu0 0
        %4336 = vmatmul.mubr.bf16.gmra.mrb[0].mxu0 %v4219
        %v4337 = vpop.f32.mrb[0].mxu0
        %v4338 = vadd.f32 0.0, %v4337
        %v4339 = vpop.f32.mrb[0].mxu0
        %v4340 = vpop.f32.mrb[0].mxu0
        %v4341 = vadd.f32 0.0, %v4340
        %v4342 = vpop.f32.mrb[0].mxu0
        %4343 = vmatprep.mubr.bf16.mxu0 0
        %4344 = vmatmul.mubr.bf16.gmra.mrb[0].mxu0 %v4222
        %v4345 = vpop.f32.mrb[0].mxu0
        %v4346 = vadd.f32 0.0, %v4345
        %v4347 = vpop.f32.mrb[0].mxu0
        %v4348 = vpop.f32.mrb[0].mxu0
        %v4349 = vadd.f32 0.0, %v4348
        %v4350 = vpop.f32.mrb[0].mxu0
        %4351 = vmatprep.mubr.bf16.mxu0 0
        %4352 = vmatmul.mubr.bf16.gmra.mrb[0].mxu0 %v4225
        %v4353 = vpop.f32.mrb[0].mxu0
        %v4354 = vadd.f32 0.0, %v4353
        %v4355 = vpop.f32.mrb[0].mxu0
        %v4356 = vpop.f32.mrb[0].mxu0
        %v4357 = vadd.f32 0.0, %v4356
        %v4358 = vpop.f32.mrb[0].mxu0
        %4359 = vmatprep.mubr.bf16.mxu0 0
        %4360 = vmatmul.mubr.bf16.gmra.mrb[0].mxu0 %v4228
        %v4361 = vpop.f32.mrb[0].mxu0
        %v4362 = vadd.f32 0.0, %v4361
        %v4363 = vpop.f32.mrb[0].mxu0
        %v4364 = vpop.f32.mrb[0].mxu0
        %v4365 = vadd.f32 0.0, %v4364
        %v4366 = vpop.f32.mrb[0].mxu0
        %4367 = vmatprep.mubr.bf16.mxu0 0
        %4368 = vmatmul.mubr.bf16.gmra.mrb[0].mxu0 %v4231
        %v4369 = vpop.f32.mrb[0].mxu0
        %v4370 = vadd.f32 0.0, %v4369
        %v4371 = vpop.f32.mrb[0].mxu0
        %v4372 = vpop.f32.mrb[0].mxu0
        %v4373 = vadd.f32 0.0, %v4372
        %v4374 = vpop.f32.mrb[0].mxu0
        %4375 = vmatprep.mubr.bf16.mxu0 0
        %4376 = vmatmul.mubr.bf16.gmra.mrb[0].mxu0 %v4234
        %v4377 = vpop.f32.mrb[0].mxu0
        %v4378 = vadd.f32 0.0, %v4377
        %v4379 = vpop.f32.mrb[0].mxu0
        %v4380 = vpop.f32.mrb[0].mxu0
        %v4381 = vadd.f32 0.0, %v4380
        %v4382 = vpop.f32.mrb[0].mxu0
        %4383 = vmatprep.mubr.bf16.mxu0 0
        %4384 = vmatmul.mubr.bf16.gmra.mrb[0].mxu0 %v4237
        %v4385 = vpop.f32.mrb[0].mxu0
        %v4386 = vadd.f32 0.0, %v4385
        %v4387 = vpop.f32.mrb[0].mxu0
        %v4388 = vpop.f32.mrb[0].mxu0
        %v4389 = vadd.f32 0.0, %v4388
        %v4390 = vpop.f32.mrb[0].mxu0
        %4391 = vmatprep.mubr.bf16.mxu0 0
        %4392 = vmatmul.mubr.bf16.gmra.mrb[0].mxu0 %v4240
        %v4393 = vpop.f32.mrb[0].mxu0
        %v4394 = vadd.f32 0.0, %v4393
        %v4395 = vpop.f32.mrb[0].mxu0
        %v4396 = vpop.f32.mrb[0].mxu0
        %v4397 = vadd.f32 0.0, %v4396
        %v4398 = vpop.f32.mrb[0].mxu0
        %4399 = vmatprep.mubr.bf16.mxu0 0
        %4400 = vmatmul.mubr.bf16.gmra.mrb[0].mxu0 %v4243
        %v4401 = vpop.f32.mrb[0].mxu0
        %v4402 = vadd.f32 0.0, %v4401
        %v4403 = vpop.f32.mrb[0].mxu0
        %v4404 = vpop.f32.mrb[0].mxu0
        %v4405 = vadd.f32 0.0, %v4404
        %v4406 = vpop.f32.mrb[0].mxu0
        %4407 = vmatprep.mubr.bf16.mxu0 0
        %4408 = vmatmul.mubr.bf16.gmra.mrb[0].mxu0 %v4246
        %v4409 = vpop.f32.mrb[0].mxu0
        %v4410 = vadd.f32 0.0, %v4409
        %v4411 = vpop.f32.mrb[0].mxu0
        %v4412 = vpop.f32.mrb[0].mxu0
        %v4413 = vadd.f32 0.0, %v4412
        %v4414 = vpop.f32.mrb[0].mxu0
        %4415 = vdwg.mxu0
        %v4448 = vcombine.high %v4290, %v4290
        %v4450 = vunpack.c.l.s4 1983009808
        %v4451 = vunpack.c.0.s8 %v4450
        %v4452 = vlaneseq
        %v4453 = vshrl.u32 %v4452, 7
        %v4454 = vsub.s32 %v4451, %v4453
        %v4455 = vrot.slane %v4290, %v4454
        %v4457 = vunpack.c.l.s4 1983009808
        %v4458 = vunpack.c.0.s8 %v4457
        %v4459 = vlaneseq
        %v4460 = vshrl.u32 %v4459, 7
        %v4461 = vsub.s32 %v4458, %v4460
        %v4462 = vrot.slane %v4448, %v4461
        %v4463 = vcombine.high %v4455, %v4455
        %v4464 = vcombine.high %v4462, %v4462
        %v4465 = vcombine.high %v4293, %v4293
        %v4467 = vunpack.c.l.s4 1983009808
        %v4468 = vunpack.c.0.s8 %v4467
        %v4469 = vlaneseq
        %v4470 = vshrl.u32 %v4469, 7
        %v4471 = vsub.s32 %v4468, %v4470
        %v4472 = vrot.slane %v4293, %v4471
        %v4474 = vunpack.c.l.s4 1983009808
        %v4475 = vunpack.c.0.s8 %v4474
        %v4476 = vlaneseq
        %v4477 = vshrl.u32 %v4476, 7
        %v4478 = vsub.s32 %v4475, %v4477
        %v4479 = vrot.slane %v4465, %v4478
        %v4480 = vcombine.high %v4472, %v4472
        %v4481 = vcombine.high %v4479, %v4479
        %v4482 = vcombine.high %v4298, %v4298
        %v4484 = vunpack.c.l.s4 1983009808
        %v4485 = vunpack.c.0.s8 %v4484
        %v4486 = vlaneseq
        %v4487 = vshrl.u32 %v4486, 7
        %v4488 = vsub.s32 %v4485, %v4487
        %v4489 = vrot.slane %v4298, %v4488
        %v4491 = vunpack.c.l.s4 1983009808
        %v4492 = vunpack.c.0.s8 %v4491
        %v4493 = vlaneseq
        %v4494 = vshrl.u32 %v4493, 7
        %v4495 = vsub.s32 %v4492, %v4494
        %v4496 = vrot.slane %v4482, %v4495
        %v4497 = vcombine.high %v4489, %v4489
        %v4498 = vcombine.high %v4496, %v4496
        %v4499 = vcombine.high %v4301, %v4301
        %v4501 = vunpack.c.l.s4 1983009808
        %v4502 = vunpack.c.0.s8 %v4501
        %v4503 = vlaneseq
        %v4504 = vshrl.u32 %v4503, 7
        %v4505 = vsub.s32 %v4502, %v4504
        %v4506 = vrot.slane %v4301, %v4505
        %v4508 = vunpack.c.l.s4 1983009808
        %v4509 = vunpack.c.0.s8 %v4508
        %v4510 = vlaneseq
        %v4511 = vshrl.u32 %v4510, 7
        %v4512 = vsub.s32 %v4509, %v4511
        %v4513 = vrot.slane %v4499, %v4512
        %v4514 = vcombine.high %v4506, %v4506
        %v4515 = vcombine.high %v4513, %v4513
        %v4516 = vcombine.high %v4306, %v4306
        %v4518 = vunpack.c.l.s4 1983009808
        %v4519 = vunpack.c.0.s8 %v4518
        %v4520 = vlaneseq
        %v4521 = vshrl.u32 %v4520, 7
        %v4522 = vsub.s32 %v4519, %v4521
        %v4523 = vrot.slane %v4306, %v4522
        %v4525 = vunpack.c.l.s4 1983009808
        %v4526 = vunpack.c.0.s8 %v4525
        %v4527 = vlaneseq
        %v4528 = vshrl.u32 %v4527, 7
        %v4529 = vsub.s32 %v4526, %v4528
        %v4530 = vrot.slane %v4516, %v4529
        %v4531 = vcombine.high %v4523, %v4523
        %v4532 = vcombine.high %v4530, %v4530
        %v4533 = vcombine.high %v4309, %v4309
        %v4535 = vunpack.c.l.s4 1983009808
        %v4536 = vunpack.c.0.s8 %v4535
        %v4537 = vlaneseq
        %v4538 = vshrl.u32 %v4537, 7
        %v4539 = vsub.s32 %v4536, %v4538
        %v4540 = vrot.slane %v4309, %v4539
        %v4542 = vunpack.c.l.s4 1983009808
        %v4543 = vunpack.c.0.s8 %v4542
        %v4544 = vlaneseq
        %v4545 = vshrl.u32 %v4544, 7
        %v4546 = vsub.s32 %v4543, %v4545
        %v4547 = vrot.slane %v4533, %v4546
        %v4548 = vcombine.high %v4540, %v4540
        %v4549 = vcombine.high %v4547, %v4547
        %v4550 = vcombine.high %v4314, %v4314
        %v4552 = vunpack.c.l.s4 1983009808
        %v4553 = vunpack.c.0.s8 %v4552
        %v4554 = vlaneseq
        %v4555 = vshrl.u32 %v4554, 7
        %v4556 = vsub.s32 %v4553, %v4555
        %v4557 = vrot.slane %v4314, %v4556
        %v4559 = vunpack.c.l.s4 1983009808
        %v4560 = vunpack.c.0.s8 %v4559
        %v4561 = vlaneseq
        %v4562 = vshrl.u32 %v4561, 7
        %v4563 = vsub.s32 %v4560, %v4562
        %v4564 = vrot.slane %v4550, %v4563
        %v4565 = vcombine.high %v4557, %v4557
        %v4566 = vcombine.high %v4564, %v4564
        %v4567 = vcombine.high %v4317, %v4317
        %v4569 = vunpack.c.l.s4 1983009808
        %v4570 = vunpack.c.0.s8 %v4569
        %v4571 = vlaneseq
        %v4572 = vshrl.u32 %v4571, 7
        %v4573 = vsub.s32 %v4570, %v4572
        %v4574 = vrot.slane %v4317, %v4573
        %v4576 = vunpack.c.l.s4 1983009808
        %v4577 = vunpack.c.0.s8 %v4576
        %v4578 = vlaneseq
        %v4579 = vshrl.u32 %v4578, 7
        %v4580 = vsub.s32 %v4577, %v4579
        %v4581 = vrot.slane %v4567, %v4580
        %v4582 = vcombine.high %v4574, %v4574
        %v4583 = vcombine.high %v4581, %v4581
        %v4584 = vcombine.high %v4322, %v4322
        %v4586 = vunpack.c.l.s4 1983009808
        %v4587 = vunpack.c.0.s8 %v4586
        %v4588 = vlaneseq
        %v4589 = vshrl.u32 %v4588, 7
        %v4590 = vsub.s32 %v4587, %v4589
        %v4591 = vrot.slane %v4322, %v4590
        %v4593 = vunpack.c.l.s4 1983009808
        %v4594 = vunpack.c.0.s8 %v4593
        %v4595 = vlaneseq
        %v4596 = vshrl.u32 %v4595, 7
        %v4597 = vsub.s32 %v4594, %v4596
        %v4598 = vrot.slane %v4584, %v4597
        %v4599 = vcombine.high %v4591, %v4591
        %v4600 = vcombine.high %v4598, %v4598
        %v4601 = vcombine.high %v4325, %v4325
        %v4603 = vunpack.c.l.s4 1983009808
        %v4604 = vunpack.c.0.s8 %v4603
        %v4605 = vlaneseq
        %v4606 = vshrl.u32 %v4605, 7
        %v4607 = vsub.s32 %v4604, %v4606
        %v4608 = vrot.slane %v4325, %v4607
        %v4610 = vunpack.c.l.s4 1983009808
        %v4611 = vunpack.c.0.s8 %v4610
        %v4612 = vlaneseq
        %v4613 = vshrl.u32 %v4612, 7
        %v4614 = vsub.s32 %v4611, %v4613
        %v4615 = vrot.slane %v4601, %v4614
        %v4616 = vcombine.high %v4608, %v4608
        %v4617 = vcombine.high %v4615, %v4615
        %v4618 = vcombine.high %v4330, %v4330
        %v4620 = vunpack.c.l.s4 1983009808
        %v4621 = vunpack.c.0.s8 %v4620
        %v4622 = vlaneseq
        %v4623 = vshrl.u32 %v4622, 7
        %v4624 = vsub.s32 %v4621, %v4623
        %v4625 = vrot.slane %v4330, %v4624
        %v4627 = vunpack.c.l.s4 1983009808
        %v4628 = vunpack.c.0.s8 %v4627
        %v4629 = vlaneseq
        %v4630 = vshrl.u32 %v4629, 7
        %v4631 = vsub.s32 %v4628, %v4630
        %v4632 = vrot.slane %v4618, %v4631
        %v4633 = vcombine.high %v4625, %v4625
        %v4634 = vcombine.high %v4632, %v4632
        %v4635 = vcombine.high %v4333, %v4333
        %v4637 = vunpack.c.l.s4 1983009808
        %v4638 = vunpack.c.0.s8 %v4637
        %v4639 = vlaneseq
        %v4640 = vshrl.u32 %v4639, 7
        %v4641 = vsub.s32 %v4638, %v4640
        %v4642 = vrot.slane %v4333, %v4641
        %v4644 = vunpack.c.l.s4 1983009808
        %v4645 = vunpack.c.0.s8 %v4644
        %v4646 = vlaneseq
        %v4647 = vshrl.u32 %v4646, 7
        %v4648 = vsub.s32 %v4645, %v4647
        %v4649 = vrot.slane %v4635, %v4648
        %v4650 = vcombine.high %v4642, %v4642
        %v4651 = vcombine.high %v4649, %v4649
        %v4652 = vcombine.high %v4338, %v4338
        %v4654 = vunpack.c.l.s4 1983009808
        %v4655 = vunpack.c.0.s8 %v4654
        %v4656 = vlaneseq
        %v4657 = vshrl.u32 %v4656, 7
        %v4658 = vsub.s32 %v4655, %v4657
        %v4659 = vrot.slane %v4338, %v4658
        %v4661 = vunpack.c.l.s4 1983009808
        %v4662 = vunpack.c.0.s8 %v4661
        %v4663 = vlaneseq
        %v4664 = vshrl.u32 %v4663, 7
        %v4665 = vsub.s32 %v4662, %v4664
        %v4666 = vrot.slane %v4652, %v4665
        %v4667 = vcombine.high %v4659, %v4659
        %v4668 = vcombine.high %v4666, %v4666
        %v4669 = vcombine.high %v4341, %v4341
        %v4671 = vunpack.c.l.s4 1983009808
        %v4672 = vunpack.c.0.s8 %v4671
        %v4673 = vlaneseq
        %v4674 = vshrl.u32 %v4673, 7
        %v4675 = vsub.s32 %v4672, %v4674
        %v4676 = vrot.slane %v4341, %v4675
        %v4678 = vunpack.c.l.s4 1983009808
        %v4679 = vunpack.c.0.s8 %v4678
        %v4680 = vlaneseq
        %v4681 = vshrl.u32 %v4680, 7
        %v4682 = vsub.s32 %v4679, %v4681
        %v4683 = vrot.slane %v4669, %v4682
        %v4684 = vcombine.high %v4676, %v4676
        %v4685 = vcombine.high %v4683, %v4683
        %v4686 = vcombine.high %v4346, %v4346
        %v4688 = vunpack.c.l.s4 1983009808
        %v4689 = vunpack.c.0.s8 %v4688
        %v4690 = vlaneseq
        %v4691 = vshrl.u32 %v4690, 7
        %v4692 = vsub.s32 %v4689, %v4691
        %v4693 = vrot.slane %v4346, %v4692
        %v4695 = vunpack.c.l.s4 1983009808
        %v4696 = vunpack.c.0.s8 %v4695
        %v4697 = vlaneseq
        %v4698 = vshrl.u32 %v4697, 7
        %v4699 = vsub.s32 %v4696, %v4698
        %v4700 = vrot.slane %v4686, %v4699
        %v4701 = vcombine.high %v4693, %v4693
        %v4702 = vcombine.high %v4700, %v4700
        %v4703 = vcombine.high %v4349, %v4349
        %v4705 = vunpack.c.l.s4 1983009808
        %v4706 = vunpack.c.0.s8 %v4705
        %v4707 = vlaneseq
        %v4708 = vshrl.u32 %v4707, 7
        %v4709 = vsub.s32 %v4706, %v4708
        %v4710 = vrot.slane %v4349, %v4709
        %v4712 = vunpack.c.l.s4 1983009808
        %v4713 = vunpack.c.0.s8 %v4712
        %v4714 = vlaneseq
        %v4715 = vshrl.u32 %v4714, 7
        %v4716 = vsub.s32 %v4713, %v4715
        %v4717 = vrot.slane %v4703, %v4716
        %v4718 = vcombine.high %v4710, %v4710
        %v4719 = vcombine.high %v4717, %v4717
        %v4720 = vcombine.high %v4354, %v4354
        %v4722 = vunpack.c.l.s4 1983009808
        %v4723 = vunpack.c.0.s8 %v4722
        %v4724 = vlaneseq
        %v4725 = vshrl.u32 %v4724, 7
        %v4726 = vsub.s32 %v4723, %v4725
        %v4727 = vrot.slane %v4354, %v4726
        %v4729 = vunpack.c.l.s4 1983009808
        %v4730 = vunpack.c.0.s8 %v4729
        %v4731 = vlaneseq
        %v4732 = vshrl.u32 %v4731, 7
        %v4733 = vsub.s32 %v4730, %v4732
        %v4734 = vrot.slane %v4720, %v4733
        %v4735 = vcombine.high %v4727, %v4727
        %v4736 = vcombine.high %v4734, %v4734
        %v4737 = vcombine.high %v4357, %v4357
        %v4739 = vunpack.c.l.s4 1983009808
        %v4740 = vunpack.c.0.s8 %v4739
        %v4741 = vlaneseq
        %v4742 = vshrl.u32 %v4741, 7
        %v4743 = vsub.s32 %v4740, %v4742
        %v4744 = vrot.slane %v4357, %v4743
        %v4746 = vunpack.c.l.s4 1983009808
        %v4747 = vunpack.c.0.s8 %v4746
        %v4748 = vlaneseq
        %v4749 = vshrl.u32 %v4748, 7
        %v4750 = vsub.s32 %v4747, %v4749
        %v4751 = vrot.slane %v4737, %v4750
        %v4752 = vcombine.high %v4744, %v4744
        %v4753 = vcombine.high %v4751, %v4751
        %v4754 = vcombine.high %v4362, %v4362
        %v4756 = vunpack.c.l.s4 1983009808
        %v4757 = vunpack.c.0.s8 %v4756
        %v4758 = vlaneseq
        %v4759 = vshrl.u32 %v4758, 7
        %v4760 = vsub.s32 %v4757, %v4759
        %v4761 = vrot.slane %v4362, %v4760
        %v4763 = vunpack.c.l.s4 1983009808
        %v4764 = vunpack.c.0.s8 %v4763
        %v4765 = vlaneseq
        %v4766 = vshrl.u32 %v4765, 7
        %v4767 = vsub.s32 %v4764, %v4766
        %v4768 = vrot.slane %v4754, %v4767
        %v4769 = vcombine.high %v4761, %v4761
        %v4770 = vcombine.high %v4768, %v4768
        %v4771 = vcombine.high %v4365, %v4365
        %v4773 = vunpack.c.l.s4 1983009808
        %v4774 = vunpack.c.0.s8 %v4773
        %v4775 = vlaneseq
        %v4776 = vshrl.u32 %v4775, 7
        %v4777 = vsub.s32 %v4774, %v4776
        %v4778 = vrot.slane %v4365, %v4777
        %v4780 = vunpack.c.l.s4 1983009808
        %v4781 = vunpack.c.0.s8 %v4780
        %v4782 = vlaneseq
        %v4783 = vshrl.u32 %v4782, 7
        %v4784 = vsub.s32 %v4781, %v4783
        %v4785 = vrot.slane %v4771, %v4784
        %v4786 = vcombine.high %v4778, %v4778
        %v4787 = vcombine.high %v4785, %v4785
        %v4788 = vcombine.high %v4370, %v4370
        %v4790 = vunpack.c.l.s4 1983009808
        %v4791 = vunpack.c.0.s8 %v4790
        %v4792 = vlaneseq
        %v4793 = vshrl.u32 %v4792, 7
        %v4794 = vsub.s32 %v4791, %v4793
        %v4795 = vrot.slane %v4370, %v4794
        %v4797 = vunpack.c.l.s4 1983009808
        %v4798 = vunpack.c.0.s8 %v4797
        %v4799 = vlaneseq
        %v4800 = vshrl.u32 %v4799, 7
        %v4801 = vsub.s32 %v4798, %v4800
        %v4802 = vrot.slane %v4788, %v4801
        %v4803 = vcombine.high %v4795, %v4795
        %v4804 = vcombine.high %v4802, %v4802
        %v4805 = vcombine.high %v4373, %v4373
        %v4807 = vunpack.c.l.s4 1983009808
        %v4808 = vunpack.c.0.s8 %v4807
        %v4809 = vlaneseq
        %v4810 = vshrl.u32 %v4809, 7
        %v4811 = vsub.s32 %v4808, %v4810
        %v4812 = vrot.slane %v4373, %v4811
        %v4814 = vunpack.c.l.s4 1983009808
        %v4815 = vunpack.c.0.s8 %v4814
        %v4816 = vlaneseq
        %v4817 = vshrl.u32 %v4816, 7
        %v4818 = vsub.s32 %v4815, %v4817
        %v4819 = vrot.slane %v4805, %v4818
        %v4820 = vcombine.high %v4812, %v4812
        %v4821 = vcombine.high %v4819, %v4819
        %v4822 = vcombine.high %v4378, %v4378
        %v4824 = vunpack.c.l.s4 1983009808
        %v4825 = vunpack.c.0.s8 %v4824
        %v4826 = vlaneseq
        %v4827 = vshrl.u32 %v4826, 7
        %v4828 = vsub.s32 %v4825, %v4827
        %v4829 = vrot.slane %v4378, %v4828
        %v4831 = vunpack.c.l.s4 1983009808
        %v4832 = vunpack.c.0.s8 %v4831
        %v4833 = vlaneseq
        %v4834 = vshrl.u32 %v4833, 7
        %v4835 = vsub.s32 %v4832, %v4834
        %v4836 = vrot.slane %v4822, %v4835
        %v4837 = vcombine.high %v4829, %v4829
        %v4838 = vcombine.high %v4836, %v4836
        %v4839 = vcombine.high %v4381, %v4381
        %v4841 = vunpack.c.l.s4 1983009808
        %v4842 = vunpack.c.0.s8 %v4841
        %v4843 = vlaneseq
        %v4844 = vshrl.u32 %v4843, 7
        %v4845 = vsub.s32 %v4842, %v4844
        %v4846 = vrot.slane %v4381, %v4845
        %v4848 = vunpack.c.l.s4 1983009808
        %v4849 = vunpack.c.0.s8 %v4848
        %v4850 = vlaneseq
        %v4851 = vshrl.u32 %v4850, 7
        %v4852 = vsub.s32 %v4849, %v4851
        %v4853 = vrot.slane %v4839, %v4852
        %v4854 = vcombine.high %v4846, %v4846
        %v4855 = vcombine.high %v4853, %v4853
        %v4856 = vcombine.high %v4386, %v4386
        %v4858 = vunpack.c.l.s4 1983009808
        %v4859 = vunpack.c.0.s8 %v4858
        %v4860 = vlaneseq
        %v4861 = vshrl.u32 %v4860, 7
        %v4862 = vsub.s32 %v4859, %v4861
        %v4863 = vrot.slane %v4386, %v4862
        %v4865 = vunpack.c.l.s4 1983009808
        %v4866 = vunpack.c.0.s8 %v4865
        %v4867 = vlaneseq
        %v4868 = vshrl.u32 %v4867, 7
        %v4869 = vsub.s32 %v4866, %v4868
        %v4870 = vrot.slane %v4856, %v4869
        %v4871 = vcombine.high %v4863, %v4863
        %v4872 = vcombine.high %v4870, %v4870
        %v4873 = vcombine.high %v4389, %v4389
        %v4875 = vunpack.c.l.s4 1983009808
        %v4876 = vunpack.c.0.s8 %v4875
        %v4877 = vlaneseq
        %v4878 = vshrl.u32 %v4877, 7
        %v4879 = vsub.s32 %v4876, %v4878
        %v4880 = vrot.slane %v4389, %v4879
        %v4882 = vunpack.c.l.s4 1983009808
        %v4883 = vunpack.c.0.s8 %v4882
        %v4884 = vlaneseq
        %v4885 = vshrl.u32 %v4884, 7
        %v4886 = vsub.s32 %v4883, %v4885
        %v4887 = vrot.slane %v4873, %v4886
        %v4888 = vcombine.high %v4880, %v4880
        %v4889 = vcombine.high %v4887, %v4887
        %v4890 = vcombine.high %v4394, %v4394
        %v4892 = vunpack.c.l.s4 1983009808
        %v4893 = vunpack.c.0.s8 %v4892
        %v4894 = vlaneseq
        %v4895 = vshrl.u32 %v4894, 7
        %v4896 = vsub.s32 %v4893, %v4895
        %v4897 = vrot.slane %v4394, %v4896
        %v4899 = vunpack.c.l.s4 1983009808
        %v4900 = vunpack.c.0.s8 %v4899
        %v4901 = vlaneseq
        %v4902 = vshrl.u32 %v4901, 7
        %v4903 = vsub.s32 %v4900, %v4902
        %v4904 = vrot.slane %v4890, %v4903
        %v4905 = vcombine.high %v4897, %v4897
        %v4906 = vcombine.high %v4904, %v4904
        %v4907 = vcombine.high %v4397, %v4397
        %v4909 = vunpack.c.l.s4 1983009808
        %v4910 = vunpack.c.0.s8 %v4909
        %v4911 = vlaneseq
        %v4912 = vshrl.u32 %v4911, 7
        %v4913 = vsub.s32 %v4910, %v4912
        %v4914 = vrot.slane %v4397, %v4913
        %v4916 = vunpack.c.l.s4 1983009808
        %v4917 = vunpack.c.0.s8 %v4916
        %v4918 = vlaneseq
        %v4919 = vshrl.u32 %v4918, 7
        %v4920 = vsub.s32 %v4917, %v4919
        %v4921 = vrot.slane %v4907, %v4920
        %v4922 = vcombine.high %v4914, %v4914
        %v4923 = vcombine.high %v4921, %v4921
        %v4924 = vcombine.high %v4402, %v4402
        %v4926 = vunpack.c.l.s4 1983009808
        %v4927 = vunpack.c.0.s8 %v4926
        %v4928 = vlaneseq
        %v4929 = vshrl.u32 %v4928, 7
        %v4930 = vsub.s32 %v4927, %v4929
        %v4931 = vrot.slane %v4402, %v4930
        %v4933 = vunpack.c.l.s4 1983009808
        %v4934 = vunpack.c.0.s8 %v4933
        %v4935 = vlaneseq
        %v4936 = vshrl.u32 %v4935, 7
        %v4937 = vsub.s32 %v4934, %v4936
        %v4938 = vrot.slane %v4924, %v4937
        %v4939 = vcombine.high %v4931, %v4931
        %v4940 = vcombine.high %v4938, %v4938
        %v4941 = vcombine.high %v4405, %v4405
        %v4943 = vunpack.c.l.s4 1983009808
        %v4944 = vunpack.c.0.s8 %v4943
        %v4945 = vlaneseq
        %v4946 = vshrl.u32 %v4945, 7
        %v4947 = vsub.s32 %v4944, %v4946
        %v4948 = vrot.slane %v4405, %v4947
        %v4950 = vunpack.c.l.s4 1983009808
        %v4951 = vunpack.c.0.s8 %v4950
        %v4952 = vlaneseq
        %v4953 = vshrl.u32 %v4952, 7
        %v4954 = vsub.s32 %v4951, %v4953
        %v4955 = vrot.slane %v4941, %v4954
        %v4956 = vcombine.high %v4948, %v4948
        %v4957 = vcombine.high %v4955, %v4955
        %v4958 = vcombine.high %v4410, %v4410
        %v4960 = vunpack.c.l.s4 1983009808
        %v4961 = vunpack.c.0.s8 %v4960
        %v4962 = vlaneseq
        %v4963 = vshrl.u32 %v4962, 7
        %v4964 = vsub.s32 %v4961, %v4963
        %v4965 = vrot.slane %v4410, %v4964
        %v4967 = vunpack.c.l.s4 1983009808
        %v4968 = vunpack.c.0.s8 %v4967
        %v4969 = vlaneseq
        %v4970 = vshrl.u32 %v4969, 7
        %v4971 = vsub.s32 %v4968, %v4970
        %v4972 = vrot.slane %v4958, %v4971
        %v4973 = vcombine.high %v4965, %v4965
        %v4974 = vcombine.high %v4972, %v4972
        %v4975 = vcombine.high %v4413, %v4413
        %v4977 = vunpack.c.l.s4 1983009808
        %v4978 = vunpack.c.0.s8 %v4977
        %v4979 = vlaneseq
        %v4980 = vshrl.u32 %v4979, 7
        %v4981 = vsub.s32 %v4978, %v4980
        %v4982 = vrot.slane %v4413, %v4981
        %v4984 = vunpack.c.l.s4 1983009808
        %v4985 = vunpack.c.0.s8 %v4984
        %v4986 = vlaneseq
        %v4987 = vshrl.u32 %v4986, 7
        %v4988 = vsub.s32 %v4985, %v4987
        %v4989 = vrot.slane %v4975, %v4988
        %v4990 = vcombine.high %v4982, %v4982
        %v4991 = vcombine.high %v4989, %v4989
        %v5120 = vrot.slane %v4455, 7
        %v5121 = vrot.slane %v5120, 2
        %v5122 = vrot.slane %v4463, 7
        %v5123 = vrot.slane %v5122, 2
        %v5124 = vrot.slane %v4462, 7
        %v5125 = vrot.slane %v5124, 2
        %v5126 = vrot.slane %v4464, 7
        %v5127 = vrot.slane %v5126, 2
        %v5128 = vrot.slane %v4472, 7
        %v5129 = vrot.slane %v5128, 2
        %v5130 = vrot.slane %v4480, 7
        %v5131 = vrot.slane %v5130, 2
        %v5132 = vrot.slane %v4479, 7
        %v5133 = vrot.slane %v5132, 2
        %v5134 = vrot.slane %v4481, 7
        %v5135 = vrot.slane %v5134, 2
        %v5136 = vrot.slane %v4489, 7
        %v5137 = vrot.slane %v5136, 2
        %v5138 = vrot.slane %v4497, 7
        %v5139 = vrot.slane %v5138, 2
        %v5140 = vrot.slane %v4496, 7
        %v5141 = vrot.slane %v5140, 2
        %v5142 = vrot.slane %v4498, 7
        %v5143 = vrot.slane %v5142, 2
        %v5144 = vrot.slane %v4506, 7
        %v5145 = vrot.slane %v5144, 2
        %v5146 = vrot.slane %v4514, 7
        %v5147 = vrot.slane %v5146, 2
        %v5148 = vrot.slane %v4513, 7
        %v5149 = vrot.slane %v5148, 2
        %v5150 = vrot.slane %v4515, 7
        %v5151 = vrot.slane %v5150, 2
        %v5152 = vrot.slane %v4523, 7
        %v5153 = vrot.slane %v5152, 2
        %v5154 = vrot.slane %v4531, 7
        %v5155 = vrot.slane %v5154, 2
        %v5156 = vrot.slane %v4530, 7
        %v5157 = vrot.slane %v5156, 2
        %v5158 = vrot.slane %v4532, 7
        %v5159 = vrot.slane %v5158, 2
        %v5160 = vrot.slane %v4540, 7
        %v5161 = vrot.slane %v5160, 2
        %v5162 = vrot.slane %v4548, 7
        %v5163 = vrot.slane %v5162, 2
        %v5164 = vrot.slane %v4547, 7
        %v5165 = vrot.slane %v5164, 2
        %v5166 = vrot.slane %v4549, 7
        %v5167 = vrot.slane %v5166, 2
        %v5168 = vrot.slane %v4557, 7
        %v5169 = vrot.slane %v5168, 2
        %v5170 = vrot.slane %v4565, 7
        %v5171 = vrot.slane %v5170, 2
        %v5172 = vrot.slane %v4564, 7
        %v5173 = vrot.slane %v5172, 2
        %v5174 = vrot.slane %v4566, 7
        %v5175 = vrot.slane %v5174, 2
        %v5176 = vrot.slane %v4574, 7
        %v5177 = vrot.slane %v5176, 2
        %v5178 = vrot.slane %v4582, 7
        %v5179 = vrot.slane %v5178, 2
        %v5180 = vrot.slane %v4581, 7
        %v5181 = vrot.slane %v5180, 2
        %v5182 = vrot.slane %v4583, 7
        %v5183 = vrot.slane %v5182, 2
        %v5184 = vrot.slane %v4591, 7
        %v5185 = vrot.slane %v5184, 2
        %v5186 = vrot.slane %v4599, 7
        %v5187 = vrot.slane %v5186, 2
        %v5188 = vrot.slane %v4598, 7
        %v5189 = vrot.slane %v5188, 2
        %v5190 = vrot.slane %v4600, 7
        %v5191 = vrot.slane %v5190, 2
        %v5192 = vrot.slane %v4608, 7
        %v5193 = vrot.slane %v5192, 2
        %v5194 = vrot.slane %v4616, 7
        %v5195 = vrot.slane %v5194, 2
        %v5196 = vrot.slane %v4615, 7
        %v5197 = vrot.slane %v5196, 2
        %v5198 = vrot.slane %v4617, 7
        %v5199 = vrot.slane %v5198, 2
        %v5200 = vrot.slane %v4625, 7
        %v5201 = vrot.slane %v5200, 2
        %v5202 = vrot.slane %v4633, 7
        %v5203 = vrot.slane %v5202, 2
        %v5204 = vrot.slane %v4632, 7
        %v5205 = vrot.slane %v5204, 2
        %v5206 = vrot.slane %v4634, 7
        %v5207 = vrot.slane %v5206, 2
        %v5208 = vrot.slane %v4642, 7
        %v5209 = vrot.slane %v5208, 2
        %v5210 = vrot.slane %v4650, 7
        %v5211 = vrot.slane %v5210, 2
        %v5212 = vrot.slane %v4649, 7
        %v5213 = vrot.slane %v5212, 2
        %v5214 = vrot.slane %v4651, 7
        %v5215 = vrot.slane %v5214, 2
        %v5216 = vrot.slane %v4659, 7
        %v5217 = vrot.slane %v5216, 2
        %v5218 = vrot.slane %v4667, 7
        %v5219 = vrot.slane %v5218, 2
        %v5220 = vrot.slane %v4666, 7
        %v5221 = vrot.slane %v5220, 2
        %v5222 = vrot.slane %v4668, 7
        %v5223 = vrot.slane %v5222, 2
        %v5224 = vrot.slane %v4676, 7
        %v5225 = vrot.slane %v5224, 2
        %v5226 = vrot.slane %v4684, 7
        %v5227 = vrot.slane %v5226, 2
        %v5228 = vrot.slane %v4683, 7
        %v5229 = vrot.slane %v5228, 2
        %v5230 = vrot.slane %v4685, 7
        %v5231 = vrot.slane %v5230, 2
        %v5232 = vrot.slane %v4693, 7
        %v5233 = vrot.slane %v5232, 2
        %v5234 = vrot.slane %v4701, 7
        %v5235 = vrot.slane %v5234, 2
        %v5236 = vrot.slane %v4700, 7
        %v5237 = vrot.slane %v5236, 2
        %v5238 = vrot.slane %v4702, 7
        %v5239 = vrot.slane %v5238, 2
        %v5240 = vrot.slane %v4710, 7
        %v5241 = vrot.slane %v5240, 2
        %v5242 = vrot.slane %v4718, 7
        %v5243 = vrot.slane %v5242, 2
        %v5244 = vrot.slane %v4717, 7
        %v5245 = vrot.slane %v5244, 2
        %v5246 = vrot.slane %v4719, 7
        %v5247 = vrot.slane %v5246, 2
        %v5248 = vrot.slane %v4727, 7
        %v5249 = vrot.slane %v5248, 2
        %v5250 = vrot.slane %v4735, 7
        %v5251 = vrot.slane %v5250, 2
        %v5252 = vrot.slane %v4734, 7
        %v5253 = vrot.slane %v5252, 2
        %v5254 = vrot.slane %v4736, 7
        %v5255 = vrot.slane %v5254, 2
        %v5256 = vrot.slane %v4744, 7
        %v5257 = vrot.slane %v5256, 2
        %v5258 = vrot.slane %v4752, 7
        %v5259 = vrot.slane %v5258, 2
        %v5260 = vrot.slane %v4751, 7
        %v5261 = vrot.slane %v5260, 2
        %v5262 = vrot.slane %v4753, 7
        %v5263 = vrot.slane %v5262, 2
        %v5264 = vrot.slane %v4761, 7
        %v5265 = vrot.slane %v5264, 2
        %v5266 = vrot.slane %v4769, 7
        %v5267 = vrot.slane %v5266, 2
        %v5268 = vrot.slane %v4768, 7
        %v5269 = vrot.slane %v5268, 2
        %v5270 = vrot.slane %v4770, 7
        %v5271 = vrot.slane %v5270, 2
        %v5272 = vrot.slane %v4778, 7
        %v5273 = vrot.slane %v5272, 2
        %v5274 = vrot.slane %v4786, 7
        %v5275 = vrot.slane %v5274, 2
        %v5276 = vrot.slane %v4785, 7
        %v5277 = vrot.slane %v5276, 2
        %v5278 = vrot.slane %v4787, 7
        %v5279 = vrot.slane %v5278, 2
        %v5280 = vrot.slane %v4795, 7
        %v5281 = vrot.slane %v5280, 2
        %v5282 = vrot.slane %v4803, 7
        %v5283 = vrot.slane %v5282, 2
        %v5284 = vrot.slane %v4802, 7
        %v5285 = vrot.slane %v5284, 2
        %v5286 = vrot.slane %v4804, 7
        %v5287 = vrot.slane %v5286, 2
        %v5288 = vrot.slane %v4812, 7
        %v5289 = vrot.slane %v5288, 2
        %v5290 = vrot.slane %v4820, 7
        %v5291 = vrot.slane %v5290, 2
        %v5292 = vrot.slane %v4819, 7
        %v5293 = vrot.slane %v5292, 2
        %v5294 = vrot.slane %v4821, 7
        %v5295 = vrot.slane %v5294, 2
        %v5296 = vrot.slane %v4829, 7
        %v5297 = vrot.slane %v5296, 2
        %v5298 = vrot.slane %v4837, 7
        %v5299 = vrot.slane %v5298, 2
        %v5300 = vrot.slane %v4836, 7
        %v5301 = vrot.slane %v5300, 2
        %v5302 = vrot.slane %v4838, 7
        %v5303 = vrot.slane %v5302, 2
        %v5304 = vrot.slane %v4846, 7
        %v5305 = vrot.slane %v5304, 2
        %v5306 = vrot.slane %v4854, 7
        %v5307 = vrot.slane %v5306, 2
        %v5308 = vrot.slane %v4853, 7
        %v5309 = vrot.slane %v5308, 2
        %v5310 = vrot.slane %v4855, 7
        %v5311 = vrot.slane %v5310, 2
        %v5312 = vrot.slane %v4863, 7
        %v5313 = vrot.slane %v5312, 2
        %v5314 = vrot.slane %v4871, 7
        %v5315 = vrot.slane %v5314, 2
        %v5316 = vrot.slane %v4870, 7
        %v5317 = vrot.slane %v5316, 2
        %v5318 = vrot.slane %v4872, 7
        %v5319 = vrot.slane %v5318, 2
        %v5320 = vrot.slane %v4880, 7
        %v5321 = vrot.slane %v5320, 2
        %v5322 = vrot.slane %v4888, 7
        %v5323 = vrot.slane %v5322, 2
        %v5324 = vrot.slane %v4887, 7
        %v5325 = vrot.slane %v5324, 2
        %v5326 = vrot.slane %v4889, 7
        %v5327 = vrot.slane %v5326, 2
        %v5328 = vrot.slane %v4897, 7
        %v5329 = vrot.slane %v5328, 2
        %v5330 = vrot.slane %v4905, 7
        %v5331 = vrot.slane %v5330, 2
        %v5332 = vrot.slane %v4904, 7
        %v5333 = vrot.slane %v5332, 2
        %v5334 = vrot.slane %v4906, 7
        %v5335 = vrot.slane %v5334, 2
        %v5336 = vrot.slane %v4914, 7
        %v5337 = vrot.slane %v5336, 2
        %v5338 = vrot.slane %v4922, 7
        %v5339 = vrot.slane %v5338, 2
        %v5340 = vrot.slane %v4921, 7
        %v5341 = vrot.slane %v5340, 2
        %v5342 = vrot.slane %v4923, 7
        %v5343 = vrot.slane %v5342, 2
        %v5344 = vrot.slane %v4931, 7
        %v5345 = vrot.slane %v5344, 2
        %v5346 = vrot.slane %v4939, 7
        %v5347 = vrot.slane %v5346, 2
        %v5348 = vrot.slane %v4938, 7
        %v5349 = vrot.slane %v5348, 2
        %v5350 = vrot.slane %v4940, 7
        %v5351 = vrot.slane %v5350, 2
        %v5352 = vrot.slane %v4948, 7
        %v5353 = vrot.slane %v5352, 2
        %v5354 = vrot.slane %v4956, 7
        %v5355 = vrot.slane %v5354, 2
        %v5356 = vrot.slane %v4955, 7
        %v5357 = vrot.slane %v5356, 2
        %v5358 = vrot.slane %v4957, 7
        %v5359 = vrot.slane %v5358, 2
        %v5360 = vrot.slane %v4965, 7
        %v5361 = vrot.slane %v5360, 2
        %v5362 = vrot.slane %v4973, 7
        %v5363 = vrot.slane %v5362, 2
        %v5364 = vrot.slane %v4972, 7
        %v5365 = vrot.slane %v5364, 2
        %v5366 = vrot.slane %v4974, 7
        %v5367 = vrot.slane %v5366, 2
        %v5368 = vrot.slane %v4982, 7
        %v5369 = vrot.slane %v5368, 2
        %v5370 = vrot.slane %v4990, 7
        %v5371 = vrot.slane %v5370, 2
        %v5372 = vrot.slane %v4989, 7
        %v5373 = vrot.slane %v5372, 2
        %v5374 = vrot.slane %v4991, 7
        %v5375 = vrot.slane %v5374, 2
        %v5504 = vmax.f32 %v4455, %v5121
        %v5505 = vmax.f32 %v4463, %v5123
        %v5506 = vmax.f32 %v4462, %v5125
        %v5507 = vmax.f32 %v4464, %v5127
        %v5508 = vmax.f32 %v4472, %v5129
        %v5509 = vmax.f32 %v4480, %v5131
        %v5510 = vmax.f32 %v4479, %v5133
        %v5511 = vmax.f32 %v4481, %v5135
        %v5512 = vmax.f32 %v4489, %v5137
        %v5513 = vmax.f32 %v4497, %v5139
        %v5514 = vmax.f32 %v4496, %v5141
        %v5515 = vmax.f32 %v4498, %v5143
        %v5516 = vmax.f32 %v4506, %v5145
        %v5517 = vmax.f32 %v4514, %v5147
        %v5518 = vmax.f32 %v4513, %v5149
        %v5519 = vmax.f32 %v4515, %v5151
        %v5520 = vmax.f32 %v4523, %v5153
        %v5521 = vmax.f32 %v4531, %v5155
        %v5522 = vmax.f32 %v4530, %v5157
        %v5523 = vmax.f32 %v4532, %v5159
        %v5524 = vmax.f32 %v4540, %v5161
        %v5525 = vmax.f32 %v4548, %v5163
        %v5526 = vmax.f32 %v4547, %v5165
        %v5527 = vmax.f32 %v4549, %v5167
        %v5528 = vmax.f32 %v4557, %v5169
        %v5529 = vmax.f32 %v4565, %v5171
        %v5530 = vmax.f32 %v4564, %v5173
        %v5531 = vmax.f32 %v4566, %v5175
        %v5532 = vmax.f32 %v4574, %v5177
        %v5533 = vmax.f32 %v4582, %v5179
        %v5534 = vmax.f32 %v4581, %v5181
        %v5535 = vmax.f32 %v4583, %v5183
        %v5536 = vmax.f32 %v4591, %v5185
        %v5537 = vmax.f32 %v4599, %v5187
        %v5538 = vmax.f32 %v4598, %v5189
        %v5539 = vmax.f32 %v4600, %v5191
        %v5540 = vmax.f32 %v4608, %v5193
        %v5541 = vmax.f32 %v4616, %v5195
        %v5542 = vmax.f32 %v4615, %v5197
        %v5543 = vmax.f32 %v4617, %v5199
        %v5544 = vmax.f32 %v4625, %v5201
        %v5545 = vmax.f32 %v4633, %v5203
        %v5546 = vmax.f32 %v4632, %v5205
        %v5547 = vmax.f32 %v4634, %v5207
        %v5548 = vmax.f32 %v4642, %v5209
        %v5549 = vmax.f32 %v4650, %v5211
        %v5550 = vmax.f32 %v4649, %v5213
        %v5551 = vmax.f32 %v4651, %v5215
        %v5552 = vmax.f32 %v4659, %v5217
        %v5553 = vmax.f32 %v4667, %v5219
        %v5554 = vmax.f32 %v4666, %v5221
        %v5555 = vmax.f32 %v4668, %v5223
        %v5556 = vmax.f32 %v4676, %v5225
        %v5557 = vmax.f32 %v4684, %v5227
        %v5558 = vmax.f32 %v4683, %v5229
        %v5559 = vmax.f32 %v4685, %v5231
        %v5560 = vmax.f32 %v4693, %v5233
        %v5561 = vmax.f32 %v4701, %v5235
        %v5562 = vmax.f32 %v4700, %v5237
        %v5563 = vmax.f32 %v4702, %v5239
        %v5564 = vmax.f32 %v4710, %v5241
        %v5565 = vmax.f32 %v4718, %v5243
        %v5566 = vmax.f32 %v4717, %v5245
        %v5567 = vmax.f32 %v4719, %v5247
        %v5568 = vmax.f32 %v4727, %v5249
        %v5569 = vmax.f32 %v4735, %v5251
        %v5570 = vmax.f32 %v4734, %v5253
        %v5571 = vmax.f32 %v4736, %v5255
        %v5572 = vmax.f32 %v4744, %v5257
        %v5573 = vmax.f32 %v4752, %v5259
        %v5574 = vmax.f32 %v4751, %v5261
        %v5575 = vmax.f32 %v4753, %v5263
        %v5576 = vmax.f32 %v4761, %v5265
        %v5577 = vmax.f32 %v4769, %v5267
        %v5578 = vmax.f32 %v4768, %v5269
        %v5579 = vmax.f32 %v4770, %v5271
        %v5580 = vmax.f32 %v4778, %v5273
        %v5581 = vmax.f32 %v4786, %v5275
        %v5582 = vmax.f32 %v4785, %v5277
        %v5583 = vmax.f32 %v4787, %v5279
        %v5584 = vmax.f32 %v4795, %v5281
        %v5585 = vmax.f32 %v4803, %v5283
        %v5586 = vmax.f32 %v4802, %v5285
        %v5587 = vmax.f32 %v4804, %v5287
        %v5588 = vmax.f32 %v4812, %v5289
        %v5589 = vmax.f32 %v4820, %v5291
        %v5590 = vmax.f32 %v4819, %v5293
        %v5591 = vmax.f32 %v4821, %v5295
        %v5592 = vmax.f32 %v4829, %v5297
        %v5593 = vmax.f32 %v4837, %v5299
        %v5594 = vmax.f32 %v4836, %v5301
        %v5595 = vmax.f32 %v4838, %v5303
        %v5596 = vmax.f32 %v4846, %v5305
        %v5597 = vmax.f32 %v4854, %v5307
        %v5598 = vmax.f32 %v4853, %v5309
        %v5599 = vmax.f32 %v4855, %v5311
        %v5600 = vmax.f32 %v4863, %v5313
        %v5601 = vmax.f32 %v4871, %v5315
        %v5602 = vmax.f32 %v4870, %v5317
        %v5603 = vmax.f32 %v4872, %v5319
        %v5604 = vmax.f32 %v4880, %v5321
        %v5605 = vmax.f32 %v4888, %v5323
        %v5606 = vmax.f32 %v4887, %v5325
        %v5607 = vmax.f32 %v4889, %v5327
        %v5608 = vmax.f32 %v4897, %v5329
        %v5609 = vmax.f32 %v4905, %v5331
        %v5610 = vmax.f32 %v4904, %v5333
        %v5611 = vmax.f32 %v4906, %v5335
        %v5612 = vmax.f32 %v4914, %v5337
        %v5613 = vmax.f32 %v4922, %v5339
        %v5614 = vmax.f32 %v4921, %v5341
        %v5615 = vmax.f32 %v4923, %v5343
        %v5616 = vmax.f32 %v4931, %v5345
        %v5617 = vmax.f32 %v4939, %v5347
        %v5618 = vmax.f32 %v4938, %v5349
        %v5619 = vmax.f32 %v4940, %v5351
        %v5620 = vmax.f32 %v4948, %v5353
        %v5621 = vmax.f32 %v4956, %v5355
        %v5622 = vmax.f32 %v4955, %v5357
        %v5623 = vmax.f32 %v4957, %v5359
        %v5624 = vmax.f32 %v4965, %v5361
        %v5625 = vmax.f32 %v4973, %v5363
        %v5626 = vmax.f32 %v4972, %v5365
        %v5627 = vmax.f32 %v4974, %v5367
        %v5628 = vmax.f32 %v4982, %v5369
        %v5629 = vmax.f32 %v4990, %v5371
        %v5630 = vmax.f32 %v4989, %v5373
        %v5631 = vmax.f32 %v4991, %v5375
        %v5632 = vmax.f32 %v5504, %v5512
        %v5633 = vmax.f32 %v5505, %v5513
        %v5634 = vmax.f32 %v5506, %v5514
        %v5635 = vmax.f32 %v5507, %v5515
        %v5636 = vmax.f32 %v5508, %v5516
        %v5637 = vmax.f32 %v5509, %v5517
        %v5638 = vmax.f32 %v5510, %v5518
        %v5639 = vmax.f32 %v5511, %v5519
        %v5640 = vmax.f32 %v5520, %v5528
        %v5641 = vmax.f32 %v5521, %v5529
        %v5642 = vmax.f32 %v5522, %v5530
        %v5643 = vmax.f32 %v5523, %v5531
        %v5644 = vmax.f32 %v5524, %v5532
        %v5645 = vmax.f32 %v5525, %v5533
        %v5646 = vmax.f32 %v5526, %v5534
        %v5647 = vmax.f32 %v5527, %v5535
        %v5648 = vmax.f32 %v5536, %v5544
        %v5649 = vmax.f32 %v5537, %v5545
        %v5650 = vmax.f32 %v5538, %v5546
        %v5651 = vmax.f32 %v5539, %v5547
        %v5652 = vmax.f32 %v5540, %v5548
        %v5653 = vmax.f32 %v5541, %v5549
        %v5654 = vmax.f32 %v5542, %v5550
        %v5655 = vmax.f32 %v5543, %v5551
        %v5656 = vmax.f32 %v5552, %v5560
        %v5657 = vmax.f32 %v5553, %v5561
        %v5658 = vmax.f32 %v5554, %v5562
        %v5659 = vmax.f32 %v5555, %v5563
        %v5660 = vmax.f32 %v5556, %v5564
        %v5661 = vmax.f32 %v5557, %v5565
        %v5662 = vmax.f32 %v5558, %v5566
        %v5663 = vmax.f32 %v5559, %v5567
        %v5664 = vmax.f32 %v5568, %v5576
        %v5665 = vmax.f32 %v5569, %v5577
        %v5666 = vmax.f32 %v5570, %v5578
        %v5667 = vmax.f32 %v5571, %v5579
        %v5668 = vmax.f32 %v5572, %v5580
        %v5669 = vmax.f32 %v5573, %v5581
        %v5670 = vmax.f32 %v5574, %v5582
        %v5671 = vmax.f32 %v5575, %v5583
        %v5672 = vmax.f32 %v5584, %v5592
        %v5673 = vmax.f32 %v5585, %v5593
        %v5674 = vmax.f32 %v5586, %v5594
        %v5675 = vmax.f32 %v5587, %v5595
        %v5676 = vmax.f32 %v5588, %v5596
        %v5677 = vmax.f32 %v5589, %v5597
        %v5678 = vmax.f32 %v5590, %v5598
        %v5679 = vmax.f32 %v5591, %v5599
        %v5680 = vmax.f32 %v5600, %v5608
        %v5681 = vmax.f32 %v5601, %v5609
        %v5682 = vmax.f32 %v5602, %v5610
        %v5683 = vmax.f32 %v5603, %v5611
        %v5684 = vmax.f32 %v5604, %v5612
        %v5685 = vmax.f32 %v5605, %v5613
        %v5686 = vmax.f32 %v5606, %v5614
        %v5687 = vmax.f32 %v5607, %v5615
        %v5688 = vmax.f32 %v5616, %v5624
        %v5689 = vmax.f32 %v5617, %v5625
        %v5690 = vmax.f32 %v5618, %v5626
        %v5691 = vmax.f32 %v5619, %v5627
        %v5692 = vmax.f32 %v5620, %v5628
        %v5693 = vmax.f32 %v5621, %v5629
        %v5694 = vmax.f32 %v5622, %v5630
        %v5695 = vmax.f32 %v5623, %v5631
        %v5696 = vld [vmem:[%s2] sm:$0x1]
        %v5698 = vlaneseq
        %v5699 = vshrl.u32 %v5698, 7
        %v5700 = vsub.s32 0, %v5699
        %v5701 = vrot.slane %v5696, %v5700
        %v5702 = vcombine.high %v5701, %v5701
        %v5704 = vunpack.c.l.s4 1983009808
        %v5705 = vunpack.c.0.s8 %v5704
        %v5706 = vlaneseq
        %v5707 = vshrl.u32 %v5706, 7
        %v5708 = vsub.s32 %v5705, %v5707
        %v5709 = vrot.slane %v5701, %v5708
        %v5711 = vunpack.c.l.s4 1983009808
        %v5712 = vunpack.c.0.s8 %v5711
        %v5713 = vlaneseq
        %v5714 = vshrl.u32 %v5713, 7
        %v5715 = vsub.s32 %v5712, %v5714
        %v5716 = vrot.slane %v5702, %v5715
        %v5717 = vcombine.high %v5709, %v5709
        %v5718 = vcombine.high %v5716, %v5716
        %v5719 = vrot.slane %v5709, 1
        %v5720 = vrot.slane %v5717, 1
        %v5721 = vrot.slane %v5716, 1
        %v5722 = vrot.slane %v5718, 1
        %v5731 = vadd.f32 %v5632, %v5709
        %v5732 = vadd.f32 %v5633, %v5719
        %v5733 = vadd.f32 %v5634, %v5717
        %v5734 = vadd.f32 %v5635, %v5720
        %v5735 = vadd.f32 %v5636, %v5716
        %v5736 = vadd.f32 %v5637, %v5721
        %v5737 = vadd.f32 %v5638, %v5718
        %v5738 = vadd.f32 %v5639, %v5722
        %v5739 = vadd.f32 %v5640, %v5709
        %v5740 = vadd.f32 %v5641, %v5719
        %v5741 = vadd.f32 %v5642, %v5717
        %v5742 = vadd.f32 %v5643, %v5720
        %v5743 = vadd.f32 %v5644, %v5716
        %v5744 = vadd.f32 %v5645, %v5721
        %v5745 = vadd.f32 %v5646, %v5718
        %v5746 = vadd.f32 %v5647, %v5722
        %v5747 = vadd.f32 %v5648, %v5709
        %v5748 = vadd.f32 %v5649, %v5719
        %v5749 = vadd.f32 %v5650, %v5717
        %v5750 = vadd.f32 %v5651, %v5720
        %v5751 = vadd.f32 %v5652, %v5716
        %v5752 = vadd.f32 %v5653, %v5721
        %v5753 = vadd.f32 %v5654, %v5718
        %v5754 = vadd.f32 %v5655, %v5722
        %v5755 = vadd.f32 %v5656, %v5709
        %v5756 = vadd.f32 %v5657, %v5719
        %v5757 = vadd.f32 %v5658, %v5717
        %v5758 = vadd.f32 %v5659, %v5720
        %v5759 = vadd.f32 %v5660, %v5716
        %v5760 = vadd.f32 %v5661, %v5721
        %v5761 = vadd.f32 %v5662, %v5718
        %v5762 = vadd.f32 %v5663, %v5722
        %v5763 = vadd.f32 %v5664, %v5709
        %v5764 = vadd.f32 %v5665, %v5719
        %v5765 = vadd.f32 %v5666, %v5717
        %v5766 = vadd.f32 %v5667, %v5720
        %v5767 = vadd.f32 %v5668, %v5716
        %v5768 = vadd.f32 %v5669, %v5721
        %v5769 = vadd.f32 %v5670, %v5718
        %v5770 = vadd.f32 %v5671, %v5722
        %v5771 = vadd.f32 %v5672, %v5709
        %v5772 = vadd.f32 %v5673, %v5719
        %v5773 = vadd.f32 %v5674, %v5717
        %v5774 = vadd.f32 %v5675, %v5720
        %v5775 = vadd.f32 %v5676, %v5716
        %v5776 = vadd.f32 %v5677, %v5721
        %v5777 = vadd.f32 %v5678, %v5718
        %v5778 = vadd.f32 %v5679, %v5722
        %v5779 = vadd.f32 %v5680, %v5709
        %v5780 = vadd.f32 %v5681, %v5719
        %v5781 = vadd.f32 %v5682, %v5717
        %v5782 = vadd.f32 %v5683, %v5720
        %v5783 = vadd.f32 %v5684, %v5716
        %v5784 = vadd.f32 %v5685, %v5721
        %v5785 = vadd.f32 %v5686, %v5718
        %v5786 = vadd.f32 %v5687, %v5722
        %v5787 = vadd.f32 %v5688, %v5709
        %v5788 = vadd.f32 %v5689, %v5719
        %v5789 = vadd.f32 %v5690, %v5717
        %v5790 = vadd.f32 %v5691, %v5720
        %v5791 = vadd.f32 %v5692, %v5716
        %v5792 = vadd.f32 %v5693, %v5721
        %v5793 = vadd.f32 %v5694, %v5718
        %v5794 = vadd.f32 %v5695, %v5722
        %v5795 = vmax.f32 %v5731, 0.0
        %v5796 = vmax.f32 %v5732, 0.0
        %v5797 = vmax.f32 %v5733, 0.0
        %v5798 = vmax.f32 %v5734, 0.0
        %v5799 = vmax.f32 %v5735, 0.0
        %v5800 = vmax.f32 %v5736, 0.0
        %v5801 = vmax.f32 %v5737, 0.0
        %v5802 = vmax.f32 %v5738, 0.0
        %v5803 = vmax.f32 %v5739, 0.0
        %v5804 = vmax.f32 %v5740, 0.0
        %v5805 = vmax.f32 %v5741, 0.0
        %v5806 = vmax.f32 %v5742, 0.0
        %v5807 = vmax.f32 %v5743, 0.0
        %v5808 = vmax.f32 %v5744, 0.0
        %v5809 = vmax.f32 %v5745, 0.0
        %v5810 = vmax.f32 %v5746, 0.0
        %v5811 = vmax.f32 %v5747, 0.0
        %v5812 = vmax.f32 %v5748, 0.0
        %v5813 = vmax.f32 %v5749, 0.0
        %v5814 = vmax.f32 %v5750, 0.0
        %v5815 = vmax.f32 %v5751, 0.0
        %v5816 = vmax.f32 %v5752, 0.0
        %v5817 = vmax.f32 %v5753, 0.0
        %v5818 = vmax.f32 %v5754, 0.0
        %v5819 = vmax.f32 %v5755, 0.0
        %v5820 = vmax.f32 %v5756, 0.0
        %v5821 = vmax.f32 %v5757, 0.0
        %v5822 = vmax.f32 %v5758, 0.0
        %v5823 = vmax.f32 %v5759, 0.0
        %v5824 = vmax.f32 %v5760, 0.0
        %v5825 = vmax.f32 %v5761, 0.0
        %v5826 = vmax.f32 %v5762, 0.0
        %v5827 = vmax.f32 %v5763, 0.0
        %v5828 = vmax.f32 %v5764, 0.0
        %v5829 = vmax.f32 %v5765, 0.0
        %v5830 = vmax.f32 %v5766, 0.0
        %v5831 = vmax.f32 %v5767, 0.0
        %v5832 = vmax.f32 %v5768, 0.0
        %v5833 = vmax.f32 %v5769, 0.0
        %v5834 = vmax.f32 %v5770, 0.0
        %v5835 = vmax.f32 %v5771, 0.0
        %v5836 = vmax.f32 %v5772, 0.0
        %v5837 = vmax.f32 %v5773, 0.0
        %v5838 = vmax.f32 %v5774, 0.0
        %v5839 = vmax.f32 %v5775, 0.0
        %v5840 = vmax.f32 %v5776, 0.0
        %v5841 = vmax.f32 %v5777, 0.0
        %v5842 = vmax.f32 %v5778, 0.0
        %v5843 = vmax.f32 %v5779, 0.0
        %v5844 = vmax.f32 %v5780, 0.0
        %v5845 = vmax.f32 %v5781, 0.0
        %v5846 = vmax.f32 %v5782, 0.0
        %v5847 = vmax.f32 %v5783, 0.0
        %v5848 = vmax.f32 %v5784, 0.0
        %v5849 = vmax.f32 %v5785, 0.0
        %v5850 = vmax.f32 %v5786, 0.0
        %v5851 = vmax.f32 %v5787, 0.0
        %v5852 = vmax.f32 %v5788, 0.0
        %v5853 = vmax.f32 %v5789, 0.0
        %v5854 = vmax.f32 %v5790, 0.0
        %v5855 = vmax.f32 %v5791, 0.0
        %v5856 = vmax.f32 %v5792, 0.0
        %v5857 = vmax.f32 %v5793, 0.0
        %v5858 = vmax.f32 %v5794, 0.0
        %vm5859 = vcmask 125952
        %5860 = vst.msk [vmem:[#allocation4] sm:$0xf] %vm5859, 0
        %vm5861 = vcmask 122880
        %5862 = vst.msk [vmem:[#allocation4 + $0x4] sm:$0x1] %vm5861, 0
        %s5863 = scalar_lea.vmem [#allocation4], 72
        %5864 = vst.msk [vmem:[%s5863] sm:$0xf] %vm5859, 0
        %5865 = vst.msk [vmem:[%s5863 + $0x4] sm:$0x1] %vm5861, 0
        %vm5866 = vcmask 122880
        %vm5867 = vmand %vm5866, %vm427
        %v5868 = vld [vmem:[#allocation4] sm:$0x1]
        %v5869 = vsel %vm5867, 0, %v5868
        %5870 = vst [vmem:[#allocation4] sm:$0x1] %v5869
        %v5871 = vld [vmem:[#allocation4 + $0x8] sm:$0x1]
        %v5872 = vsel %vm5867, 0, %v5871
        %5873 = vst [vmem:[#allocation4 + $0x8] sm:$0x1] %v5872
        %v5874 = vld [vmem:[#allocation4 + $0x10] sm:$0x1]
        %v5875 = vsel %vm5867, 0, %v5874
        %5876 = vst [vmem:[#allocation4 + $0x10] sm:$0x1] %v5875
        %v5877 = vld [vmem:[#allocation4 + $0x18] sm:$0x1]
        %v5878 = vsel %vm5867, 0, %v5877
        %5879 = vst [vmem:[#allocation4 + $0x18] sm:$0x1] %v5878
        %v5880 = vld [vmem:[#allocation4 + $0x20] sm:$0x1]
        %v5881 = vsel %vm5867, 0, %v5880
        %5882 = vst [vmem:[#allocation4 + $0x20] sm:$0x1] %v5881
        %v5883 = vld [vmem:[#allocation4 + $0x28] sm:$0x1]
        %v5884 = vsel %vm5867, 0, %v5883
        %5885 = vst [vmem:[#allocation4 + $0x28] sm:$0x1] %v5884
        %v5886 = vld [vmem:[#allocation4 + $0x30] sm:$0x1]
        %v5887 = vsel %vm5867, 0, %v5886
        %5888 = vst [vmem:[#allocation4 + $0x30] sm:$0x1] %v5887
        %v5889 = vld [vmem:[#allocation4 + $0x38] sm:$0x1]
        %v5890 = vsel %vm5867, 0, %v5889
        %5891 = vst [vmem:[#allocation4 + $0x38] sm:$0x1] %v5890
        %v5892 = vld [vmem:[#allocation4 + $0x40] sm:$0x1]
        %v5893 = vsel %vm5867, 0, %v5892
        %5894 = vst [vmem:[#allocation4 + $0x40] sm:$0x1] %v5893
        %v5895 = vld [vmem:[#allocation4 + $0x48] sm:$0x1]
        %v5896 = vsel %vm5867, 0, %v5895
        %5897 = vst [vmem:[#allocation4 + $0x48] sm:$0x1] %v5896
        %vm5898 = vmand %vm5866, %vm483
        %v5899 = vld [vmem:[#allocation4 + $0x4] sm:$0x1]
        %v5900 = vsel %vm5898, 0, %v5899
        %5901 = vst [vmem:[#allocation4 + $0x4] sm:$0x1] %v5900
        %v5902 = vld [vmem:[#allocation4 + $0xc] sm:$0x1]
        %v5903 = vsel %vm5898, 0, %v5902
        %5904 = vst [vmem:[#allocation4 + $0xc] sm:$0x1] %v5903
        %v5905 = vld [vmem:[#allocation4 + $0x14] sm:$0x1]
        %v5906 = vsel %vm5898, 0, %v5905
        %5907 = vst [vmem:[#allocation4 + $0x14] sm:$0x1] %v5906
        %v5908 = vld [vmem:[#allocation4 + $0x1c] sm:$0x1]
        %v5909 = vsel %vm5898, 0, %v5908
        %5910 = vst [vmem:[#allocation4 + $0x1c] sm:$0x1] %v5909
        %v5911 = vld [vmem:[#allocation4 + $0x24] sm:$0x1]
        %v5912 = vsel %vm5898, 0, %v5911
        %5913 = vst [vmem:[#allocation4 + $0x24] sm:$0x1] %v5912
        %v5914 = vld [vmem:[#allocation4 + $0x2c] sm:$0x1]
        %v5915 = vsel %vm5898, 0, %v5914
        %5916 = vst [vmem:[#allocation4 + $0x2c] sm:$0x1] %v5915
        %v5917 = vld [vmem:[#allocation4 + $0x34] sm:$0x1]
        %v5918 = vsel %vm5898, 0, %v5917
        %5919 = vst [vmem:[#allocation4 + $0x34] sm:$0x1] %v5918
        %v5920 = vld [vmem:[#allocation4 + $0x3c] sm:$0x1]
        %v5921 = vsel %vm5898, 0, %v5920
        %5922 = vst [vmem:[#allocation4 + $0x3c] sm:$0x1] %v5921
        %v5923 = vld [vmem:[#allocation4 + $0x44] sm:$0x1]
        %v5924 = vsel %vm5898, 0, %v5923
        %5925 = vst [vmem:[#allocation4 + $0x44] sm:$0x1] %v5924
        %v5926 = vld [vmem:[#allocation4 + $0x4c] sm:$0x1]
        %v5927 = vsel %vm5898, 0, %v5926
        %5928 = vst [vmem:[#allocation4 + $0x4c] sm:$0x1] %v5927
        %v5929 = vpack.c.bf16 %v5795, %v5795
        %v5930 = vpack.c.bf16 %v5796, %v5796
        %v5931 = vpack.c.bf16 %v5797, %v5797
        %v5932 = vpack.c.bf16 %v5798, %v5798
        %v5933 = vpack.c.bf16 %v5799, %v5799
        %v5934 = vpack.c.bf16 %v5800, %v5800
        %v5935 = vpack.c.bf16 %v5801, %v5801
        %v5936 = vpack.c.bf16 %v5802, %v5802
        %v5937 = vpack.c.bf16 %v5803, %v5803
        %v5938 = vpack.c.bf16 %v5804, %v5804
        %v5939 = vpack.c.bf16 %v5805, %v5805
        %v5940 = vpack.c.bf16 %v5806, %v5806
        %v5941 = vpack.c.bf16 %v5807, %v5807
        %v5942 = vpack.c.bf16 %v5808, %v5808
        %v5943 = vpack.c.bf16 %v5809, %v5809
        %v5944 = vpack.c.bf16 %v5810, %v5810
        %v5945 = vpack.c.bf16 %v5811, %v5811
        %v5946 = vpack.c.bf16 %v5812, %v5812
        %v5947 = vpack.c.bf16 %v5813, %v5813
        %v5948 = vpack.c.bf16 %v5814, %v5814
        %v5949 = vpack.c.bf16 %v5815, %v5815
        %v5950 = vpack.c.bf16 %v5816, %v5816
        %v5951 = vpack.c.bf16 %v5817, %v5817
        %v5952 = vpack.c.bf16 %v5818, %v5818
        %v5953 = vpack.c.bf16 %v5819, %v5819
        %v5954 = vpack.c.bf16 %v5820, %v5820
        %v5955 = vpack.c.bf16 %v5821, %v5821
        %v5956 = vpack.c.bf16 %v5822, %v5822
        %v5957 = vpack.c.bf16 %v5823, %v5823
        %v5958 = vpack.c.bf16 %v5824, %v5824
        %v5959 = vpack.c.bf16 %v5825, %v5825
        %v5960 = vpack.c.bf16 %v5826, %v5826
        %v5961 = vpack.c.bf16 %v5827, %v5827
        %v5962 = vpack.c.bf16 %v5828, %v5828
        %v5963 = vpack.c.bf16 %v5829, %v5829
        %v5964 = vpack.c.bf16 %v5830, %v5830
        %v5965 = vpack.c.bf16 %v5831, %v5831
        %v5966 = vpack.c.bf16 %v5832, %v5832
        %v5967 = vpack.c.bf16 %v5833, %v5833
        %v5968 = vpack.c.bf16 %v5834, %v5834
        %v5969 = vpack.c.bf16 %v5835, %v5835
        %v5970 = vpack.c.bf16 %v5836, %v5836
        %v5971 = vpack.c.bf16 %v5837, %v5837
        %v5972 = vpack.c.bf16 %v5838, %v5838
        %v5973 = vpack.c.bf16 %v5839, %v5839
        %v5974 = vpack.c.bf16 %v5840, %v5840
        %v5975 = vpack.c.bf16 %v5841, %v5841
        %v5976 = vpack.c.bf16 %v5842, %v5842
        %v5977 = vpack.c.bf16 %v5843, %v5843
        %v5978 = vpack.c.bf16 %v5844, %v5844
        %v5979 = vpack.c.bf16 %v5845, %v5845
        %v5980 = vpack.c.bf16 %v5846, %v5846
        %v5981 = vpack.c.bf16 %v5847, %v5847
        %v5982 = vpack.c.bf16 %v5848, %v5848
        %v5983 = vpack.c.bf16 %v5849, %v5849
        %v5984 = vpack.c.bf16 %v5850, %v5850
        %v5985 = vpack.c.bf16 %v5851, %v5851
        %v5986 = vpack.c.bf16 %v5852, %v5852
        %v5987 = vpack.c.bf16 %v5853, %v5853
        %v5988 = vpack.c.bf16 %v5854, %v5854
        %v5989 = vpack.c.bf16 %v5855, %v5855
        %v5990 = vpack.c.bf16 %v5856, %v5856
        %v5991 = vpack.c.bf16 %v5857, %v5857
        %v5992 = vpack.c.bf16 %v5858, %v5858
        %v6057 = vunpack.c.l.b16 %v5929
        %v6058 = vunpack.c.l.b16 %v5930
        %v6059 = vunpack.c.l.b16 %v5931
        %v6060 = vunpack.c.l.b16 %v5932
        %v6061 = vunpack.c.l.b16 %v5933
        %v6062 = vunpack.c.l.b16 %v5934
        %v6063 = vunpack.c.l.b16 %v5935
        %v6064 = vunpack.c.l.b16 %v5936
        %v6065 = vunpack.c.l.b16 %v5937
        %v6066 = vunpack.c.l.b16 %v5938
        %v6067 = vunpack.c.l.b16 %v5939
        %v6068 = vunpack.c.l.b16 %v5940
        %v6069 = vunpack.c.l.b16 %v5941
        %v6070 = vunpack.c.l.b16 %v5942
        %v6071 = vunpack.c.l.b16 %v5943
        %v6072 = vunpack.c.l.b16 %v5944
        %v6073 = vunpack.c.l.b16 %v5945
        %v6074 = vunpack.c.l.b16 %v5946
        %v6075 = vunpack.c.l.b16 %v5947
        %v6076 = vunpack.c.l.b16 %v5948
        %v6077 = vunpack.c.l.b16 %v5949
        %v6078 = vunpack.c.l.b16 %v5950
        %v6079 = vunpack.c.l.b16 %v5951
        %v6080 = vunpack.c.l.b16 %v5952
        %v6081 = vunpack.c.l.b16 %v5953
        %v6082 = vunpack.c.l.b16 %v5954
        %v6083 = vunpack.c.l.b16 %v5955
        %v6084 = vunpack.c.l.b16 %v5956
        %v6085 = vunpack.c.l.b16 %v5957
        %v6086 = vunpack.c.l.b16 %v5958
        %v6087 = vunpack.c.l.b16 %v5959
        %v6088 = vunpack.c.l.b16 %v5960
        %v6089 = vunpack.c.l.b16 %v5961
        %v6090 = vunpack.c.l.b16 %v5962
        %v6091 = vunpack.c.l.b16 %v5963
        %v6092 = vunpack.c.l.b16 %v5964
        %v6093 = vunpack.c.l.b16 %v5965
        %v6094 = vunpack.c.l.b16 %v5966
        %v6095 = vunpack.c.l.b16 %v5967
        %v6096 = vunpack.c.l.b16 %v5968
        %v6097 = vunpack.c.l.b16 %v5969
        %v6098 = vunpack.c.l.b16 %v5970
        %v6099 = vunpack.c.l.b16 %v5971
        %v6100 = vunpack.c.l.b16 %v5972
        %v6101 = vunpack.c.l.b16 %v5973
        %v6102 = vunpack.c.l.b16 %v5974
        %v6103 = vunpack.c.l.b16 %v5975
        %v6104 = vunpack.c.l.b16 %v5976
        %v6105 = vunpack.c.l.b16 %v5977
        %v6106 = vunpack.c.l.b16 %v5978
        %v6107 = vunpack.c.l.b16 %v5979
        %v6108 = vunpack.c.l.b16 %v5980
        %v6109 = vunpack.c.l.b16 %v5981
        %v6110 = vunpack.c.l.b16 %v5982
        %v6111 = vunpack.c.l.b16 %v5983
        %v6112 = vunpack.c.l.b16 %v5984
        %v6113 = vunpack.c.l.b16 %v5985
        %v6114 = vunpack.c.l.b16 %v5986
        %v6115 = vunpack.c.l.b16 %v5987
        %v6116 = vunpack.c.l.b16 %v5988
        %v6117 = vunpack.c.l.b16 %v5989
        %v6118 = vunpack.c.l.b16 %v5990
        %v6119 = vunpack.c.l.b16 %v5991
        %v6120 = vunpack.c.l.b16 %v5992
        %v6121 = vpack.c.b16 %v6057, %v6057
        %v6122 = vpack.c.b16 %v6058, %v6058
        %v6123 = vpack.c.b16 %v6059, %v6059
        %v6124 = vpack.c.b16 %v6060, %v6060
        %v6125 = vpack.c.b16 %v6061, %v6061
        %v6126 = vpack.c.b16 %v6062, %v6062
        %v6127 = vpack.c.b16 %v6063, %v6063
        %v6128 = vpack.c.b16 %v6064, %v6064
        %v6129 = vpack.c.b16 %v6065, %v6065
        %v6130 = vpack.c.b16 %v6066, %v6066
        %v6131 = vpack.c.b16 %v6067, %v6067
        %v6132 = vpack.c.b16 %v6068, %v6068
        %v6133 = vpack.c.b16 %v6069, %v6069
        %v6134 = vpack.c.b16 %v6070, %v6070
        %v6135 = vpack.c.b16 %v6071, %v6071
        %v6136 = vpack.c.b16 %v6072, %v6072
        %v6137 = vpack.c.b16 %v6073, %v6073
        %v6138 = vpack.c.b16 %v6074, %v6074
        %v6139 = vpack.c.b16 %v6075, %v6075
        %v6140 = vpack.c.b16 %v6076, %v6076
        %v6141 = vpack.c.b16 %v6077, %v6077
        %v6142 = vpack.c.b16 %v6078, %v6078
        %v6143 = vpack.c.b16 %v6079, %v6079
        %v6144 = vpack.c.b16 %v6080, %v6080
        %v6145 = vpack.c.b16 %v6081, %v6081
        %v6146 = vpack.c.b16 %v6082, %v6082
        %v6147 = vpack.c.b16 %v6083, %v6083
        %v6148 = vpack.c.b16 %v6084, %v6084
        %v6149 = vpack.c.b16 %v6085, %v6085
        %v6150 = vpack.c.b16 %v6086, %v6086
        %v6151 = vpack.c.b16 %v6087, %v6087
        %v6152 = vpack.c.b16 %v6088, %v6088
        %v6153 = vpack.c.b16 %v6089, %v6089
        %v6154 = vpack.c.b16 %v6090, %v6090
        %v6155 = vpack.c.b16 %v6091, %v6091
        %v6156 = vpack.c.b16 %v6092, %v6092
        %v6157 = vpack.c.b16 %v6093, %v6093
        %v6158 = vpack.c.b16 %v6094, %v6094
        %v6159 = vpack.c.b16 %v6095, %v6095
        %v6160 = vpack.c.b16 %v6096, %v6096
        %v6161 = vpack.c.b16 %v6097, %v6097
        %v6162 = vpack.c.b16 %v6098, %v6098
        %v6163 = vpack.c.b16 %v6099, %v6099
        %v6164 = vpack.c.b16 %v6100, %v6100
        %v6165 = vpack.c.b16 %v6101, %v6101
        %v6166 = vpack.c.b16 %v6102, %v6102
        %v6167 = vpack.c.b16 %v6103, %v6103
        %v6168 = vpack.c.b16 %v6104, %v6104
        %v6169 = vpack.c.b16 %v6105, %v6105
        %v6170 = vpack.c.b16 %v6106, %v6106
        %v6171 = vpack.c.b16 %v6107, %v6107
        %v6172 = vpack.c.b16 %v6108, %v6108
        %v6173 = vpack.c.b16 %v6109, %v6109
        %v6174 = vpack.c.b16 %v6110, %v6110
        %v6175 = vpack.c.b16 %v6111, %v6111
        %v6176 = vpack.c.b16 %v6112, %v6112
        %v6177 = vpack.c.b16 %v6113, %v6113
        %v6178 = vpack.c.b16 %v6114, %v6114
        %v6179 = vpack.c.b16 %v6115, %v6115
        %v6180 = vpack.c.b16 %v6116, %v6116
        %v6181 = vpack.c.b16 %v6117, %v6117
        %v6182 = vpack.c.b16 %v6118, %v6118
        %v6183 = vpack.c.b16 %v6119, %v6119
        %v6184 = vpack.c.b16 %v6120, %v6120
        %v6185 = vunpack.c.l.b16 %v6121
        %v6186 = vunpack.c.l.b16 %v6122
        %v6187 = vunpack.c.l.b16 %v6123
        %v6188 = vunpack.c.l.b16 %v6124
        %v6189 = vunpack.c.l.b16 %v6125
        %v6190 = vunpack.c.l.b16 %v6126
        %v6191 = vunpack.c.l.b16 %v6127
        %v6192 = vunpack.c.l.b16 %v6128
        %v6193 = vunpack.c.l.b16 %v6129
        %v6194 = vunpack.c.l.b16 %v6130
        %v6195 = vunpack.c.l.b16 %v6131
        %v6196 = vunpack.c.l.b16 %v6132
        %v6197 = vunpack.c.l.b16 %v6133
        %v6198 = vunpack.c.l.b16 %v6134
        %v6199 = vunpack.c.l.b16 %v6135
        %v6200 = vunpack.c.l.b16 %v6136
        %v6201 = vunpack.c.l.b16 %v6137
        %v6202 = vunpack.c.l.b16 %v6138
        %v6203 = vunpack.c.l.b16 %v6139
        %v6204 = vunpack.c.l.b16 %v6140
        %v6205 = vunpack.c.l.b16 %v6141
        %v6206 = vunpack.c.l.b16 %v6142
        %v6207 = vunpack.c.l.b16 %v6143
        %v6208 = vunpack.c.l.b16 %v6144
        %v6209 = vunpack.c.l.b16 %v6145
        %v6210 = vunpack.c.l.b16 %v6146
        %v6211 = vunpack.c.l.b16 %v6147
        %v6212 = vunpack.c.l.b16 %v6148
        %v6213 = vunpack.c.l.b16 %v6149
        %v6214 = vunpack.c.l.b16 %v6150
        %v6215 = vunpack.c.l.b16 %v6151
        %v6216 = vunpack.c.l.b16 %v6152
        %v6217 = vunpack.c.l.b16 %v6153
        %v6218 = vunpack.c.l.b16 %v6154
        %v6219 = vunpack.c.l.b16 %v6155
        %v6220 = vunpack.c.l.b16 %v6156
        %v6221 = vunpack.c.l.b16 %v6157
        %v6222 = vunpack.c.l.b16 %v6158
        %v6223 = vunpack.c.l.b16 %v6159
        %v6224 = vunpack.c.l.b16 %v6160
        %v6225 = vunpack.c.l.b16 %v6161
        %v6226 = vunpack.c.l.b16 %v6162
        %v6227 = vunpack.c.l.b16 %v6163
        %v6228 = vunpack.c.l.b16 %v6164
        %v6229 = vunpack.c.l.b16 %v6165
        %v6230 = vunpack.c.l.b16 %v6166
        %v6231 = vunpack.c.l.b16 %v6167
        %v6232 = vunpack.c.l.b16 %v6168
        %v6233 = vunpack.c.l.b16 %v6169
        %v6234 = vunpack.c.l.b16 %v6170
        %v6235 = vunpack.c.l.b16 %v6171
        %v6236 = vunpack.c.l.b16 %v6172
        %v6237 = vunpack.c.l.b16 %v6173
        %v6238 = vunpack.c.l.b16 %v6174
        %v6239 = vunpack.c.l.b16 %v6175
        %v6240 = vunpack.c.l.b16 %v6176
        %v6241 = vunpack.c.l.b16 %v6177
        %v6242 = vunpack.c.l.b16 %v6178
        %v6243 = vunpack.c.l.b16 %v6179
        %v6244 = vunpack.c.l.b16 %v6180
        %v6245 = vunpack.c.l.b16 %v6181
        %v6246 = vunpack.c.l.b16 %v6182
        %v6247 = vunpack.c.l.b16 %v6183
        %v6248 = vunpack.c.l.b16 %v6184
        %v6249 = vrot.slane %v6185, 7
        %v6250 = vrot.slane %v6186, 6
        %vm6251 = vcmask 1042434
        %v6252 = vsel %vm6251, %v6250, %v6249
        %v6253 = vrot.slane %v6187, 5
        %vm6254 = vcmask 1043459
        %v6255 = vsel %vm6254, %v6253, %v6252
        %v6256 = vrot.slane %v6188, 4
        %vm6257 = vcmask 1044484
        %v6258 = vsel %vm6257, %v6256, %v6255
        %v6259 = vrot.slane %v6189, 3
        %vm6260 = vcmask 1045509
        %v6261 = vsel %vm6260, %v6259, %v6258
        %v6262 = vrot.slane %v6190, 2
        %vm6263 = vcmask 1046534
        %v6264 = vsel %vm6263, %v6262, %v6261
        %v6265 = vrot.slane %v6191, 1
        %vm6266 = vcmask 1047559
        %v6267 = vsel %vm6266, %v6265, %v6264
        %v6268 = vrot.slane %v6193, 7
        %v6269 = vrot.slane %v6194, 6
        %v6270 = vsel %vm6251, %v6269, %v6268
        %v6271 = vrot.slane %v6195, 5
        %v6272 = vsel %vm6254, %v6271, %v6270
        %v6273 = vrot.slane %v6196, 4
        %v6274 = vsel %vm6257, %v6273, %v6272
        %v6275 = vrot.slane %v6197, 3
        %v6276 = vsel %vm6260, %v6275, %v6274
        %v6277 = vrot.slane %v6198, 2
        %v6278 = vsel %vm6263, %v6277, %v6276
        %v6279 = vrot.slane %v6199, 1
        %v6280 = vsel %vm6266, %v6279, %v6278
        %v6281 = vrot.slane %v6201, 7
        %v6282 = vrot.slane %v6202, 6
        %v6283 = vsel %vm6251, %v6282, %v6281
        %v6284 = vrot.slane %v6203, 5
        %v6285 = vsel %vm6254, %v6284, %v6283
        %v6286 = vrot.slane %v6204, 4
        %v6287 = vsel %vm6257, %v6286, %v6285
        %v6288 = vrot.slane %v6205, 3
        %v6289 = vsel %vm6260, %v6288, %v6287
        %v6290 = vrot.slane %v6206, 2
        %v6291 = vsel %vm6263, %v6290, %v6289
        %v6292 = vrot.slane %v6207, 1
        %v6293 = vsel %vm6266, %v6292, %v6291
        %v6294 = vrot.slane %v6209, 7
        %v6295 = vrot.slane %v6210, 6
        %v6296 = vsel %vm6251, %v6295, %v6294
        %v6297 = vrot.slane %v6211, 5
        %v6298 = vsel %vm6254, %v6297, %v6296
        %v6299 = vrot.slane %v6212, 4
        %v6300 = vsel %vm6257, %v6299, %v6298
        %v6301 = vrot.slane %v6213, 3
        %v6302 = vsel %vm6260, %v6301, %v6300
        %v6303 = vrot.slane %v6214, 2
        %v6304 = vsel %vm6263, %v6303, %v6302
        %v6305 = vrot.slane %v6215, 1
        %v6306 = vsel %vm6266, %v6305, %v6304
        %v6307 = vrot.slane %v6217, 7
        %v6308 = vrot.slane %v6218, 6
        %v6309 = vsel %vm6251, %v6308, %v6307
        %v6310 = vrot.slane %v6219, 5
        %v6311 = vsel %vm6254, %v6310, %v6309
        %v6312 = vrot.slane %v6220, 4
        %v6313 = vsel %vm6257, %v6312, %v6311
        %v6314 = vrot.slane %v6221, 3
        %v6315 = vsel %vm6260, %v6314, %v6313
        %v6316 = vrot.slane %v6222, 2
        %v6317 = vsel %vm6263, %v6316, %v6315
        %v6318 = vrot.slane %v6223, 1
        %v6319 = vsel %vm6266, %v6318, %v6317
        %v6320 = vrot.slane %v6225, 7
        %v6321 = vrot.slane %v6226, 6
        %v6322 = vsel %vm6251, %v6321, %v6320
        %v6323 = vrot.slane %v6227, 5
        %v6324 = vsel %vm6254, %v6323, %v6322
        %v6325 = vrot.slane %v6228, 4
        %v6326 = vsel %vm6257, %v6325, %v6324
        %v6327 = vrot.slane %v6229, 3
        %v6328 = vsel %vm6260, %v6327, %v6326
        %v6329 = vrot.slane %v6230, 2
        %v6330 = vsel %vm6263, %v6329, %v6328
        %v6331 = vrot.slane %v6231, 1
        %v6332 = vsel %vm6266, %v6331, %v6330
        %v6333 = vrot.slane %v6233, 7
        %v6334 = vrot.slane %v6234, 6
        %v6335 = vsel %vm6251, %v6334, %v6333
        %v6336 = vrot.slane %v6235, 5
        %v6337 = vsel %vm6254, %v6336, %v6335
        %v6338 = vrot.slane %v6236, 4
        %v6339 = vsel %vm6257, %v6338, %v6337
        %v6340 = vrot.slane %v6237, 3
        %v6341 = vsel %vm6260, %v6340, %v6339
        %v6342 = vrot.slane %v6238, 2
        %v6343 = vsel %vm6263, %v6342, %v6341
        %v6344 = vrot.slane %v6239, 1
        %v6345 = vsel %vm6266, %v6344, %v6343
        %v6346 = vrot.slane %v6241, 7
        %v6347 = vrot.slane %v6242, 6
        %v6348 = vsel %vm6251, %v6347, %v6346
        %v6349 = vrot.slane %v6243, 5
        %v6350 = vsel %vm6254, %v6349, %v6348
        %v6351 = vrot.slane %v6244, 4
        %v6352 = vsel %vm6257, %v6351, %v6350
        %v6353 = vrot.slane %v6245, 3
        %v6354 = vsel %vm6260, %v6353, %v6352
        %v6355 = vrot.slane %v6246, 2
        %v6356 = vsel %vm6263, %v6355, %v6354
        %v6357 = vrot.slane %v6247, 1
        %v6358 = vsel %vm6266, %v6357, %v6356
        %v6359 = vpack.c.b16 %v6267, %v6267
        %v6360 = vpack.c.b16 %v6192, %v6192
        %v6361 = vpack.c.b16 %v6280, %v6280
        %v6362 = vpack.c.b16 %v6200, %v6200
        %v6363 = vpack.c.b16 %v6293, %v6293
        %v6364 = vpack.c.b16 %v6208, %v6208
        %v6365 = vpack.c.b16 %v6306, %v6306
        %v6366 = vpack.c.b16 %v6216, %v6216
        %v6367 = vpack.c.b16 %v6319, %v6319
        %v6368 = vpack.c.b16 %v6224, %v6224
        %v6369 = vpack.c.b16 %v6332, %v6332
        %v6370 = vpack.c.b16 %v6232, %v6232
        %v6371 = vpack.c.b16 %v6345, %v6345
        %v6372 = vpack.c.b16 %v6240, %v6240
        %v6373 = vpack.c.b16 %v6358, %v6358
        %v6374 = vpack.c.b16 %v6248, %v6248
        %s6391 = scalar_lea.vmem [#allocation4], 8
        %vm6392 = vcmask 125952
        %vm6393 = vmand %vm6392, %vm483
        %v6394 = vld [vmem:[%s6391] sm:$0xf]
        %v6395 = vsel %vm6393, %v6359, %v6394
        %6396 = vst [vmem:[%s6391] sm:$0xf] %v6395
        %v6397 = vld [vmem:[%s6391 + $0x4] sm:$0x1]
        %v6398 = vsel %vm5867, %v6360, %v6397
        %6399 = vst [vmem:[%s6391 + $0x4] sm:$0x1] %v6398
        %v6400 = vld [vmem:[%s6391 + $0x8] sm:$0xf]
        %v6401 = vsel %vm6393, %v6361, %v6400
        %6402 = vst [vmem:[%s6391 + $0x8] sm:$0xf] %v6401
        %v6403 = vld [vmem:[%s6391 + $0xc] sm:$0x1]
        %v6404 = vsel %vm5867, %v6362, %v6403
        %6405 = vst [vmem:[%s6391 + $0xc] sm:$0x1] %v6404
        %v6406 = vld [vmem:[%s6391 + $0x10] sm:$0xf]
        %v6407 = vsel %vm6393, %v6363, %v6406
        %6408 = vst [vmem:[%s6391 + $0x10] sm:$0xf] %v6407
        %v6409 = vld [vmem:[%s6391 + $0x14] sm:$0x1]
        %v6410 = vsel %vm5867, %v6364, %v6409
        %6411 = vst [vmem:[%s6391 + $0x14] sm:$0x1] %v6410
        %v6412 = vld [vmem:[%s6391 + $0x18] sm:$0xf]
        %v6413 = vsel %vm6393, %v6365, %v6412
        %6414 = vst [vmem:[%s6391 + $0x18] sm:$0xf] %v6413
        %v6415 = vld [vmem:[%s6391 + $0x1c] sm:$0x1]
        %v6416 = vsel %vm5867, %v6366, %v6415
        %6417 = vst [vmem:[%s6391 + $0x1c] sm:$0x1] %v6416
        %v6418 = vld [vmem:[%s6391 + $0x20] sm:$0xf]
        %v6419 = vsel %vm6393, %v6367, %v6418
        %6420 = vst [vmem:[%s6391 + $0x20] sm:$0xf] %v6419
        %v6421 = vld [vmem:[%s6391 + $0x24] sm:$0x1]
        %v6422 = vsel %vm5867, %v6368, %v6421
        %6423 = vst [vmem:[%s6391 + $0x24] sm:$0x1] %v6422
        %v6424 = vld [vmem:[%s6391 + $0x28] sm:$0xf]
        %v6425 = vsel %vm6393, %v6369, %v6424
        %6426 = vst [vmem:[%s6391 + $0x28] sm:$0xf] %v6425
        %v6427 = vld [vmem:[%s6391 + $0x2c] sm:$0x1]
        %v6428 = vsel %vm5867, %v6370, %v6427
        %6429 = vst [vmem:[%s6391 + $0x2c] sm:$0x1] %v6428
        %v6430 = vld [vmem:[%s6391 + $0x30] sm:$0xf]
        %v6431 = vsel %vm6393, %v6371, %v6430
        %6432 = vst [vmem:[%s6391 + $0x30] sm:$0xf] %v6431
        %v6433 = vld [vmem:[%s6391 + $0x34] sm:$0x1]
        %v6434 = vsel %vm5867, %v6372, %v6433
        %6435 = vst [vmem:[%s6391 + $0x34] sm:$0x1] %v6434
        %v6436 = vld [vmem:[%s6391 + $0x38] sm:$0xf]
        %v6437 = vsel %vm6393, %v6373, %v6436
        %6438 = vst [vmem:[%s6391 + $0x38] sm:$0xf] %v6437
        %v6439 = vld [vmem:[%s6391 + $0x3c] sm:$0x1]
        %v6440 = vsel %vm5867, %v6374, %v6439
        %6441 = vst [vmem:[%s6391 + $0x3c] sm:$0x1] %v6440
        %v6442 = vld [vmem:[#allocation4] sm:$0xf]
        %v6443 = vld [vmem:[#allocation4 + $0x8] sm:$0xf]
        %v6444 = vld [vmem:[#allocation4 + $0x10] sm:$0xf]
        %v6445 = vld [vmem:[#allocation4 + $0x18] sm:$0xf]
        %v6446 = vld [vmem:[#allocation4 + $0x20] sm:$0xf]
        %v6447 = vld [vmem:[#allocation4 + $0x28] sm:$0xf]
        %v6448 = vld [vmem:[#allocation4 + $0x30] sm:$0xf]
        %v6449 = vld [vmem:[#allocation4 + $0x38] sm:$0xf]
        %v6458 = vunpack.c.l.b16 %v6442
        %v6459 = vunpack.c.l.b16 %v6443
        %v6460 = vunpack.c.l.b16 %v6444
        %v6461 = vunpack.c.l.b16 %v6445
        %v6462 = vunpack.c.l.b16 %v6446
        %v6463 = vunpack.c.l.b16 %v6447
        %v6464 = vunpack.c.l.b16 %v6448
        %v6465 = vunpack.c.l.b16 %v6449
        %v6466 = vpack.c.b16 %v6459, %v6458
        %v6467 = vpack.c.b16 %v6461, %v6460
        %v6468 = vpack.c.b16 %v6463, %v6462
        %v6469 = vpack.c.b16 %v6465, %v6464
        %vm6474 = vcmask 130048
        %6475 = vst.msk [vmem:[#allocation5] sm:$0xff] %vm6474, %v6466
        %6476 = vst.msk [vmem:[#allocation5 + $0x10] sm:$0xff] %vm6474, %v6467
        %6477 = vst.msk [vmem:[#allocation5 + $0x20] sm:$0xff] %vm6474, %v6468
        %6478 = vst.msk [vmem:[#allocation5 + $0x30] sm:$0xff] %vm6474, %v6469
        %v6479 = vld [vmem:[#allocation4] sm:$0xf]
        %v6480 = vld [vmem:[#allocation4 + $0x4] sm:$0x1]
        %v6481 = vld [vmem:[#allocation4 + $0x8] sm:$0xf]
        %v6482 = vld [vmem:[#allocation4 + $0xc] sm:$0x1]
        %v6483 = vld [vmem:[#allocation4 + $0x10] sm:$0xf]
        %v6484 = vld [vmem:[#allocation4 + $0x14] sm:$0x1]
        %v6485 = vld [vmem:[#allocation4 + $0x18] sm:$0xf]
        %v6486 = vld [vmem:[#allocation4 + $0x1c] sm:$0x1]
        %v6487 = vld [vmem:[#allocation4 + $0x20] sm:$0xf]
        %v6488 = vld [vmem:[#allocation4 + $0x24] sm:$0x1]
        %v6489 = vld [vmem:[#allocation4 + $0x28] sm:$0xf]
        %v6490 = vld [vmem:[#allocation4 + $0x2c] sm:$0x1]
        %v6491 = vld [vmem:[#allocation4 + $0x30] sm:$0xf]
        %v6492 = vld [vmem:[#allocation4 + $0x34] sm:$0x1]
        %v6493 = vld [vmem:[#allocation4 + $0x38] sm:$0xf]
        %v6494 = vld [vmem:[#allocation4 + $0x3c] sm:$0x1]
        %v6496 = vshrl.u32 %v6479, 16
        %v6498 = vrot.slane %v6496, 4
        %v6499 = vshll.u32 %v6479, 16
        %v6501 = vrot.slane %v6499, 5
        %v6502 = vor.u32 %v6498, %v6501
        %v6503 = vrot.slane %v6502, 4
        %v6505 = vshll.u32 %v6480, 16
        %v6507 = vrot.slane %v6505, 5
        %v6508 = vsel %vm1267, %v6503, %v6507
        %v6510 = vshrl.u32 %v6481, 16
        %v6512 = vrot.slane %v6510, 4
        %v6513 = vshll.u32 %v6481, 16
        %v6515 = vrot.slane %v6513, 5
        %v6516 = vor.u32 %v6512, %v6515
        %v6517 = vrot.slane %v6516, 4
        %v6519 = vshll.u32 %v6482, 16
        %v6521 = vrot.slane %v6519, 5
        %v6522 = vsel %vm1267, %v6517, %v6521
        %v6524 = vshrl.u32 %v6483, 16
        %v6526 = vrot.slane %v6524, 4
        %v6527 = vshll.u32 %v6483, 16
        %v6529 = vrot.slane %v6527, 5
        %v6530 = vor.u32 %v6526, %v6529
        %v6531 = vrot.slane %v6530, 4
        %v6533 = vshll.u32 %v6484, 16
        %v6535 = vrot.slane %v6533, 5
        %v6536 = vsel %vm1267, %v6531, %v6535
        %v6538 = vshrl.u32 %v6485, 16
        %v6540 = vrot.slane %v6538, 4
        %v6541 = vshll.u32 %v6485, 16
        %v6543 = vrot.slane %v6541, 5
        %v6544 = vor.u32 %v6540, %v6543
        %v6545 = vrot.slane %v6544, 4
        %v6547 = vshll.u32 %v6486, 16
        %v6549 = vrot.slane %v6547, 5
        %v6550 = vsel %vm1267, %v6545, %v6549
        %v6552 = vshrl.u32 %v6487, 16
        %v6554 = vrot.slane %v6552, 4
        %v6555 = vshll.u32 %v6487, 16
        %v6557 = vrot.slane %v6555, 5
        %v6558 = vor.u32 %v6554, %v6557
        %v6559 = vrot.slane %v6558, 4
        %v6561 = vshll.u32 %v6488, 16
        %v6563 = vrot.slane %v6561, 5
        %v6564 = vsel %vm1267, %v6559, %v6563
        %v6566 = vshrl.u32 %v6489, 16
        %v6568 = vrot.slane %v6566, 4
        %v6569 = vshll.u32 %v6489, 16
        %v6571 = vrot.slane %v6569, 5
        %v6572 = vor.u32 %v6568, %v6571
        %v6573 = vrot.slane %v6572, 4
        %v6575 = vshll.u32 %v6490, 16
        %v6577 = vrot.slane %v6575, 5
        %v6578 = vsel %vm1267, %v6573, %v6577
        %v6580 = vshrl.u32 %v6491, 16
        %v6582 = vrot.slane %v6580, 4
        %v6583 = vshll.u32 %v6491, 16
        %v6585 = vrot.slane %v6583, 5
        %v6586 = vor.u32 %v6582, %v6585
        %v6587 = vrot.slane %v6586, 4
        %v6589 = vshll.u32 %v6492, 16
        %v6591 = vrot.slane %v6589, 5
        %v6592 = vsel %vm1267, %v6587, %v6591
        %v6594 = vshrl.u32 %v6493, 16
        %v6596 = vrot.slane %v6594, 4
        %v6597 = vshll.u32 %v6493, 16
        %v6599 = vrot.slane %v6597, 5
        %v6600 = vor.u32 %v6596, %v6599
        %v6601 = vrot.slane %v6600, 4
        %v6603 = vshll.u32 %v6494, 16
        %v6605 = vrot.slane %v6603, 5
        %v6606 = vsel %vm1267, %v6601, %v6605
        %v6607 = vunpack.c.l.b16 %v6508
        %v6608 = vunpack.c.l.b16 %v6522
        %v6609 = vunpack.c.l.b16 %v6536
        %v6610 = vunpack.c.l.b16 %v6550
        %v6611 = vunpack.c.l.b16 %v6564
        %v6612 = vunpack.c.l.b16 %v6578
        %v6613 = vunpack.c.l.b16 %v6592
        %v6614 = vunpack.c.l.b16 %v6606
        %v6615 = vpack.c.b16 %v6608, %v6607
        %v6616 = vpack.c.b16 %v6610, %v6609
        %v6617 = vpack.c.b16 %v6612, %v6611
        %v6618 = vpack.c.b16 %v6614, %v6613
        %6619 = vrot.lane.b32.xlu0 %v6615, 16
        %v6620 = vpop.permute.xlu0 %6619
        %6621 = vrot.lane.b32.xlu0 %v6616, 16
        %v6622 = vpop.permute.xlu0 %6621
        %6623 = vrot.lane.b32.xlu0 %v6617, 16
        %v6624 = vpop.permute.xlu0 %6623
        %6625 = vrot.lane.b32.xlu0 %v6618, 16
        %v6626 = vpop.permute.xlu0 %6625
        %vm6631 = vcmask 261248
        %6632 = vst.msk [vmem:[#allocation5] sm:$0xff] %vm6631, %v6620
        %6633 = vst.msk [vmem:[#allocation5 + $0x10] sm:$0xff] %vm6631, %v6622
        %6634 = vst.msk [vmem:[#allocation5 + $0x20] sm:$0xff] %vm6631, %v6624
        %6635 = vst.msk [vmem:[#allocation5 + $0x30] sm:$0xff] %vm6631, %v6626
        %v6636 = vld [vmem:[#allocation4] sm:$0xe]
        %v6637 = vld [vmem:[#allocation4 + $0x4] sm:$0x1]
        %v6638 = vld [vmem:[#allocation4 + $0x8] sm:$0xe]
        %v6639 = vld [vmem:[#allocation4 + $0xc] sm:$0x1]
        %v6640 = vld [vmem:[#allocation4 + $0x10] sm:$0xe]
        %v6641 = vld [vmem:[#allocation4 + $0x14] sm:$0x1]
        %v6642 = vld [vmem:[#allocation4 + $0x18] sm:$0xe]
        %v6643 = vld [vmem:[#allocation4 + $0x1c] sm:$0x1]
        %v6644 = vld [vmem:[#allocation4 + $0x20] sm:$0xe]
        %v6645 = vld [vmem:[#allocation4 + $0x24] sm:$0x1]
        %v6646 = vld [vmem:[#allocation4 + $0x28] sm:$0xe]
        %v6647 = vld [vmem:[#allocation4 + $0x2c] sm:$0x1]
        %v6648 = vld [vmem:[#allocation4 + $0x30] sm:$0xe]
        %v6649 = vld [vmem:[#allocation4 + $0x34] sm:$0x1]
        %v6650 = vld [vmem:[#allocation4 + $0x38] sm:$0xe]
        %v6651 = vld [vmem:[#allocation4 + $0x3c] sm:$0x1]
        %v6668 = vrot.slane %v6636, 5
        %v6669 = vrot.slane %v6668, 4
        %v6670 = vrot.slane %v6637, 5
        %v6671 = vsel %vm1863, %v6669, %v6670
        %v6672 = vrot.slane %v6638, 5
        %v6673 = vrot.slane %v6672, 4
        %v6674 = vrot.slane %v6639, 5
        %v6675 = vsel %vm1863, %v6673, %v6674
        %v6676 = vrot.slane %v6640, 5
        %v6677 = vrot.slane %v6676, 4
        %v6678 = vrot.slane %v6641, 5
        %v6679 = vsel %vm1863, %v6677, %v6678
        %v6680 = vrot.slane %v6642, 5
        %v6681 = vrot.slane %v6680, 4
        %v6682 = vrot.slane %v6643, 5
        %v6683 = vsel %vm1863, %v6681, %v6682
        %v6684 = vrot.slane %v6644, 5
        %v6685 = vrot.slane %v6684, 4
        %v6686 = vrot.slane %v6645, 5
        %v6687 = vsel %vm1863, %v6685, %v6686
        %v6688 = vrot.slane %v6646, 5
        %v6689 = vrot.slane %v6688, 4
        %v6690 = vrot.slane %v6647, 5
        %v6691 = vsel %vm1863, %v6689, %v6690
        %v6692 = vrot.slane %v6648, 5
        %v6693 = vrot.slane %v6692, 4
        %v6694 = vrot.slane %v6649, 5
        %v6695 = vsel %vm1863, %v6693, %v6694
        %v6696 = vrot.slane %v6650, 5
        %v6697 = vrot.slane %v6696, 4
        %v6698 = vrot.slane %v6651, 5
        %v6699 = vsel %vm1863, %v6697, %v6698
        %v6700 = vunpack.c.l.b16 %v6671
        %v6701 = vunpack.c.l.b16 %v6675
        %v6702 = vunpack.c.l.b16 %v6679
        %v6703 = vunpack.c.l.b16 %v6683
        %v6704 = vunpack.c.l.b16 %v6687
        %v6705 = vunpack.c.l.b16 %v6691
        %v6706 = vunpack.c.l.b16 %v6695
        %v6707 = vunpack.c.l.b16 %v6699
        %v6708 = vpack.c.b16 %v6701, %v6700
        %v6709 = vpack.c.b16 %v6703, %v6702
        %v6710 = vpack.c.b16 %v6705, %v6704
        %v6711 = vpack.c.b16 %v6707, %v6706
        %6712 = vrot.lane.b32.xlu0 %v6708, 32
        %v6713 = vpop.permute.xlu0 %6712
        %6714 = vrot.lane.b32.xlu0 %v6709, 32
        %v6715 = vpop.permute.xlu0 %6714
        %6716 = vrot.lane.b32.xlu0 %v6710, 32
        %v6717 = vpop.permute.xlu0 %6716
        %6718 = vrot.lane.b32.xlu0 %v6711, 32
        %v6719 = vpop.permute.xlu0 %6718
        %vm6724 = vcmask 392448
        %6725 = vst.msk [vmem:[#allocation5] sm:$0xff] %vm6724, %v6713
        %6726 = vst.msk [vmem:[#allocation5 + $0x10] sm:$0xff] %vm6724, %v6715
        %6727 = vst.msk [vmem:[#allocation5 + $0x20] sm:$0xff] %vm6724, %v6717
        %6728 = vst.msk [vmem:[#allocation5 + $0x30] sm:$0xff] %vm6724, %v6719
        %v6729 = vld [vmem:[%s6391] sm:$0xf]
        %v6730 = vld [vmem:[%s6391 + $0x8] sm:$0xf]
        %v6731 = vld [vmem:[%s6391 + $0x10] sm:$0xf]
        %v6732 = vld [vmem:[%s6391 + $0x18] sm:$0xf]
        %v6733 = vld [vmem:[%s6391 + $0x20] sm:$0xf]
        %v6734 = vld [vmem:[%s6391 + $0x28] sm:$0xf]
        %v6735 = vld [vmem:[%s6391 + $0x30] sm:$0xf]
        %v6736 = vld [vmem:[%s6391 + $0x38] sm:$0xf]
        %v6745 = vunpack.c.l.b16 %v6729
        %v6746 = vunpack.c.l.b16 %v6730
        %v6747 = vunpack.c.l.b16 %v6731
        %v6748 = vunpack.c.l.b16 %v6732
        %v6749 = vunpack.c.l.b16 %v6733
        %v6750 = vunpack.c.l.b16 %v6734
        %v6751 = vunpack.c.l.b16 %v6735
        %v6752 = vunpack.c.l.b16 %v6736
        %v6753 = vpack.c.b16 %v6746, %v6745
        %v6754 = vpack.c.b16 %v6748, %v6747
        %v6755 = vpack.c.b16 %v6750, %v6749
        %v6756 = vpack.c.b16 %v6752, %v6751
        %6757 = vrot.lane.b32.xlu0 %v6753, 48
        %v6758 = vpop.permute.xlu0 %6757
        %6759 = vrot.lane.b32.xlu0 %v6754, 48
        %v6760 = vpop.permute.xlu0 %6759
        %6761 = vrot.lane.b32.xlu0 %v6755, 48
        %v6762 = vpop.permute.xlu0 %6761
        %6763 = vrot.lane.b32.xlu0 %v6756, 48
        %v6764 = vpop.permute.xlu0 %6763
        %vm6769 = vcmask 523648
        %6770 = vst.msk [vmem:[#allocation5] sm:$0xff] %vm6769, %v6758
        %6771 = vst.msk [vmem:[#allocation5 + $0x10] sm:$0xff] %vm6769, %v6760
        %6772 = vst.msk [vmem:[#allocation5 + $0x20] sm:$0xff] %vm6769, %v6762
        %6773 = vst.msk [vmem:[#allocation5 + $0x30] sm:$0xff] %vm6769, %v6764
        %v6774 = vld [vmem:[%s6391] sm:$0xf]
        %v6775 = vld [vmem:[%s6391 + $0x4] sm:$0x1]
        %v6776 = vld [vmem:[%s6391 + $0x8] sm:$0xf]
        %v6777 = vld [vmem:[%s6391 + $0xc] sm:$0x1]
        %v6778 = vld [vmem:[%s6391 + $0x10] sm:$0xf]
        %v6779 = vld [vmem:[%s6391 + $0x14] sm:$0x1]
        %v6780 = vld [vmem:[%s6391 + $0x18] sm:$0xf]
        %v6781 = vld [vmem:[%s6391 + $0x1c] sm:$0x1]
        %v6782 = vld [vmem:[%s6391 + $0x20] sm:$0xf]
        %v6783 = vld [vmem:[%s6391 + $0x24] sm:$0x1]
        %v6784 = vld [vmem:[%s6391 + $0x28] sm:$0xf]
        %v6785 = vld [vmem:[%s6391 + $0x2c] sm:$0x1]
        %v6786 = vld [vmem:[%s6391 + $0x30] sm:$0xf]
        %v6787 = vld [vmem:[%s6391 + $0x34] sm:$0x1]
        %v6788 = vld [vmem:[%s6391 + $0x38] sm:$0xf]
        %v6789 = vld [vmem:[%s6391 + $0x3c] sm:$0x1]
        %v6791 = vshrl.u32 %v6774, 16
        %v6793 = vrot.slane %v6791, 4
        %v6794 = vshll.u32 %v6774, 16
        %v6796 = vrot.slane %v6794, 5
        %v6797 = vor.u32 %v6793, %v6796
        %v6798 = vrot.slane %v6797, 4
        %v6800 = vshll.u32 %v6775, 16
        %v6802 = vrot.slane %v6800, 5
        %v6803 = vsel %vm1267, %v6798, %v6802
        %v6805 = vshrl.u32 %v6776, 16
        %v6807 = vrot.slane %v6805, 4
        %v6808 = vshll.u32 %v6776, 16
        %v6810 = vrot.slane %v6808, 5
        %v6811 = vor.u32 %v6807, %v6810
        %v6812 = vrot.slane %v6811, 4
        %v6814 = vshll.u32 %v6777, 16
        %v6816 = vrot.slane %v6814, 5
        %v6817 = vsel %vm1267, %v6812, %v6816
        %v6819 = vshrl.u32 %v6778, 16
        %v6821 = vrot.slane %v6819, 4
        %v6822 = vshll.u32 %v6778, 16
        %v6824 = vrot.slane %v6822, 5
        %v6825 = vor.u32 %v6821, %v6824
        %v6826 = vrot.slane %v6825, 4
        %v6828 = vshll.u32 %v6779, 16
        %v6830 = vrot.slane %v6828, 5
        %v6831 = vsel %vm1267, %v6826, %v6830
        %v6833 = vshrl.u32 %v6780, 16
        %v6835 = vrot.slane %v6833, 4
        %v6836 = vshll.u32 %v6780, 16
        %v6838 = vrot.slane %v6836, 5
        %v6839 = vor.u32 %v6835, %v6838
        %v6840 = vrot.slane %v6839, 4
        %v6842 = vshll.u32 %v6781, 16
        %v6844 = vrot.slane %v6842, 5
        %v6845 = vsel %vm1267, %v6840, %v6844
        %v6847 = vshrl.u32 %v6782, 16
        %v6849 = vrot.slane %v6847, 4
        %v6850 = vshll.u32 %v6782, 16
        %v6852 = vrot.slane %v6850, 5
        %v6853 = vor.u32 %v6849, %v6852
        %v6854 = vrot.slane %v6853, 4
        %v6856 = vshll.u32 %v6783, 16
        %v6858 = vrot.slane %v6856, 5
        %v6859 = vsel %vm1267, %v6854, %v6858
        %v6861 = vshrl.u32 %v6784, 16
        %v6863 = vrot.slane %v6861, 4
        %v6864 = vshll.u32 %v6784, 16
        %v6866 = vrot.slane %v6864, 5
        %v6867 = vor.u32 %v6863, %v6866
        %v6868 = vrot.slane %v6867, 4
        %v6870 = vshll.u32 %v6785, 16
        %v6872 = vrot.slane %v6870, 5
        %v6873 = vsel %vm1267, %v6868, %v6872
        %v6875 = vshrl.u32 %v6786, 16
        %v6877 = vrot.slane %v6875, 4
        %v6878 = vshll.u32 %v6786, 16
        %v6880 = vrot.slane %v6878, 5
        %v6881 = vor.u32 %v6877, %v6880
        %v6882 = vrot.slane %v6881, 4
        %v6884 = vshll.u32 %v6787, 16
        %v6886 = vrot.slane %v6884, 5
        %v6887 = vsel %vm1267, %v6882, %v6886
        %v6889 = vshrl.u32 %v6788, 16
        %v6891 = vrot.slane %v6889, 4
        %v6892 = vshll.u32 %v6788, 16
        %v6894 = vrot.slane %v6892, 5
        %v6895 = vor.u32 %v6891, %v6894
        %v6896 = vrot.slane %v6895, 4
        %v6898 = vshll.u32 %v6789, 16
        %v6900 = vrot.slane %v6898, 5
        %v6901 = vsel %vm1267, %v6896, %v6900
        %v6902 = vunpack.c.l.b16 %v6803
        %v6903 = vunpack.c.l.b16 %v6817
        %v6904 = vunpack.c.l.b16 %v6831
        %v6905 = vunpack.c.l.b16 %v6845
        %v6906 = vunpack.c.l.b16 %v6859
        %v6907 = vunpack.c.l.b16 %v6873
        %v6908 = vunpack.c.l.b16 %v6887
        %v6909 = vunpack.c.l.b16 %v6901
        %v6910 = vpack.c.b16 %v6903, %v6902
        %v6911 = vpack.c.b16 %v6905, %v6904
        %v6912 = vpack.c.b16 %v6907, %v6906
        %v6913 = vpack.c.b16 %v6909, %v6908
        %6914 = vrot.lane.b32.xlu0 %v6910, 64
        %v6915 = vpop.permute.xlu0 %6914
        %6916 = vrot.lane.b32.xlu0 %v6911, 64
        %v6917 = vpop.permute.xlu0 %6916
        %6918 = vrot.lane.b32.xlu0 %v6912, 64
        %v6919 = vpop.permute.xlu0 %6918
        %6920 = vrot.lane.b32.xlu0 %v6913, 64
        %v6921 = vpop.permute.xlu0 %6920
        %vm6926 = vcmask 654848
        %6927 = vst.msk [vmem:[#allocation5] sm:$0xff] %vm6926, %v6915
        %6928 = vst.msk [vmem:[#allocation5 + $0x10] sm:$0xff] %vm6926, %v6917
        %6929 = vst.msk [vmem:[#allocation5 + $0x20] sm:$0xff] %vm6926, %v6919
        %6930 = vst.msk [vmem:[#allocation5 + $0x30] sm:$0xff] %vm6926, %v6921
        %v6931 = vld [vmem:[%s6391] sm:$0xe]
        %v6932 = vld [vmem:[%s6391 + $0x4] sm:$0x1]
        %v6933 = vld [vmem:[%s6391 + $0x8] sm:$0xe]
        %v6934 = vld [vmem:[%s6391 + $0xc] sm:$0x1]
        %v6935 = vld [vmem:[%s6391 + $0x10] sm:$0xe]
        %v6936 = vld [vmem:[%s6391 + $0x14] sm:$0x1]
        %v6937 = vld [vmem:[%s6391 + $0x18] sm:$0xe]
        %v6938 = vld [vmem:[%s6391 + $0x1c] sm:$0x1]
        %v6939 = vld [vmem:[%s6391 + $0x20] sm:$0xe]
        %v6940 = vld [vmem:[%s6391 + $0x24] sm:$0x1]
        %v6941 = vld [vmem:[%s6391 + $0x28] sm:$0xe]
        %v6942 = vld [vmem:[%s6391 + $0x2c] sm:$0x1]
        %v6943 = vld [vmem:[%s6391 + $0x30] sm:$0xe]
        %v6944 = vld [vmem:[%s6391 + $0x34] sm:$0x1]
        %v6945 = vld [vmem:[%s6391 + $0x38] sm:$0xe]
        %v6946 = vld [vmem:[%s6391 + $0x3c] sm:$0x1]
        %v6963 = vrot.slane %v6931, 5
        %v6964 = vrot.slane %v6963, 4
        %v6965 = vrot.slane %v6932, 5
        %v6966 = vsel %vm1863, %v6964, %v6965
        %v6967 = vrot.slane %v6933, 5
        %v6968 = vrot.slane %v6967, 4
        %v6969 = vrot.slane %v6934, 5
        %v6970 = vsel %vm1863, %v6968, %v6969
        %v6971 = vrot.slane %v6935, 5
        %v6972 = vrot.slane %v6971, 4
        %v6973 = vrot.slane %v6936, 5
        %v6974 = vsel %vm1863, %v6972, %v6973
        %v6975 = vrot.slane %v6937, 5
        %v6976 = vrot.slane %v6975, 4
        %v6977 = vrot.slane %v6938, 5
        %v6978 = vsel %vm1863, %v6976, %v6977
        %v6979 = vrot.slane %v6939, 5
        %v6980 = vrot.slane %v6979, 4
        %v6981 = vrot.slane %v6940, 5
        %v6982 = vsel %vm1863, %v6980, %v6981
        %v6983 = vrot.slane %v6941, 5
        %v6984 = vrot.slane %v6983, 4
        %v6985 = vrot.slane %v6942, 5
        %v6986 = vsel %vm1863, %v6984, %v6985
        %v6987 = vrot.slane %v6943, 5
        %v6988 = vrot.slane %v6987, 4
        %v6989 = vrot.slane %v6944, 5
        %v6990 = vsel %vm1863, %v6988, %v6989
        %v6991 = vrot.slane %v6945, 5
        %v6992 = vrot.slane %v6991, 4
        %v6993 = vrot.slane %v6946, 5
        %v6994 = vsel %vm1863, %v6992, %v6993
        %v6995 = vunpack.c.l.b16 %v6966
        %v6996 = vunpack.c.l.b16 %v6970
        %v6997 = vunpack.c.l.b16 %v6974
        %v6998 = vunpack.c.l.b16 %v6978
        %v6999 = vunpack.c.l.b16 %v6982
        %v7000 = vunpack.c.l.b16 %v6986
        %v7001 = vunpack.c.l.b16 %v6990
        %v7002 = vunpack.c.l.b16 %v6994
        %v7003 = vpack.c.b16 %v6996, %v6995
        %v7004 = vpack.c.b16 %v6998, %v6997
        %v7005 = vpack.c.b16 %v7000, %v6999
        %v7006 = vpack.c.b16 %v7002, %v7001
        %7007 = vrot.lane.b32.xlu0 %v7003, 80
        %v7008 = vpop.permute.xlu0 %7007
        %7009 = vrot.lane.b32.xlu0 %v7004, 80
        %v7010 = vpop.permute.xlu0 %7009
        %7011 = vrot.lane.b32.xlu0 %v7005, 80
        %v7012 = vpop.permute.xlu0 %7011
        %7013 = vrot.lane.b32.xlu0 %v7006, 80
        %v7014 = vpop.permute.xlu0 %7013
        %vm7019 = vcmask 786048
        %7020 = vst.msk [vmem:[#allocation5] sm:$0xff] %vm7019, %v7008
        %7021 = vst.msk [vmem:[#allocation5 + $0x10] sm:$0xff] %vm7019, %v7010
        %7022 = vst.msk [vmem:[#allocation5 + $0x20] sm:$0xff] %vm7019, %v7012
        %7023 = vst.msk [vmem:[#allocation5 + $0x30] sm:$0xff] %vm7019, %v7014
        %s7024 = scalar_lea.vmem [#allocation4], 16
        %v7025 = vld [vmem:[%s7024] sm:$0xf]
        %v7026 = vld [vmem:[%s7024 + $0x8] sm:$0xf]
        %v7027 = vld [vmem:[%s7024 + $0x10] sm:$0xf]
        %v7028 = vld [vmem:[%s7024 + $0x18] sm:$0xf]
        %v7029 = vld [vmem:[%s7024 + $0x20] sm:$0xf]
        %v7030 = vld [vmem:[%s7024 + $0x28] sm:$0xf]
        %v7031 = vld [vmem:[%s7024 + $0x30] sm:$0xf]
        %v7032 = vld [vmem:[%s7024 + $0x38] sm:$0xf]
        %v7041 = vunpack.c.l.b16 %v7025
        %v7042 = vunpack.c.l.b16 %v7026
        %v7043 = vunpack.c.l.b16 %v7027
        %v7044 = vunpack.c.l.b16 %v7028
        %v7045 = vunpack.c.l.b16 %v7029
        %v7046 = vunpack.c.l.b16 %v7030
        %v7047 = vunpack.c.l.b16 %v7031
        %v7048 = vunpack.c.l.b16 %v7032
        %v7049 = vpack.c.b16 %v7042, %v7041
        %v7050 = vpack.c.b16 %v7044, %v7043
        %v7051 = vpack.c.b16 %v7046, %v7045
        %v7052 = vpack.c.b16 %v7048, %v7047
        %7053 = vrot.lane.b32.xlu0 %v7049, 96
        %v7054 = vpop.permute.xlu0 %7053
        %7055 = vrot.lane.b32.xlu0 %v7050, 96
        %v7056 = vpop.permute.xlu0 %7055
        %7057 = vrot.lane.b32.xlu0 %v7051, 96
        %v7058 = vpop.permute.xlu0 %7057
        %7059 = vrot.lane.b32.xlu0 %v7052, 96
        %v7060 = vpop.permute.xlu0 %7059
        %vm7065 = vcmask 917248
        %7066 = vst.msk [vmem:[#allocation5] sm:$0xff] %vm7065, %v7054
        %7067 = vst.msk [vmem:[#allocation5 + $0x10] sm:$0xff] %vm7065, %v7056
        %7068 = vst.msk [vmem:[#allocation5 + $0x20] sm:$0xff] %vm7065, %v7058
        %7069 = vst.msk [vmem:[#allocation5 + $0x30] sm:$0xff] %vm7065, %v7060
        %v7070 = vld [vmem:[%s7024] sm:$0xf]
        %v7071 = vld [vmem:[%s7024 + $0x4] sm:$0x1]
        %v7072 = vld [vmem:[%s7024 + $0x8] sm:$0xf]
        %v7073 = vld [vmem:[%s7024 + $0xc] sm:$0x1]
        %v7074 = vld [vmem:[%s7024 + $0x10] sm:$0xf]
        %v7075 = vld [vmem:[%s7024 + $0x14] sm:$0x1]
        %v7076 = vld [vmem:[%s7024 + $0x18] sm:$0xf]
        %v7077 = vld [vmem:[%s7024 + $0x1c] sm:$0x1]
        %v7078 = vld [vmem:[%s7024 + $0x20] sm:$0xf]
        %v7079 = vld [vmem:[%s7024 + $0x24] sm:$0x1]
        %v7080 = vld [vmem:[%s7024 + $0x28] sm:$0xf]
        %v7081 = vld [vmem:[%s7024 + $0x2c] sm:$0x1]
        %v7082 = vld [vmem:[%s7024 + $0x30] sm:$0xf]
        %v7083 = vld [vmem:[%s7024 + $0x34] sm:$0x1]
        %v7084 = vld [vmem:[%s7024 + $0x38] sm:$0xf]
        %v7085 = vld [vmem:[%s7024 + $0x3c] sm:$0x1]
        %v7087 = vshrl.u32 %v7070, 16
        %v7089 = vrot.slane %v7087, 4
        %v7090 = vshll.u32 %v7070, 16
        %v7092 = vrot.slane %v7090, 5
        %v7093 = vor.u32 %v7089, %v7092
        %v7094 = vrot.slane %v7093, 4
        %v7096 = vshll.u32 %v7071, 16
        %v7098 = vrot.slane %v7096, 5
        %v7099 = vsel %vm1267, %v7094, %v7098
        %v7101 = vshrl.u32 %v7072, 16
        %v7103 = vrot.slane %v7101, 4
        %v7104 = vshll.u32 %v7072, 16
        %v7106 = vrot.slane %v7104, 5
        %v7107 = vor.u32 %v7103, %v7106
        %v7108 = vrot.slane %v7107, 4
        %v7110 = vshll.u32 %v7073, 16
        %v7112 = vrot.slane %v7110, 5
        %v7113 = vsel %vm1267, %v7108, %v7112
        %v7115 = vshrl.u32 %v7074, 16
        %v7117 = vrot.slane %v7115, 4
        %v7118 = vshll.u32 %v7074, 16
        %v7120 = vrot.slane %v7118, 5
        %v7121 = vor.u32 %v7117, %v7120
        %v7122 = vrot.slane %v7121, 4
        %v7124 = vshll.u32 %v7075, 16
        %v7126 = vrot.slane %v7124, 5
        %v7127 = vsel %vm1267, %v7122, %v7126
        %v7129 = vshrl.u32 %v7076, 16
        %v7131 = vrot.slane %v7129, 4
        %v7132 = vshll.u32 %v7076, 16
        %v7134 = vrot.slane %v7132, 5
        %v7135 = vor.u32 %v7131, %v7134
        %v7136 = vrot.slane %v7135, 4
        %v7138 = vshll.u32 %v7077, 16
        %v7140 = vrot.slane %v7138, 5
        %v7141 = vsel %vm1267, %v7136, %v7140
        %v7143 = vshrl.u32 %v7078, 16
        %v7145 = vrot.slane %v7143, 4
        %v7146 = vshll.u32 %v7078, 16
        %v7148 = vrot.slane %v7146, 5
        %v7149 = vor.u32 %v7145, %v7148
        %v7150 = vrot.slane %v7149, 4
        %v7152 = vshll.u32 %v7079, 16
        %v7154 = vrot.slane %v7152, 5
        %v7155 = vsel %vm1267, %v7150, %v7154
        %v7157 = vshrl.u32 %v7080, 16
        %v7159 = vrot.slane %v7157, 4
        %v7160 = vshll.u32 %v7080, 16
        %v7162 = vrot.slane %v7160, 5
        %v7163 = vor.u32 %v7159, %v7162
        %v7164 = vrot.slane %v7163, 4
        %v7166 = vshll.u32 %v7081, 16
        %v7168 = vrot.slane %v7166, 5
        %v7169 = vsel %vm1267, %v7164, %v7168
        %v7171 = vshrl.u32 %v7082, 16
        %v7173 = vrot.slane %v7171, 4
        %v7174 = vshll.u32 %v7082, 16
        %v7176 = vrot.slane %v7174, 5
        %v7177 = vor.u32 %v7173, %v7176
        %v7178 = vrot.slane %v7177, 4
        %v7180 = vshll.u32 %v7083, 16
        %v7182 = vrot.slane %v7180, 5
        %v7183 = vsel %vm1267, %v7178, %v7182
        %v7185 = vshrl.u32 %v7084, 16
        %v7187 = vrot.slane %v7185, 4
        %v7188 = vshll.u32 %v7084, 16
        %v7190 = vrot.slane %v7188, 5
        %v7191 = vor.u32 %v7187, %v7190
        %v7192 = vrot.slane %v7191, 4
        %v7194 = vshll.u32 %v7085, 16
        %v7196 = vrot.slane %v7194, 5
        %v7197 = vsel %vm1267, %v7192, %v7196
        %v7198 = vunpack.c.l.b16 %v7099
        %v7199 = vunpack.c.l.b16 %v7113
        %v7200 = vunpack.c.l.b16 %v7127
        %v7201 = vunpack.c.l.b16 %v7141
        %v7202 = vunpack.c.l.b16 %v7155
        %v7203 = vunpack.c.l.b16 %v7169
        %v7204 = vunpack.c.l.b16 %v7183
        %v7205 = vunpack.c.l.b16 %v7197
        %v7206 = vpack.c.b16 %v7199, %v7198
        %v7207 = vpack.c.b16 %v7201, %v7200
        %v7208 = vpack.c.b16 %v7203, %v7202
        %v7209 = vpack.c.b16 %v7205, %v7204
        %7210 = vrot.lane.b32.xlu0 %v7206, 112
        %v7211 = vpop.permute.xlu0 %7210
        %7212 = vrot.lane.b32.xlu0 %v7207, 112
        %v7213 = vpop.permute.xlu0 %7212
        %7214 = vrot.lane.b32.xlu0 %v7208, 112
        %v7215 = vpop.permute.xlu0 %7214
        %7216 = vrot.lane.b32.xlu0 %v7209, 112
        %v7217 = vpop.permute.xlu0 %7216
        %vm7222 = vcmask 1048448
        %7223 = vst.msk [vmem:[#allocation5] sm:$0xff] %vm7222, %v7211
        %7224 = vst.msk [vmem:[#allocation5 + $0x10] sm:$0xff] %vm7222, %v7213
        %7225 = vst.msk [vmem:[#allocation5 + $0x20] sm:$0xff] %vm7222, %v7215
        %7226 = vst.msk [vmem:[#allocation5 + $0x30] sm:$0xff] %vm7222, %v7217
        %v7227 = vld [vmem:[%s7024] sm:$0xe]
        %v7228 = vld [vmem:[%s7024 + $0x4] sm:$0x1]
        %v7229 = vld [vmem:[%s7024 + $0x8] sm:$0xe]
        %v7230 = vld [vmem:[%s7024 + $0xc] sm:$0x1]
        %v7231 = vld [vmem:[%s7024 + $0x10] sm:$0xe]
        %v7232 = vld [vmem:[%s7024 + $0x14] sm:$0x1]
        %v7233 = vld [vmem:[%s7024 + $0x18] sm:$0xe]
        %v7234 = vld [vmem:[%s7024 + $0x1c] sm:$0x1]
        %v7235 = vld [vmem:[%s7024 + $0x20] sm:$0xe]
        %v7236 = vld [vmem:[%s7024 + $0x24] sm:$0x1]
        %v7237 = vld [vmem:[%s7024 + $0x28] sm:$0xe]
        %v7238 = vld [vmem:[%s7024 + $0x2c] sm:$0x1]
        %v7239 = vld [vmem:[%s7024 + $0x30] sm:$0xe]
        %v7240 = vld [vmem:[%s7024 + $0x34] sm:$0x1]
        %v7241 = vld [vmem:[%s7024 + $0x38] sm:$0xe]
        %v7242 = vld [vmem:[%s7024 + $0x3c] sm:$0x1]
        %v7259 = vrot.slane %v7227, 5
        %v7260 = vrot.slane %v7259, 4
        %v7261 = vrot.slane %v7228, 5
        %v7262 = vsel %vm1863, %v7260, %v7261
        %v7263 = vrot.slane %v7229, 5
        %v7264 = vrot.slane %v7263, 4
        %v7265 = vrot.slane %v7230, 5
        %v7266 = vsel %vm1863, %v7264, %v7265
        %v7267 = vrot.slane %v7231, 5
        %v7268 = vrot.slane %v7267, 4
        %v7269 = vrot.slane %v7232, 5
        %v7270 = vsel %vm1863, %v7268, %v7269
        %v7271 = vrot.slane %v7233, 5
        %v7272 = vrot.slane %v7271, 4
        %v7273 = vrot.slane %v7234, 5
        %v7274 = vsel %vm1863, %v7272, %v7273
        %v7275 = vrot.slane %v7235, 5
        %v7276 = vrot.slane %v7275, 4
        %v7277 = vrot.slane %v7236, 5
        %v7278 = vsel %vm1863, %v7276, %v7277
        %v7279 = vrot.slane %v7237, 5
        %v7280 = vrot.slane %v7279, 4
        %v7281 = vrot.slane %v7238, 5
        %v7282 = vsel %vm1863, %v7280, %v7281
        %v7283 = vrot.slane %v7239, 5
        %v7284 = vrot.slane %v7283, 4
        %v7285 = vrot.slane %v7240, 5
        %v7286 = vsel %vm1863, %v7284, %v7285
        %v7287 = vrot.slane %v7241, 5
        %v7288 = vrot.slane %v7287, 4
        %v7289 = vrot.slane %v7242, 5
        %v7290 = vsel %vm1863, %v7288, %v7289
        %v7291 = vunpack.c.l.b16 %v7262
        %v7292 = vunpack.c.l.b16 %v7266
        %v7293 = vunpack.c.l.b16 %v7270
        %v7294 = vunpack.c.l.b16 %v7274
        %v7295 = vunpack.c.l.b16 %v7278
        %v7296 = vunpack.c.l.b16 %v7282
        %v7297 = vunpack.c.l.b16 %v7286
        %v7298 = vunpack.c.l.b16 %v7290
        %v7299 = vpack.c.b16 %v7292, %v7291
        %v7300 = vpack.c.b16 %v7294, %v7293
        %v7301 = vpack.c.b16 %v7296, %v7295
        %v7302 = vpack.c.b16 %v7298, %v7297
        %7307 = vst.msk [vmem:[#allocation5 + $0x8] sm:$0xff] %vm6474, %v7299
        %7308 = vst.msk [vmem:[#allocation5 + $0x18] sm:$0xff] %vm6474, %v7300
        %7309 = vst.msk [vmem:[#allocation5 + $0x28] sm:$0xff] %vm6474, %v7301
        %7310 = vst.msk [vmem:[#allocation5 + $0x38] sm:$0xff] %vm6474, %v7302
        %v7311 = vld [vmem:[#allocation5] sm:$0xff]
        %v7312 = vld [vmem:[#allocation5 + $0x8] sm:$0xff]
        %v7313 = vld [vmem:[#allocation5 + $0x10] sm:$0xff]
        %v7314 = vld [vmem:[#allocation5 + $0x18] sm:$0xff]
        %v7315 = vld [vmem:[#allocation5 + $0x20] sm:$0xff]
        %v7316 = vld [vmem:[#allocation5 + $0x28] sm:$0xff]
        %v7317 = vld [vmem:[#allocation5 + $0x30] sm:$0xff]
        %v7318 = vld [vmem:[#allocation5 + $0x38] sm:$0xff]
        %v7319 = vld [vmem:[%s3] sm:$0xf]
        %v7320 = vld [vmem:[%s3 + $0x4] sm:$0xf]
        %v7321 = vld [vmem:[%s3 + $0x8] sm:$0xf]
        %v7322 = vld [vmem:[%s3 + $0xc] sm:$0xf]
        %v7323 = vld [vmem:[%s3 + $0x10] sm:$0xf]
        %v7324 = vld [vmem:[%s3 + $0x14] sm:$0xf]
        %v7325 = vld [vmem:[%s3 + $0x18] sm:$0xf]
        %v7326 = vld [vmem:[%s3 + $0x1c] sm:$0xf]
        %v7327 = vld [vmem:[%s3 + $0x20] sm:$0xf]
        %v7328 = vld [vmem:[%s3 + $0x24] sm:$0xf]
        %v7329 = vld [vmem:[%s3 + $0x28] sm:$0xf]
        %v7330 = vld [vmem:[%s3 + $0x2c] sm:$0xf]
        %v7331 = vld [vmem:[%s3 + $0x30] sm:$0xf]
        %v7332 = vld [vmem:[%s3 + $0x34] sm:$0xf]
        %v7333 = vld [vmem:[%s3 + $0x38] sm:$0xf]
        %v7334 = vld [vmem:[%s3 + $0x3c] sm:$0xf]
        %v7335 = vld [vmem:[%s3 + $0x40] sm:$0xf]
        %v7336 = vld [vmem:[%s3 + $0x44] sm:$0xf]
        %v7355 = vunpack.c.l.b16 %v7319
        %v7356 = vunpack.c.l.b16 %v7320
        %v7357 = vunpack.c.l.b16 %v7321
        %v7358 = vunpack.c.l.b16 %v7322
        %v7359 = vunpack.c.l.b16 %v7323
        %v7360 = vunpack.c.l.b16 %v7324
        %v7361 = vunpack.c.l.b16 %v7325
        %v7362 = vunpack.c.l.b16 %v7326
        %v7363 = vunpack.c.l.b16 %v7327
        %v7364 = vunpack.c.l.b16 %v7328
        %v7365 = vunpack.c.l.b16 %v7329
        %v7366 = vunpack.c.l.b16 %v7330
        %v7367 = vunpack.c.l.b16 %v7331
        %v7368 = vunpack.c.l.b16 %v7332
        %v7369 = vunpack.c.l.b16 %v7333
        %v7370 = vunpack.c.l.b16 %v7334
        %v7371 = vunpack.c.l.b16 %v7335
        %v7372 = vunpack.c.l.b16 %v7336
        %v7373 = vpack.c.b16 %v7356, %v7355
        %v7374 = vpack.c.b16 %v7358, %v7357
        %v7375 = vpack.c.b16 %v7360, %v7359
        %v7376 = vpack.c.b16 %v7362, %v7361
        %v7377 = vpack.c.b16 %v7364, %v7363
        %v7378 = vpack.c.b16 %v7366, %v7365
        %v7379 = vpack.c.b16 %v7368, %v7367
        %v7380 = vpack.c.b16 %v7370, %v7369
        %v7381 = vpack.c.b16 %v7372, %v7371
        %v7392 = vsel %vm6474, %v7312, 0
        %v7395 = vsel %vm6474, %v7314, 0
        %v7398 = vsel %vm6474, %v7316, 0
        %v7401 = vsel %vm6474, %v7318, 0
        %7403 = vmatprep.subr.bf16.mxu0 0
        %7404 = vmatpush1.bf16.msra.mxu0 %v7373
        %7405 = vmatprep.subr.bf16.mxu0 0
        %7406 = vmatpush1.bf16.msra.mxu0 %v7374
        %7407 = vmatprep.subr.bf16.mxu0 0
        %7408 = vmatpush1.bf16.msra.mxu0 %v7375
        %7409 = vmatprep.subr.bf16.mxu0 0
        %7410 = vmatpush1.bf16.msra.mxu0 %v7376
        %7411 = vmatprep.subr.bf16.mxu0 0
        %7412 = vmatpush1.bf16.msra.mxu0 %v7377
        %7413 = vmatprep.subr.bf16.mxu0 0
        %7414 = vmatpush1.bf16.msra.mxu0 %v7378
        %7415 = vmatprep.subr.bf16.mxu0 0
        %7416 = vmatpush1.bf16.msra.mxu0 %v7379
        %7417 = vmatprep.subr.bf16.mxu0 0
        %7418 = vmatpush1.bf16.msra.mxu0 %v7380
        %7419 = vmatprep.subr.bf16.mxu0 0
        %7420 = vmatpush1.bf16.msra.mxu0 %v7381
        %7421 = vmatprep.subr.bf16.mxu0 0
        %7422 = vmatpush1.bf16.msra.mxu0 0
        %7423 = vmatprep.subr.bf16.mxu0 0
        %7424 = vmatpush1.bf16.msra.mxu0 0
        %7425 = vmatprep.subr.bf16.mxu0 0
        %7426 = vmatpush1.bf16.msra.mxu0 0
        %7427 = vmatprep.subr.bf16.mxu0 0
        %7428 = vmatpush1.bf16.msra.mxu0 0
        %7429 = vmatprep.subr.bf16.mxu0 0
        %7430 = vmatpush1.bf16.msra.mxu0 0
        %7431 = vmatprep.subr.bf16.mxu0 0
        %7432 = vmatpush1.bf16.msra.mxu0 0
        %7433 = vmatprep.subr.bf16.mxu0 0
        %7434 = vmatpush1.bf16.msra.mxu0 0
        %7435 = vmatprep.mubr.bf16.mxu0 %v7392
        %7436 = vmatmul.mubr.bf16.gmra.mrb[0].mxu0 %v7311
        %v7437 = vpop.f32.mrb[0].mxu0
        %v7438 = vadd.f32 0.0, %v7437
        %v7439 = vpop.f32.mrb[0].mxu0
        %v7440 = vpop.f32.mrb[0].mxu0
        %v7441 = vadd.f32 0.0, %v7440
        %v7442 = vpop.f32.mrb[0].mxu0
        %7443 = vmatprep.mubr.bf16.mxu0 %v7395
        %7444 = vmatmul.mubr.bf16.gmra.mrb[0].mxu0 %v7313
        %v7445 = vpop.f32.mrb[0].mxu0
        %v7446 = vadd.f32 0.0, %v7445
        %v7447 = vpop.f32.mrb[0].mxu0
        %v7448 = vpop.f32.mrb[0].mxu0
        %v7449 = vadd.f32 0.0, %v7448
        %v7450 = vpop.f32.mrb[0].mxu0
        %7451 = vmatprep.mubr.bf16.mxu0 %v7398
        %7452 = vmatmul.mubr.bf16.gmra.mrb[0].mxu0 %v7315
        %v7453 = vpop.f32.mrb[0].mxu0
        %v7454 = vadd.f32 0.0, %v7453
        %v7455 = vpop.f32.mrb[0].mxu0
        %v7456 = vpop.f32.mrb[0].mxu0
        %v7457 = vadd.f32 0.0, %v7456
        %v7458 = vpop.f32.mrb[0].mxu0
        %7459 = vmatprep.mubr.bf16.mxu0 %v7401
        %7460 = vmatmul.mubr.bf16.gmra.mrb[0].mxu0 %v7317
        %v7461 = vpop.f32.mrb[0].mxu0
        %v7462 = vadd.f32 0.0, %v7461
        %v7463 = vpop.f32.mrb[0].mxu0
        %v7464 = vpop.f32.mrb[0].mxu0
        %v7465 = vadd.f32 0.0, %v7464
        %v7466 = vpop.f32.mrb[0].mxu0
        %7467 = vdwg.mxu0
        %v7476 = vcombine.high %v7438, %v7438
        %v7478 = vunpack.c.l.s4 1983009808
        %v7479 = vunpack.c.0.s8 %v7478
        %v7480 = vlaneseq
        %v7481 = vshrl.u32 %v7480, 7
        %v7482 = vsub.s32 %v7479, %v7481
        %v7483 = vrot.slane %v7438, %v7482
        %v7485 = vunpack.c.l.s4 1983009808
        %v7486 = vunpack.c.0.s8 %v7485
        %v7487 = vlaneseq
        %v7488 = vshrl.u32 %v7487, 7
        %v7489 = vsub.s32 %v7486, %v7488
        %v7490 = vrot.slane %v7476, %v7489
        %v7491 = vcombine.high %v7483, %v7483
        %v7492 = vcombine.high %v7490, %v7490
        %v7493 = vcombine.high %v7441, %v7441
        %v7495 = vunpack.c.l.s4 1983009808
        %v7496 = vunpack.c.0.s8 %v7495
        %v7497 = vlaneseq
        %v7498 = vshrl.u32 %v7497, 7
        %v7499 = vsub.s32 %v7496, %v7498
        %v7500 = vrot.slane %v7441, %v7499
        %v7502 = vunpack.c.l.s4 1983009808
        %v7503 = vunpack.c.0.s8 %v7502
        %v7504 = vlaneseq
        %v7505 = vshrl.u32 %v7504, 7
        %v7506 = vsub.s32 %v7503, %v7505
        %v7507 = vrot.slane %v7493, %v7506
        %v7508 = vcombine.high %v7500, %v7500
        %v7509 = vcombine.high %v7507, %v7507
        %v7510 = vcombine.high %v7446, %v7446
        %v7512 = vunpack.c.l.s4 1983009808
        %v7513 = vunpack.c.0.s8 %v7512
        %v7514 = vlaneseq
        %v7515 = vshrl.u32 %v7514, 7
        %v7516 = vsub.s32 %v7513, %v7515
        %v7517 = vrot.slane %v7446, %v7516
        %v7519 = vunpack.c.l.s4 1983009808
        %v7520 = vunpack.c.0.s8 %v7519
        %v7521 = vlaneseq
        %v7522 = vshrl.u32 %v7521, 7
        %v7523 = vsub.s32 %v7520, %v7522
        %v7524 = vrot.slane %v7510, %v7523
        %v7525 = vcombine.high %v7517, %v7517
        %v7526 = vcombine.high %v7524, %v7524
        %v7527 = vcombine.high %v7449, %v7449
        %v7529 = vunpack.c.l.s4 1983009808
        %v7530 = vunpack.c.0.s8 %v7529
        %v7531 = vlaneseq
        %v7532 = vshrl.u32 %v7531, 7
        %v7533 = vsub.s32 %v7530, %v7532
        %v7534 = vrot.slane %v7449, %v7533
        %v7536 = vunpack.c.l.s4 1983009808
        %v7537 = vunpack.c.0.s8 %v7536
        %v7538 = vlaneseq
        %v7539 = vshrl.u32 %v7538, 7
        %v7540 = vsub.s32 %v7537, %v7539
        %v7541 = vrot.slane %v7527, %v7540
        %v7542 = vcombine.high %v7534, %v7534
        %v7543 = vcombine.high %v7541, %v7541
        %v7544 = vcombine.high %v7454, %v7454
        %v7546 = vunpack.c.l.s4 1983009808
        %v7547 = vunpack.c.0.s8 %v7546
        %v7548 = vlaneseq
        %v7549 = vshrl.u32 %v7548, 7
        %v7550 = vsub.s32 %v7547, %v7549
        %v7551 = vrot.slane %v7454, %v7550
        %v7553 = vunpack.c.l.s4 1983009808
        %v7554 = vunpack.c.0.s8 %v7553
        %v7555 = vlaneseq
        %v7556 = vshrl.u32 %v7555, 7
        %v7557 = vsub.s32 %v7554, %v7556
        %v7558 = vrot.slane %v7544, %v7557
        %v7559 = vcombine.high %v7551, %v7551
        %v7560 = vcombine.high %v7558, %v7558
        %v7561 = vcombine.high %v7457, %v7457
        %v7563 = vunpack.c.l.s4 1983009808
        %v7564 = vunpack.c.0.s8 %v7563
        %v7565 = vlaneseq
        %v7566 = vshrl.u32 %v7565, 7
        %v7567 = vsub.s32 %v7564, %v7566
        %v7568 = vrot.slane %v7457, %v7567
        %v7570 = vunpack.c.l.s4 1983009808
        %v7571 = vunpack.c.0.s8 %v7570
        %v7572 = vlaneseq
        %v7573 = vshrl.u32 %v7572, 7
        %v7574 = vsub.s32 %v7571, %v7573
        %v7575 = vrot.slane %v7561, %v7574
        %v7576 = vcombine.high %v7568, %v7568
        %v7577 = vcombine.high %v7575, %v7575
        %v7578 = vcombine.high %v7462, %v7462
        %v7580 = vunpack.c.l.s4 1983009808
        %v7581 = vunpack.c.0.s8 %v7580
        %v7582 = vlaneseq
        %v7583 = vshrl.u32 %v7582, 7
        %v7584 = vsub.s32 %v7581, %v7583
        %v7585 = vrot.slane %v7462, %v7584
        %v7587 = vunpack.c.l.s4 1983009808
        %v7588 = vunpack.c.0.s8 %v7587
        %v7589 = vlaneseq
        %v7590 = vshrl.u32 %v7589, 7
        %v7591 = vsub.s32 %v7588, %v7590
        %v7592 = vrot.slane %v7578, %v7591
        %v7593 = vcombine.high %v7585, %v7585
        %v7594 = vcombine.high %v7592, %v7592
        %v7595 = vcombine.high %v7465, %v7465
        %v7597 = vunpack.c.l.s4 1983009808
        %v7598 = vunpack.c.0.s8 %v7597
        %v7599 = vlaneseq
        %v7600 = vshrl.u32 %v7599, 7
        %v7601 = vsub.s32 %v7598, %v7600
        %v7602 = vrot.slane %v7465, %v7601
        %v7604 = vunpack.c.l.s4 1983009808
        %v7605 = vunpack.c.0.s8 %v7604
        %v7606 = vlaneseq
        %v7607 = vshrl.u32 %v7606, 7
        %v7608 = vsub.s32 %v7605, %v7607
        %v7609 = vrot.slane %v7595, %v7608
        %v7610 = vcombine.high %v7602, %v7602
        %v7611 = vcombine.high %v7609, %v7609
        %v7644 = vrot.slane %v7483, 7
        %v7645 = vrot.slane %v7644, 2
        %v7646 = vrot.slane %v7491, 7
        %v7647 = vrot.slane %v7646, 2
        %v7648 = vrot.slane %v7490, 7
        %v7649 = vrot.slane %v7648, 2
        %v7650 = vrot.slane %v7492, 7
        %v7651 = vrot.slane %v7650, 2
        %v7652 = vrot.slane %v7500, 7
        %v7653 = vrot.slane %v7652, 2
        %v7654 = vrot.slane %v7508, 7
        %v7655 = vrot.slane %v7654, 2
        %v7656 = vrot.slane %v7507, 7
        %v7657 = vrot.slane %v7656, 2
        %v7658 = vrot.slane %v7509, 7
        %v7659 = vrot.slane %v7658, 2
        %v7660 = vrot.slane %v7517, 7
        %v7661 = vrot.slane %v7660, 2
        %v7662 = vrot.slane %v7525, 7
        %v7663 = vrot.slane %v7662, 2
        %v7664 = vrot.slane %v7524, 7
        %v7665 = vrot.slane %v7664, 2
        %v7666 = vrot.slane %v7526, 7
        %v7667 = vrot.slane %v7666, 2
        %v7668 = vrot.slane %v7534, 7
        %v7669 = vrot.slane %v7668, 2
        %v7670 = vrot.slane %v7542, 7
        %v7671 = vrot.slane %v7670, 2
        %v7672 = vrot.slane %v7541, 7
        %v7673 = vrot.slane %v7672, 2
        %v7674 = vrot.slane %v7543, 7
        %v7675 = vrot.slane %v7674, 2
        %v7676 = vrot.slane %v7551, 7
        %v7677 = vrot.slane %v7676, 2
        %v7678 = vrot.slane %v7559, 7
        %v7679 = vrot.slane %v7678, 2
        %v7680 = vrot.slane %v7558, 7
        %v7681 = vrot.slane %v7680, 2
        %v7682 = vrot.slane %v7560, 7
        %v7683 = vrot.slane %v7682, 2
        %v7684 = vrot.slane %v7568, 7
        %v7685 = vrot.slane %v7684, 2
        %v7686 = vrot.slane %v7576, 7
        %v7687 = vrot.slane %v7686, 2
        %v7688 = vrot.slane %v7575, 7
        %v7689 = vrot.slane %v7688, 2
        %v7690 = vrot.slane %v7577, 7
        %v7691 = vrot.slane %v7690, 2
        %v7692 = vrot.slane %v7585, 7
        %v7693 = vrot.slane %v7692, 2
        %v7694 = vrot.slane %v7593, 7
        %v7695 = vrot.slane %v7694, 2
        %v7696 = vrot.slane %v7592, 7
        %v7697 = vrot.slane %v7696, 2
        %v7698 = vrot.slane %v7594, 7
        %v7699 = vrot.slane %v7698, 2
        %v7700 = vrot.slane %v7602, 7
        %v7701 = vrot.slane %v7700, 2
        %v7702 = vrot.slane %v7610, 7
        %v7703 = vrot.slane %v7702, 2
        %v7704 = vrot.slane %v7609, 7
        %v7705 = vrot.slane %v7704, 2
        %v7706 = vrot.slane %v7611, 7
        %v7707 = vrot.slane %v7706, 2
        %v7740 = vmax.f32 %v7483, %v7645
        %v7741 = vmax.f32 %v7491, %v7647
        %v7742 = vmax.f32 %v7490, %v7649
        %v7743 = vmax.f32 %v7492, %v7651
        %v7744 = vmax.f32 %v7500, %v7653
        %v7745 = vmax.f32 %v7508, %v7655
        %v7746 = vmax.f32 %v7507, %v7657
        %v7747 = vmax.f32 %v7509, %v7659
        %v7748 = vmax.f32 %v7517, %v7661
        %v7749 = vmax.f32 %v7525, %v7663
        %v7750 = vmax.f32 %v7524, %v7665
        %v7751 = vmax.f32 %v7526, %v7667
        %v7752 = vmax.f32 %v7534, %v7669
        %v7753 = vmax.f32 %v7542, %v7671
        %v7754 = vmax.f32 %v7541, %v7673
        %v7755 = vmax.f32 %v7543, %v7675
        %v7756 = vmax.f32 %v7551, %v7677
        %v7757 = vmax.f32 %v7559, %v7679
        %v7758 = vmax.f32 %v7558, %v7681
        %v7759 = vmax.f32 %v7560, %v7683
        %v7760 = vmax.f32 %v7568, %v7685
        %v7761 = vmax.f32 %v7576, %v7687
        %v7762 = vmax.f32 %v7575, %v7689
        %v7763 = vmax.f32 %v7577, %v7691
        %v7764 = vmax.f32 %v7585, %v7693
        %v7765 = vmax.f32 %v7593, %v7695
        %v7766 = vmax.f32 %v7592, %v7697
        %v7767 = vmax.f32 %v7594, %v7699
        %v7768 = vmax.f32 %v7602, %v7701
        %v7769 = vmax.f32 %v7610, %v7703
        %v7770 = vmax.f32 %v7609, %v7705
        %v7771 = vmax.f32 %v7611, %v7707
        %v7772 = vmax.f32 %v7740, %v7744
        %v7773 = vmax.f32 %v7741, %v7745
        %v7774 = vmax.f32 %v7742, %v7746
        %v7775 = vmax.f32 %v7743, %v7747
        %v7776 = vmax.f32 %v7748, %v7752
        %v7777 = vmax.f32 %v7749, %v7753
        %v7778 = vmax.f32 %v7750, %v7754
        %v7779 = vmax.f32 %v7751, %v7755
        %v7780 = vmax.f32 %v7756, %v7760
        %v7781 = vmax.f32 %v7757, %v7761
        %v7782 = vmax.f32 %v7758, %v7762
        %v7783 = vmax.f32 %v7759, %v7763
        %v7784 = vmax.f32 %v7764, %v7768
        %v7785 = vmax.f32 %v7765, %v7769
        %v7786 = vmax.f32 %v7766, %v7770
        %v7787 = vmax.f32 %v7767, %v7771
        %v7788 = vld [vmem:[%s4] sm:$0x1]
        %v7790 = vlaneseq
        %v7791 = vshrl.u32 %v7790, 7
        %v7792 = vsub.s32 0, %v7791
        %v7793 = vrot.slane %v7788, %v7792
        %v7795 = vunpack.c.l.s4 1983009808
        %v7796 = vunpack.c.0.s8 %v7795
        %v7797 = vlaneseq
        %v7798 = vshrl.u32 %v7797, 7
        %v7799 = vsub.s32 %v7796, %v7798
        %v7800 = vrot.slane %v7793, %v7799
        %v7801 = vcombine.high %v7800, %v7800
        %v7802 = vrot.slane %v7800, 1
        %v7803 = vrot.slane %v7801, 1
        %v7808 = vadd.f32 %v7772, %v7800
        %v7809 = vadd.f32 %v7773, %v7802
        %v7810 = vadd.f32 %v7774, %v7801
        %v7811 = vadd.f32 %v7775, %v7803
        %v7812 = vadd.f32 %v7776, %v7800
        %v7813 = vadd.f32 %v7777, %v7802
        %v7814 = vadd.f32 %v7778, %v7801
        %v7815 = vadd.f32 %v7779, %v7803
        %v7816 = vadd.f32 %v7780, %v7800
        %v7817 = vadd.f32 %v7781, %v7802
        %v7818 = vadd.f32 %v7782, %v7801
        %v7819 = vadd.f32 %v7783, %v7803
        %v7820 = vadd.f32 %v7784, %v7800
        %v7821 = vadd.f32 %v7785, %v7802
        %v7822 = vadd.f32 %v7786, %v7801
        %v7823 = vadd.f32 %v7787, %v7803
        %v7824 = vmax.f32 %v7808, 0.0
        %v7825 = vmax.f32 %v7809, 0.0
        %v7826 = vmax.f32 %v7810, 0.0
        %v7827 = vmax.f32 %v7811, 0.0
        %v7828 = vmax.f32 %v7812, 0.0
        %v7829 = vmax.f32 %v7813, 0.0
        %v7830 = vmax.f32 %v7814, 0.0
        %v7831 = vmax.f32 %v7815, 0.0
        %v7832 = vmax.f32 %v7816, 0.0
        %v7833 = vmax.f32 %v7817, 0.0
        %v7834 = vmax.f32 %v7818, 0.0
        %v7835 = vmax.f32 %v7819, 0.0
        %v7836 = vmax.f32 %v7820, 0.0
        %v7837 = vmax.f32 %v7821, 0.0
        %v7838 = vmax.f32 %v7822, 0.0
        %v7839 = vmax.f32 %v7823, 0.0
        %vm7840 = vcmask 256000
        %7841 = vst.msk [vmem:[#allocation6] sm:$0x7] %vm7840, 0
        %s7842 = scalar_lea.vmem [#allocation6], 20
        %7843 = vst.msk [vmem:[%s7842] sm:$0x7] %vm7840, 0
        %vm7844 = vcmask 253952
        %vm7845 = vmand %vm7844, %vm427
        %v7846 = vld [vmem:[#allocation6] sm:$0x1]
        %v7847 = vsel %vm7845, 0, %v7846
        %7848 = vst [vmem:[#allocation6] sm:$0x1] %v7847
        %v7849 = vld [vmem:[#allocation6 + $0x4] sm:$0x1]
        %v7850 = vsel %vm7845, 0, %v7849
        %7851 = vst [vmem:[#allocation6 + $0x4] sm:$0x1] %v7850
        %v7852 = vld [vmem:[#allocation6 + $0x8] sm:$0x1]
        %v7853 = vsel %vm7845, 0, %v7852
        %7854 = vst [vmem:[#allocation6 + $0x8] sm:$0x1] %v7853
        %v7855 = vld [vmem:[#allocation6 + $0xc] sm:$0x1]
        %v7856 = vsel %vm7845, 0, %v7855
        %7857 = vst [vmem:[#allocation6 + $0xc] sm:$0x1] %v7856
        %v7858 = vld [vmem:[#allocation6 + $0x10] sm:$0x1]
        %v7859 = vsel %vm7845, 0, %v7858
        %7860 = vst [vmem:[#allocation6 + $0x10] sm:$0x1] %v7859
        %v7861 = vld [vmem:[#allocation6 + $0x14] sm:$0x1]
        %v7862 = vsel %vm7845, 0, %v7861
        %7863 = vst [vmem:[#allocation6 + $0x14] sm:$0x1] %v7862
        %vm7864 = vcmask 256002
        %vm7865 = vsmask.f32 7946
        %vm7866 = vmand %vm7864, %vm7865
        %v7867 = vld [vmem:[#allocation6] sm:$0x4]
        %v7868 = vsel %vm7866, 0, %v7867
        %7869 = vst [vmem:[#allocation6] sm:$0x4] %v7868
        %v7870 = vld [vmem:[#allocation6 + $0x4] sm:$0x4]
        %v7871 = vsel %vm7866, 0, %v7870
        %7872 = vst [vmem:[#allocation6 + $0x4] sm:$0x4] %v7871
        %v7873 = vld [vmem:[#allocation6 + $0x8] sm:$0x4]
        %v7874 = vsel %vm7866, 0, %v7873
        %7875 = vst [vmem:[#allocation6 + $0x8] sm:$0x4] %v7874
        %v7876 = vld [vmem:[#allocation6 + $0xc] sm:$0x4]
        %v7877 = vsel %vm7866, 0, %v7876
        %7878 = vst [vmem:[#allocation6 + $0xc] sm:$0x4] %v7877
        %v7879 = vld [vmem:[#allocation6 + $0x10] sm:$0x4]
        %v7880 = vsel %vm7866, 0, %v7879
        %7881 = vst [vmem:[#allocation6 + $0x10] sm:$0x4] %v7880
        %v7882 = vld [vmem:[#allocation6 + $0x14] sm:$0x4]
        %v7883 = vsel %vm7866, 0, %v7882
        %7884 = vst [vmem:[#allocation6 + $0x14] sm:$0x4] %v7883
        %v7885 = vpack.c.bf16 %v7824, %v7824
        %v7886 = vpack.c.bf16 %v7825, %v7825
        %v7887 = vpack.c.bf16 %v7826, %v7826
        %v7888 = vpack.c.bf16 %v7827, %v7827
        %v7889 = vpack.c.bf16 %v7828, %v7828
        %v7890 = vpack.c.bf16 %v7829, %v7829
        %v7891 = vpack.c.bf16 %v7830, %v7830
        %v7892 = vpack.c.bf16 %v7831, %v7831
        %v7893 = vpack.c.bf16 %v7832, %v7832
        %v7894 = vpack.c.bf16 %v7833, %v7833
        %v7895 = vpack.c.bf16 %v7834, %v7834
        %v7896 = vpack.c.bf16 %v7835, %v7835
        %v7897 = vpack.c.bf16 %v7836, %v7836
        %v7898 = vpack.c.bf16 %v7837, %v7837
        %v7899 = vpack.c.bf16 %v7838, %v7838
        %v7900 = vpack.c.bf16 %v7839, %v7839
        %v7917 = vunpack.c.l.b16 %v7885
        %v7918 = vunpack.c.l.b16 %v7886
        %v7919 = vunpack.c.l.b16 %v7887
        %v7920 = vunpack.c.l.b16 %v7888
        %v7921 = vunpack.c.l.b16 %v7889
        %v7922 = vunpack.c.l.b16 %v7890
        %v7923 = vunpack.c.l.b16 %v7891
        %v7924 = vunpack.c.l.b16 %v7892
        %v7925 = vunpack.c.l.b16 %v7893
        %v7926 = vunpack.c.l.b16 %v7894
        %v7927 = vunpack.c.l.b16 %v7895
        %v7928 = vunpack.c.l.b16 %v7896
        %v7929 = vunpack.c.l.b16 %v7897
        %v7930 = vunpack.c.l.b16 %v7898
        %v7931 = vunpack.c.l.b16 %v7899
        %v7932 = vunpack.c.l.b16 %v7900
        %v7933 = vpack.c.b16 %v7917, %v7917
        %v7934 = vpack.c.b16 %v7918, %v7918
        %v7935 = vpack.c.b16 %v7919, %v7919
        %v7936 = vpack.c.b16 %v7920, %v7920
        %v7937 = vpack.c.b16 %v7921, %v7921
        %v7938 = vpack.c.b16 %v7922, %v7922
        %v7939 = vpack.c.b16 %v7923, %v7923
        %v7940 = vpack.c.b16 %v7924, %v7924
        %v7941 = vpack.c.b16 %v7925, %v7925
        %v7942 = vpack.c.b16 %v7926, %v7926
        %v7943 = vpack.c.b16 %v7927, %v7927
        %v7944 = vpack.c.b16 %v7928, %v7928
        %v7945 = vpack.c.b16 %v7929, %v7929
        %v7946 = vpack.c.b16 %v7930, %v7930
        %v7947 = vpack.c.b16 %v7931, %v7931
        %v7948 = vpack.c.b16 %v7932, %v7932
        %v7949 = vunpack.c.l.b16 %v7933
        %v7950 = vunpack.c.l.b16 %v7934
        %v7951 = vunpack.c.l.b16 %v7935
        %v7952 = vunpack.c.l.b16 %v7936
        %v7953 = vunpack.c.l.b16 %v7937
        %v7954 = vunpack.c.l.b16 %v7938
        %v7955 = vunpack.c.l.b16 %v7939
        %v7956 = vunpack.c.l.b16 %v7940
        %v7957 = vunpack.c.l.b16 %v7941
        %v7958 = vunpack.c.l.b16 %v7942
        %v7959 = vunpack.c.l.b16 %v7943
        %v7960 = vunpack.c.l.b16 %v7944
        %v7961 = vunpack.c.l.b16 %v7945
        %v7962 = vunpack.c.l.b16 %v7946
        %v7963 = vunpack.c.l.b16 %v7947
        %v7964 = vunpack.c.l.b16 %v7948
        %v7965 = vrot.slane %v7949, 7
        %v7966 = vrot.slane %v7950, 6
        %v7967 = vsel %vm6251, %v7966, %v7965
        %v7968 = vrot.slane %v7951, 5
        %v7969 = vsel %vm6254, %v7968, %v7967
        %v7970 = vrot.slane %v7952, 4
        %v7971 = vsel %vm6257, %v7970, %v7969
        %v7972 = vrot.slane %v7953, 7
        %v7973 = vrot.slane %v7954, 6
        %v7974 = vsel %vm6251, %v7973, %v7972
        %v7975 = vrot.slane %v7955, 5
        %v7976 = vsel %vm6254, %v7975, %v7974
        %v7977 = vrot.slane %v7956, 4
        %v7978 = vsel %vm6257, %v7977, %v7976
        %v7979 = vrot.slane %v7957, 7
        %v7980 = vrot.slane %v7958, 6
        %v7981 = vsel %vm6251, %v7980, %v7979
        %v7982 = vrot.slane %v7959, 5
        %v7983 = vsel %vm6254, %v7982, %v7981
        %v7984 = vrot.slane %v7960, 4
        %v7985 = vsel %vm6257, %v7984, %v7983
        %v7986 = vrot.slane %v7961, 7
        %v7987 = vrot.slane %v7962, 6
        %v7988 = vsel %vm6251, %v7987, %v7986
        %v7989 = vrot.slane %v7963, 5
        %v7990 = vsel %vm6254, %v7989, %v7988
        %v7991 = vrot.slane %v7964, 4
        %v7992 = vsel %vm6257, %v7991, %v7990
        %v7993 = vpack.c.b16 %v7971, %v7971
        %v7994 = vpack.c.b16 %v7978, %v7978
        %v7995 = vpack.c.b16 %v7985, %v7985
        %v7996 = vpack.c.b16 %v7992, %v7992
        %s8001 = scalar_lea.vmem [#allocation6], 4
        %vm8002 = vcmask 256000
        %vm8003 = vsmask.f32 2306
        %vm8004 = vmand %vm8002, %vm8003
        %v8005 = vld [vmem:[%s8001] sm:$0x7]
        %v8006 = vsel %vm8004, %v7993, %v8005
        %8007 = vst [vmem:[%s8001] sm:$0x7] %v8006
        %v8008 = vld [vmem:[%s8001 + $0x4] sm:$0x7]
        %v8009 = vsel %vm8004, %v7994, %v8008
        %8010 = vst [vmem:[%s8001 + $0x4] sm:$0x7] %v8009
        %v8011 = vld [vmem:[%s8001 + $0x8] sm:$0x7]
        %v8012 = vsel %vm8004, %v7995, %v8011
        %8013 = vst [vmem:[%s8001 + $0x8] sm:$0x7] %v8012
        %v8014 = vld [vmem:[%s8001 + $0xc] sm:$0x7]
        %v8015 = vsel %vm8004, %v7996, %v8014
        %8016 = vst [vmem:[%s8001 + $0xc] sm:$0x7] %v8015
        %v8017 = vld [vmem:[#allocation6] sm:$0x3]
        %v8018 = vld [vmem:[#allocation6 + $0x4] sm:$0x3]
        %v8019 = vld [vmem:[#allocation6 + $0x8] sm:$0x3]
        %v8020 = vld [vmem:[#allocation6 + $0xc] sm:$0x3]
        %v8025 = vcombine.low %v8017, %v8018
        %v8026 = vcombine.low %v8019, %v8020
        %v8028 = vunpack.c.l.s4 1983009808
        %v8029 = vunpack.c.0.s8 %v8028
        %v8030 = vlaneseq
        %v8031 = vshrl.u32 %v8030, 7
        %v8032 = vsub.s32 %v8029, %v8031
        %v8033 = vrot.slane %v8025, %v8032
        %v8035 = vunpack.c.l.s4 1983009808
        %v8036 = vunpack.c.0.s8 %v8035
        %v8037 = vlaneseq
        %v8038 = vshrl.u32 %v8037, 7
        %v8039 = vsub.s32 %v8036, %v8038
        %v8040 = vrot.slane %v8026, %v8039
        %v8041 = vcombine.low %v8033, %v8040
        %vm8043 = vcmask 261120
        %8044 = vst.msk [vmem:[#allocation7] sm:$0xff] %vm8043, %v8041
        %v8045 = vld [vmem:[#allocation6] sm:$0x7]
        %v8046 = vld [vmem:[#allocation6 + $0x4] sm:$0x7]
        %v8047 = vld [vmem:[#allocation6 + $0x8] sm:$0x7]
        %v8048 = vld [vmem:[#allocation6 + $0xc] sm:$0x7]
        %v8054 = vunpack.c.l.s4 1983009808
        %v8055 = vunpack.c.0.s8 %v8054
        %v8056 = vlaneseq
        %v8057 = vshrl.u32 %v8056, 7
        %v8058 = vsub.s32 %v8055, %v8057
        %v8059 = vrot.slane %v8045, %v8058
        %v8060 = vcombine.high %v8059, %v8059
        %v8062 = vunpack.c.l.s4 1983009808
        %v8063 = vunpack.c.0.s8 %v8062
        %v8064 = vlaneseq
        %v8065 = vshrl.u32 %v8064, 7
        %v8066 = vsub.s32 %v8063, %v8065
        %v8067 = vrot.slane %v8046, %v8066
        %v8068 = vcombine.high %v8067, %v8067
        %v8070 = vunpack.c.l.s4 1983009808
        %v8071 = vunpack.c.0.s8 %v8070
        %v8072 = vlaneseq
        %v8073 = vshrl.u32 %v8072, 7
        %v8074 = vsub.s32 %v8071, %v8073
        %v8075 = vrot.slane %v8047, %v8074
        %v8076 = vcombine.high %v8075, %v8075
        %v8078 = vunpack.c.l.s4 1983009808
        %v8079 = vunpack.c.0.s8 %v8078
        %v8080 = vlaneseq
        %v8081 = vshrl.u32 %v8080, 7
        %v8082 = vsub.s32 %v8079, %v8081
        %v8083 = vrot.slane %v8048, %v8082
        %v8084 = vcombine.high %v8083, %v8083
        %vm8085 = vsmask.f32 1280
        %vm8086 = vsmask.f32 3336
        %vm8087 = vmor %vm8085, %vm8086
        %vm8088 = vsmask.f32 5392
        %vm8089 = vmor %vm8087, %vm8088
        %vm8090 = vsmask.f32 7448
        %vm8091 = vmor %vm8089, %vm8090
        %v8093 = vshrl.u32 %v8059, 16
        %v8095 = vrot.slane %v8093, 6
        %v8096 = vshll.u32 %v8059, 16
        %v8098 = vrot.slane %v8096, 7
        %v8099 = vor.u32 %v8095, %v8098
        %v8100 = vrot.slane %v8099, 2
        %v8102 = vshll.u32 %v8060, 16
        %v8104 = vrot.slane %v8102, 7
        %v8105 = vsel %vm8091, %v8100, %v8104
        %v8107 = vshrl.u32 %v8067, 16
        %v8109 = vrot.slane %v8107, 6
        %v8110 = vshll.u32 %v8067, 16
        %v8112 = vrot.slane %v8110, 7
        %v8113 = vor.u32 %v8109, %v8112
        %v8114 = vrot.slane %v8113, 2
        %v8116 = vshll.u32 %v8068, 16
        %v8118 = vrot.slane %v8116, 7
        %v8119 = vsel %vm8091, %v8114, %v8118
        %v8121 = vshrl.u32 %v8075, 16
        %v8123 = vrot.slane %v8121, 6
        %v8124 = vshll.u32 %v8075, 16
        %v8126 = vrot.slane %v8124, 7
        %v8127 = vor.u32 %v8123, %v8126
        %v8128 = vrot.slane %v8127, 2
        %v8130 = vshll.u32 %v8076, 16
        %v8132 = vrot.slane %v8130, 7
        %v8133 = vsel %vm8091, %v8128, %v8132
        %v8135 = vshrl.u32 %v8083, 16
        %v8137 = vrot.slane %v8135, 6
        %v8138 = vshll.u32 %v8083, 16
        %v8140 = vrot.slane %v8138, 7
        %v8141 = vor.u32 %v8137, %v8140
        %v8142 = vrot.slane %v8141, 2
        %v8144 = vshll.u32 %v8084, 16
        %v8146 = vrot.slane %v8144, 7
        %v8147 = vsel %vm8091, %v8142, %v8146
        %v8148 = vcombine.low %v8105, %v8119
        %v8149 = vcombine.low %v8133, %v8147
        %v8151 = vunpack.c.l.s4 1983009808
        %v8152 = vunpack.c.0.s8 %v8151
        %v8153 = vlaneseq
        %v8154 = vshrl.u32 %v8153, 7
        %v8155 = vsub.s32 %v8152, %v8154
        %v8156 = vrot.slane %v8148, %v8155
        %v8158 = vunpack.c.l.s4 1983009808
        %v8159 = vunpack.c.0.s8 %v8158
        %v8160 = vlaneseq
        %v8161 = vshrl.u32 %v8160, 7
        %v8162 = vsub.s32 %v8159, %v8161
        %v8163 = vrot.slane %v8149, %v8162
        %v8164 = vcombine.low %v8156, %v8163
        %8165 = vrot.lane.b32.xlu0 %v8164, 32
        %v8166 = vpop.permute.xlu0 %8165
        %vm8168 = vcmask 523520
        %8169 = vst.msk [vmem:[#allocation7] sm:$0xff] %vm8168, %v8166
        %v8170 = vld [vmem:[#allocation6] sm:$0x6]
        %v8171 = vld [vmem:[#allocation6 + $0x4] sm:$0x6]
        %v8172 = vld [vmem:[#allocation6 + $0x8] sm:$0x6]
        %v8173 = vld [vmem:[#allocation6 + $0xc] sm:$0x6]
        %v8179 = vunpack.c.l.s4 1983009808
        %v8180 = vunpack.c.0.s8 %v8179
        %v8181 = vlaneseq
        %v8182 = vshrl.u32 %v8181, 7
        %v8183 = vsub.s32 %v8180, %v8182
        %v8184 = vrot.slane %v8170, %v8183
        %v8185 = vcombine.high %v8184, %v8184
        %v8187 = vunpack.c.l.s4 1983009808
        %v8188 = vunpack.c.0.s8 %v8187
        %v8189 = vlaneseq
        %v8190 = vshrl.u32 %v8189, 7
        %v8191 = vsub.s32 %v8188, %v8190
        %v8192 = vrot.slane %v8171, %v8191
        %v8193 = vcombine.high %v8192, %v8192
        %v8195 = vunpack.c.l.s4 1983009808
        %v8196 = vunpack.c.0.s8 %v8195
        %v8197 = vlaneseq
        %v8198 = vshrl.u32 %v8197, 7
        %v8199 = vsub.s32 %v8196, %v8198
        %v8200 = vrot.slane %v8172, %v8199
        %v8201 = vcombine.high %v8200, %v8200
        %v8203 = vunpack.c.l.s4 1983009808
        %v8204 = vunpack.c.0.s8 %v8203
        %v8205 = vlaneseq
        %v8206 = vshrl.u32 %v8205, 7
        %v8207 = vsub.s32 %v8204, %v8206
        %v8208 = vrot.slane %v8173, %v8207
        %v8209 = vcombine.high %v8208, %v8208
        %vm8210 = vcmask 1040384
        %vm8211 = vcmask 1042434
        %vm8212 = vmor %vm8210, %vm8211
        %vm8213 = vcmask 1044484
        %vm8214 = vmor %vm8212, %vm8213
        %vm8215 = vcmask 1046534
        %vm8216 = vmor %vm8214, %vm8215
        %v8217 = vrot.slane %v8184, 7
        %v8218 = vrot.slane %v8217, 2
        %v8219 = vrot.slane %v8185, 7
        %v8220 = vsel %vm8216, %v8218, %v8219
        %v8221 = vrot.slane %v8192, 7
        %v8222 = vrot.slane %v8221, 2
        %v8223 = vrot.slane %v8193, 7
        %v8224 = vsel %vm8216, %v8222, %v8223
        %v8225 = vrot.slane %v8200, 7
        %v8226 = vrot.slane %v8225, 2
        %v8227 = vrot.slane %v8201, 7
        %v8228 = vsel %vm8216, %v8226, %v8227
        %v8229 = vrot.slane %v8208, 7
        %v8230 = vrot.slane %v8229, 2
        %v8231 = vrot.slane %v8209, 7
        %v8232 = vsel %vm8216, %v8230, %v8231
        %v8233 = vcombine.low %v8220, %v8224
        %v8234 = vcombine.low %v8228, %v8232
        %v8236 = vunpack.c.l.s4 1983009808
        %v8237 = vunpack.c.0.s8 %v8236
        %v8238 = vlaneseq
        %v8239 = vshrl.u32 %v8238, 7
        %v8240 = vsub.s32 %v8237, %v8239
        %v8241 = vrot.slane %v8233, %v8240
        %v8243 = vunpack.c.l.s4 1983009808
        %v8244 = vunpack.c.0.s8 %v8243
        %v8245 = vlaneseq
        %v8246 = vshrl.u32 %v8245, 7
        %v8247 = vsub.s32 %v8244, %v8246
        %v8248 = vrot.slane %v8234, %v8247
        %v8249 = vcombine.low %v8241, %v8248
        %8250 = vrot.lane.b32.xlu0 %v8249, 64
        %v8251 = vpop.permute.xlu0 %8250
        %vm8253 = vcmask 785920
        %8254 = vst.msk [vmem:[#allocation7] sm:$0xff] %vm8253, %v8251
        %v8255 = vld [vmem:[%s8001] sm:$0x3]
        %v8256 = vld [vmem:[%s8001 + $0x4] sm:$0x3]
        %v8257 = vld [vmem:[%s8001 + $0x8] sm:$0x3]
        %v8258 = vld [vmem:[%s8001 + $0xc] sm:$0x3]
        %v8263 = vcombine.low %v8255, %v8256
        %v8264 = vcombine.low %v8257, %v8258
        %v8266 = vunpack.c.l.s4 1983009808
        %v8267 = vunpack.c.0.s8 %v8266
        %v8268 = vlaneseq
        %v8269 = vshrl.u32 %v8268, 7
        %v8270 = vsub.s32 %v8267, %v8269
        %v8271 = vrot.slane %v8263, %v8270
        %v8273 = vunpack.c.l.s4 1983009808
        %v8274 = vunpack.c.0.s8 %v8273
        %v8275 = vlaneseq
        %v8276 = vshrl.u32 %v8275, 7
        %v8277 = vsub.s32 %v8274, %v8276
        %v8278 = vrot.slane %v8264, %v8277
        %v8279 = vcombine.low %v8271, %v8278
        %8280 = vrot.lane.b32.xlu0 %v8279, 96
        %v8281 = vpop.permute.xlu0 %8280
        %vm8283 = vcmask 1048320
        %8284 = vst.msk [vmem:[#allocation7] sm:$0xff] %vm8283, %v8281
        %v8285 = vld [vmem:[%s8001] sm:$0x7]
        %v8286 = vld [vmem:[%s8001 + $0x4] sm:$0x7]
        %v8287 = vld [vmem:[%s8001 + $0x8] sm:$0x7]
        %v8288 = vld [vmem:[%s8001 + $0xc] sm:$0x7]
        %v8294 = vunpack.c.l.s4 1983009808
        %v8295 = vunpack.c.0.s8 %v8294
        %v8296 = vlaneseq
        %v8297 = vshrl.u32 %v8296, 7
        %v8298 = vsub.s32 %v8295, %v8297
        %v8299 = vrot.slane %v8285, %v8298
        %v8300 = vcombine.high %v8299, %v8299
        %v8302 = vunpack.c.l.s4 1983009808
        %v8303 = vunpack.c.0.s8 %v8302
        %v8304 = vlaneseq
        %v8305 = vshrl.u32 %v8304, 7
        %v8306 = vsub.s32 %v8303, %v8305
        %v8307 = vrot.slane %v8286, %v8306
        %v8308 = vcombine.high %v8307, %v8307
        %v8310 = vunpack.c.l.s4 1983009808
        %v8311 = vunpack.c.0.s8 %v8310
        %v8312 = vlaneseq
        %v8313 = vshrl.u32 %v8312, 7
        %v8314 = vsub.s32 %v8311, %v8313
        %v8315 = vrot.slane %v8287, %v8314
        %v8316 = vcombine.high %v8315, %v8315
        %v8318 = vunpack.c.l.s4 1983009808
        %v8319 = vunpack.c.0.s8 %v8318
        %v8320 = vlaneseq
        %v8321 = vshrl.u32 %v8320, 7
        %v8322 = vsub.s32 %v8319, %v8321
        %v8323 = vrot.slane %v8288, %v8322
        %v8324 = vcombine.high %v8323, %v8323
        %v8326 = vshrl.u32 %v8299, 16
        %v8328 = vrot.slane %v8326, 6
        %v8329 = vshll.u32 %v8299, 16
        %v8331 = vrot.slane %v8329, 7
        %v8332 = vor.u32 %v8328, %v8331
        %v8333 = vrot.slane %v8332, 2
        %v8335 = vshll.u32 %v8300, 16
        %v8337 = vrot.slane %v8335, 7
        %v8338 = vsel %vm8091, %v8333, %v8337
        %v8340 = vshrl.u32 %v8307, 16
        %v8342 = vrot.slane %v8340, 6
        %v8343 = vshll.u32 %v8307, 16
        %v8345 = vrot.slane %v8343, 7
        %v8346 = vor.u32 %v8342, %v8345
        %v8347 = vrot.slane %v8346, 2
        %v8349 = vshll.u32 %v8308, 16
        %v8351 = vrot.slane %v8349, 7
        %v8352 = vsel %vm8091, %v8347, %v8351
        %v8354 = vshrl.u32 %v8315, 16
        %v8356 = vrot.slane %v8354, 6
        %v8357 = vshll.u32 %v8315, 16
        %v8359 = vrot.slane %v8357, 7
        %v8360 = vor.u32 %v8356, %v8359
        %v8361 = vrot.slane %v8360, 2
        %v8363 = vshll.u32 %v8316, 16
        %v8365 = vrot.slane %v8363, 7
        %v8366 = vsel %vm8091, %v8361, %v8365
        %v8368 = vshrl.u32 %v8323, 16
        %v8370 = vrot.slane %v8368, 6
        %v8371 = vshll.u32 %v8323, 16
        %v8373 = vrot.slane %v8371, 7
        %v8374 = vor.u32 %v8370, %v8373
        %v8375 = vrot.slane %v8374, 2
        %v8377 = vshll.u32 %v8324, 16
        %v8379 = vrot.slane %v8377, 7
        %v8380 = vsel %vm8091, %v8375, %v8379
        %v8381 = vcombine.low %v8338, %v8352
        %v8382 = vcombine.low %v8366, %v8380
        %v8384 = vunpack.c.l.s4 1983009808
        %v8385 = vunpack.c.0.s8 %v8384
        %v8386 = vlaneseq
        %v8387 = vshrl.u32 %v8386, 7
        %v8388 = vsub.s32 %v8385, %v8387
        %v8389 = vrot.slane %v8381, %v8388
        %v8391 = vunpack.c.l.s4 1983009808
        %v8392 = vunpack.c.0.s8 %v8391
        %v8393 = vlaneseq
        %v8394 = vshrl.u32 %v8393, 7
        %v8395 = vsub.s32 %v8392, %v8394
        %v8396 = vrot.slane %v8382, %v8395
        %v8397 = vcombine.low %v8389, %v8396
        %8399 = vst.msk [vmem:[#allocation7 + $0x8] sm:$0xff] %vm8043, %v8397
        %v8400 = vld [vmem:[%s8001] sm:$0x6]
        %v8401 = vld [vmem:[%s8001 + $0x4] sm:$0x6]
        %v8402 = vld [vmem:[%s8001 + $0x8] sm:$0x6]
        %v8403 = vld [vmem:[%s8001 + $0xc] sm:$0x6]
        %v8409 = vunpack.c.l.s4 1983009808
        %v8410 = vunpack.c.0.s8 %v8409
        %v8411 = vlaneseq
        %v8412 = vshrl.u32 %v8411, 7
        %v8413 = vsub.s32 %v8410, %v8412
        %v8414 = vrot.slane %v8400, %v8413
        %v8415 = vcombine.high %v8414, %v8414
        %v8417 = vunpack.c.l.s4 1983009808
        %v8418 = vunpack.c.0.s8 %v8417
        %v8419 = vlaneseq
        %v8420 = vshrl.u32 %v8419, 7
        %v8421 = vsub.s32 %v8418, %v8420
        %v8422 = vrot.slane %v8401, %v8421
        %v8423 = vcombine.high %v8422, %v8422
        %v8425 = vunpack.c.l.s4 1983009808
        %v8426 = vunpack.c.0.s8 %v8425
        %v8427 = vlaneseq
        %v8428 = vshrl.u32 %v8427, 7
        %v8429 = vsub.s32 %v8426, %v8428
        %v8430 = vrot.slane %v8402, %v8429
        %v8431 = vcombine.high %v8430, %v8430
        %v8433 = vunpack.c.l.s4 1983009808
        %v8434 = vunpack.c.0.s8 %v8433
        %v8435 = vlaneseq
        %v8436 = vshrl.u32 %v8435, 7
        %v8437 = vsub.s32 %v8434, %v8436
        %v8438 = vrot.slane %v8403, %v8437
        %v8439 = vcombine.high %v8438, %v8438
        %v8440 = vrot.slane %v8414, 7
        %v8441 = vrot.slane %v8440, 2
        %v8442 = vrot.slane %v8415, 7
        %v8443 = vsel %vm8216, %v8441, %v8442
        %v8444 = vrot.slane %v8422, 7
        %v8445 = vrot.slane %v8444, 2
        %v8446 = vrot.slane %v8423, 7
        %v8447 = vsel %vm8216, %v8445, %v8446
        %v8448 = vrot.slane %v8430, 7
        %v8449 = vrot.slane %v8448, 2
        %v8450 = vrot.slane %v8431, 7
        %v8451 = vsel %vm8216, %v8449, %v8450
        %v8452 = vrot.slane %v8438, 7
        %v8453 = vrot.slane %v8452, 2
        %v8454 = vrot.slane %v8439, 7
        %v8455 = vsel %vm8216, %v8453, %v8454
        %v8456 = vcombine.low %v8443, %v8447
        %v8457 = vcombine.low %v8451, %v8455
        %v8459 = vunpack.c.l.s4 1983009808
        %v8460 = vunpack.c.0.s8 %v8459
        %v8461 = vlaneseq
        %v8462 = vshrl.u32 %v8461, 7
        %v8463 = vsub.s32 %v8460, %v8462
        %v8464 = vrot.slane %v8456, %v8463
        %v8466 = vunpack.c.l.s4 1983009808
        %v8467 = vunpack.c.0.s8 %v8466
        %v8468 = vlaneseq
        %v8469 = vshrl.u32 %v8468, 7
        %v8470 = vsub.s32 %v8467, %v8469
        %v8471 = vrot.slane %v8457, %v8470
        %v8472 = vcombine.low %v8464, %v8471
        %8473 = vrot.lane.b32.xlu0 %v8472, 32
        %v8474 = vpop.permute.xlu0 %8473
        %8476 = vst.msk [vmem:[#allocation7 + $0x8] sm:$0xff] %vm8168, %v8474
        %s8477 = scalar_lea.vmem [#allocation6], 8
        %v8478 = vld [vmem:[%s8477] sm:$0x3]
        %v8479 = vld [vmem:[%s8477 + $0x4] sm:$0x3]
        %v8480 = vld [vmem:[%s8477 + $0x8] sm:$0x3]
        %v8481 = vld [vmem:[%s8477 + $0xc] sm:$0x3]
        %v8486 = vcombine.low %v8478, %v8479
        %v8487 = vcombine.low %v8480, %v8481
        %v8489 = vunpack.c.l.s4 1983009808
        %v8490 = vunpack.c.0.s8 %v8489
        %v8491 = vlaneseq
        %v8492 = vshrl.u32 %v8491, 7
        %v8493 = vsub.s32 %v8490, %v8492
        %v8494 = vrot.slane %v8486, %v8493
        %v8496 = vunpack.c.l.s4 1983009808
        %v8497 = vunpack.c.0.s8 %v8496
        %v8498 = vlaneseq
        %v8499 = vshrl.u32 %v8498, 7
        %v8500 = vsub.s32 %v8497, %v8499
        %v8501 = vrot.slane %v8487, %v8500
        %v8502 = vcombine.low %v8494, %v8501
        %8503 = vrot.lane.b32.xlu0 %v8502, 64
        %v8504 = vpop.permute.xlu0 %8503
        %8506 = vst.msk [vmem:[#allocation7 + $0x8] sm:$0xff] %vm8253, %v8504
        %v8507 = vld [vmem:[%s8477] sm:$0x7]
        %v8508 = vld [vmem:[%s8477 + $0x4] sm:$0x7]
        %v8509 = vld [vmem:[%s8477 + $0x8] sm:$0x7]
        %v8510 = vld [vmem:[%s8477 + $0xc] sm:$0x7]
        %v8516 = vunpack.c.l.s4 1983009808
        %v8517 = vunpack.c.0.s8 %v8516
        %v8518 = vlaneseq
        %v8519 = vshrl.u32 %v8518, 7
        %v8520 = vsub.s32 %v8517, %v8519
        %v8521 = vrot.slane %v8507, %v8520
        %v8522 = vcombine.high %v8521, %v8521
        %v8524 = vunpack.c.l.s4 1983009808
        %v8525 = vunpack.c.0.s8 %v8524
        %v8526 = vlaneseq
        %v8527 = vshrl.u32 %v8526, 7
        %v8528 = vsub.s32 %v8525, %v8527
        %v8529 = vrot.slane %v8508, %v8528
        %v8530 = vcombine.high %v8529, %v8529
        %v8532 = vunpack.c.l.s4 1983009808
        %v8533 = vunpack.c.0.s8 %v8532
        %v8534 = vlaneseq
        %v8535 = vshrl.u32 %v8534, 7
        %v8536 = vsub.s32 %v8533, %v8535
        %v8537 = vrot.slane %v8509, %v8536
        %v8538 = vcombine.high %v8537, %v8537
        %v8540 = vunpack.c.l.s4 1983009808
        %v8541 = vunpack.c.0.s8 %v8540
        %v8542 = vlaneseq
        %v8543 = vshrl.u32 %v8542, 7
        %v8544 = vsub.s32 %v8541, %v8543
        %v8545 = vrot.slane %v8510, %v8544
        %v8546 = vcombine.high %v8545, %v8545
        %v8548 = vshrl.u32 %v8521, 16
        %v8550 = vrot.slane %v8548, 6
        %v8551 = vshll.u32 %v8521, 16
        %v8553 = vrot.slane %v8551, 7
        %v8554 = vor.u32 %v8550, %v8553
        %v8555 = vrot.slane %v8554, 2
        %v8557 = vshll.u32 %v8522, 16
        %v8559 = vrot.slane %v8557, 7
        %v8560 = vsel %vm8091, %v8555, %v8559
        %v8562 = vshrl.u32 %v8529, 16
        %v8564 = vrot.slane %v8562, 6
        %v8565 = vshll.u32 %v8529, 16
        %v8567 = vrot.slane %v8565, 7
        %v8568 = vor.u32 %v8564, %v8567
        %v8569 = vrot.slane %v8568, 2
        %v8571 = vshll.u32 %v8530, 16
        %v8573 = vrot.slane %v8571, 7
        %v8574 = vsel %vm8091, %v8569, %v8573
        %v8576 = vshrl.u32 %v8537, 16
        %v8578 = vrot.slane %v8576, 6
        %v8579 = vshll.u32 %v8537, 16
        %v8581 = vrot.slane %v8579, 7
        %v8582 = vor.u32 %v8578, %v8581
        %v8583 = vrot.slane %v8582, 2
        %v8585 = vshll.u32 %v8538, 16
        %v8587 = vrot.slane %v8585, 7
        %v8588 = vsel %vm8091, %v8583, %v8587
        %v8590 = vshrl.u32 %v8545, 16
        %v8592 = vrot.slane %v8590, 6
        %v8593 = vshll.u32 %v8545, 16
        %v8595 = vrot.slane %v8593, 7
        %v8596 = vor.u32 %v8592, %v8595
        %v8597 = vrot.slane %v8596, 2
        %v8599 = vshll.u32 %v8546, 16
        %v8601 = vrot.slane %v8599, 7
        %v8602 = vsel %vm8091, %v8597, %v8601
        %v8603 = vcombine.low %v8560, %v8574
        %v8604 = vcombine.low %v8588, %v8602
        %v8606 = vunpack.c.l.s4 1983009808
        %v8607 = vunpack.c.0.s8 %v8606
        %v8608 = vlaneseq
        %v8609 = vshrl.u32 %v8608, 7
        %v8610 = vsub.s32 %v8607, %v8609
        %v8611 = vrot.slane %v8603, %v8610
        %v8613 = vunpack.c.l.s4 1983009808
        %v8614 = vunpack.c.0.s8 %v8613
        %v8615 = vlaneseq
        %v8616 = vshrl.u32 %v8615, 7
        %v8617 = vsub.s32 %v8614, %v8616
        %v8618 = vrot.slane %v8604, %v8617
        %v8619 = vcombine.low %v8611, %v8618
        %8620 = vrot.lane.b32.xlu0 %v8619, 96
        %v8621 = vpop.permute.xlu0 %8620
        %8623 = vst.msk [vmem:[#allocation7 + $0x8] sm:$0xff] %vm8283, %v8621
        %v8624 = vld [vmem:[%s8477] sm:$0x6]
        %v8625 = vld [vmem:[%s8477 + $0x4] sm:$0x6]
        %v8626 = vld [vmem:[%s8477 + $0x8] sm:$0x6]
        %v8627 = vld [vmem:[%s8477 + $0xc] sm:$0x6]
        %v8633 = vunpack.c.l.s4 1983009808
        %v8634 = vunpack.c.0.s8 %v8633
        %v8635 = vlaneseq
        %v8636 = vshrl.u32 %v8635, 7
        %v8637 = vsub.s32 %v8634, %v8636
        %v8638 = vrot.slane %v8624, %v8637
        %v8639 = vcombine.high %v8638, %v8638
        %v8641 = vunpack.c.l.s4 1983009808
        %v8642 = vunpack.c.0.s8 %v8641
        %v8643 = vlaneseq
        %v8644 = vshrl.u32 %v8643, 7
        %v8645 = vsub.s32 %v8642, %v8644
        %v8646 = vrot.slane %v8625, %v8645
        %v8647 = vcombine.high %v8646, %v8646
        %v8649 = vunpack.c.l.s4 1983009808
        %v8650 = vunpack.c.0.s8 %v8649
        %v8651 = vlaneseq
        %v8652 = vshrl.u32 %v8651, 7
        %v8653 = vsub.s32 %v8650, %v8652
        %v8654 = vrot.slane %v8626, %v8653
        %v8655 = vcombine.high %v8654, %v8654
        %v8657 = vunpack.c.l.s4 1983009808
        %v8658 = vunpack.c.0.s8 %v8657
        %v8659 = vlaneseq
        %v8660 = vshrl.u32 %v8659, 7
        %v8661 = vsub.s32 %v8658, %v8660
        %v8662 = vrot.slane %v8627, %v8661
        %v8663 = vcombine.high %v8662, %v8662
        %v8664 = vrot.slane %v8638, 7
        %v8665 = vrot.slane %v8664, 2
        %v8666 = vrot.slane %v8639, 7
        %v8667 = vsel %vm8216, %v8665, %v8666
        %v8668 = vrot.slane %v8646, 7
        %v8669 = vrot.slane %v8668, 2
        %v8670 = vrot.slane %v8647, 7
        %v8671 = vsel %vm8216, %v8669, %v8670
        %v8672 = vrot.slane %v8654, 7
        %v8673 = vrot.slane %v8672, 2
        %v8674 = vrot.slane %v8655, 7
        %v8675 = vsel %vm8216, %v8673, %v8674
        %v8676 = vrot.slane %v8662, 7
        %v8677 = vrot.slane %v8676, 2
        %v8678 = vrot.slane %v8663, 7
        %v8679 = vsel %vm8216, %v8677, %v8678
        %v8680 = vcombine.low %v8667, %v8671
        %v8681 = vcombine.low %v8675, %v8679
        %v8683 = vunpack.c.l.s4 1983009808
        %v8684 = vunpack.c.0.s8 %v8683
        %v8685 = vlaneseq
        %v8686 = vshrl.u32 %v8685, 7
        %v8687 = vsub.s32 %v8684, %v8686
        %v8688 = vrot.slane %v8680, %v8687
        %v8690 = vunpack.c.l.s4 1983009808
        %v8691 = vunpack.c.0.s8 %v8690
        %v8692 = vlaneseq
        %v8693 = vshrl.u32 %v8692, 7
        %v8694 = vsub.s32 %v8691, %v8693
        %v8695 = vrot.slane %v8681, %v8694
        %v8696 = vcombine.low %v8688, %v8695
        %8698 = vst.msk [vmem:[#allocation7 + $0x10] sm:$0xff] %vm8043, %v8696
        %v8699 = vld [vmem:[#allocation7] sm:$0xff]
        %v8700 = vld [vmem:[#allocation7 + $0x8] sm:$0xff]
        %v8701 = vld [vmem:[#allocation7 + $0x10] sm:$0xff]
        %v8702 = vld [vmem:[%s5] sm:$0xf]
        %v8703 = vld [vmem:[%s5 + $0x4] sm:$0xf]
        %v8704 = vld [vmem:[%s5 + $0x8] sm:$0xf]
        %v8705 = vld [vmem:[%s5 + $0xc] sm:$0xf]
        %v8706 = vld [vmem:[%s5 + $0x10] sm:$0xf]
        %v8707 = vld [vmem:[%s5 + $0x14] sm:$0xf]
        %v8708 = vld [vmem:[%s5 + $0x18] sm:$0xf]
        %v8709 = vld [vmem:[%s5 + $0x1c] sm:$0xf]
        %v8710 = vld [vmem:[%s5 + $0x20] sm:$0xf]
        %v8711 = vld [vmem:[%s5 + $0x24] sm:$0xf]
        %v8712 = vld [vmem:[%s5 + $0x28] sm:$0xf]
        %v8713 = vld [vmem:[%s5 + $0x2c] sm:$0xf]
        %v8714 = vld [vmem:[%s5 + $0x30] sm:$0xf]
        %v8715 = vld [vmem:[%s5 + $0x34] sm:$0xf]
        %v8716 = vld [vmem:[%s5 + $0x38] sm:$0xf]
        %v8717 = vld [vmem:[%s5 + $0x3c] sm:$0xf]
        %v8718 = vld [vmem:[%s5 + $0x40] sm:$0xf]
        %v8719 = vld [vmem:[%s5 + $0x44] sm:$0xf]
        %v8720 = vld [vmem:[%s5 + $0x48] sm:$0xf]
        %v8721 = vld [vmem:[%s5 + $0x4c] sm:$0xf]
        %v8722 = vld [vmem:[%s5 + $0x50] sm:$0xf]
        %v8723 = vld [vmem:[%s5 + $0x54] sm:$0xf]
        %v8724 = vld [vmem:[%s5 + $0x58] sm:$0xf]
        %v8725 = vld [vmem:[%s5 + $0x5c] sm:$0xf]
        %v8726 = vld [vmem:[%s5 + $0x60] sm:$0xf]
        %v8727 = vld [vmem:[%s5 + $0x64] sm:$0xf]
        %v8728 = vld [vmem:[%s5 + $0x68] sm:$0xf]
        %v8729 = vld [vmem:[%s5 + $0x6c] sm:$0xf]
        %v8730 = vld [vmem:[%s5 + $0x70] sm:$0xf]
        %v8731 = vld [vmem:[%s5 + $0x74] sm:$0xf]
        %v8732 = vld [vmem:[%s5 + $0x78] sm:$0xf]
        %v8733 = vld [vmem:[%s5 + $0x7c] sm:$0xf]
        %v8734 = vld [vmem:[%s5 + $0x80] sm:$0xf]
        %v8735 = vld [vmem:[%s5 + $0x84] sm:$0xf]
        %v8736 = vld [vmem:[%s5 + $0x88] sm:$0xf]
        %v8737 = vld [vmem:[%s5 + $0x8c] sm:$0xf]
        %v8774 = vunpack.c.l.b16 %v8702
        %v8775 = vunpack.c.l.b16 %v8703
        %v8776 = vunpack.c.l.b16 %v8704
        %v8777 = vunpack.c.l.b16 %v8705
        %v8778 = vunpack.c.l.b16 %v8706
        %v8779 = vunpack.c.l.b16 %v8707
        %v8780 = vunpack.c.l.b16 %v8708
        %v8781 = vunpack.c.l.b16 %v8709
        %v8782 = vunpack.c.l.b16 %v8710
        %v8783 = vunpack.c.l.b16 %v8711
        %v8784 = vunpack.c.l.b16 %v8712
        %v8785 = vunpack.c.l.b16 %v8713
        %v8786 = vunpack.c.l.b16 %v8714
        %v8787 = vunpack.c.l.b16 %v8715
        %v8788 = vunpack.c.l.b16 %v8716
        %v8789 = vunpack.c.l.b16 %v8717
        %v8790 = vunpack.c.l.b16 %v8718
        %v8791 = vunpack.c.l.b16 %v8719
        %v8792 = vunpack.c.l.b16 %v8720
        %v8793 = vunpack.c.l.b16 %v8721
        %v8794 = vunpack.c.l.b16 %v8722
        %v8795 = vunpack.c.l.b16 %v8723
        %v8796 = vunpack.c.l.b16 %v8724
        %v8797 = vunpack.c.l.b16 %v8725
        %v8798 = vunpack.c.l.b16 %v8726
        %v8799 = vunpack.c.l.b16 %v8727
        %v8800 = vunpack.c.l.b16 %v8728
        %v8801 = vunpack.c.l.b16 %v8729
        %v8802 = vunpack.c.l.b16 %v8730
        %v8803 = vunpack.c.l.b16 %v8731
        %v8804 = vunpack.c.l.b16 %v8732
        %v8805 = vunpack.c.l.b16 %v8733
        %v8806 = vunpack.c.l.b16 %v8734
        %v8807 = vunpack.c.l.b16 %v8735
        %v8808 = vunpack.c.l.b16 %v8736
        %v8809 = vunpack.c.l.b16 %v8737
        %v8810 = vpack.c.b16 %v8775, %v8774
        %v8811 = vpack.c.b16 %v8777, %v8776
        %v8812 = vpack.c.b16 %v8779, %v8778
        %v8813 = vpack.c.b16 %v8781, %v8780
        %v8814 = vpack.c.b16 %v8783, %v8782
        %v8815 = vpack.c.b16 %v8785, %v8784
        %v8816 = vpack.c.b16 %v8787, %v8786
        %v8817 = vpack.c.b16 %v8789, %v8788
        %v8818 = vpack.c.b16 %v8791, %v8790
        %v8819 = vpack.c.b16 %v8793, %v8792
        %v8820 = vpack.c.b16 %v8795, %v8794
        %v8821 = vpack.c.b16 %v8797, %v8796
        %v8822 = vpack.c.b16 %v8799, %v8798
        %v8823 = vpack.c.b16 %v8801, %v8800
        %v8824 = vpack.c.b16 %v8803, %v8802
        %v8825 = vpack.c.b16 %v8805, %v8804
        %v8826 = vpack.c.b16 %v8807, %v8806
        %v8827 = vpack.c.b16 %v8809, %v8808
        %v8847 = vsel %vm8043, %v8701, 0
        %8849 = vmatprep.subr.bf16.mxu0 0
        %8850 = vmatpush1.bf16.msra.mxu0 %v8810
        %8851 = vmatprep.subr.bf16.mxu0 0
        %8852 = vmatpush1.bf16.msra.mxu0 %v8811
        %8853 = vmatprep.subr.bf16.mxu0 0
        %8854 = vmatpush1.bf16.msra.mxu0 %v8812
        %8855 = vmatprep.subr.bf16.mxu0 0
        %8856 = vmatpush1.bf16.msra.mxu0 %v8813
        %8857 = vmatprep.subr.bf16.mxu0 0
        %8858 = vmatpush1.bf16.msra.mxu0 %v8814
        %8859 = vmatprep.subr.bf16.mxu0 0
        %8860 = vmatpush1.bf16.msra.mxu0 %v8815
        %8861 = vmatprep.subr.bf16.mxu0 0
        %8862 = vmatpush1.bf16.msra.mxu0 %v8816
        %8863 = vmatprep.subr.bf16.mxu0 0
        %8864 = vmatpush1.bf16.msra.mxu0 %v8817
        %8865 = vmatprep.subr.bf16.mxu0 0
        %8866 = vmatpush1.bf16.msra.mxu0 %v8818
        %8867 = vmatprep.subr.bf16.mxu0 0
        %8868 = vmatpush1.bf16.msra.mxu0 %v8819
        %8869 = vmatprep.subr.bf16.mxu0 0
        %8870 = vmatpush1.bf16.msra.mxu0 %v8820
        %8871 = vmatprep.subr.bf16.mxu0 0
        %8872 = vmatpush1.bf16.msra.mxu0 %v8821
        %8873 = vmatprep.subr.bf16.mxu0 0
        %8874 = vmatpush1.bf16.msra.mxu0 %v8822
        %8875 = vmatprep.subr.bf16.mxu0 0
        %8876 = vmatpush1.bf16.msra.mxu0 %v8823
        %8877 = vmatprep.subr.bf16.mxu0 0
        %8878 = vmatpush1.bf16.msra.mxu0 %v8824
        %8879 = vmatprep.subr.bf16.mxu0 0
        %8880 = vmatpush1.bf16.msra.mxu0 %v8825
        %8881 = vmatprep.mubr.bf16.mxu0 %v8700
        %8882 = vmatmul.mubr.bf16.gmra.mrb[0].mxu0 %v8699
        %v8883 = vpop.f32.mrb[0].mxu0
        %v8884 = vadd.f32 0.0, %v8883
        %v8885 = vpop.f32.mrb[0].mxu0
        %v8886 = vpop.f32.mrb[0].mxu0
        %v8887 = vadd.f32 0.0, %v8886
        %v8888 = vpop.f32.mrb[0].mxu0
        %8889 = vdwg.mxu0
        %8890 = vmatprep.subr.bf16.mxu0 0
        %8891 = vmatpush1.bf16.msra.mxu0 %v8826
        %8892 = vmatprep.subr.bf16.mxu0 0
        %8893 = vmatpush1.bf16.msra.mxu0 %v8827
        %8894 = vmatprep.subr.bf16.mxu0 0
        %8895 = vmatpush1.bf16.msra.mxu0 0
        %8896 = vmatprep.subr.bf16.mxu0 0
        %8897 = vmatpush1.bf16.msra.mxu0 0
        %8898 = vmatprep.subr.bf16.mxu0 0
        %8899 = vmatpush1.bf16.msra.mxu0 0
        %8900 = vmatprep.subr.bf16.mxu0 0
        %8901 = vmatpush1.bf16.msra.mxu0 0
        %8902 = vmatprep.subr.bf16.mxu0 0
        %8903 = vmatpush1.bf16.msra.mxu0 0
        %8904 = vmatprep.subr.bf16.mxu0 0
        %8905 = vmatpush1.bf16.msra.mxu0 0
        %8906 = vmatprep.subr.bf16.mxu0 0
        %8907 = vmatpush1.bf16.msra.mxu0 0
        %8908 = vmatprep.subr.bf16.mxu0 0
        %8909 = vmatpush1.bf16.msra.mxu0 0
        %8910 = vmatprep.subr.bf16.mxu0 0
        %8911 = vmatpush1.bf16.msra.mxu0 0
        %8912 = vmatprep.subr.bf16.mxu0 0
        %8913 = vmatpush1.bf16.msra.mxu0 0
        %8914 = vmatprep.subr.bf16.mxu0 0
        %8915 = vmatpush1.bf16.msra.mxu0 0
        %8916 = vmatprep.subr.bf16.mxu0 0
        %8917 = vmatpush1.bf16.msra.mxu0 0
        %8918 = vmatprep.subr.bf16.mxu0 0
        %8919 = vmatpush1.bf16.msra.mxu0 0
        %8920 = vmatprep.subr.bf16.mxu0 0
        %8921 = vmatpush1.bf16.msra.mxu0 0
        %8922 = vmatprep.mubr.bf16.mxu0 0
        %8923 = vmatmul.mubr.bf16.gmra.mrb[0].mxu0 %v8847
        %v8924 = vpop.f32.mrb[0].mxu0
        %v8925 = vadd.f32 %v8884, %v8924
        %v8926 = vpop.f32.mrb[0].mxu0
        %v8927 = vpop.f32.mrb[0].mxu0
        %v8928 = vadd.f32 %v8887, %v8927
        %v8929 = vpop.f32.mrb[0].mxu0
        %8930 = vdwg.mxu0
        %v8933 = vcombine.high %v8925, %v8925
        %v8935 = vunpack.c.l.s4 1983009808
        %v8936 = vunpack.c.0.s8 %v8935
        %v8937 = vlaneseq
        %v8938 = vshrl.u32 %v8937, 7
        %v8939 = vsub.s32 %v8936, %v8938
        %v8940 = vrot.slane %v8925, %v8939
        %v8942 = vunpack.c.l.s4 1983009808
        %v8943 = vunpack.c.0.s8 %v8942
        %v8944 = vlaneseq
        %v8945 = vshrl.u32 %v8944, 7
        %v8946 = vsub.s32 %v8943, %v8945
        %v8947 = vrot.slane %v8933, %v8946
        %v8948 = vcombine.high %v8940, %v8940
        %v8949 = vcombine.high %v8947, %v8947
        %v8950 = vcombine.high %v8928, %v8928
        %v8952 = vunpack.c.l.s4 1983009808
        %v8953 = vunpack.c.0.s8 %v8952
        %v8954 = vlaneseq
        %v8955 = vshrl.u32 %v8954, 7
        %v8956 = vsub.s32 %v8953, %v8955
        %v8957 = vrot.slane %v8928, %v8956
        %v8959 = vunpack.c.l.s4 1983009808
        %v8960 = vunpack.c.0.s8 %v8959
        %v8961 = vlaneseq
        %v8962 = vshrl.u32 %v8961, 7
        %v8963 = vsub.s32 %v8960, %v8962
        %v8964 = vrot.slane %v8950, %v8963
        %v8965 = vcombine.high %v8957, %v8957
        %v8966 = vcombine.high %v8964, %v8964
        %v8975 = vrot.slane %v8940, 7
        %v8976 = vrot.slane %v8975, 2
        %v8977 = vrot.slane %v8948, 7
        %v8978 = vrot.slane %v8977, 2
        %v8979 = vrot.slane %v8947, 7
        %v8980 = vrot.slane %v8979, 2
        %v8981 = vrot.slane %v8949, 7
        %v8982 = vrot.slane %v8981, 2
        %v8983 = vrot.slane %v8957, 7
        %v8984 = vrot.slane %v8983, 2
        %v8985 = vrot.slane %v8965, 7
        %v8986 = vrot.slane %v8985, 2
        %v8987 = vrot.slane %v8964, 7
        %v8988 = vrot.slane %v8987, 2
        %v8989 = vrot.slane %v8966, 7
        %v8990 = vrot.slane %v8989, 2
        %v8999 = vmax.f32 %v8940, %v8976
        %v9000 = vmax.f32 %v8948, %v8978
        %v9001 = vmax.f32 %v8947, %v8980
        %v9002 = vmax.f32 %v8949, %v8982
        %v9003 = vmax.f32 %v8957, %v8984
        %v9004 = vmax.f32 %v8965, %v8986
        %v9005 = vmax.f32 %v8964, %v8988
        %v9006 = vmax.f32 %v8966, %v8990
        %v9007 = vmax.f32 %v8999, %v9001
        %v9008 = vmax.f32 %v9000, %v9002
        %v9009 = vmax.f32 %v9003, %v9005
        %v9010 = vmax.f32 %v9004, %v9006
        %v9011 = vld [vmem:[%s6] sm:$0x1]
        %v9013 = vlaneseq
        %v9014 = vshrl.u32 %v9013, 7
        %v9015 = vsub.s32 0, %v9014
        %v9016 = vrot.slane %v9011, %v9015
        %v9018 = vunpack.c.l.s4 1983009808
        %v9019 = vunpack.c.0.s8 %v9018
        %v9020 = vlaneseq
        %v9021 = vshrl.u32 %v9020, 7
        %v9022 = vsub.s32 %v9019, %v9021
        %v9023 = vrot.slane %v9016, %v9022
        %v9024 = vrot.slane %v9023, 1
        %v9027 = vadd.f32 %v9007, %v9023
        %v9028 = vadd.f32 %v9008, %v9024
        %v9029 = vadd.f32 %v9009, %v9023
        %v9030 = vadd.f32 %v9010, %v9024
        %v9031 = vmax.f32 %v9027, 0.0
        %v9032 = vmax.f32 %v9028, 0.0
        %v9033 = vmax.f32 %v9029, 0.0
        %v9034 = vmax.f32 %v9030, 0.0
        %v9035 = vpack.c.bf16 %v9031, %v9031
        %v9036 = vpack.c.bf16 %v9032, %v9032
        %v9037 = vpack.c.bf16 %v9033, %v9033
        %v9038 = vpack.c.bf16 %v9034, %v9034
        %vm9039 = vcmask 516096
        %vm9040 = vmand %vm9039, %vm427
        %v9041 = vld [vmem:[#allocation8] sm:$0x1]
        %v9042 = vsel %vm9040, %v9035, %v9041
        %9043 = vst [vmem:[#allocation8] sm:$0x1] %v9042
        %v9046 = vunpack.c.l.s4 1966171168
        %v9047 = vunpack.c.0.s8 %v9046
        %v9048 = vlaneseq
        %v9049 = vshrl.u32 %v9048, 7
        %v9050 = vsub.s32 %v9047, %v9049
        %v9051 = vrot.slane %v9036, %v9050
        %v9053 = vunpack.c.l.s4 1966171168
        %v9054 = vunpack.c.0.s8 %v9053
        %v9055 = vlaneseq
        %v9056 = vshrl.u32 %v9055, 7
        %v9057 = vsub.s32 %v9054, %v9056
        %v9058 = vrot.slane %v9051, %v9057
        %9059 = vrot.lane.b32.xlu0 %v9058, 64
        %v9060 = vpop.permute.xlu0 %9059
        %vm9062 = vcmask 1040896
        %vm9063 = vmand %vm9062, %vm427
        %v9064 = vld [vmem:[#allocation8] sm:$0x1]
        %v9065 = vsel %vm9063, %v9060, %v9064
        %9066 = vst [vmem:[#allocation8] sm:$0x1] %v9065
        %v9067 = vld [vmem:[#allocation8 + $0x1] sm:$0x1]
        %v9068 = vsel %vm9040, %v9037, %v9067
        %9069 = vst [vmem:[#allocation8 + $0x1] sm:$0x1] %v9068
        %v9072 = vunpack.c.l.s4 1966171168
        %v9073 = vunpack.c.0.s8 %v9072
        %v9074 = vlaneseq
        %v9075 = vshrl.u32 %v9074, 7
        %v9076 = vsub.s32 %v9073, %v9075
        %v9077 = vrot.slane %v9038, %v9076
        %v9079 = vunpack.c.l.s4 1966171168
        %v9080 = vunpack.c.0.s8 %v9079
        %v9081 = vlaneseq
        %v9082 = vshrl.u32 %v9081, 7
        %v9083 = vsub.s32 %v9080, %v9082
        %v9084 = vrot.slane %v9077, %v9083
        %9085 = vrot.lane.b32.xlu0 %v9084, 64
        %v9086 = vpop.permute.xlu0 %9085
        %v9088 = vld [vmem:[#allocation8 + $0x1] sm:$0x1]
        %v9089 = vsel %vm9063, %v9086, %v9088
        %9090 = vst [vmem:[#allocation8 + $0x1] sm:$0x1] %v9089
        %v9091 = vld [vmem:[#allocation8] sm:$0x3]
        %v9092 = vld [vmem:[%s7] sm:$0xf]
        %v9093 = vld [vmem:[%s7 + $0x4] sm:$0xf]
        %v9094 = vld [vmem:[%s7 + $0x8] sm:$0xf]
        %v9095 = vld [vmem:[%s7 + $0xc] sm:$0xf]
        %v9096 = vld [vmem:[%s7 + $0x10] sm:$0xf]
        %v9097 = vld [vmem:[%s7 + $0x14] sm:$0xf]
        %v9098 = vld [vmem:[%s7 + $0x18] sm:$0xf]
        %v9099 = vld [vmem:[%s7 + $0x1c] sm:$0xf]
        %v9100 = vld [vmem:[%s7 + $0x20] sm:$0xf]
        %v9101 = vld [vmem:[%s7 + $0x24] sm:$0xf]
        %v9102 = vld [vmem:[%s7 + $0x28] sm:$0xf]
        %v9103 = vld [vmem:[%s7 + $0x2c] sm:$0xf]
        %v9104 = vld [vmem:[%s7 + $0x30] sm:$0xf]
        %v9105 = vld [vmem:[%s7 + $0x34] sm:$0xf]
        %v9106 = vld [vmem:[%s7 + $0x38] sm:$0xf]
        %v9107 = vld [vmem:[%s7 + $0x3c] sm:$0xf]
        %v9108 = vld [vmem:[%s7 + $0x40] sm:$0xf]
        %v9109 = vld [vmem:[%s7 + $0x44] sm:$0xf]
        %v9110 = vld [vmem:[%s7 + $0x48] sm:$0xf]
        %v9111 = vld [vmem:[%s7 + $0x4c] sm:$0xf]
        %v9112 = vld [vmem:[%s7 + $0x50] sm:$0xf]
        %v9113 = vld [vmem:[%s7 + $0x54] sm:$0xf]
        %v9114 = vld [vmem:[%s7 + $0x58] sm:$0xf]
        %v9115 = vld [vmem:[%s7 + $0x5c] sm:$0xf]
        %v9116 = vld [vmem:[%s7 + $0x60] sm:$0xf]
        %v9117 = vld [vmem:[%s7 + $0x64] sm:$0xf]
        %v9118 = vld [vmem:[%s7 + $0x68] sm:$0xf]
        %v9119 = vld [vmem:[%s7 + $0x6c] sm:$0xf]
        %v9120 = vld [vmem:[%s7 + $0x70] sm:$0xf]
        %v9121 = vld [vmem:[%s7 + $0x74] sm:$0xf]
        %v9122 = vld [vmem:[%s7 + $0x78] sm:$0xf]
        %v9123 = vld [vmem:[%s7 + $0x7c] sm:$0xf]
        %v9124 = vld [vmem:[%s8] sm:$0x1]
        %v9127 = vunpack.c.l.s4 1966171168
        %v9128 = vunpack.c.0.s8 %v9127
        %v9129 = vlaneseq
        %v9130 = vshrl.u32 %v9129, 7
        %v9131 = vsub.s32 %v9128, %v9130
        %v9132 = vrot.slane %v9091, %v9131
        %v9133 = vcombine.high %v9132, %v9132
        %v9135 = vunpack.c.l.s4 1966171168
        %v9136 = vunpack.c.0.s8 %v9135
        %v9137 = vlaneseq
        %v9138 = vshrl.u32 %v9137, 7
        %v9139 = vsub.s32 %v9136, %v9138
        %v9140 = vrot.slane %v9132, %v9139
        %v9142 = vunpack.c.l.s4 1966171168
        %v9143 = vunpack.c.0.s8 %v9142
        %v9144 = vlaneseq
        %v9145 = vshrl.u32 %v9144, 7
        %v9146 = vsub.s32 %v9143, %v9145
        %v9147 = vrot.slane %v9133, %v9146
        %v9182 = vunpack.c.l.b16 %v9092
        %v9183 = vunpack.c.l.b16 %v9093
        %v9184 = vunpack.c.l.b16 %v9094
        %v9185 = vunpack.c.l.b16 %v9095
        %v9186 = vunpack.c.l.b16 %v9096
        %v9187 = vunpack.c.l.b16 %v9097
        %v9188 = vunpack.c.l.b16 %v9098
        %v9189 = vunpack.c.l.b16 %v9099
        %v9190 = vunpack.c.l.b16 %v9100
        %v9191 = vunpack.c.l.b16 %v9101
        %v9192 = vunpack.c.l.b16 %v9102
        %v9193 = vunpack.c.l.b16 %v9103
        %v9194 = vunpack.c.l.b16 %v9104
        %v9195 = vunpack.c.l.b16 %v9105
        %v9196 = vunpack.c.l.b16 %v9106
        %v9197 = vunpack.c.l.b16 %v9107
        %v9198 = vunpack.c.l.b16 %v9108
        %v9199 = vunpack.c.l.b16 %v9109
        %v9200 = vunpack.c.l.b16 %v9110
        %v9201 = vunpack.c.l.b16 %v9111
        %v9202 = vunpack.c.l.b16 %v9112
        %v9203 = vunpack.c.l.b16 %v9113
        %v9204 = vunpack.c.l.b16 %v9114
        %v9205 = vunpack.c.l.b16 %v9115
        %v9206 = vunpack.c.l.b16 %v9116
        %v9207 = vunpack.c.l.b16 %v9117
        %v9208 = vunpack.c.l.b16 %v9118
        %v9209 = vunpack.c.l.b16 %v9119
        %v9210 = vunpack.c.l.b16 %v9120
        %v9211 = vunpack.c.l.b16 %v9121
        %v9212 = vunpack.c.l.b16 %v9122
        %v9213 = vunpack.c.l.b16 %v9123
        %v9214 = vpack.c.b16 %v9183, %v9182
        %v9215 = vpack.c.b16 %v9185, %v9184
        %v9216 = vpack.c.b16 %v9187, %v9186
        %v9217 = vpack.c.b16 %v9189, %v9188
        %v9218 = vpack.c.b16 %v9191, %v9190
        %v9219 = vpack.c.b16 %v9193, %v9192
        %v9220 = vpack.c.b16 %v9195, %v9194
        %v9221 = vpack.c.b16 %v9197, %v9196
        %v9222 = vpack.c.b16 %v9199, %v9198
        %v9223 = vpack.c.b16 %v9201, %v9200
        %v9224 = vpack.c.b16 %v9203, %v9202
        %v9225 = vpack.c.b16 %v9205, %v9204
        %v9226 = vpack.c.b16 %v9207, %v9206
        %v9227 = vpack.c.b16 %v9209, %v9208
        %v9228 = vpack.c.b16 %v9211, %v9210
        %v9229 = vpack.c.b16 %v9213, %v9212
        %9246 = vmatprep.subr.bf16.mxu0 0
        %9247 = vmatpush1.bf16.msra.mxu0 %v9214
        %9248 = vmatprep.subr.bf16.mxu0 0
        %9249 = vmatpush1.bf16.msra.mxu0 %v9215
        %9250 = vmatprep.subr.bf16.mxu0 0
        %9251 = vmatpush1.bf16.msra.mxu0 %v9216
        %9252 = vmatprep.subr.bf16.mxu0 0
        %9253 = vmatpush1.bf16.msra.mxu0 %v9217
        %9254 = vmatprep.subr.bf16.mxu0 0
        %9255 = vmatpush1.bf16.msra.mxu0 %v9218
        %9256 = vmatprep.subr.bf16.mxu0 0
        %9257 = vmatpush1.bf16.msra.mxu0 %v9219
        %9258 = vmatprep.subr.bf16.mxu0 0
        %9259 = vmatpush1.bf16.msra.mxu0 %v9220
        %9260 = vmatprep.subr.bf16.mxu0 0
        %9261 = vmatpush1.bf16.msra.mxu0 %v9221
        %9262 = vmatprep.subr.bf16.mxu0 0
        %9263 = vmatpush1.bf16.msra.mxu0 %v9222
        %9264 = vmatprep.subr.bf16.mxu0 0
        %9265 = vmatpush1.bf16.msra.mxu0 %v9223
        %9266 = vmatprep.subr.bf16.mxu0 0
        %9267 = vmatpush1.bf16.msra.mxu0 %v9224
        %9268 = vmatprep.subr.bf16.mxu0 0
        %9269 = vmatpush1.bf16.msra.mxu0 %v9225
        %9270 = vmatprep.subr.bf16.mxu0 0
        %9271 = vmatpush1.bf16.msra.mxu0 %v9226
        %9272 = vmatprep.subr.bf16.mxu0 0
        %9273 = vmatpush1.bf16.msra.mxu0 %v9227
        %9274 = vmatprep.subr.bf16.mxu0 0
        %9275 = vmatpush1.bf16.msra.mxu0 %v9228
        %9276 = vmatprep.subr.bf16.mxu0 0
        %9277 = vmatpush1.bf16.msra.mxu0 %v9229
        %9278 = vmatprep.mubr.bf16.mxu0 %v9147
        %9279 = vmatmul.mubr.bf16.gmra.mrb[0].mxu0 %v9140
        %v9280 = vpop.f32.mrb[0].mxu0
        %v9281 = vadd.f32 %v9124, %v9280
        %v9282 = vpop.f32.mrb[0].mxu0
        %v9283 = vpop.f32.mrb[0].mxu0
        %v9284 = vpop.f32.mrb[0].mxu0
        %9285 = vdwg.mxu0
        %v9286 = vmax.f32 %v9281, 0.0
        %v9287 = vpack.c.bf16 %v9286, %v9286
        %v9288 = vld [vmem:[%s9] sm:$0xf]
        %v9289 = vld [vmem:[%s9 + $0x4] sm:$0xf]
        %v9290 = vld [vmem:[%s9 + $0x8] sm:$0xf]
        %v9291 = vld [vmem:[%s9 + $0xc] sm:$0xf]
        %v9292 = vld [vmem:[%s9 + $0x10] sm:$0xf]
        %v9293 = vld [vmem:[%s9 + $0x14] sm:$0xf]
        %v9294 = vld [vmem:[%s9 + $0x18] sm:$0xf]
        %v9295 = vld [vmem:[%s9 + $0x1c] sm:$0xf]
        %v9296 = vld [vmem:[%s9 + $0x20] sm:$0xf]
        %v9297 = vld [vmem:[%s9 + $0x24] sm:$0xf]
        %v9298 = vld [vmem:[%s9 + $0x28] sm:$0xf]
        %v9299 = vld [vmem:[%s9 + $0x2c] sm:$0xf]
        %v9300 = vld [vmem:[%s9 + $0x30] sm:$0xf]
        %v9301 = vld [vmem:[%s9 + $0x34] sm:$0xf]
        %v9302 = vld [vmem:[%s9 + $0x38] sm:$0xf]
        %v9303 = vld [vmem:[%s9 + $0x3c] sm:$0xf]
        %v9304 = vld [vmem:[%s10] sm:$0x1]
        %v9321 = vunpack.c.l.b16 %v9288
        %v9322 = vunpack.c.l.b16 %v9289
        %v9323 = vunpack.c.l.b16 %v9290
        %v9324 = vunpack.c.l.b16 %v9291
        %v9325 = vunpack.c.l.b16 %v9292
        %v9326 = vunpack.c.l.b16 %v9293
        %v9327 = vunpack.c.l.b16 %v9294
        %v9328 = vunpack.c.l.b16 %v9295
        %v9329 = vunpack.c.l.b16 %v9296
        %v9330 = vunpack.c.l.b16 %v9297
        %v9331 = vunpack.c.l.b16 %v9298
        %v9332 = vunpack.c.l.b16 %v9299
        %v9333 = vunpack.c.l.b16 %v9300
        %v9334 = vunpack.c.l.b16 %v9301
        %v9335 = vunpack.c.l.b16 %v9302
        %v9336 = vunpack.c.l.b16 %v9303
        %v9337 = vpack.c.b16 %v9322, %v9321
        %v9338 = vpack.c.b16 %v9324, %v9323
        %v9339 = vpack.c.b16 %v9326, %v9325
        %v9340 = vpack.c.b16 %v9328, %v9327
        %v9341 = vpack.c.b16 %v9330, %v9329
        %v9342 = vpack.c.b16 %v9332, %v9331
        %v9343 = vpack.c.b16 %v9334, %v9333
        %v9344 = vpack.c.b16 %v9336, %v9335
        %9353 = vmatprep.subr.bf16.mxu0 0
        %9354 = vmatpush1.bf16.msra.mxu0 %v9337
        %9355 = vmatprep.subr.bf16.mxu0 0
        %9356 = vmatpush1.bf16.msra.mxu0 %v9338
        %9357 = vmatprep.subr.bf16.mxu0 0
        %9358 = vmatpush1.bf16.msra.mxu0 %v9339
        %9359 = vmatprep.subr.bf16.mxu0 0
        %9360 = vmatpush1.bf16.msra.mxu0 %v9340
        %9361 = vmatprep.subr.bf16.mxu0 0
        %9362 = vmatpush1.bf16.msra.mxu0 %v9341
        %9363 = vmatprep.subr.bf16.mxu0 0
        %9364 = vmatpush1.bf16.msra.mxu0 %v9342
        %9365 = vmatprep.subr.bf16.mxu0 0
        %9366 = vmatpush1.bf16.msra.mxu0 %v9343
        %9367 = vmatprep.subr.bf16.mxu0 0
        %9368 = vmatpush1.bf16.msra.mxu0 %v9344
        %9369 = vmatprep.subr.bf16.mxu0 0
        %9370 = vmatpush1.bf16.msra.mxu0 0
        %9371 = vmatprep.subr.bf16.mxu0 0
        %9372 = vmatpush1.bf16.msra.mxu0 0
        %9373 = vmatprep.subr.bf16.mxu0 0
        %9374 = vmatpush1.bf16.msra.mxu0 0
        %9375 = vmatprep.subr.bf16.mxu0 0
        %9376 = vmatpush1.bf16.msra.mxu0 0
        %9377 = vmatprep.subr.bf16.mxu0 0
        %9378 = vmatpush1.bf16.msra.mxu0 0
        %9379 = vmatprep.subr.bf16.mxu0 0
        %9380 = vmatpush1.bf16.msra.mxu0 0
        %9381 = vmatprep.subr.bf16.mxu0 0
        %9382 = vmatpush1.bf16.msra.mxu0 0
        %9383 = vmatprep.subr.bf16.mxu0 0
        %9384 = vmatpush1.bf16.msra.mxu0 0
        %9385 = vmatprep.mubr.bf16.mxu0 0
        %9386 = vmatmul.mubr.bf16.gmra.mrb[0].mxu0 %v9287
        %v9387 = vpop.f32.mrb[0].mxu0
        %v9388 = vadd.f32 %v9304, %v9387
        %v9389 = vpop.f32.mrb[0].mxu0
        %v9390 = vpop.f32.mrb[0].mxu0
        %v9391 = vpop.f32.mrb[0].mxu0
        %9392 = vdwg.mxu0
        %vm9393 = vcmask 73728
        %9394 = vst.msk [vmem:[%s378] sm:$0x1] %vm9393, %v9388
        %s9395 = sand.u32 %s269, 1
        %s9396 = scalar_lea.sflag [#allocation10], %s9395
        %s9397 = sand.u32 %s269, 1
        %s9398 = scalar_lea.vmem [#allocation9], %s9397
        // Predicated region
        $region65: #{audio_cnn_forward_fn.1} parent=63 // pred_check
          %p9399 = pneg %p279
        $region66: #{audio_cnn_forward_fn.1} parent=63 // pred_check_branch
          %9401 = sbr.rel (%p9399) target = $region68
        $region67: #{audio_cnn_forward_fn.1} parent=63 // pred_region
          %s9403 = ssub.s32 16, 16
          %9404 = vsyncadd %s9396, %s9403
          %s9405 = smul.addr %s25, 16
          %s9406 = scalar_lea.hbm %s11, %s9405
          %s9408 = sshll.u32 %s9398, 4
          %s9409 = int_to_ptr.vmem [resolvable:$true] %s9408
          %9411 = dma.vmem_to_hbm [thread:$0]  %s9409, 16, %s9406, %s9396
        $region68: #{audio_cnn_forward_fn.1} parent=63 // pred_fallthru
          _
      $region64: #{audio_cnn_forward_fn.1} parent=5 // pred_fallthru
        _
      %p9412 = scmp.le.s32.totalorder 2, %s20
      // Predicated region
      $region69: #{audio_cnn_forward_fn.1} parent=5 // pred_check
        %p9413 = pneg %p9412
      $region70: #{audio_cnn_forward_fn.1} parent=5 // pred_check_branch
        %9415 = sbr.rel (%p9413) target = $region72
      $region71: #{audio_cnn_forward_fn.1} parent=5 // pred_region
        %s9416 = ssub.s32 %s20, 2
        // Predicated region
        $region73: #{audio_cnn_forward_fn.1} parent=71 // pred_check
          %p9417 = pneg %p285
        $region74: #{audio_cnn_forward_fn.1} parent=71 // pred_check_branch
          %9419 = sbr.rel (%p9417) target = $region76
        $region75: #{audio_cnn_forward_fn.1} parent=71 // pred_region
          %s9420 = sand.u32 %s270, 1
          %s9421 = scalar_lea.sflag [#allocation10], %s9420
          %s9422 = sand.u32 %s270, 1
          %s9423 = scalar_lea.vmem [#allocation9], %s9422
          %9424 = dma.done %s9421, 16
        $region76: #{audio_cnn_forward_fn.1} parent=71 // pred_fallthru
          _
      $region72: #{audio_cnn_forward_fn.1} parent=5 // pred_fallthru
        _
    $region6: #{audio_cnn_forward_fn.1} parent=1 // loop_footer
      %s24 = sadd.s32 1, %s20
    $region7: #{audio_cnn_forward_fn.1} parent=1 // loop_footer_branch
      %19 = sbr.rel target = $region3
    $region8: #{audio_cnn_forward_fn.1} parent=1 // loop_exit
      _
    %9425 = vsyncpa [#allocation10], 1
    %s9426 = scalar_lea.sflag [#allocation10], 1
    %9427 = vsyncpa %s9426, 1

</llo_original>
